<compile_context>
chip_gen: v7x
topology: tpu7x:2x2x1
jax: 0.10.0
libtpu: 0.0.40
codegen_flags: <defaults>
</compile_context>

<pallas_src>
import math

import jax
import jax.numpy as jnp
from jax.experimental import pallas as pl
from jax.experimental.pallas import tpu as pltpu

LOG2 = math.log(2.0)

H = 32        # hidden_size of the module
H2 = 2 * H    # inner MLP width (64)


def _ssp(x):
    # ShiftedSoftplus: softplus(x) - log(2), numerically stable, f32.
    return jnp.maximum(x, 0.0) + jnp.log1p(jnp.exp(-jnp.abs(x))) - LOG2


def _bdot(a, b):
    # bf16 MXU matmul with f32 accumulation.
    return jnp.dot(a.astype(jnp.bfloat16), b.astype(jnp.bfloat16),
                   preferred_element_type=jnp.float32)


# ----------------------------- fused Pallas kernel -----------------------------

def _megblock_kernel(*refs):
    it = iter(refs)

    def take(n):
        return tuple(next(it) for _ in range(n))

    # -- data (true width H) --
    nodes_ref, state_ref, eche_ref, evdw_ref = take(4)
    # -- index vectors (column (R,1) and row (1,R) orientations) --
    che_cc_ref, che_cr_ref, che_nc_ref, che_gc_ref, che_gr_ref = take(5)
    vdw_cc_ref, vdw_cr_ref, vdw_nc_ref, vdw_gc_ref, vdw_gr_ref = take(5)
    nd_c_ref, nd_r_ref = take(2)
    # -- parameters (bf16 weights, f32 biases) --
    pre_e_che = take(4)
    pre_e_vdw = take(4)
    pre_v = take(4)
    pre_u = take(4)
    phi_e_che = take(6)
    phi_e_vdw = take(6)
    phi_v_che = take(6)
    phi_v_vdw = take(6)
    phi_u_che = take(6)
    phi_u_vdw = take(6)
    # -- outputs --
    o_eche_ref, o_evdw_ref, o_v_ref, o_u_ref = take(4)

    N = nodes_ref.shape[0]
    B = state_ref.shape[0]

    def mlp2(x, p):
        w1, b1, w2, b2 = p
        h = _ssp(_bdot(x, w1[...]) + b1[...])
        return _ssp(_bdot(h, w2[...]) + b2[...])

    def mlp3(parts, p):
        # concat(parts, -1) @ W1 == sum_j parts[j] @ W1[j*H:(j+1)*H]
        # (true K=32 per partial dot, no padding of the contraction dim).
        w1, b1, w2, b2, w3, b3 = p
        acc = _bdot(parts[0], w1[0:H, :])
        for j in range(1, len(parts)):
            acc = acc + _bdot(parts[j], w1[j * H:(j + 1) * H, :])
        h = _ssp(acc + b1[...])
        h = _ssp(_bdot(h, w2[...]) + b2[...])
        return _ssp(_bdot(h, w3[...]) + b3[...])

    def onehot(col_ref, ncols):
        # col_ref: (R, 1) int32 -> (R, ncols) bf16; row r has a 1 at idx[r].
        idx = col_ref[...]
        iota = jax.lax.broadcasted_iota(jnp.int32, (idx.shape[0], ncols), 1)
        return (iota == idx).astype(jnp.float32).astype(jnp.bfloat16)

    def onehot_t(row_ref, nrows):
        # row_ref: (1, R) int32 -> (nrows, R) bf16 transposed one-hot.  Built
        # directly in this orientation so the segment-sum is a plain NN matmul
        # (avoids a trans-A dot_general / explicit XLU transpose).
        idx = row_ref[...]
        iota = jax.lax.broadcasted_iota(jnp.int32, (nrows, idx.shape[1]), 0)
        return (iota == idx).astype(jnp.float32).astype(jnp.bfloat16)

    # ---------------- shared preprocess MLPs (VMEM resident) ----------------
    nodes = nodes_ref[...]          # (N, H)   also v_skip
    state = state_ref[...]          # (B, H)   also u_skip
    e_che_in = eche_ref[...]        # (E1, H)  also e_che_skip
    e_vdw_in = evdw_ref[...]        # (E2, H)  also e_vdw_skip

    v = mlp2(nodes, pre_v)          # (N, H) f32
    u = mlp2(state, pre_u)          # (B, H) f32
    e_che = mlp2(e_che_in, pre_e_che)
    e_vdw = mlp2(e_vdw_in, pre_e_vdw)

    # node -> graph one-hots shared by both branches
    G_nd = onehot(nd_c_ref, B)      # (N, B) : gather u per node
    GT_nd = onehot_t(nd_r_ref, B)   # (B, N) : segment-sum nodes -> graphs
    u_v = _bdot(G_nd, u)            # == repeat_interleave(u, num_atoms)

    def branch(e, cc_ref, cr_ref, nc_ref, gc_ref, gr_ref, p_e, p_v, p_u):
        G_c = onehot(cc_ref, N)     # (E, N)  gather center nodes
        GT_c = onehot_t(cr_ref, N)  # (N, E)  index_add_ onto nodes
        G_n = onehot(nc_ref, N)     # (E, N)  gather neighbour nodes
        G_g = onehot(gc_ref, B)     # (E, B)  gather graph state per edge
        GT_g = onehot_t(gr_ref, B)  # (B, E)  index_add_ onto graphs

        nodes_center = _bdot(G_c, v)                # v[index[:, 0]]
        nodes_nbr = _bdot(G_n, v)                   # v[index[:, 1]]
        u_e = _bdot(G_g, u)                         # repeat_interleave(u, num_pairs)
        e_p = mlp3([nodes_center, e, nodes_nbr, u_e], p_e)     # (E, H)

        e_v = _bdot(GT_c, e_p)                      # index_add_(0, index[:,0], e_p)
        v_p = mlp3([e_v, v, u_v], p_v)              # (N, H)

        e_u = _bdot(GT_g, e_p)                      # index_add_(0, edge_index, e_p)
        v_u = _bdot(GT_nd, v_p)                     # index_add_(0, node_index, v_p)
        u_p = mlp3([e_u, v_u, u], p_u)              # (B, H)
        return e_p, v_p, u_p

    che_e_p, che_v_p, che_u_p = branch(
        e_che, che_cc_ref, che_cr_ref, che_nc_ref, che_gc_ref, che_gr_ref,
        phi_e_che, phi_v_che, phi_u_che)
    vdw_e_p, vdw_v_p, vdw_u_p = branch(
        e_vdw, vdw_cc_ref, vdw_cr_ref, vdw_nc_ref, vdw_gc_ref, vdw_gr_ref,
        phi_e_vdw, phi_v_vdw, phi_u_vdw)

    # fused residual adds (inner_skip=False: skips are the raw inputs)
    o_eche_ref[...] = e_che_in + che_e_p
    o_evdw_ref[...] = e_vdw_in + vdw_e_p
    o_v_ref[...] = nodes + che_v_p + vdw_v_p
    o_u_ref[...] = state + che_u_p + vdw_u_p


# --------------------------- parameter creation / packing ---------------------------

def _linear(key, d_in, d_out):
    kw, kb = jax.random.split(key)
    lim = 1.0 / math.sqrt(d_in)
    w = jax.random.uniform(kw, (d_in, d_out), jnp.float32, -lim, lim)
    b = jax.random.uniform(kb, (1, d_out), jnp.float32, -lim, lim)
    return w, b


def init_mlp2(key, d_in, h):
    k1, k2 = jax.random.split(key)
    w1, b1 = _linear(k1, d_in, 2 * h)
    w2, b2 = _linear(k2, 2 * h, h)
    return {"w1": w1, "b1": b1, "w2": w2, "b2": b2}


def init_mlp3(key, d_in, h):
    k1, k2, k3 = jax.random.split(key, 3)
    w1, b1 = _linear(k1, d_in, 2 * h)
    w2, b2 = _linear(k2, 2 * h, 2 * h)
    w3, b3 = _linear(k3, 2 * h, h)
    return {"w1": w1, "b1": b1, "w2": w2, "b2": b2, "w3": w3, "b3": b3}


def init_megblock(key, edge_in, node_in, state_in, hidden):
    ks = jax.random.split(key, 10)
    return {
        "pre_e_che": init_mlp2(ks[0], edge_in, hidden),
        "pre_e_vdw": init_mlp2(ks[1], edge_in, hidden),
        "pre_v": init_mlp2(ks[2], node_in, hidden),
        "pre_u": init_mlp2(ks[3], state_in, hidden),
        "phi_e_che": init_mlp3(ks[4], 4 * hidden, hidden),
        "phi_e_vdw": init_mlp3(ks[5], 4 * hidden, hidden),
        "phi_v_che": init_mlp3(ks[6], 3 * hidden, hidden),
        "phi_v_vdw": init_mlp3(ks[7], 3 * hidden, hidden),
        "phi_u_che": init_mlp3(ks[8], 3 * hidden, hidden),
        "phi_u_vdw": init_mlp3(ks[9], 3 * hidden, hidden),
    }


def pack_mlp2(p):
    # weights -> bf16 (MXU path), biases stay f32; shapes are the true shapes.
    return (p["w1"].astype(jnp.bfloat16), p["b1"],
            p["w2"].astype(jnp.bfloat16), p["b2"])


def pack_mlp3(p):
    return (p["w1"].astype(jnp.bfloat16), p["b1"],
            p["w2"].astype(jnp.bfloat16), p["b2"],
            p["w3"].astype(jnp.bfloat16), p["b3"])


def pack_params(params):
    return {
        "pre_e_che": pack_mlp2(params["pre_e_che"]),
        "pre_e_vdw": pack_mlp2(params["pre_e_vdw"]),
        "pre_v": pack_mlp2(params["pre_v"]),
        "pre_u": pack_mlp2(params["pre_u"]),
        "phi_e_che": pack_mlp3(params["phi_e_che"]),
        "phi_e_vdw": pack_mlp3(params["phi_e_vdw"]),
        "phi_v_che": pack_mlp3(params["phi_v_che"]),
        "phi_v_vdw": pack_mlp3(params["phi_v_vdw"]),
        "phi_u_che": pack_mlp3(params["phi_u_che"]),
        "phi_u_vdw": pack_mlp3(params["phi_u_vdw"]),
    }


# ------------------------------ forward pass (wrapper) ------------------------------

def _fs(shape):
    zeros = (0,) * len(shape)
    return pl.BlockSpec(shape, lambda i: zeros)


def _vmem_limit_bytes():
    # Generation-aware VMEM budget: ~80% of physical capacity, capped.
    cap = 128 * 1024 * 1024
    try:
        cap = int(getattr(pltpu.get_tpu_info(), "vmem_capacity_bytes", cap))
    except Exception:
        pass
    return max(32 * 1024 * 1024, min(int(cap * 0.8), 110 * 1024 * 1024))


def _cost_estimate(n, b, e1, e2):
    def mm(m, k, p):
        return 2 * m * k * p

    flops = 0
    for rows in (n, b, e1, e2):                                   # preprocess MLP2s
        flops += mm(rows, H, H2) + mm(rows, H2, H)
    flops += mm(n, b, H)                                          # u_v gather
    for e in (e1, e2):
        flops += 2 * mm(e, n, H) + mm(e, b, H)                    # edge gathers
        flops += mm(e, 4 * H, H2) + mm(e, H2, H2) + mm(e, H2, H)  # phi_e
        flops += mm(n, e, H)                                      # e_v segment sum
        flops += mm(n, 3 * H, H2) + mm(n, H2, H2) + mm(n, H2, H)  # phi_v
        flops += mm(b, e, H) + mm(b, n, H)                        # e_u / v_u
        flops += mm(b, 3 * H, H2) + mm(b, H2, H2) + mm(b, H2, H)  # phi_u
    ssp_elems = 3 * H * (n + b + e1 + e2) + 5 * H * (e1 + e2 + 2 * n + 2 * b)
    feat_bytes = 2 * (n + b + e1 + e2) * H * 4
    weight_bytes = 2 * (4 * (H * H2 + H2 * H)
                        + 2 * (4 * H * H2 + H2 * H2 + H2 * H)
                        + 4 * (3 * H * H2 + H2 * H2 + H2 * H))
    index_bytes = 4 * (5 * (e1 + e2) + 2 * n)
    return pl.CostEstimate(flops=flops, transcendentals=2 * ssp_elems,
                           bytes_accessed=feat_bytes + weight_bytes + index_bytes)


def megblock_forward(packed, nodes, num_atoms, node_index, state,
                     che_max_num_nbrs, che_num_pairs, che_edge_index,
                     che_index, che_edges,
                     vdw_max_num_nbrs, vdw_num_pairs, vdw_edge_index,
                     vdw_index, vdw_edges):
    # inner_skip=False, pool_method='sum': max_num_nbrs / num_pairs / num_atoms
    # only feed the 'mean' pooling path, so they are unused here.
    del che_max_num_nbrs, vdw_max_num_nbrs, num_atoms, che_num_pairs, vdw_num_pairs

    N, fn = nodes.shape
    B, fu = state.shape
    E1, fe1 = che_edges.shape
    E2, fe2 = vdw_edges.shape
    # residual adds in the reference require input feature sizes == hidden_size
    assert fn == H and fu == H and fe1 == H and fe2 == H

    def col(i):
        return i.astype(jnp.int32)[:, None]

    def row(i):
        return i.astype(jnp.int32)[None, :]

    data = (nodes, state, che_edges, vdw_edges)
    idx = (col(che_index[:, 0]), row(che_index[:, 0]), col(che_index[:, 1]),
           col(che_edge_index), row(che_edge_index),
           col(vdw_index[:, 0]), row(vdw_index[:, 0]), col(vdw_index[:, 1]),
           col(vdw_edge_index), row(vdw_edge_index),
           col(node_index), row(node_index))
    params_flat = (packed["pre_e_che"] + packed["pre_e_vdw"]
                   + packed["pre_v"] + packed["pre_u"]
                   + packed["phi_e_che"] + packed["phi_e_vdw"]
                   + packed["phi_v_che"] + packed["phi_v_vdw"]
                   + packed["phi_u_che"] + packed["phi_u_vdw"])
    inputs = data + idx + params_flat

    out_shapes = (jax.ShapeDtypeStruct((E1, H), jnp.float32),
                  jax.ShapeDtypeStruct((E2, H), jnp.float32),
                  jax.ShapeDtypeStruct((N, H), jnp.float32),
                  jax.ShapeDtypeStruct((B, H), jnp.float32))

    return pl.pallas_call(
        _megblock_kernel,
        out_shape=out_shapes,
        grid=(1,),
        in_specs=[_fs(x.shape) for x in inputs],
        out_specs=tuple(_fs(s.shape) for s in out_shapes),
        compiler_params=pltpu.CompilerParams(
            dimension_semantics=("arbitrary",),
            vmem_limit_bytes=_vmem_limit_bytes()),
        cost_estimate=_cost_estimate(N, B, E1, E2),
    )(*inputs)


# ------------------------- pure-JAX references (correctness) -------------------------

def megblock_forward_ref(params, nodes, num_atoms, node_index, state,
                         che_max_num_nbrs, che_num_pairs, che_edge_index,
                         che_index, che_edges,
                         vdw_max_num_nbrs, vdw_num_pairs, vdw_edge_index,
                         vdw_index, vdw_edges, cast=None):
    # cast=None      -> full-f32 reference (torch module numerics)
    # cast=bf16 cast -> matched-precision reference (same dot-input rounding
    #                   as the Pallas kernel's bf16 MXU path)
    del che_max_num_nbrs, vdw_max_num_nbrs, num_atoms, che_num_pairs, vdw_num_pairs
    if cast is None:
        cast = lambda x: x
    N = nodes.shape[0]
    B = state.shape[0]

    def dot(a, b):
        return jnp.dot(cast(a), cast(b), preferred_element_type=jnp.float32)

    def mlp2(x, p):
        h = _ssp(dot(x, p["w1"]) + p["b1"])
        return _ssp(dot(h, p["w2"]) + p["b2"])

    def mlp3(x, p):
        h = _ssp(dot(x, p["w1"]) + p["b1"])
        h = _ssp(dot(h, p["w2"]) + p["b2"])
        return _ssp(dot(h, p["w3"]) + p["b3"])

    def seg_sum(x, idx, nseg):
        return jax.ops.segment_sum(cast(x).astype(jnp.float32), idx,
                                   num_segments=nseg)

    e_che = mlp2(che_edges, params["pre_e_che"])
    e_vdw = mlp2(vdw_edges, params["pre_e_vdw"])
    v = mlp2(nodes, params["pre_v"])
    u = mlp2(state, params["pre_u"])

    def branch(e, index, edge_index, p_e, p_v, p_u):
        nc = jnp.take(v, index[:, 0], axis=0)
        nn = jnp.take(v, index[:, 1], axis=0)
        u_e = jnp.take(u, edge_index, axis=0)
        e_p = mlp3(jnp.concatenate([nc, e, nn, u_e], -1), p_e)
        e_v = seg_sum(e_p, index[:, 0], N)
        u_v = jnp.take(u, node_index, axis=0)
        v_p = mlp3(jnp.concatenate([e_v, v, u_v], -1), p_v)
        e_u = seg_sum(e_p, edge_index, B)
        v_u = seg_sum(v_p, node_index, B)
        u_p = mlp3(jnp.concatenate([e_u, v_u, u], -1), p_u)
        return e_p, v_p, u_p

    ce, cv, cu = branch(e_che, che_index, che_edge_index,
                        params["phi_e_che"], params["phi_v_che"], params["phi_u_che"])
    we, wv, wu = branch(e_vdw, vdw_index, vdw_edge_index,
                        params["phi_e_vdw"], params["phi_v_vdw"], params["phi_u_vdw"])
    return (che_edges + ce, vdw_edges + we, nodes + cv + wv, state + cu + wu)


# --------------------------------------- main ---------------------------------------

if __name__ == "__main__":
    F_E = F_N = F_S = H          # edge/node/state input sizes (= H so residuals match)
    B = 2                        # number of graphs
    num_atoms_l = [4, 4]
    che_pairs_l = [6, 6]
    vdw_pairs_l = [5, 5]
    N = sum(num_atoms_l)
    E_CHE = sum(che_pairs_l)
    E_VDW = sum(vdw_pairs_l)

    key = jax.random.PRNGKey(0)
    kp, kn, ks, kec, kev = jax.random.split(key, 5)

    params = init_megblock(kp, F_E, F_N, F_S, H)
    packed = pack_params(params)          # one-time bf16 weight packing (init time)

    nodes = jax.random.normal(kn, (N, F_N), jnp.float32)
    state = jax.random.normal(ks, (B, F_S), jnp.float32)
    che_edges = jax.random.normal(kec, (E_CHE, F_E), jnp.float32)
    vdw_edges = jax.random.normal(kev, (E_VDW, F_E), jnp.float32)

    num_atoms = jnp.array(num_atoms_l, jnp.int32)
    che_num_pairs = jnp.array(che_pairs_l, jnp.int32)
    vdw_num_pairs = jnp.array(vdw_pairs_l, jnp.int32)
    node_index = jnp.repeat(jnp.arange(B, dtype=jnp.int32), num_atoms)
    che_edge_index = jnp.repeat(jnp.arange(B, dtype=jnp.int32), che_num_pairs)
    vdw_edge_index = jnp.repeat(jnp.arange(B, dtype=jnp.int32), vdw_num_pairs)

    def build_index(pairs_per_graph, atoms_per_graph):
        idx, off = [], 0
        for na, ne in zip(atoms_per_graph, pairs_per_graph):
            for k in range(ne):
                idx.append([off + (k % na), off + ((k + 1) % na)])
            off += na
        return jnp.array(idx, jnp.int32)

    che_index = build_index(che_pairs_l, num_atoms_l)
    vdw_index = build_index(vdw_pairs_l, num_atoms_l)

    che_max_num_nbrs = 3
    vdw_max_num_nbrs = 3

    args = (nodes, num_atoms, node_index, state,
            che_max_num_nbrs, che_num_pairs, che_edge_index, che_index, che_edges,
            vdw_max_num_nbrs, vdw_num_pairs, vdw_edge_index, vdw_index, vdw_edges)

    fwd = jax.jit(megblock_forward)
    out = jax.block_until_ready(fwd(packed, *args))

    # (1) matched-precision reference: same bf16 rounding at every dot input
    ref_bf16 = megblock_forward_ref(params, *args,
                                    cast=lambda x: x.astype(jnp.bfloat16))
    # (2) full-f32 reference: the torch module's numerics (bf16 MXU path only
    #     introduces ~1e-2-scale deviations for O(1) activations)
    ref_f32 = megblock_forward_ref(params, *args)

    for o, rb, rf in zip(out, ref_bf16, ref_f32):
        assert o.shape == rb.shape
        assert jnp.allclose(o, rb, rtol=5e-3, atol=5e-3), "mismatch vs bf16 reference"
        assert jnp.allclose(o, rf, rtol=5e-2, atol=5e-2), "mismatch vs f32 reference"

    print("KERNEL_OK")
</pallas_src>

<mosaic_0001>
module attributes {stable_mosaic.version = 11 : i64} {
  func.func @_megblock_kernel(%arg0: i32, %arg1: memref<8x32xf32, #tpu.memory_space<vmem>>, %arg2: memref<2x32xf32, #tpu.memory_space<vmem>>, %arg3: memref<12x32xf32, #tpu.memory_space<vmem>>, %arg4: memref<10x32xf32, #tpu.memory_space<vmem>>, %arg5: memref<12x1xi32, #tpu.memory_space<vmem>>, %arg6: memref<1x12xi32, #tpu.memory_space<vmem>>, %arg7: memref<12x1xi32, #tpu.memory_space<vmem>>, %arg8: memref<12x1xi32, #tpu.memory_space<vmem>>, %arg9: memref<1x12xi32, #tpu.memory_space<vmem>>, %arg10: memref<10x1xi32, #tpu.memory_space<vmem>>, %arg11: memref<1x10xi32, #tpu.memory_space<vmem>>, %arg12: memref<10x1xi32, #tpu.memory_space<vmem>>, %arg13: memref<10x1xi32, #tpu.memory_space<vmem>>, %arg14: memref<1x10xi32, #tpu.memory_space<vmem>>, %arg15: memref<8x1xi32, #tpu.memory_space<vmem>>, %arg16: memref<1x8xi32, #tpu.memory_space<vmem>>, %arg17: memref<32x64xbf16, #tpu.memory_space<vmem>>, %arg18: memref<1x64xf32, #tpu.memory_space<vmem>>, %arg19: memref<64x32xbf16, #tpu.memory_space<vmem>>, %arg20: memref<1x32xf32, #tpu.memory_space<vmem>>, %arg21: memref<32x64xbf16, #tpu.memory_space<vmem>>, %arg22: memref<1x64xf32, #tpu.memory_space<vmem>>, %arg23: memref<64x32xbf16, #tpu.memory_space<vmem>>, %arg24: memref<1x32xf32, #tpu.memory_space<vmem>>, %arg25: memref<32x64xbf16, #tpu.memory_space<vmem>>, %arg26: memref<1x64xf32, #tpu.memory_space<vmem>>, %arg27: memref<64x32xbf16, #tpu.memory_space<vmem>>, %arg28: memref<1x32xf32, #tpu.memory_space<vmem>>, %arg29: memref<32x64xbf16, #tpu.memory_space<vmem>>, %arg30: memref<1x64xf32, #tpu.memory_space<vmem>>, %arg31: memref<64x32xbf16, #tpu.memory_space<vmem>>, %arg32: memref<1x32xf32, #tpu.memory_space<vmem>>, %arg33: memref<128x64xbf16, #tpu.memory_space<vmem>>, %arg34: memref<1x64xf32, #tpu.memory_space<vmem>>, %arg35: memref<64x64xbf16, #tpu.memory_space<vmem>>, %arg36: memref<1x64xf32, #tpu.memory_space<vmem>>, %arg37: memref<64x32xbf16, #tpu.memory_space<vmem>>, %arg38: memref<1x32xf32, #tpu.memory_space<vmem>>, %arg39: memref<128x64xbf16, #tpu.memory_space<vmem>>, %arg40: memref<1x64xf32, #tpu.memory_space<vmem>>, %arg41: memref<64x64xbf16, #tpu.memory_space<vmem>>, %arg42: memref<1x64xf32, #tpu.memory_space<vmem>>, %arg43: memref<64x32xbf16, #tpu.memory_space<vmem>>, %arg44: memref<1x32xf32, #tpu.memory_space<vmem>>, %arg45: memref<96x64xbf16, #tpu.memory_space<vmem>>, %arg46: memref<1x64xf32, #tpu.memory_space<vmem>>, %arg47: memref<64x64xbf16, #tpu.memory_space<vmem>>, %arg48: memref<1x64xf32, #tpu.memory_space<vmem>>, %arg49: memref<64x32xbf16, #tpu.memory_space<vmem>>, %arg50: memref<1x32xf32, #tpu.memory_space<vmem>>, %arg51: memref<96x64xbf16, #tpu.memory_space<vmem>>, %arg52: memref<1x64xf32, #tpu.memory_space<vmem>>, %arg53: memref<64x64xbf16, #tpu.memory_space<vmem>>, %arg54: memref<1x64xf32, #tpu.memory_space<vmem>>, %arg55: memref<64x32xbf16, #tpu.memory_space<vmem>>, %arg56: memref<1x32xf32, #tpu.memory_space<vmem>>, %arg57: memref<96x64xbf16, #tpu.memory_space<vmem>>, %arg58: memref<1x64xf32, #tpu.memory_space<vmem>>, %arg59: memref<64x64xbf16, #tpu.memory_space<vmem>>, %arg60: memref<1x64xf32, #tpu.memory_space<vmem>>, %arg61: memref<64x32xbf16, #tpu.memory_space<vmem>>, %arg62: memref<1x32xf32, #tpu.memory_space<vmem>>, %arg63: memref<96x64xbf16, #tpu.memory_space<vmem>>, %arg64: memref<1x64xf32, #tpu.memory_space<vmem>>, %arg65: memref<64x64xbf16, #tpu.memory_space<vmem>>, %arg66: memref<1x64xf32, #tpu.memory_space<vmem>>, %arg67: memref<64x32xbf16, #tpu.memory_space<vmem>>, %arg68: memref<1x32xf32, #tpu.memory_space<vmem>>, %arg69: memref<12x32xf32, #tpu.memory_space<vmem>>, %arg70: memref<10x32xf32, #tpu.memory_space<vmem>>, %arg71: memref<8x32xf32, #tpu.memory_space<vmem>>, %arg72: memref<2x32xf32, #tpu.memory_space<vmem>>) attributes {dimension_semantics = [#tpu.dimension_semantics<arbitrary>], iteration_bounds = array<i64: 1>, scalar_prefetch = 0 : i64, scratch_operands = 0 : i64, tpu.core_type = #tpu.core_type<tc>, window_params = [{pipeline_mode = #tpu.pipeline_mode<synchronous>, transform_indices = @transform_0, window_bounds = array<i64: 8, 32>}, {pipeline_mode = #tpu.pipeline_mode<synchronous>, transform_indices = @transform_1, window_bounds = array<i64: 2, 32>}, {pipeline_mode = #tpu.pipeline_mode<synchronous>, transform_indices = @transform_2, window_bounds = array<i64: 12, 32>}, {pipeline_mode = #tpu.pipeline_mode<synchronous>, transform_indices = @transform_3, window_bounds = array<i64: 10, 32>}, {pipeline_mode = #tpu.pipeline_mode<synchronous>, transform_indices = @transform_4, window_bounds = array<i64: 12, 1>}, {pipeline_mode = #tpu.pipeline_mode<synchronous>, transform_indices = @transform_5, window_bounds = array<i64: 1, 12>}, {pipeline_mode = #tpu.pipeline_mode<synchronous>, transform_indices = @transform_6, window_bounds = array<i64: 12, 1>}, {pipeline_mode = #tpu.pipeline_mode<synchronous>, transform_indices = @transform_7, window_bounds = array<i64: 12, 1>}, {pipeline_mode = #tpu.pipeline_mode<synchronous>, transform_indices = @transform_8, window_bounds = array<i64: 1, 12>}, {pipeline_mode = #tpu.pipeline_mode<synchronous>, transform_indices = @transform_9, window_bounds = array<i64: 10, 1>}, {pipeline_mode = #tpu.pipeline_mode<synchronous>, transform_indices = @transform_10, window_bounds = array<i64: 1, 10>}, {pipeline_mode = #tpu.pipeline_mode<synchronous>, transform_indices = @transform_11, window_bounds = array<i64: 10, 1>}, {pipeline_mode = #tpu.pipeline_mode<synchronous>, transform_indices = @transform_12, window_bounds = array<i64: 10, 1>}, {pipeline_mode = #tpu.pipeline_mode<synchronous>, transform_indices = @transform_13, window_bounds = array<i64: 1, 10>}, {pipeline_mode = #tpu.pipeline_mode<synchronous>, transform_indices = @transform_14, window_bounds = array<i64: 8, 1>}, {pipeline_mode = #tpu.pipeline_mode<synchronous>, transform_indices = @transform_15, window_bounds = array<i64: 1, 8>}, {pipeline_mode = #tpu.pipeline_mode<synchronous>, transform_indices = @transform_16, window_bounds = array<i64: 32, 64>}, {pipeline_mode = #tpu.pipeline_mode<synchronous>, transform_indices = @transform_17, window_bounds = array<i64: 1, 64>}, {pipeline_mode = #tpu.pipeline_mode<synchronous>, transform_indices = @transform_18, window_bounds = array<i64: 64, 32>}, {pipeline_mode = #tpu.pipeline_mode<synchronous>, transform_indices = @transform_19, window_bounds = array<i64: 1, 32>}, {pipeline_mode = #tpu.pipeline_mode<synchronous>, transform_indices = @transform_20, window_bounds = array<i64: 32, 64>}, {pipeline_mode = #tpu.pipeline_mode<synchronous>, transform_indices = @transform_21, window_bounds = array<i64: 1, 64>}, {pipeline_mode = #tpu.pipeline_mode<synchronous>, transform_indices = @transform_22, window_bounds = array<i64: 64, 32>}, {pipeline_mode = #tpu.pipeline_mode<synchronous>, transform_indices = @transform_23, window_bounds = array<i64: 1, 32>}, {pipeline_mode = #tpu.pipeline_mode<synchronous>, transform_indices = @transform_24, window_bounds = array<i64: 32, 64>}, {pipeline_mode = #tpu.pipeline_mode<synchronous>, transform_indices = @transform_25, window_bounds = array<i64: 1, 64>}, {pipeline_mode = #tpu.pipeline_mode<synchronous>, transform_indices = @transform_26, window_bounds = array<i64: 64, 32>}, {pipeline_mode = #tpu.pipeline_mode<synchronous>, transform_indices = @transform_27, window_bounds = array<i64: 1, 32>}, {pipeline_mode = #tpu.pipeline_mode<synchronous>, transform_indices = @transform_28, window_bounds = array<i64: 32, 64>}, {pipeline_mode = #tpu.pipeline_mode<synchronous>, transform_indices = @transform_29, window_bounds = array<i64: 1, 64>}, {pipeline_mode = #tpu.pipeline_mode<synchronous>, transform_indices = @transform_30, window_bounds = array<i64: 64, 32>}, {pipeline_mode = #tpu.pipeline_mode<synchronous>, transform_indices = @transform_31, window_bounds = array<i64: 1, 32>}, {pipeline_mode = #tpu.pipeline_mode<synchronous>, transform_indices = @transform_32, window_bounds = array<i64: 128, 64>}, {pipeline_mode = #tpu.pipeline_mode<synchronous>, transform_indices = @transform_33, window_bounds = array<i64: 1, 64>}, {pipeline_mode = #tpu.pipeline_mode<synchronous>, transform_indices = @transform_34, window_bounds = array<i64: 64, 64>}, {pipeline_mode = #tpu.pipeline_mode<synchronous>, transform_indices = @transform_35, window_bounds = array<i64: 1, 64>}, {pipeline_mode = #tpu.pipeline_mode<synchronous>, transform_indices = @transform_36, window_bounds = array<i64: 64, 32>}, {pipeline_mode = #tpu.pipeline_mode<synchronous>, transform_indices = @transform_37, window_bounds = array<i64: 1, 32>}, {pipeline_mode = #tpu.pipeline_mode<synchronous>, transform_indices = @transform_38, window_bounds = array<i64: 128, 64>}, {pipeline_mode = #tpu.pipeline_mode<synchronous>, transform_indices = @transform_39, window_bounds = array<i64: 1, 64>}, {pipeline_mode = #tpu.pipeline_mode<synchronous>, transform_indices = @transform_40, window_bounds = array<i64: 64, 64>}, {pipeline_mode = #tpu.pipeline_mode<synchronous>, transform_indices = @transform_41, window_bounds = array<i64: 1, 64>}, {pipeline_mode = #tpu.pipeline_mode<synchronous>, transform_indices = @transform_42, window_bounds = array<i64: 64, 32>}, {pipeline_mode = #tpu.pipeline_mode<synchronous>, transform_indices = @transform_43, window_bounds = array<i64: 1, 32>}, {pipeline_mode = #tpu.pipeline_mode<synchronous>, transform_indices = @transform_44, window_bounds = array<i64: 96, 64>}, {pipeline_mode = #tpu.pipeline_mode<synchronous>, transform_indices = @transform_45, window_bounds = array<i64: 1, 64>}, {pipeline_mode = #tpu.pipeline_mode<synchronous>, transform_indices = @transform_46, window_bounds = array<i64: 64, 64>}, {pipeline_mode = #tpu.pipeline_mode<synchronous>, transform_indices = @transform_47, window_bounds = array<i64: 1, 64>}, {pipeline_mode = #tpu.pipeline_mode<synchronous>, transform_indices = @transform_48, window_bounds = array<i64: 64, 32>}, {pipeline_mode = #tpu.pipeline_mode<synchronous>, transform_indices = @transform_49, window_bounds = array<i64: 1, 32>}, {pipeline_mode = #tpu.pipeline_mode<synchronous>, transform_indices = @transform_50, window_bounds = array<i64: 96, 64>}, {pipeline_mode = #tpu.pipeline_mode<synchronous>, transform_indices = @transform_51, window_bounds = array<i64: 1, 64>}, {pipeline_mode = #tpu.pipeline_mode<synchronous>, transform_indices = @transform_52, window_bounds = array<i64: 64, 64>}, {pipeline_mode = #tpu.pipeline_mode<synchronous>, transform_indices = @transform_53, window_bounds = array<i64: 1, 64>}, {pipeline_mode = #tpu.pipeline_mode<synchronous>, transform_indices = @transform_54, window_bounds = array<i64: 64, 32>}, {pipeline_mode = #tpu.pipeline_mode<synchronous>, transform_indices = @transform_55, window_bounds = array<i64: 1, 32>}, {pipeline_mode = #tpu.pipeline_mode<synchronous>, transform_indices = @transform_56, window_bounds = array<i64: 96, 64>}, {pipeline_mode = #tpu.pipeline_mode<synchronous>, transform_indices = @transform_57, window_bounds = array<i64: 1, 64>}, {pipeline_mode = #tpu.pipeline_mode<synchronous>, transform_indices = @transform_58, window_bounds = array<i64: 64, 64>}, {pipeline_mode = #tpu.pipeline_mode<synchronous>, transform_indices = @transform_59, window_bounds = array<i64: 1, 64>}, {pipeline_mode = #tpu.pipeline_mode<synchronous>, transform_indices = @transform_60, window_bounds = array<i64: 64, 32>}, {pipeline_mode = #tpu.pipeline_mode<synchronous>, transform_indices = @transform_61, window_bounds = array<i64: 1, 32>}, {pipeline_mode = #tpu.pipeline_mode<synchronous>, transform_indices = @transform_62, window_bounds = array<i64: 96, 64>}, {pipeline_mode = #tpu.pipeline_mode<synchronous>, transform_indices = @transform_63, window_bounds = array<i64: 1, 64>}, {pipeline_mode = #tpu.pipeline_mode<synchronous>, transform_indices = @transform_64, window_bounds = array<i64: 64, 64>}, {pipeline_mode = #tpu.pipeline_mode<synchronous>, transform_indices = @transform_65, window_bounds = array<i64: 1, 64>}, {pipeline_mode = #tpu.pipeline_mode<synchronous>, transform_indices = @transform_66, window_bounds = array<i64: 64, 32>}, {pipeline_mode = #tpu.pipeline_mode<synchronous>, transform_indices = @transform_67, window_bounds = array<i64: 1, 32>}, {pipeline_mode = #tpu.pipeline_mode<synchronous>, transform_indices = @transform_68, window_bounds = array<i64: 12, 32>}, {pipeline_mode = #tpu.pipeline_mode<synchronous>, transform_indices = @transform_69, window_bounds = array<i64: 10, 32>}, {pipeline_mode = #tpu.pipeline_mode<synchronous>, transform_indices = @transform_70, window_bounds = array<i64: 8, 32>}, {pipeline_mode = #tpu.pipeline_mode<synchronous>, transform_indices = @transform_71, window_bounds = array<i64: 2, 32>}]} {
    %c0 = arith.constant 0 : index
    %c0_0 = arith.constant 0 : index
    %0 = vector.load %arg1[%c0, %c0_0] : memref<8x32xf32, #tpu.memory_space<vmem>>, vector<8x32xf32>
    %c0_1 = arith.constant 0 : index
    %c0_2 = arith.constant 0 : index
    %1 = vector.load %arg2[%c0_1, %c0_2] : memref<2x32xf32, #tpu.memory_space<vmem>>, vector<2x32xf32>
    %c0_3 = arith.constant 0 : index
    %c0_4 = arith.constant 0 : index
    %2 = vector.load %arg3[%c0_3, %c0_4] : memref<12x32xf32, #tpu.memory_space<vmem>>, vector<12x32xf32>
    %c0_5 = arith.constant 0 : index
    %c0_6 = arith.constant 0 : index
    %3 = vector.load %arg4[%c0_5, %c0_6] : memref<10x32xf32, #tpu.memory_space<vmem>>, vector<10x32xf32>
    %c0_7 = arith.constant 0 : index
    %c0_8 = arith.constant 0 : index
    %4 = vector.load %arg25[%c0_7, %c0_8] : memref<32x64xbf16, #tpu.memory_space<vmem>>, vector<32x64xbf16>
    %5 = arith.truncf %0 : vector<8x32xf32> to vector<8x32xbf16>
    %cst = arith.constant dense<0.000000e+00> : vector<8x64xf32>
    %6 = tpu.matmul %5, %4, %cst {dimension_numbers = #tpu.dot_dimension_numbers<[1], [0], [0], [1], [0, 0, 1, 1], [], []>} : vector<8x32xbf16>, vector<32x64xbf16>, vector<8x64xf32> -> vector<8x64xf32>
    %c0_9 = arith.constant 0 : index
    %c0_10 = arith.constant 0 : index
    %7 = vector.load %arg26[%c0_9, %c0_10] : memref<1x64xf32, #tpu.memory_space<vmem>>, vector<1x64xf32>
    %8 = vector.broadcast %7 : vector<1x64xf32> to vector<8x64xf32>
    %9 = arith.addf %6, %8 : vector<8x64xf32>
    %cst_11 = arith.constant 0.000000e+00 : f32
    %10 = vector.broadcast %cst_11 : f32 to vector<8x64xf32>
    %11 = arith.maximumf %9, %10 : vector<8x64xf32>
    %12 = math.absf %9 : vector<8x64xf32>
    %cst_12 = arith.constant 0.000000e+00 : f32
    %13 = vector.broadcast %cst_12 : f32 to vector<8x64xf32>
    %14 = arith.subf %13, %12 : vector<8x64xf32>
    %15 = math.exp %14 : vector<8x64xf32>
    %16 = math.log1p %15 : vector<8x64xf32>
    %17 = arith.addf %11, %16 : vector<8x64xf32>
    %cst_13 = arith.constant 0.693147182 : f32
    %18 = vector.broadcast %cst_13 : f32 to vector<8x64xf32>
    %19 = arith.subf %17, %18 : vector<8x64xf32>
    %c0_14 = arith.constant 0 : index
    %c0_15 = arith.constant 0 : index
    %20 = vector.load %arg27[%c0_14, %c0_15] : memref<64x32xbf16, #tpu.memory_space<vmem>>, vector<64x32xbf16>
    %21 = arith.truncf %19 : vector<8x64xf32> to vector<8x64xbf16>
    %cst_16 = arith.constant dense<0.000000e+00> : vector<8x32xf32>
    %22 = tpu.matmul %21, %20, %cst_16 {dimension_numbers = #tpu.dot_dimension_numbers<[1], [0], [0], [1], [0, 0, 1, 1], [], []>} : vector<8x64xbf16>, vector<64x32xbf16>, vector<8x32xf32> -> vector<8x32xf32>
    %c0_17 = arith.constant 0 : index
    %c0_18 = arith.constant 0 : index
    %23 = vector.load %arg28[%c0_17, %c0_18] : memref<1x32xf32, #tpu.memory_space<vmem>>, vector<1x32xf32>
    %24 = vector.broadcast %23 : vector<1x32xf32> to vector<8x32xf32>
    %25 = arith.addf %22, %24 : vector<8x32xf32>
    %cst_19 = arith.constant 0.000000e+00 : f32
    %26 = vector.broadcast %cst_19 : f32 to vector<8x32xf32>
    %27 = arith.maximumf %25, %26 : vector<8x32xf32>
    %28 = math.absf %25 : vector<8x32xf32>
    %cst_20 = arith.constant 0.000000e+00 : f32
    %29 = vector.broadcast %cst_20 : f32 to vector<8x32xf32>
    %30 = arith.subf %29, %28 : vector<8x32xf32>
    %31 = math.exp %30 : vector<8x32xf32>
    %32 = math.log1p %31 : vector<8x32xf32>
    %33 = arith.addf %27, %32 : vector<8x32xf32>
    %cst_21 = arith.constant 0.693147182 : f32
    %34 = vector.broadcast %cst_21 : f32 to vector<8x32xf32>
    %35 = arith.subf %33, %34 : vector<8x32xf32>
    %c0_22 = arith.constant 0 : index
    %c0_23 = arith.constant 0 : index
    %36 = vector.load %arg29[%c0_22, %c0_23] : memref<32x64xbf16, #tpu.memory_space<vmem>>, vector<32x64xbf16>
    %37 = arith.truncf %1 : vector<2x32xf32> to vector<2x32xbf16>
    %cst_24 = arith.constant dense<0.000000e+00> : vector<2x64xf32>
    %38 = tpu.matmul %37, %36, %cst_24 {dimension_numbers = #tpu.dot_dimension_numbers<[1], [0], [0], [1], [0, 0, 1, 1], [], []>} : vector<2x32xbf16>, vector<32x64xbf16>, vector<2x64xf32> -> vector<2x64xf32>
    %c0_25 = arith.constant 0 : index
    %c0_26 = arith.constant 0 : index
    %39 = vector.load %arg30[%c0_25, %c0_26] : memref<1x64xf32, #tpu.memory_space<vmem>>, vector<1x64xf32>
    %40 = vector.broadcast %39 : vector<1x64xf32> to vector<2x64xf32>
    %41 = arith.addf %38, %40 : vector<2x64xf32>
    %cst_27 = arith.constant 0.000000e+00 : f32
    %42 = vector.broadcast %cst_27 : f32 to vector<2x64xf32>
    %43 = arith.maximumf %41, %42 : vector<2x64xf32>
    %44 = math.absf %41 : vector<2x64xf32>
    %cst_28 = arith.constant 0.000000e+00 : f32
    %45 = vector.broadcast %cst_28 : f32 to vector<2x64xf32>
    %46 = arith.subf %45, %44 : vector<2x64xf32>
    %47 = math.exp %46 : vector<2x64xf32>
    %48 = math.log1p %47 : vector<2x64xf32>
    %49 = arith.addf %43, %48 : vector<2x64xf32>
    %cst_29 = arith.constant 0.693147182 : f32
    %50 = vector.broadcast %cst_29 : f32 to vector<2x64xf32>
    %51 = arith.subf %49, %50 : vector<2x64xf32>
    %c0_30 = arith.constant 0 : index
    %c0_31 = arith.constant 0 : index
    %52 = vector.load %arg31[%c0_30, %c0_31] : memref<64x32xbf16, #tpu.memory_space<vmem>>, vector<64x32xbf16>
    %53 = arith.truncf %51 : vector<2x64xf32> to vector<2x64xbf16>
    %cst_32 = arith.constant dense<0.000000e+00> : vector<2x32xf32>
    %54 = tpu.matmul %53, %52, %cst_32 {dimension_numbers = #tpu.dot_dimension_numbers<[1], [0], [0], [1], [0, 0, 1, 1], [], []>} : vector<2x64xbf16>, vector<64x32xbf16>, vector<2x32xf32> -> vector<2x32xf32>
    %c0_33 = arith.constant 0 : index
    %c0_34 = arith.constant 0 : index
    %55 = vector.load %arg32[%c0_33, %c0_34] : memref<1x32xf32, #tpu.memory_space<vmem>>, vector<1x32xf32>
    %56 = vector.broadcast %55 : vector<1x32xf32> to vector<2x32xf32>
    %57 = arith.addf %54, %56 : vector<2x32xf32>
    %cst_35 = arith.constant 0.000000e+00 : f32
    %58 = vector.broadcast %cst_35 : f32 to vector<2x32xf32>
    %59 = arith.maximumf %57, %58 : vector<2x32xf32>
    %60 = math.absf %57 : vector<2x32xf32>
    %cst_36 = arith.constant 0.000000e+00 : f32
    %61 = vector.broadcast %cst_36 : f32 to vector<2x32xf32>
    %62 = arith.subf %61, %60 : vector<2x32xf32>
    %63 = math.exp %62 : vector<2x32xf32>
    %64 = math.log1p %63 : vector<2x32xf32>
    %65 = arith.addf %59, %64 : vector<2x32xf32>
    %cst_37 = arith.constant 0.693147182 : f32
    %66 = vector.broadcast %cst_37 : f32 to vector<2x32xf32>
    %67 = arith.subf %65, %66 : vector<2x32xf32>
    %c0_38 = arith.constant 0 : index
    %c0_39 = arith.constant 0 : index
    %68 = vector.load %arg17[%c0_38, %c0_39] : memref<32x64xbf16, #tpu.memory_space<vmem>>, vector<32x64xbf16>
    %69 = arith.truncf %2 : vector<12x32xf32> to vector<12x32xbf16>
    %cst_40 = arith.constant dense<0.000000e+00> : vector<12x64xf32>
    %70 = tpu.matmul %69, %68, %cst_40 {dimension_numbers = #tpu.dot_dimension_numbers<[1], [0], [0], [1], [0, 0, 1, 1], [], []>} : vector<12x32xbf16>, vector<32x64xbf16>, vector<12x64xf32> -> vector<12x64xf32>
    %c0_41 = arith.constant 0 : index
    %c0_42 = arith.constant 0 : index
    %71 = vector.load %arg18[%c0_41, %c0_42] : memref<1x64xf32, #tpu.memory_space<vmem>>, vector<1x64xf32>
    %72 = vector.broadcast %71 : vector<1x64xf32> to vector<12x64xf32>
    %73 = arith.addf %70, %72 : vector<12x64xf32>
    %cst_43 = arith.constant 0.000000e+00 : f32
    %74 = vector.broadcast %cst_43 : f32 to vector<12x64xf32>
    %75 = arith.maximumf %73, %74 : vector<12x64xf32>
    %76 = math.absf %73 : vector<12x64xf32>
    %cst_44 = arith.constant 0.000000e+00 : f32
    %77 = vector.broadcast %cst_44 : f32 to vector<12x64xf32>
    %78 = arith.subf %77, %76 : vector<12x64xf32>
    %79 = math.exp %78 : vector<12x64xf32>
    %80 = math.log1p %79 : vector<12x64xf32>
    %81 = arith.addf %75, %80 : vector<12x64xf32>
    %cst_45 = arith.constant 0.693147182 : f32
    %82 = vector.broadcast %cst_45 : f32 to vector<12x64xf32>
    %83 = arith.subf %81, %82 : vector<12x64xf32>
    %c0_46 = arith.constant 0 : index
    %c0_47 = arith.constant 0 : index
    %84 = vector.load %arg19[%c0_46, %c0_47] : memref<64x32xbf16, #tpu.memory_space<vmem>>, vector<64x32xbf16>
    %85 = arith.truncf %83 : vector<12x64xf32> to vector<12x64xbf16>
    %cst_48 = arith.constant dense<0.000000e+00> : vector<12x32xf32>
    %86 = tpu.matmul %85, %84, %cst_48 {dimension_numbers = #tpu.dot_dimension_numbers<[1], [0], [0], [1], [0, 0, 1, 1], [], []>} : vector<12x64xbf16>, vector<64x32xbf16>, vector<12x32xf32> -> vector<12x32xf32>
    %c0_49 = arith.constant 0 : index
    %c0_50 = arith.constant 0 : index
    %87 = vector.load %arg20[%c0_49, %c0_50] : memref<1x32xf32, #tpu.memory_space<vmem>>, vector<1x32xf32>
    %88 = vector.broadcast %87 : vector<1x32xf32> to vector<12x32xf32>
    %89 = arith.addf %86, %88 : vector<12x32xf32>
    %cst_51 = arith.constant 0.000000e+00 : f32
    %90 = vector.broadcast %cst_51 : f32 to vector<12x32xf32>
    %91 = arith.maximumf %89, %90 : vector<12x32xf32>
    %92 = math.absf %89 : vector<12x32xf32>
    %cst_52 = arith.constant 0.000000e+00 : f32
    %93 = vector.broadcast %cst_52 : f32 to vector<12x32xf32>
    %94 = arith.subf %93, %92 : vector<12x32xf32>
    %95 = math.exp %94 : vector<12x32xf32>
    %96 = math.log1p %95 : vector<12x32xf32>
    %97 = arith.addf %91, %96 : vector<12x32xf32>
    %cst_53 = arith.constant 0.693147182 : f32
    %98 = vector.broadcast %cst_53 : f32 to vector<12x32xf32>
    %99 = arith.subf %97, %98 : vector<12x32xf32>
    %c0_54 = arith.constant 0 : index
    %c0_55 = arith.constant 0 : index
    %100 = vector.load %arg21[%c0_54, %c0_55] : memref<32x64xbf16, #tpu.memory_space<vmem>>, vector<32x64xbf16>
    %101 = arith.truncf %3 : vector<10x32xf32> to vector<10x32xbf16>
    %cst_56 = arith.constant dense<0.000000e+00> : vector<10x64xf32>
    %102 = tpu.matmul %101, %100, %cst_56 {dimension_numbers = #tpu.dot_dimension_numbers<[1], [0], [0], [1], [0, 0, 1, 1], [], []>} : vector<10x32xbf16>, vector<32x64xbf16>, vector<10x64xf32> -> vector<10x64xf32>
    %c0_57 = arith.constant 0 : index
    %c0_58 = arith.constant 0 : index
    %103 = vector.load %arg22[%c0_57, %c0_58] : memref<1x64xf32, #tpu.memory_space<vmem>>, vector<1x64xf32>
    %104 = vector.broadcast %103 : vector<1x64xf32> to vector<10x64xf32>
    %105 = arith.addf %102, %104 : vector<10x64xf32>
    %cst_59 = arith.constant 0.000000e+00 : f32
    %106 = vector.broadcast %cst_59 : f32 to vector<10x64xf32>
    %107 = arith.maximumf %105, %106 : vector<10x64xf32>
    %108 = math.absf %105 : vector<10x64xf32>
    %cst_60 = arith.constant 0.000000e+00 : f32
    %109 = vector.broadcast %cst_60 : f32 to vector<10x64xf32>
    %110 = arith.subf %109, %108 : vector<10x64xf32>
    %111 = math.exp %110 : vector<10x64xf32>
    %112 = math.log1p %111 : vector<10x64xf32>
    %113 = arith.addf %107, %112 : vector<10x64xf32>
    %cst_61 = arith.constant 0.693147182 : f32
    %114 = vector.broadcast %cst_61 : f32 to vector<10x64xf32>
    %115 = arith.subf %113, %114 : vector<10x64xf32>
    %c0_62 = arith.constant 0 : index
    %c0_63 = arith.constant 0 : index
    %116 = vector.load %arg23[%c0_62, %c0_63] : memref<64x32xbf16, #tpu.memory_space<vmem>>, vector<64x32xbf16>
    %117 = arith.truncf %115 : vector<10x64xf32> to vector<10x64xbf16>
    %cst_64 = arith.constant dense<0.000000e+00> : vector<10x32xf32>
    %118 = tpu.matmul %117, %116, %cst_64 {dimension_numbers = #tpu.dot_dimension_numbers<[1], [0], [0], [1], [0, 0, 1, 1], [], []>} : vector<10x64xbf16>, vector<64x32xbf16>, vector<10x32xf32> -> vector<10x32xf32>
    %c0_65 = arith.constant 0 : index
    %c0_66 = arith.constant 0 : index
    %119 = vector.load %arg24[%c0_65, %c0_66] : memref<1x32xf32, #tpu.memory_space<vmem>>, vector<1x32xf32>
    %120 = vector.broadcast %119 : vector<1x32xf32> to vector<10x32xf32>
    %121 = arith.addf %118, %120 : vector<10x32xf32>
    %cst_67 = arith.constant 0.000000e+00 : f32
    %122 = vector.broadcast %cst_67 : f32 to vector<10x32xf32>
    %123 = arith.maximumf %121, %122 : vector<10x32xf32>
    %124 = math.absf %121 : vector<10x32xf32>
    %cst_68 = arith.constant 0.000000e+00 : f32
    %125 = vector.broadcast %cst_68 : f32 to vector<10x32xf32>
    %126 = arith.subf %125, %124 : vector<10x32xf32>
    %127 = math.exp %126 : vector<10x32xf32>
    %128 = math.log1p %127 : vector<10x32xf32>
    %129 = arith.addf %123, %128 : vector<10x32xf32>
    %cst_69 = arith.constant 0.693147182 : f32
    %130 = vector.broadcast %cst_69 : f32 to vector<10x32xf32>
    %131 = arith.subf %129, %130 : vector<10x32xf32>
    %c0_70 = arith.constant 0 : index
    %c0_71 = arith.constant 0 : index
    %132 = vector.load %arg15[%c0_70, %c0_71] : memref<8x1xi32, #tpu.memory_space<vmem>>, vector<8x1xi32>
    %133 = tpu.iota {dimensions = array<i32: 1>} : vector<8x2xi32>
    %134 = vector.broadcast %132 : vector<8x1xi32> to vector<8x2xi32>
    %135 = arith.cmpi eq, %133, %134 : vector<8x2xi32>
    %136 = arith.extui %135 : vector<8x2xi1> to vector<8x2xi32>
    %137 = arith.sitofp %136 : vector<8x2xi32> to vector<8x2xf32>
    %138 = arith.truncf %137 : vector<8x2xf32> to vector<8x2xbf16>
    %c0_72 = arith.constant 0 : index
    %c0_73 = arith.constant 0 : index
    %139 = vector.load %arg16[%c0_72, %c0_73] : memref<1x8xi32, #tpu.memory_space<vmem>>, vector<1x8xi32>
    %140 = tpu.iota {dimensions = array<i32: 0>} : vector<2x8xi32>
    %141 = vector.broadcast %139 : vector<1x8xi32> to vector<2x8xi32>
    %142 = arith.cmpi eq, %140, %141 : vector<2x8xi32>
    %143 = arith.extui %142 : vector<2x8xi1> to vector<2x8xi32>
    %144 = arith.sitofp %143 : vector<2x8xi32> to vector<2x8xf32>
    %145 = arith.truncf %144 : vector<2x8xf32> to vector<2x8xbf16>
    %146 = arith.truncf %67 : vector<2x32xf32> to vector<2x32xbf16>
    %cst_74 = arith.constant dense<0.000000e+00> : vector<8x32xf32>
    %147 = tpu.matmul %138, %146, %cst_74 {dimension_numbers = #tpu.dot_dimension_numbers<[1], [0], [0], [1], [0, 0, 1, 1], [], []>} : vector<8x2xbf16>, vector<2x32xbf16>, vector<8x32xf32> -> vector<8x32xf32>
    %c0_75 = arith.constant 0 : index
    %c0_76 = arith.constant 0 : index
    %148 = vector.load %arg5[%c0_75, %c0_76] : memref<12x1xi32, #tpu.memory_space<vmem>>, vector<12x1xi32>
    %149 = tpu.iota {dimensions = array<i32: 1>} : vector<12x8xi32>
    %150 = vector.broadcast %148 : vector<12x1xi32> to vector<12x8xi32>
    %151 = arith.cmpi eq, %149, %150 : vector<12x8xi32>
    %152 = arith.extui %151 : vector<12x8xi1> to vector<12x8xi32>
    %153 = arith.sitofp %152 : vector<12x8xi32> to vector<12x8xf32>
    %154 = arith.truncf %153 : vector<12x8xf32> to vector<12x8xbf16>
    %c0_77 = arith.constant 0 : index
    %c0_78 = arith.constant 0 : index
    %155 = vector.load %arg6[%c0_77, %c0_78] : memref<1x12xi32, #tpu.memory_space<vmem>>, vector<1x12xi32>
    %156 = tpu.iota {dimensions = array<i32: 0>} : vector<8x12xi32>
    %157 = vector.broadcast %155 : vector<1x12xi32> to vector<8x12xi32>
    %158 = arith.cmpi eq, %156, %157 : vector<8x12xi32>
    %159 = arith.extui %158 : vector<8x12xi1> to vector<8x12xi32>
    %160 = arith.sitofp %159 : vector<8x12xi32> to vector<8x12xf32>
    %161 = arith.truncf %160 : vector<8x12xf32> to vector<8x12xbf16>
    %c0_79 = arith.constant 0 : index
    %c0_80 = arith.constant 0 : index
    %162 = vector.load %arg7[%c0_79, %c0_80] : memref<12x1xi32, #tpu.memory_space<vmem>>, vector<12x1xi32>
    %163 = tpu.iota {dimensions = array<i32: 1>} : vector<12x8xi32>
    %164 = vector.broadcast %162 : vector<12x1xi32> to vector<12x8xi32>
    %165 = arith.cmpi eq, %163, %164 : vector<12x8xi32>
    %166 = arith.extui %165 : vector<12x8xi1> to vector<12x8xi32>
    %167 = arith.sitofp %166 : vector<12x8xi32> to vector<12x8xf32>
    %168 = arith.truncf %167 : vector<12x8xf32> to vector<12x8xbf16>
    %c0_81 = arith.constant 0 : index
    %c0_82 = arith.constant 0 : index
    %169 = vector.load %arg8[%c0_81, %c0_82] : memref<12x1xi32, #tpu.memory_space<vmem>>, vector<12x1xi32>
    %170 = tpu.iota {dimensions = array<i32: 1>} : vector<12x2xi32>
    %171 = vector.broadcast %169 : vector<12x1xi32> to vector<12x2xi32>
    %172 = arith.cmpi eq, %170, %171 : vector<12x2xi32>
    %173 = arith.extui %172 : vector<12x2xi1> to vector<12x2xi32>
    %174 = arith.sitofp %173 : vector<12x2xi32> to vector<12x2xf32>
    %175 = arith.truncf %174 : vector<12x2xf32> to vector<12x2xbf16>
    %c0_83 = arith.constant 0 : index
    %c0_84 = arith.constant 0 : index
    %176 = vector.load %arg9[%c0_83, %c0_84] : memref<1x12xi32, #tpu.memory_space<vmem>>, vector<1x12xi32>
    %177 = tpu.iota {dimensions = array<i32: 0>} : vector<2x12xi32>
    %178 = vector.broadcast %176 : vector<1x12xi32> to vector<2x12xi32>
    %179 = arith.cmpi eq, %177, %178 : vector<2x12xi32>
    %180 = arith.extui %179 : vector<2x12xi1> to vector<2x12xi32>
    %181 = arith.sitofp %180 : vector<2x12xi32> to vector<2x12xf32>
    %182 = arith.truncf %181 : vector<2x12xf32> to vector<2x12xbf16>
    %183 = arith.truncf %35 : vector<8x32xf32> to vector<8x32xbf16>
    %cst_85 = arith.constant dense<0.000000e+00> : vector<12x32xf32>
    %184 = tpu.matmul %154, %183, %cst_85 {dimension_numbers = #tpu.dot_dimension_numbers<[1], [0], [0], [1], [0, 0, 1, 1], [], []>} : vector<12x8xbf16>, vector<8x32xbf16>, vector<12x32xf32> -> vector<12x32xf32>
    %185 = arith.truncf %35 : vector<8x32xf32> to vector<8x32xbf16>
    %cst_86 = arith.constant dense<0.000000e+00> : vector<12x32xf32>
    %186 = tpu.matmul %168, %185, %cst_86 {dimension_numbers = #tpu.dot_dimension_numbers<[1], [0], [0], [1], [0, 0, 1, 1], [], []>} : vector<12x8xbf16>, vector<8x32xbf16>, vector<12x32xf32> -> vector<12x32xf32>
    %187 = arith.truncf %67 : vector<2x32xf32> to vector<2x32xbf16>
    %cst_87 = arith.constant dense<0.000000e+00> : vector<12x32xf32>
    %188 = tpu.matmul %175, %187, %cst_87 {dimension_numbers = #tpu.dot_dimension_numbers<[1], [0], [0], [1], [0, 0, 1, 1], [], []>} : vector<12x2xbf16>, vector<2x32xbf16>, vector<12x32xf32> -> vector<12x32xf32>
    %c0_88 = arith.constant 0 : index
    %c0_89 = arith.constant 0 : index
    %189 = vector.load %arg33[%c0_88, %c0_89] : memref<128x64xbf16, #tpu.memory_space<vmem>>, vector<32x64xbf16>
    %190 = arith.truncf %184 : vector<12x32xf32> to vector<12x32xbf16>
    %cst_90 = arith.constant dense<0.000000e+00> : vector<12x64xf32>
    %191 = tpu.matmul %190, %189, %cst_90 {dimension_numbers = #tpu.dot_dimension_numbers<[1], [0], [0], [1], [0, 0, 1, 1], [], []>} : vector<12x32xbf16>, vector<32x64xbf16>, vector<12x64xf32> -> vector<12x64xf32>
    %c32 = arith.constant 32 : index
    %c0_91 = arith.constant 0 : index
    %192 = vector.load %arg33[%c32, %c0_91] : memref<128x64xbf16, #tpu.memory_space<vmem>>, vector<32x64xbf16>
    %193 = arith.truncf %99 : vector<12x32xf32> to vector<12x32xbf16>
    %cst_92 = arith.constant dense<0.000000e+00> : vector<12x64xf32>
    %194 = tpu.matmul %193, %192, %cst_92 {dimension_numbers = #tpu.dot_dimension_numbers<[1], [0], [0], [1], [0, 0, 1, 1], [], []>} : vector<12x32xbf16>, vector<32x64xbf16>, vector<12x64xf32> -> vector<12x64xf32>
    %195 = arith.addf %191, %194 : vector<12x64xf32>
    %c64 = arith.constant 64 : index
    %c0_93 = arith.constant 0 : index
    %196 = vector.load %arg33[%c64, %c0_93] : memref<128x64xbf16, #tpu.memory_space<vmem>>, vector<32x64xbf16>
    %197 = arith.truncf %186 : vector<12x32xf32> to vector<12x32xbf16>
    %cst_94 = arith.constant dense<0.000000e+00> : vector<12x64xf32>
    %198 = tpu.matmul %197, %196, %cst_94 {dimension_numbers = #tpu.dot_dimension_numbers<[1], [0], [0], [1], [0, 0, 1, 1], [], []>} : vector<12x32xbf16>, vector<32x64xbf16>, vector<12x64xf32> -> vector<12x64xf32>
    %199 = arith.addf %195, %198 : vector<12x64xf32>
    %c96 = arith.constant 96 : index
    %c0_95 = arith.constant 0 : index
    %200 = vector.load %arg33[%c96, %c0_95] : memref<128x64xbf16, #tpu.memory_space<vmem>>, vector<32x64xbf16>
    %201 = arith.truncf %188 : vector<12x32xf32> to vector<12x32xbf16>
    %cst_96 = arith.constant dense<0.000000e+00> : vector<12x64xf32>
    %202 = tpu.matmul %201, %200, %cst_96 {dimension_numbers = #tpu.dot_dimension_numbers<[1], [0], [0], [1], [0, 0, 1, 1], [], []>} : vector<12x32xbf16>, vector<32x64xbf16>, vector<12x64xf32> -> vector<12x64xf32>
    %203 = arith.addf %199, %202 : vector<12x64xf32>
    %c0_97 = arith.constant 0 : index
    %c0_98 = arith.constant 0 : index
    %204 = vector.load %arg34[%c0_97, %c0_98] : memref<1x64xf32, #tpu.memory_space<vmem>>, vector<1x64xf32>
    %205 = vector.broadcast %204 : vector<1x64xf32> to vector<12x64xf32>
    %206 = arith.addf %203, %205 : vector<12x64xf32>
    %cst_99 = arith.constant 0.000000e+00 : f32
    %207 = vector.broadcast %cst_99 : f32 to vector<12x64xf32>
    %208 = arith.maximumf %206, %207 : vector<12x64xf32>
    %209 = math.absf %206 : vector<12x64xf32>
    %cst_100 = arith.constant 0.000000e+00 : f32
    %210 = vector.broadcast %cst_100 : f32 to vector<12x64xf32>
    %211 = arith.subf %210, %209 : vector<12x64xf32>
    %212 = math.exp %211 : vector<12x64xf32>
    %213 = math.log1p %212 : vector<12x64xf32>
    %214 = arith.addf %208, %213 : vector<12x64xf32>
    %cst_101 = arith.constant 0.693147182 : f32
    %215 = vector.broadcast %cst_101 : f32 to vector<12x64xf32>
    %216 = arith.subf %214, %215 : vector<12x64xf32>
    %c0_102 = arith.constant 0 : index
    %c0_103 = arith.constant 0 : index
    %217 = vector.load %arg35[%c0_102, %c0_103] : memref<64x64xbf16, #tpu.memory_space<vmem>>, vector<64x64xbf16>
    %218 = arith.truncf %216 : vector<12x64xf32> to vector<12x64xbf16>
    %cst_104 = arith.constant dense<0.000000e+00> : vector<12x64xf32>
    %219 = tpu.matmul %218, %217, %cst_104 {dimension_numbers = #tpu.dot_dimension_numbers<[1], [0], [0], [1], [0, 0, 1, 1], [], []>} : vector<12x64xbf16>, vector<64x64xbf16>, vector<12x64xf32> -> vector<12x64xf32>
    %c0_105 = arith.constant 0 : index
    %c0_106 = arith.constant 0 : index
    %220 = vector.load %arg36[%c0_105, %c0_106] : memref<1x64xf32, #tpu.memory_space<vmem>>, vector<1x64xf32>
    %221 = vector.broadcast %220 : vector<1x64xf32> to vector<12x64xf32>
    %222 = arith.addf %219, %221 : vector<12x64xf32>
    %cst_107 = arith.constant 0.000000e+00 : f32
    %223 = vector.broadcast %cst_107 : f32 to vector<12x64xf32>
    %224 = arith.maximumf %222, %223 : vector<12x64xf32>
    %225 = math.absf %222 : vector<12x64xf32>
    %cst_108 = arith.constant 0.000000e+00 : f32
    %226 = vector.broadcast %cst_108 : f32 to vector<12x64xf32>
    %227 = arith.subf %226, %225 : vector<12x64xf32>
    %228 = math.exp %227 : vector<12x64xf32>
    %229 = math.log1p %228 : vector<12x64xf32>
    %230 = arith.addf %224, %229 : vector<12x64xf32>
    %cst_109 = arith.constant 0.693147182 : f32
    %231 = vector.broadcast %cst_109 : f32 to vector<12x64xf32>
    %232 = arith.subf %230, %231 : vector<12x64xf32>
    %c0_110 = arith.constant 0 : index
    %c0_111 = arith.constant 0 : index
    %233 = vector.load %arg37[%c0_110, %c0_111] : memref<64x32xbf16, #tpu.memory_space<vmem>>, vector<64x32xbf16>
    %234 = arith.truncf %232 : vector<12x64xf32> to vector<12x64xbf16>
    %cst_112 = arith.constant dense<0.000000e+00> : vector<12x32xf32>
    %235 = tpu.matmul %234, %233, %cst_112 {dimension_numbers = #tpu.dot_dimension_numbers<[1], [0], [0], [1], [0, 0, 1, 1], [], []>} : vector<12x64xbf16>, vector<64x32xbf16>, vector<12x32xf32> -> vector<12x32xf32>
    %c0_113 = arith.constant 0 : index
    %c0_114 = arith.constant 0 : index
    %236 = vector.load %arg38[%c0_113, %c0_114] : memref<1x32xf32, #tpu.memory_space<vmem>>, vector<1x32xf32>
    %237 = vector.broadcast %236 : vector<1x32xf32> to vector<12x32xf32>
    %238 = arith.addf %235, %237 : vector<12x32xf32>
    %cst_115 = arith.constant 0.000000e+00 : f32
    %239 = vector.broadcast %cst_115 : f32 to vector<12x32xf32>
    %240 = arith.maximumf %238, %239 : vector<12x32xf32>
    %241 = math.absf %238 : vector<12x32xf32>
    %cst_116 = arith.constant 0.000000e+00 : f32
    %242 = vector.broadcast %cst_116 : f32 to vector<12x32xf32>
    %243 = arith.subf %242, %241 : vector<12x32xf32>
    %244 = math.exp %243 : vector<12x32xf32>
    %245 = math.log1p %244 : vector<12x32xf32>
    %246 = arith.addf %240, %245 : vector<12x32xf32>
    %cst_117 = arith.constant 0.693147182 : f32
    %247 = vector.broadcast %cst_117 : f32 to vector<12x32xf32>
    %248 = arith.subf %246, %247 : vector<12x32xf32>
    %249 = arith.truncf %248 : vector<12x32xf32> to vector<12x32xbf16>
    %cst_118 = arith.constant dense<0.000000e+00> : vector<8x32xf32>
    %250 = tpu.matmul %161, %249, %cst_118 {dimension_numbers = #tpu.dot_dimension_numbers<[1], [0], [0], [1], [0, 0, 1, 1], [], []>} : vector<8x12xbf16>, vector<12x32xbf16>, vector<8x32xf32> -> vector<8x32xf32>
    %c0_119 = arith.constant 0 : index
    %c0_120 = arith.constant 0 : index
    %251 = vector.load %arg45[%c0_119, %c0_120] : memref<96x64xbf16, #tpu.memory_space<vmem>>, vector<32x64xbf16>
    %252 = arith.truncf %250 : vector<8x32xf32> to vector<8x32xbf16>
    %cst_121 = arith.constant dense<0.000000e+00> : vector<8x64xf32>
    %253 = tpu.matmul %252, %251, %cst_121 {dimension_numbers = #tpu.dot_dimension_numbers<[1], [0], [0], [1], [0, 0, 1, 1], [], []>} : vector<8x32xbf16>, vector<32x64xbf16>, vector<8x64xf32> -> vector<8x64xf32>
    %c32_122 = arith.constant 32 : index
    %c0_123 = arith.constant 0 : index
    %254 = vector.load %arg45[%c32_122, %c0_123] : memref<96x64xbf16, #tpu.memory_space<vmem>>, vector<32x64xbf16>
    %255 = arith.truncf %35 : vector<8x32xf32> to vector<8x32xbf16>
    %cst_124 = arith.constant dense<0.000000e+00> : vector<8x64xf32>
    %256 = tpu.matmul %255, %254, %cst_124 {dimension_numbers = #tpu.dot_dimension_numbers<[1], [0], [0], [1], [0, 0, 1, 1], [], []>} : vector<8x32xbf16>, vector<32x64xbf16>, vector<8x64xf32> -> vector<8x64xf32>
    %257 = arith.addf %253, %256 : vector<8x64xf32>
    %c64_125 = arith.constant 64 : index
    %c0_126 = arith.constant 0 : index
    %258 = vector.load %arg45[%c64_125, %c0_126] : memref<96x64xbf16, #tpu.memory_space<vmem>>, vector<32x64xbf16>
    %259 = arith.truncf %147 : vector<8x32xf32> to vector<8x32xbf16>
    %cst_127 = arith.constant dense<0.000000e+00> : vector<8x64xf32>
    %260 = tpu.matmul %259, %258, %cst_127 {dimension_numbers = #tpu.dot_dimension_numbers<[1], [0], [0], [1], [0, 0, 1, 1], [], []>} : vector<8x32xbf16>, vector<32x64xbf16>, vector<8x64xf32> -> vector<8x64xf32>
    %261 = arith.addf %257, %260 : vector<8x64xf32>
    %c0_128 = arith.constant 0 : index
    %c0_129 = arith.constant 0 : index
    %262 = vector.load %arg46[%c0_128, %c0_129] : memref<1x64xf32, #tpu.memory_space<vmem>>, vector<1x64xf32>
    %263 = vector.broadcast %262 : vector<1x64xf32> to vector<8x64xf32>
    %264 = arith.addf %261, %263 : vector<8x64xf32>
    %cst_130 = arith.constant 0.000000e+00 : f32
    %265 = vector.broadcast %cst_130 : f32 to vector<8x64xf32>
    %266 = arith.maximumf %264, %265 : vector<8x64xf32>
    %267 = math.absf %264 : vector<8x64xf32>
    %cst_131 = arith.constant 0.000000e+00 : f32
    %268 = vector.broadcast %cst_131 : f32 to vector<8x64xf32>
    %269 = arith.subf %268, %267 : vector<8x64xf32>
    %270 = math.exp %269 : vector<8x64xf32>
    %271 = math.log1p %270 : vector<8x64xf32>
    %272 = arith.addf %266, %271 : vector<8x64xf32>
    %cst_132 = arith.constant 0.693147182 : f32
    %273 = vector.broadcast %cst_132 : f32 to vector<8x64xf32>
    %274 = arith.subf %272, %273 : vector<8x64xf32>
    %c0_133 = arith.constant 0 : index
    %c0_134 = arith.constant 0 : index
    %275 = vector.load %arg47[%c0_133, %c0_134] : memref<64x64xbf16, #tpu.memory_space<vmem>>, vector<64x64xbf16>
    %276 = arith.truncf %274 : vector<8x64xf32> to vector<8x64xbf16>
    %cst_135 = arith.constant dense<0.000000e+00> : vector<8x64xf32>
    %277 = tpu.matmul %276, %275, %cst_135 {dimension_numbers = #tpu.dot_dimension_numbers<[1], [0], [0], [1], [0, 0, 1, 1], [], []>} : vector<8x64xbf16>, vector<64x64xbf16>, vector<8x64xf32> -> vector<8x64xf32>
    %c0_136 = arith.constant 0 : index
    %c0_137 = arith.constant 0 : index
    %278 = vector.load %arg48[%c0_136, %c0_137] : memref<1x64xf32, #tpu.memory_space<vmem>>, vector<1x64xf32>
    %279 = vector.broadcast %278 : vector<1x64xf32> to vector<8x64xf32>
    %280 = arith.addf %277, %279 : vector<8x64xf32>
    %cst_138 = arith.constant 0.000000e+00 : f32
    %281 = vector.broadcast %cst_138 : f32 to vector<8x64xf32>
    %282 = arith.maximumf %280, %281 : vector<8x64xf32>
    %283 = math.absf %280 : vector<8x64xf32>
    %cst_139 = arith.constant 0.000000e+00 : f32
    %284 = vector.broadcast %cst_139 : f32 to vector<8x64xf32>
    %285 = arith.subf %284, %283 : vector<8x64xf32>
    %286 = math.exp %285 : vector<8x64xf32>
    %287 = math.log1p %286 : vector<8x64xf32>
    %288 = arith.addf %282, %287 : vector<8x64xf32>
    %cst_140 = arith.constant 0.693147182 : f32
    %289 = vector.broadcast %cst_140 : f32 to vector<8x64xf32>
    %290 = arith.subf %288, %289 : vector<8x64xf32>
    %c0_141 = arith.constant 0 : index
    %c0_142 = arith.constant 0 : index
    %291 = vector.load %arg49[%c0_141, %c0_142] : memref<64x32xbf16, #tpu.memory_space<vmem>>, vector<64x32xbf16>
    %292 = arith.truncf %290 : vector<8x64xf32> to vector<8x64xbf16>
    %cst_143 = arith.constant dense<0.000000e+00> : vector<8x32xf32>
    %293 = tpu.matmul %292, %291, %cst_143 {dimension_numbers = #tpu.dot_dimension_numbers<[1], [0], [0], [1], [0, 0, 1, 1], [], []>} : vector<8x64xbf16>, vector<64x32xbf16>, vector<8x32xf32> -> vector<8x32xf32>
    %c0_144 = arith.constant 0 : index
    %c0_145 = arith.constant 0 : index
    %294 = vector.load %arg50[%c0_144, %c0_145] : memref<1x32xf32, #tpu.memory_space<vmem>>, vector<1x32xf32>
    %295 = vector.broadcast %294 : vector<1x32xf32> to vector<8x32xf32>
    %296 = arith.addf %293, %295 : vector<8x32xf32>
    %cst_146 = arith.constant 0.000000e+00 : f32
    %297 = vector.broadcast %cst_146 : f32 to vector<8x32xf32>
    %298 = arith.maximumf %296, %297 : vector<8x32xf32>
    %299 = math.absf %296 : vector<8x32xf32>
    %cst_147 = arith.constant 0.000000e+00 : f32
    %300 = vector.broadcast %cst_147 : f32 to vector<8x32xf32>
    %301 = arith.subf %300, %299 : vector<8x32xf32>
    %302 = math.exp %301 : vector<8x32xf32>
    %303 = math.log1p %302 : vector<8x32xf32>
    %304 = arith.addf %298, %303 : vector<8x32xf32>
    %cst_148 = arith.constant 0.693147182 : f32
    %305 = vector.broadcast %cst_148 : f32 to vector<8x32xf32>
    %306 = arith.subf %304, %305 : vector<8x32xf32>
    %307 = arith.truncf %248 : vector<12x32xf32> to vector<12x32xbf16>
    %cst_149 = arith.constant dense<0.000000e+00> : vector<2x32xf32>
    %308 = tpu.matmul %182, %307, %cst_149 {dimension_numbers = #tpu.dot_dimension_numbers<[1], [0], [0], [1], [0, 0, 1, 1], [], []>} : vector<2x12xbf16>, vector<12x32xbf16>, vector<2x32xf32> -> vector<2x32xf32>
    %309 = arith.truncf %306 : vector<8x32xf32> to vector<8x32xbf16>
    %cst_150 = arith.constant dense<0.000000e+00> : vector<2x32xf32>
    %310 = tpu.matmul %145, %309, %cst_150 {dimension_numbers = #tpu.dot_dimension_numbers<[1], [0], [0], [1], [0, 0, 1, 1], [], []>} : vector<2x8xbf16>, vector<8x32xbf16>, vector<2x32xf32> -> vector<2x32xf32>
    %c0_151 = arith.constant 0 : index
    %c0_152 = arith.constant 0 : index
    %311 = vector.load %arg57[%c0_151, %c0_152] : memref<96x64xbf16, #tpu.memory_space<vmem>>, vector<32x64xbf16>
    %312 = arith.truncf %308 : vector<2x32xf32> to vector<2x32xbf16>
    %cst_153 = arith.constant dense<0.000000e+00> : vector<2x64xf32>
    %313 = tpu.matmul %312, %311, %cst_153 {dimension_numbers = #tpu.dot_dimension_numbers<[1], [0], [0], [1], [0, 0, 1, 1], [], []>} : vector<2x32xbf16>, vector<32x64xbf16>, vector<2x64xf32> -> vector<2x64xf32>
    %c32_154 = arith.constant 32 : index
    %c0_155 = arith.constant 0 : index
    %314 = vector.load %arg57[%c32_154, %c0_155] : memref<96x64xbf16, #tpu.memory_space<vmem>>, vector<32x64xbf16>
    %315 = arith.truncf %310 : vector<2x32xf32> to vector<2x32xbf16>
    %cst_156 = arith.constant dense<0.000000e+00> : vector<2x64xf32>
    %316 = tpu.matmul %315, %314, %cst_156 {dimension_numbers = #tpu.dot_dimension_numbers<[1], [0], [0], [1], [0, 0, 1, 1], [], []>} : vector<2x32xbf16>, vector<32x64xbf16>, vector<2x64xf32> -> vector<2x64xf32>
    %317 = arith.addf %313, %316 : vector<2x64xf32>
    %c64_157 = arith.constant 64 : index
    %c0_158 = arith.constant 0 : index
    %318 = vector.load %arg57[%c64_157, %c0_158] : memref<96x64xbf16, #tpu.memory_space<vmem>>, vector<32x64xbf16>
    %319 = arith.truncf %67 : vector<2x32xf32> to vector<2x32xbf16>
    %cst_159 = arith.constant dense<0.000000e+00> : vector<2x64xf32>
    %320 = tpu.matmul %319, %318, %cst_159 {dimension_numbers = #tpu.dot_dimension_numbers<[1], [0], [0], [1], [0, 0, 1, 1], [], []>} : vector<2x32xbf16>, vector<32x64xbf16>, vector<2x64xf32> -> vector<2x64xf32>
    %321 = arith.addf %317, %320 : vector<2x64xf32>
    %c0_160 = arith.constant 0 : index
    %c0_161 = arith.constant 0 : index
    %322 = vector.load %arg58[%c0_160, %c0_161] : memref<1x64xf32, #tpu.memory_space<vmem>>, vector<1x64xf32>
    %323 = vector.broadcast %322 : vector<1x64xf32> to vector<2x64xf32>
    %324 = arith.addf %321, %323 : vector<2x64xf32>
    %cst_162 = arith.constant 0.000000e+00 : f32
    %325 = vector.broadcast %cst_162 : f32 to vector<2x64xf32>
    %326 = arith.maximumf %324, %325 : vector<2x64xf32>
    %327 = math.absf %324 : vector<2x64xf32>
    %cst_163 = arith.constant 0.000000e+00 : f32
    %328 = vector.broadcast %cst_163 : f32 to vector<2x64xf32>
    %329 = arith.subf %328, %327 : vector<2x64xf32>
    %330 = math.exp %329 : vector<2x64xf32>
    %331 = math.log1p %330 : vector<2x64xf32>
    %332 = arith.addf %326, %331 : vector<2x64xf32>
    %cst_164 = arith.constant 0.693147182 : f32
    %333 = vector.broadcast %cst_164 : f32 to vector<2x64xf32>
    %334 = arith.subf %332, %333 : vector<2x64xf32>
    %c0_165 = arith.constant 0 : index
    %c0_166 = arith.constant 0 : index
    %335 = vector.load %arg59[%c0_165, %c0_166] : memref<64x64xbf16, #tpu.memory_space<vmem>>, vector<64x64xbf16>
    %336 = arith.truncf %334 : vector<2x64xf32> to vector<2x64xbf16>
    %cst_167 = arith.constant dense<0.000000e+00> : vector<2x64xf32>
    %337 = tpu.matmul %336, %335, %cst_167 {dimension_numbers = #tpu.dot_dimension_numbers<[1], [0], [0], [1], [0, 0, 1, 1], [], []>} : vector<2x64xbf16>, vector<64x64xbf16>, vector<2x64xf32> -> vector<2x64xf32>
    %c0_168 = arith.constant 0 : index
    %c0_169 = arith.constant 0 : index
    %338 = vector.load %arg60[%c0_168, %c0_169] : memref<1x64xf32, #tpu.memory_space<vmem>>, vector<1x64xf32>
    %339 = vector.broadcast %338 : vector<1x64xf32> to vector<2x64xf32>
    %340 = arith.addf %337, %339 : vector<2x64xf32>
    %cst_170 = arith.constant 0.000000e+00 : f32
    %341 = vector.broadcast %cst_170 : f32 to vector<2x64xf32>
    %342 = arith.maximumf %340, %341 : vector<2x64xf32>
    %343 = math.absf %340 : vector<2x64xf32>
    %cst_171 = arith.constant 0.000000e+00 : f32
    %344 = vector.broadcast %cst_171 : f32 to vector<2x64xf32>
    %345 = arith.subf %344, %343 : vector<2x64xf32>
    %346 = math.exp %345 : vector<2x64xf32>
    %347 = math.log1p %346 : vector<2x64xf32>
    %348 = arith.addf %342, %347 : vector<2x64xf32>
    %cst_172 = arith.constant 0.693147182 : f32
    %349 = vector.broadcast %cst_172 : f32 to vector<2x64xf32>
    %350 = arith.subf %348, %349 : vector<2x64xf32>
    %c0_173 = arith.constant 0 : index
    %c0_174 = arith.constant 0 : index
    %351 = vector.load %arg61[%c0_173, %c0_174] : memref<64x32xbf16, #tpu.memory_space<vmem>>, vector<64x32xbf16>
    %352 = arith.truncf %350 : vector<2x64xf32> to vector<2x64xbf16>
    %cst_175 = arith.constant dense<0.000000e+00> : vector<2x32xf32>
    %353 = tpu.matmul %352, %351, %cst_175 {dimension_numbers = #tpu.dot_dimension_numbers<[1], [0], [0], [1], [0, 0, 1, 1], [], []>} : vector<2x64xbf16>, vector<64x32xbf16>, vector<2x32xf32> -> vector<2x32xf32>
    %c0_176 = arith.constant 0 : index
    %c0_177 = arith.constant 0 : index
    %354 = vector.load %arg62[%c0_176, %c0_177] : memref<1x32xf32, #tpu.memory_space<vmem>>, vector<1x32xf32>
    %355 = vector.broadcast %354 : vector<1x32xf32> to vector<2x32xf32>
    %356 = arith.addf %353, %355 : vector<2x32xf32>
    %cst_178 = arith.constant 0.000000e+00 : f32
    %357 = vector.broadcast %cst_178 : f32 to vector<2x32xf32>
    %358 = arith.maximumf %356, %357 : vector<2x32xf32>
    %359 = math.absf %356 : vector<2x32xf32>
    %cst_179 = arith.constant 0.000000e+00 : f32
    %360 = vector.broadcast %cst_179 : f32 to vector<2x32xf32>
    %361 = arith.subf %360, %359 : vector<2x32xf32>
    %362 = math.exp %361 : vector<2x32xf32>
    %363 = math.log1p %362 : vector<2x32xf32>
    %364 = arith.addf %358, %363 : vector<2x32xf32>
    %cst_180 = arith.constant 0.693147182 : f32
    %365 = vector.broadcast %cst_180 : f32 to vector<2x32xf32>
    %366 = arith.subf %364, %365 : vector<2x32xf32>
    %c0_181 = arith.constant 0 : index
    %c0_182 = arith.constant 0 : index
    %367 = vector.load %arg10[%c0_181, %c0_182] : memref<10x1xi32, #tpu.memory_space<vmem>>, vector<10x1xi32>
    %368 = tpu.iota {dimensions = array<i32: 1>} : vector<10x8xi32>
    %369 = vector.broadcast %367 : vector<10x1xi32> to vector<10x8xi32>
    %370 = arith.cmpi eq, %368, %369 : vector<10x8xi32>
    %371 = arith.extui %370 : vector<10x8xi1> to vector<10x8xi32>
    %372 = arith.sitofp %371 : vector<10x8xi32> to vector<10x8xf32>
    %373 = arith.truncf %372 : vector<10x8xf32> to vector<10x8xbf16>
    %c0_183 = arith.constant 0 : index
    %c0_184 = arith.constant 0 : index
    %374 = vector.load %arg11[%c0_183, %c0_184] : memref<1x10xi32, #tpu.memory_space<vmem>>, vector<1x10xi32>
    %375 = tpu.iota {dimensions = array<i32: 0>} : vector<8x10xi32>
    %376 = vector.broadcast %374 : vector<1x10xi32> to vector<8x10xi32>
    %377 = arith.cmpi eq, %375, %376 : vector<8x10xi32>
    %378 = arith.extui %377 : vector<8x10xi1> to vector<8x10xi32>
    %379 = arith.sitofp %378 : vector<8x10xi32> to vector<8x10xf32>
    %380 = arith.truncf %379 : vector<8x10xf32> to vector<8x10xbf16>
    %c0_185 = arith.constant 0 : index
    %c0_186 = arith.constant 0 : index
    %381 = vector.load %arg12[%c0_185, %c0_186] : memref<10x1xi32, #tpu.memory_space<vmem>>, vector<10x1xi32>
    %382 = tpu.iota {dimensions = array<i32: 1>} : vector<10x8xi32>
    %383 = vector.broadcast %381 : vector<10x1xi32> to vector<10x8xi32>
    %384 = arith.cmpi eq, %382, %383 : vector<10x8xi32>
    %385 = arith.extui %384 : vector<10x8xi1> to vector<10x8xi32>
    %386 = arith.sitofp %385 : vector<10x8xi32> to vector<10x8xf32>
    %387 = arith.truncf %386 : vector<10x8xf32> to vector<10x8xbf16>
    %c0_187 = arith.constant 0 : index
    %c0_188 = arith.constant 0 : index
    %388 = vector.load %arg13[%c0_187, %c0_188] : memref<10x1xi32, #tpu.memory_space<vmem>>, vector<10x1xi32>
    %389 = tpu.iota {dimensions = array<i32: 1>} : vector<10x2xi32>
    %390 = vector.broadcast %388 : vector<10x1xi32> to vector<10x2xi32>
    %391 = arith.cmpi eq, %389, %390 : vector<10x2xi32>
    %392 = arith.extui %391 : vector<10x2xi1> to vector<10x2xi32>
    %393 = arith.sitofp %392 : vector<10x2xi32> to vector<10x2xf32>
    %394 = arith.truncf %393 : vector<10x2xf32> to vector<10x2xbf16>
    %c0_189 = arith.constant 0 : index
    %c0_190 = arith.constant 0 : index
    %395 = vector.load %arg14[%c0_189, %c0_190] : memref<1x10xi32, #tpu.memory_space<vmem>>, vector<1x10xi32>
    %396 = tpu.iota {dimensions = array<i32: 0>} : vector<2x10xi32>
    %397 = vector.broadcast %395 : vector<1x10xi32> to vector<2x10xi32>
    %398 = arith.cmpi eq, %396, %397 : vector<2x10xi32>
    %399 = arith.extui %398 : vector<2x10xi1> to vector<2x10xi32>
    %400 = arith.sitofp %399 : vector<2x10xi32> to vector<2x10xf32>
    %401 = arith.truncf %400 : vector<2x10xf32> to vector<2x10xbf16>
    %402 = arith.truncf %35 : vector<8x32xf32> to vector<8x32xbf16>
    %cst_191 = arith.constant dense<0.000000e+00> : vector<10x32xf32>
    %403 = tpu.matmul %373, %402, %cst_191 {dimension_numbers = #tpu.dot_dimension_numbers<[1], [0], [0], [1], [0, 0, 1, 1], [], []>} : vector<10x8xbf16>, vector<8x32xbf16>, vector<10x32xf32> -> vector<10x32xf32>
    %404 = arith.truncf %35 : vector<8x32xf32> to vector<8x32xbf16>
    %cst_192 = arith.constant dense<0.000000e+00> : vector<10x32xf32>
    %405 = tpu.matmul %387, %404, %cst_192 {dimension_numbers = #tpu.dot_dimension_numbers<[1], [0], [0], [1], [0, 0, 1, 1], [], []>} : vector<10x8xbf16>, vector<8x32xbf16>, vector<10x32xf32> -> vector<10x32xf32>
    %406 = arith.truncf %67 : vector<2x32xf32> to vector<2x32xbf16>
    %cst_193 = arith.constant dense<0.000000e+00> : vector<10x32xf32>
    %407 = tpu.matmul %394, %406, %cst_193 {dimension_numbers = #tpu.dot_dimension_numbers<[1], [0], [0], [1], [0, 0, 1, 1], [], []>} : vector<10x2xbf16>, vector<2x32xbf16>, vector<10x32xf32> -> vector<10x32xf32>
    %c0_194 = arith.constant 0 : index
    %c0_195 = arith.constant 0 : index
    %408 = vector.load %arg39[%c0_194, %c0_195] : memref<128x64xbf16, #tpu.memory_space<vmem>>, vector<32x64xbf16>
    %409 = arith.truncf %403 : vector<10x32xf32> to vector<10x32xbf16>
    %cst_196 = arith.constant dense<0.000000e+00> : vector<10x64xf32>
    %410 = tpu.matmul %409, %408, %cst_196 {dimension_numbers = #tpu.dot_dimension_numbers<[1], [0], [0], [1], [0, 0, 1, 1], [], []>} : vector<10x32xbf16>, vector<32x64xbf16>, vector<10x64xf32> -> vector<10x64xf32>
    %c32_197 = arith.constant 32 : index
    %c0_198 = arith.constant 0 : index
    %411 = vector.load %arg39[%c32_197, %c0_198] : memref<128x64xbf16, #tpu.memory_space<vmem>>, vector<32x64xbf16>
    %412 = arith.truncf %131 : vector<10x32xf32> to vector<10x32xbf16>
    %cst_199 = arith.constant dense<0.000000e+00> : vector<10x64xf32>
    %413 = tpu.matmul %412, %411, %cst_199 {dimension_numbers = #tpu.dot_dimension_numbers<[1], [0], [0], [1], [0, 0, 1, 1], [], []>} : vector<10x32xbf16>, vector<32x64xbf16>, vector<10x64xf32> -> vector<10x64xf32>
    %414 = arith.addf %410, %413 : vector<10x64xf32>
    %c64_200 = arith.constant 64 : index
    %c0_201 = arith.constant 0 : index
    %415 = vector.load %arg39[%c64_200, %c0_201] : memref<128x64xbf16, #tpu.memory_space<vmem>>, vector<32x64xbf16>
    %416 = arith.truncf %405 : vector<10x32xf32> to vector<10x32xbf16>
    %cst_202 = arith.constant dense<0.000000e+00> : vector<10x64xf32>
    %417 = tpu.matmul %416, %415, %cst_202 {dimension_numbers = #tpu.dot_dimension_numbers<[1], [0], [0], [1], [0, 0, 1, 1], [], []>} : vector<10x32xbf16>, vector<32x64xbf16>, vector<10x64xf32> -> vector<10x64xf32>
    %418 = arith.addf %414, %417 : vector<10x64xf32>
    %c96_203 = arith.constant 96 : index
    %c0_204 = arith.constant 0 : index
    %419 = vector.load %arg39[%c96_203, %c0_204] : memref<128x64xbf16, #tpu.memory_space<vmem>>, vector<32x64xbf16>
    %420 = arith.truncf %407 : vector<10x32xf32> to vector<10x32xbf16>
    %cst_205 = arith.constant dense<0.000000e+00> : vector<10x64xf32>
    %421 = tpu.matmul %420, %419, %cst_205 {dimension_numbers = #tpu.dot_dimension_numbers<[1], [0], [0], [1], [0, 0, 1, 1], [], []>} : vector<10x32xbf16>, vector<32x64xbf16>, vector<10x64xf32> -> vector<10x64xf32>
    %422 = arith.addf %418, %421 : vector<10x64xf32>
    %c0_206 = arith.constant 0 : index
    %c0_207 = arith.constant 0 : index
    %423 = vector.load %arg40[%c0_206, %c0_207] : memref<1x64xf32, #tpu.memory_space<vmem>>, vector<1x64xf32>
    %424 = vector.broadcast %423 : vector<1x64xf32> to vector<10x64xf32>
    %425 = arith.addf %422, %424 : vector<10x64xf32>
    %cst_208 = arith.constant 0.000000e+00 : f32
    %426 = vector.broadcast %cst_208 : f32 to vector<10x64xf32>
    %427 = arith.maximumf %425, %426 : vector<10x64xf32>
    %428 = math.absf %425 : vector<10x64xf32>
    %cst_209 = arith.constant 0.000000e+00 : f32
    %429 = vector.broadcast %cst_209 : f32 to vector<10x64xf32>
    %430 = arith.subf %429, %428 : vector<10x64xf32>
    %431 = math.exp %430 : vector<10x64xf32>
    %432 = math.log1p %431 : vector<10x64xf32>
    %433 = arith.addf %427, %432 : vector<10x64xf32>
    %cst_210 = arith.constant 0.693147182 : f32
    %434 = vector.broadcast %cst_210 : f32 to vector<10x64xf32>
    %435 = arith.subf %433, %434 : vector<10x64xf32>
    %c0_211 = arith.constant 0 : index
    %c0_212 = arith.constant 0 : index
    %436 = vector.load %arg41[%c0_211, %c0_212] : memref<64x64xbf16, #tpu.memory_space<vmem>>, vector<64x64xbf16>
    %437 = arith.truncf %435 : vector<10x64xf32> to vector<10x64xbf16>
    %cst_213 = arith.constant dense<0.000000e+00> : vector<10x64xf32>
    %438 = tpu.matmul %437, %436, %cst_213 {dimension_numbers = #tpu.dot_dimension_numbers<[1], [0], [0], [1], [0, 0, 1, 1], [], []>} : vector<10x64xbf16>, vector<64x64xbf16>, vector<10x64xf32> -> vector<10x64xf32>
    %c0_214 = arith.constant 0 : index
    %c0_215 = arith.constant 0 : index
    %439 = vector.load %arg42[%c0_214, %c0_215] : memref<1x64xf32, #tpu.memory_space<vmem>>, vector<1x64xf32>
    %440 = vector.broadcast %439 : vector<1x64xf32> to vector<10x64xf32>
    %441 = arith.addf %438, %440 : vector<10x64xf32>
    %cst_216 = arith.constant 0.000000e+00 : f32
    %442 = vector.broadcast %cst_216 : f32 to vector<10x64xf32>
    %443 = arith.maximumf %441, %442 : vector<10x64xf32>
    %444 = math.absf %441 : vector<10x64xf32>
    %cst_217 = arith.constant 0.000000e+00 : f32
    %445 = vector.broadcast %cst_217 : f32 to vector<10x64xf32>
    %446 = arith.subf %445, %444 : vector<10x64xf32>
    %447 = math.exp %446 : vector<10x64xf32>
    %448 = math.log1p %447 : vector<10x64xf32>
    %449 = arith.addf %443, %448 : vector<10x64xf32>
    %cst_218 = arith.constant 0.693147182 : f32
    %450 = vector.broadcast %cst_218 : f32 to vector<10x64xf32>
    %451 = arith.subf %449, %450 : vector<10x64xf32>
    %c0_219 = arith.constant 0 : index
    %c0_220 = arith.constant 0 : index
    %452 = vector.load %arg43[%c0_219, %c0_220] : memref<64x32xbf16, #tpu.memory_space<vmem>>, vector<64x32xbf16>
    %453 = arith.truncf %451 : vector<10x64xf32> to vector<10x64xbf16>
    %cst_221 = arith.constant dense<0.000000e+00> : vector<10x32xf32>
    %454 = tpu.matmul %453, %452, %cst_221 {dimension_numbers = #tpu.dot_dimension_numbers<[1], [0], [0], [1], [0, 0, 1, 1], [], []>} : vector<10x64xbf16>, vector<64x32xbf16>, vector<10x32xf32> -> vector<10x32xf32>
    %c0_222 = arith.constant 0 : index
    %c0_223 = arith.constant 0 : index
    %455 = vector.load %arg44[%c0_222, %c0_223] : memref<1x32xf32, #tpu.memory_space<vmem>>, vector<1x32xf32>
    %456 = vector.broadcast %455 : vector<1x32xf32> to vector<10x32xf32>
    %457 = arith.addf %454, %456 : vector<10x32xf32>
    %cst_224 = arith.constant 0.000000e+00 : f32
    %458 = vector.broadcast %cst_224 : f32 to vector<10x32xf32>
    %459 = arith.maximumf %457, %458 : vector<10x32xf32>
    %460 = math.absf %457 : vector<10x32xf32>
    %cst_225 = arith.constant 0.000000e+00 : f32
    %461 = vector.broadcast %cst_225 : f32 to vector<10x32xf32>
    %462 = arith.subf %461, %460 : vector<10x32xf32>
    %463 = math.exp %462 : vector<10x32xf32>
    %464 = math.log1p %463 : vector<10x32xf32>
    %465 = arith.addf %459, %464 : vector<10x32xf32>
    %cst_226 = arith.constant 0.693147182 : f32
    %466 = vector.broadcast %cst_226 : f32 to vector<10x32xf32>
    %467 = arith.subf %465, %466 : vector<10x32xf32>
    %468 = arith.truncf %467 : vector<10x32xf32> to vector<10x32xbf16>
    %cst_227 = arith.constant dense<0.000000e+00> : vector<8x32xf32>
    %469 = tpu.matmul %380, %468, %cst_227 {dimension_numbers = #tpu.dot_dimension_numbers<[1], [0], [0], [1], [0, 0, 1, 1], [], []>} : vector<8x10xbf16>, vector<10x32xbf16>, vector<8x32xf32> -> vector<8x32xf32>
    %c0_228 = arith.constant 0 : index
    %c0_229 = arith.constant 0 : index
    %470 = vector.load %arg51[%c0_228, %c0_229] : memref<96x64xbf16, #tpu.memory_space<vmem>>, vector<32x64xbf16>
    %471 = arith.truncf %469 : vector<8x32xf32> to vector<8x32xbf16>
    %cst_230 = arith.constant dense<0.000000e+00> : vector<8x64xf32>
    %472 = tpu.matmul %471, %470, %cst_230 {dimension_numbers = #tpu.dot_dimension_numbers<[1], [0], [0], [1], [0, 0, 1, 1], [], []>} : vector<8x32xbf16>, vector<32x64xbf16>, vector<8x64xf32> -> vector<8x64xf32>
    %c32_231 = arith.constant 32 : index
    %c0_232 = arith.constant 0 : index
    %473 = vector.load %arg51[%c32_231, %c0_232] : memref<96x64xbf16, #tpu.memory_space<vmem>>, vector<32x64xbf16>
    %474 = arith.truncf %35 : vector<8x32xf32> to vector<8x32xbf16>
    %cst_233 = arith.constant dense<0.000000e+00> : vector<8x64xf32>
    %475 = tpu.matmul %474, %473, %cst_233 {dimension_numbers = #tpu.dot_dimension_numbers<[1], [0], [0], [1], [0, 0, 1, 1], [], []>} : vector<8x32xbf16>, vector<32x64xbf16>, vector<8x64xf32> -> vector<8x64xf32>
    %476 = arith.addf %472, %475 : vector<8x64xf32>
    %c64_234 = arith.constant 64 : index
    %c0_235 = arith.constant 0 : index
    %477 = vector.load %arg51[%c64_234, %c0_235] : memref<96x64xbf16, #tpu.memory_space<vmem>>, vector<32x64xbf16>
    %478 = arith.truncf %147 : vector<8x32xf32> to vector<8x32xbf16>
    %cst_236 = arith.constant dense<0.000000e+00> : vector<8x64xf32>
    %479 = tpu.matmul %478, %477, %cst_236 {dimension_numbers = #tpu.dot_dimension_numbers<[1], [0], [0], [1], [0, 0, 1, 1], [], []>} : vector<8x32xbf16>, vector<32x64xbf16>, vector<8x64xf32> -> vector<8x64xf32>
    %480 = arith.addf %476, %479 : vector<8x64xf32>
    %c0_237 = arith.constant 0 : index
    %c0_238 = arith.constant 0 : index
    %481 = vector.load %arg52[%c0_237, %c0_238] : memref<1x64xf32, #tpu.memory_space<vmem>>, vector<1x64xf32>
    %482 = vector.broadcast %481 : vector<1x64xf32> to vector<8x64xf32>
    %483 = arith.addf %480, %482 : vector<8x64xf32>
    %cst_239 = arith.constant 0.000000e+00 : f32
    %484 = vector.broadcast %cst_239 : f32 to vector<8x64xf32>
    %485 = arith.maximumf %483, %484 : vector<8x64xf32>
    %486 = math.absf %483 : vector<8x64xf32>
    %cst_240 = arith.constant 0.000000e+00 : f32
    %487 = vector.broadcast %cst_240 : f32 to vector<8x64xf32>
    %488 = arith.subf %487, %486 : vector<8x64xf32>
    %489 = math.exp %488 : vector<8x64xf32>
    %490 = math.log1p %489 : vector<8x64xf32>
    %491 = arith.addf %485, %490 : vector<8x64xf32>
    %cst_241 = arith.constant 0.693147182 : f32
    %492 = vector.broadcast %cst_241 : f32 to vector<8x64xf32>
    %493 = arith.subf %491, %492 : vector<8x64xf32>
    %c0_242 = arith.constant 0 : index
    %c0_243 = arith.constant 0 : index
    %494 = vector.load %arg53[%c0_242, %c0_243] : memref<64x64xbf16, #tpu.memory_space<vmem>>, vector<64x64xbf16>
    %495 = arith.truncf %493 : vector<8x64xf32> to vector<8x64xbf16>
    %cst_244 = arith.constant dense<0.000000e+00> : vector<8x64xf32>
    %496 = tpu.matmul %495, %494, %cst_244 {dimension_numbers = #tpu.dot_dimension_numbers<[1], [0], [0], [1], [0, 0, 1, 1], [], []>} : vector<8x64xbf16>, vector<64x64xbf16>, vector<8x64xf32> -> vector<8x64xf32>
    %c0_245 = arith.constant 0 : index
    %c0_246 = arith.constant 0 : index
    %497 = vector.load %arg54[%c0_245, %c0_246] : memref<1x64xf32, #tpu.memory_space<vmem>>, vector<1x64xf32>
    %498 = vector.broadcast %497 : vector<1x64xf32> to vector<8x64xf32>
    %499 = arith.addf %496, %498 : vector<8x64xf32>
    %cst_247 = arith.constant 0.000000e+00 : f32
    %500 = vector.broadcast %cst_247 : f32 to vector<8x64xf32>
    %501 = arith.maximumf %499, %500 : vector<8x64xf32>
    %502 = math.absf %499 : vector<8x64xf32>
    %cst_248 = arith.constant 0.000000e+00 : f32
    %503 = vector.broadcast %cst_248 : f32 to vector<8x64xf32>
    %504 = arith.subf %503, %502 : vector<8x64xf32>
    %505 = math.exp %504 : vector<8x64xf32>
    %506 = math.log1p %505 : vector<8x64xf32>
    %507 = arith.addf %501, %506 : vector<8x64xf32>
    %cst_249 = arith.constant 0.693147182 : f32
    %508 = vector.broadcast %cst_249 : f32 to vector<8x64xf32>
    %509 = arith.subf %507, %508 : vector<8x64xf32>
    %c0_250 = arith.constant 0 : index
    %c0_251 = arith.constant 0 : index
    %510 = vector.load %arg55[%c0_250, %c0_251] : memref<64x32xbf16, #tpu.memory_space<vmem>>, vector<64x32xbf16>
    %511 = arith.truncf %509 : vector<8x64xf32> to vector<8x64xbf16>
    %cst_252 = arith.constant dense<0.000000e+00> : vector<8x32xf32>
    %512 = tpu.matmul %511, %510, %cst_252 {dimension_numbers = #tpu.dot_dimension_numbers<[1], [0], [0], [1], [0, 0, 1, 1], [], []>} : vector<8x64xbf16>, vector<64x32xbf16>, vector<8x32xf32> -> vector<8x32xf32>
    %c0_253 = arith.constant 0 : index
    %c0_254 = arith.constant 0 : index
    %513 = vector.load %arg56[%c0_253, %c0_254] : memref<1x32xf32, #tpu.memory_space<vmem>>, vector<1x32xf32>
    %514 = vector.broadcast %513 : vector<1x32xf32> to vector<8x32xf32>
    %515 = arith.addf %512, %514 : vector<8x32xf32>
    %cst_255 = arith.constant 0.000000e+00 : f32
    %516 = vector.broadcast %cst_255 : f32 to vector<8x32xf32>
    %517 = arith.maximumf %515, %516 : vector<8x32xf32>
    %518 = math.absf %515 : vector<8x32xf32>
    %cst_256 = arith.constant 0.000000e+00 : f32
    %519 = vector.broadcast %cst_256 : f32 to vector<8x32xf32>
    %520 = arith.subf %519, %518 : vector<8x32xf32>
    %521 = math.exp %520 : vector<8x32xf32>
    %522 = math.log1p %521 : vector<8x32xf32>
    %523 = arith.addf %517, %522 : vector<8x32xf32>
    %cst_257 = arith.constant 0.693147182 : f32
    %524 = vector.broadcast %cst_257 : f32 to vector<8x32xf32>
    %525 = arith.subf %523, %524 : vector<8x32xf32>
    %526 = arith.truncf %467 : vector<10x32xf32> to vector<10x32xbf16>
    %cst_258 = arith.constant dense<0.000000e+00> : vector<2x32xf32>
    %527 = tpu.matmul %401, %526, %cst_258 {dimension_numbers = #tpu.dot_dimension_numbers<[1], [0], [0], [1], [0, 0, 1, 1], [], []>} : vector<2x10xbf16>, vector<10x32xbf16>, vector<2x32xf32> -> vector<2x32xf32>
    %528 = arith.truncf %525 : vector<8x32xf32> to vector<8x32xbf16>
    %cst_259 = arith.constant dense<0.000000e+00> : vector<2x32xf32>
    %529 = tpu.matmul %145, %528, %cst_259 {dimension_numbers = #tpu.dot_dimension_numbers<[1], [0], [0], [1], [0, 0, 1, 1], [], []>} : vector<2x8xbf16>, vector<8x32xbf16>, vector<2x32xf32> -> vector<2x32xf32>
    %c0_260 = arith.constant 0 : index
    %c0_261 = arith.constant 0 : index
    %530 = vector.load %arg63[%c0_260, %c0_261] : memref<96x64xbf16, #tpu.memory_space<vmem>>, vector<32x64xbf16>
    %531 = arith.truncf %527 : vector<2x32xf32> to vector<2x32xbf16>
    %cst_262 = arith.constant dense<0.000000e+00> : vector<2x64xf32>
    %532 = tpu.matmul %531, %530, %cst_262 {dimension_numbers = #tpu.dot_dimension_numbers<[1], [0], [0], [1], [0, 0, 1, 1], [], []>} : vector<2x32xbf16>, vector<32x64xbf16>, vector<2x64xf32> -> vector<2x64xf32>
    %c32_263 = arith.constant 32 : index
    %c0_264 = arith.constant 0 : index
    %533 = vector.load %arg63[%c32_263, %c0_264] : memref<96x64xbf16, #tpu.memory_space<vmem>>, vector<32x64xbf16>
    %534 = arith.truncf %529 : vector<2x32xf32> to vector<2x32xbf16>
    %cst_265 = arith.constant dense<0.000000e+00> : vector<2x64xf32>
    %535 = tpu.matmul %534, %533, %cst_265 {dimension_numbers = #tpu.dot_dimension_numbers<[1], [0], [0], [1], [0, 0, 1, 1], [], []>} : vector<2x32xbf16>, vector<32x64xbf16>, vector<2x64xf32> -> vector<2x64xf32>
    %536 = arith.addf %532, %535 : vector<2x64xf32>
    %c64_266 = arith.constant 64 : index
    %c0_267 = arith.constant 0 : index
    %537 = vector.load %arg63[%c64_266, %c0_267] : memref<96x64xbf16, #tpu.memory_space<vmem>>, vector<32x64xbf16>
    %538 = arith.truncf %67 : vector<2x32xf32> to vector<2x32xbf16>
    %cst_268 = arith.constant dense<0.000000e+00> : vector<2x64xf32>
    %539 = tpu.matmul %538, %537, %cst_268 {dimension_numbers = #tpu.dot_dimension_numbers<[1], [0], [0], [1], [0, 0, 1, 1], [], []>} : vector<2x32xbf16>, vector<32x64xbf16>, vector<2x64xf32> -> vector<2x64xf32>
    %540 = arith.addf %536, %539 : vector<2x64xf32>
    %c0_269 = arith.constant 0 : index
    %c0_270 = arith.constant 0 : index
    %541 = vector.load %arg64[%c0_269, %c0_270] : memref<1x64xf32, #tpu.memory_space<vmem>>, vector<1x64xf32>
    %542 = vector.broadcast %541 : vector<1x64xf32> to vector<2x64xf32>
    %543 = arith.addf %540, %542 : vector<2x64xf32>
    %cst_271 = arith.constant 0.000000e+00 : f32
    %544 = vector.broadcast %cst_271 : f32 to vector<2x64xf32>
    %545 = arith.maximumf %543, %544 : vector<2x64xf32>
    %546 = math.absf %543 : vector<2x64xf32>
    %cst_272 = arith.constant 0.000000e+00 : f32
    %547 = vector.broadcast %cst_272 : f32 to vector<2x64xf32>
    %548 = arith.subf %547, %546 : vector<2x64xf32>
    %549 = math.exp %548 : vector<2x64xf32>
    %550 = math.log1p %549 : vector<2x64xf32>
    %551 = arith.addf %545, %550 : vector<2x64xf32>
    %cst_273 = arith.constant 0.693147182 : f32
    %552 = vector.broadcast %cst_273 : f32 to vector<2x64xf32>
    %553 = arith.subf %551, %552 : vector<2x64xf32>
    %c0_274 = arith.constant 0 : index
    %c0_275 = arith.constant 0 : index
    %554 = vector.load %arg65[%c0_274, %c0_275] : memref<64x64xbf16, #tpu.memory_space<vmem>>, vector<64x64xbf16>
    %555 = arith.truncf %553 : vector<2x64xf32> to vector<2x64xbf16>
    %cst_276 = arith.constant dense<0.000000e+00> : vector<2x64xf32>
    %556 = tpu.matmul %555, %554, %cst_276 {dimension_numbers = #tpu.dot_dimension_numbers<[1], [0], [0], [1], [0, 0, 1, 1], [], []>} : vector<2x64xbf16>, vector<64x64xbf16>, vector<2x64xf32> -> vector<2x64xf32>
    %c0_277 = arith.constant 0 : index
    %c0_278 = arith.constant 0 : index
    %557 = vector.load %arg66[%c0_277, %c0_278] : memref<1x64xf32, #tpu.memory_space<vmem>>, vector<1x64xf32>
    %558 = vector.broadcast %557 : vector<1x64xf32> to vector<2x64xf32>
    %559 = arith.addf %556, %558 : vector<2x64xf32>
    %cst_279 = arith.constant 0.000000e+00 : f32
    %560 = vector.broadcast %cst_279 : f32 to vector<2x64xf32>
    %561 = arith.maximumf %559, %560 : vector<2x64xf32>
    %562 = math.absf %559 : vector<2x64xf32>
    %cst_280 = arith.constant 0.000000e+00 : f32
    %563 = vector.broadcast %cst_280 : f32 to vector<2x64xf32>
    %564 = arith.subf %563, %562 : vector<2x64xf32>
    %565 = math.exp %564 : vector<2x64xf32>
    %566 = math.log1p %565 : vector<2x64xf32>
    %567 = arith.addf %561, %566 : vector<2x64xf32>
    %cst_281 = arith.constant 0.693147182 : f32
    %568 = vector.broadcast %cst_281 : f32 to vector<2x64xf32>
    %569 = arith.subf %567, %568 : vector<2x64xf32>
    %c0_282 = arith.constant 0 : index
    %c0_283 = arith.constant 0 : index
    %570 = vector.load %arg67[%c0_282, %c0_283] : memref<64x32xbf16, #tpu.memory_space<vmem>>, vector<64x32xbf16>
    %571 = arith.truncf %569 : vector<2x64xf32> to vector<2x64xbf16>
    %cst_284 = arith.constant dense<0.000000e+00> : vector<2x32xf32>
    %572 = tpu.matmul %571, %570, %cst_284 {dimension_numbers = #tpu.dot_dimension_numbers<[1], [0], [0], [1], [0, 0, 1, 1], [], []>} : vector<2x64xbf16>, vector<64x32xbf16>, vector<2x32xf32> -> vector<2x32xf32>
    %c0_285 = arith.constant 0 : index
    %c0_286 = arith.constant 0 : index
    %573 = vector.load %arg68[%c0_285, %c0_286] : memref<1x32xf32, #tpu.memory_space<vmem>>, vector<1x32xf32>
    %574 = vector.broadcast %573 : vector<1x32xf32> to vector<2x32xf32>
    %575 = arith.addf %572, %574 : vector<2x32xf32>
    %cst_287 = arith.constant 0.000000e+00 : f32
    %576 = vector.broadcast %cst_287 : f32 to vector<2x32xf32>
    %577 = arith.maximumf %575, %576 : vector<2x32xf32>
    %578 = math.absf %575 : vector<2x32xf32>
    %cst_288 = arith.constant 0.000000e+00 : f32
    %579 = vector.broadcast %cst_288 : f32 to vector<2x32xf32>
    %580 = arith.subf %579, %578 : vector<2x32xf32>
    %581 = math.exp %580 : vector<2x32xf32>
    %582 = math.log1p %581 : vector<2x32xf32>
    %583 = arith.addf %577, %582 : vector<2x32xf32>
    %cst_289 = arith.constant 0.693147182 : f32
    %584 = vector.broadcast %cst_289 : f32 to vector<2x32xf32>
    %585 = arith.subf %583, %584 : vector<2x32xf32>
    %586 = arith.addf %2, %248 : vector<12x32xf32>
    %c0_290 = arith.constant 0 : index
    %c0_291 = arith.constant 0 : index
    %587 = vector.load %arg69[%c0_290, %c0_291] : memref<12x32xf32, #tpu.memory_space<vmem>>, vector<12x32xf32>
    tpu.vector_store %arg69[%c0_290, %c0_291], %586 {strides = array<i32>} : memref<12x32xf32, #tpu.memory_space<vmem>>, vector<12x32xf32>,
    %588 = arith.addf %3, %467 : vector<10x32xf32>
    %c0_292 = arith.constant 0 : index
    %c0_293 = arith.constant 0 : index
    %589 = vector.load %arg70[%c0_292, %c0_293] : memref<10x32xf32, #tpu.memory_space<vmem>>, vector<10x32xf32>
    tpu.vector_store %arg70[%c0_292, %c0_293], %588 {strides = array<i32>} : memref<10x32xf32, #tpu.memory_space<vmem>>, vector<10x32xf32>,
    %590 = arith.addf %0, %306 : vector<8x32xf32>
    %591 = arith.addf %590, %525 : vector<8x32xf32>
    %c0_294 = arith.constant 0 : index
    %c0_295 = arith.constant 0 : index
    %592 = vector.load %arg71[%c0_294, %c0_295] : memref<8x32xf32, #tpu.memory_space<vmem>>, vector<8x32xf32>
    tpu.vector_store %arg71[%c0_294, %c0_295], %591 {strides = array<i32>} : memref<8x32xf32, #tpu.memory_space<vmem>>, vector<8x32xf32>,
    %593 = arith.addf %1, %366 : vector<2x32xf32>
    %594 = arith.addf %593, %585 : vector<2x32xf32>
    %c0_296 = arith.constant 0 : index
    %c0_297 = arith.constant 0 : index
    %595 = vector.load %arg72[%c0_296, %c0_297] : memref<2x32xf32, #tpu.memory_space<vmem>>, vector<2x32xf32>
    tpu.vector_store %arg72[%c0_296, %c0_297], %594 {strides = array<i32>} : memref<2x32xf32, #tpu.memory_space<vmem>>, vector<2x32xf32>,
    return
  }
  func.func @transform_0(%arg0: i32) -> (i32, i32) {
    %c0_i32 = arith.constant 0 : i32
    %c0_i32_0 = arith.constant 0 : i32
    %c0_i32_1 = arith.constant 0 : i32
    return %c0_i32, %c0_i32_0 : i32, i32
  }
  func.func @transform_1(%arg0: i32) -> (i32, i32) {
    %c0_i32 = arith.constant 0 : i32
    %c0_i32_0 = arith.constant 0 : i32
    %c0_i32_1 = arith.constant 0 : i32
    return %c0_i32, %c0_i32_0 : i32, i32
  }
  func.func @transform_2(%arg0: i32) -> (i32, i32) {
    %c0_i32 = arith.constant 0 : i32
    %c0_i32_0 = arith.constant 0 : i32
    %c0_i32_1 = arith.constant 0 : i32
    return %c0_i32, %c0_i32_0 : i32, i32
  }
  func.func @transform_3(%arg0: i32) -> (i32, i32) {
    %c0_i32 = arith.constant 0 : i32
    %c0_i32_0 = arith.constant 0 : i32
    %c0_i32_1 = arith.constant 0 : i32
    return %c0_i32, %c0_i32_0 : i32, i32
  }
  func.func @transform_4(%arg0: i32) -> (i32, i32) {
    %c0_i32 = arith.constant 0 : i32
    %c0_i32_0 = arith.constant 0 : i32
    %c0_i32_1 = arith.constant 0 : i32
    return %c0_i32, %c0_i32_0 : i32, i32
  }
  func.func @transform_5(%arg0: i32) -> (i32, i32) {
    %c0_i32 = arith.constant 0 : i32
    %c0_i32_0 = arith.constant 0 : i32
    %c0_i32_1 = arith.constant 0 : i32
    return %c0_i32, %c0_i32_0 : i32, i32
  }
  func.func @transform_6(%arg0: i32) -> (i32, i32) {
    %c0_i32 = arith.constant 0 : i32
    %c0_i32_0 = arith.constant 0 : i32
    %c0_i32_1 = arith.constant 0 : i32
    return %c0_i32, %c0_i32_0 : i32, i32
  }
  func.func @transform_7(%arg0: i32) -> (i32, i32) {
    %c0_i32 = arith.constant 0 : i32
    %c0_i32_0 = arith.constant 0 : i32
    %c0_i32_1 = arith.constant 0 : i32
    return %c0_i32, %c0_i32_0 : i32, i32
  }
  func.func @transform_8(%arg0: i32) -> (i32, i32) {
    %c0_i32 = arith.constant 0 : i32
    %c0_i32_0 = arith.constant 0 : i32
    %c0_i32_1 = arith.constant 0 : i32
    return %c0_i32, %c0_i32_0 : i32, i32
  }
  func.func @transform_9(%arg0: i32) -> (i32, i32) {
    %c0_i32 = arith.constant 0 : i32
    %c0_i32_0 = arith.constant 0 : i32
    %c0_i32_1 = arith.constant 0 : i32
    return %c0_i32, %c0_i32_0 : i32, i32
  }
  func.func @transform_10(%arg0: i32) -> (i32, i32) {
    %c0_i32 = arith.constant 0 : i32
    %c0_i32_0 = arith.constant 0 : i32
    %c0_i32_1 = arith.constant 0 : i32
    return %c0_i32, %c0_i32_0 : i32, i32
  }
  func.func @transform_11(%arg0: i32) -> (i32, i32) {
    %c0_i32 = arith.constant 0 : i32
    %c0_i32_0 = arith.constant 0 : i32
    %c0_i32_1 = arith.constant 0 : i32
    return %c0_i32, %c0_i32_0 : i32, i32
  }
  func.func @transform_12(%arg0: i32) -> (i32, i32) {
    %c0_i32 = arith.constant 0 : i32
    %c0_i32_0 = arith.constant 0 : i32
    %c0_i32_1 = arith.constant 0 : i32
    return %c0_i32, %c0_i32_0 : i32, i32
  }
  func.func @transform_13(%arg0: i32) -> (i32, i32) {
    %c0_i32 = arith.constant 0 : i32
    %c0_i32_0 = arith.constant 0 : i32
    %c0_i32_1 = arith.constant 0 : i32
    return %c0_i32, %c0_i32_0 : i32, i32
  }
  func.func @transform_14(%arg0: i32) -> (i32, i32) {
    %c0_i32 = arith.constant 0 : i32
    %c0_i32_0 = arith.constant 0 : i32
    %c0_i32_1 = arith.constant 0 : i32
    return %c0_i32, %c0_i32_0 : i32, i32
  }
  func.func @transform_15(%arg0: i32) -> (i32, i32) {
    %c0_i32 = arith.constant 0 : i32
    %c0_i32_0 = arith.constant 0 : i32
    %c0_i32_1 = arith.constant 0 : i32
    return %c0_i32, %c0_i32_0 : i32, i32
  }
  func.func @transform_16(%arg0: i32) -> (i32, i32) {
    %c0_i32 = arith.constant 0 : i32
    %c0_i32_0 = arith.constant 0 : i32
    %c0_i32_1 = arith.constant 0 : i32
    return %c0_i32, %c0_i32_0 : i32, i32
  }
  func.func @transform_17(%arg0: i32) -> (i32, i32) {
    %c0_i32 = arith.constant 0 : i32
    %c0_i32_0 = arith.constant 0 : i32
    %c0_i32_1 = arith.constant 0 : i32
    return %c0_i32, %c0_i32_0 : i32, i32
  }
  func.func @transform_18(%arg0: i32) -> (i32, i32) {
    %c0_i32 = arith.constant 0 : i32
    %c0_i32_0 = arith.constant 0 : i32
    %c0_i32_1 = arith.constant 0 : i32
    return %c0_i32, %c0_i32_0 : i32, i32
  }
  func.func @transform_19(%arg0: i32) -> (i32, i32) {
    %c0_i32 = arith.constant 0 : i32
    %c0_i32_0 = arith.constant 0 : i32
    %c0_i32_1 = arith.constant 0 : i32
    return %c0_i32, %c0_i32_0 : i32, i32
  }
  func.func @transform_20(%arg0: i32) -> (i32, i32) {
    %c0_i32 = arith.constant 0 : i32
    %c0_i32_0 = arith.constant 0 : i32
    %c0_i32_1 = arith.constant 0 : i32
    return %c0_i32, %c0_i32_0 : i32, i32
  }
  func.func @transform_21(%arg0: i32) -> (i32, i32) {
    %c0_i32 = arith.constant 0 : i32
    %c0_i32_0 = arith.constant 0 : i32
    %c0_i32_1 = arith.constant 0 : i32
    return %c0_i32, %c0_i32_0 : i32, i32
  }
  func.func @transform_22(%arg0: i32) -> (i32, i32) {
    %c0_i32 = arith.constant 0 : i32
    %c0_i32_0 = arith.constant 0 : i32
    %c0_i32_1 = arith.constant 0 : i32
    return %c0_i32, %c0_i32_0 : i32, i32
  }
  func.func @transform_23(%arg0: i32) -> (i32, i32) {
    %c0_i32 = arith.constant 0 : i32
    %c0_i32_0 = arith.constant 0 : i32
    %c0_i32_1 = arith.constant 0 : i32
    return %c0_i32, %c0_i32_0 : i32, i32
  }
  func.func @transform_24(%arg0: i32) -> (i32, i32) {
    %c0_i32 = arith.constant 0 : i32
    %c0_i32_0 = arith.constant 0 : i32
    %c0_i32_1 = arith.constant 0 : i32
    return %c0_i32, %c0_i32_0 : i32, i32
  }
  func.func @transform_25(%arg0: i32) -> (i32, i32) {
    %c0_i32 = arith.constant 0 : i32
    %c0_i32_0 = arith.constant 0 : i32
    %c0_i32_1 = arith.constant 0 : i32
    return %c0_i32, %c0_i32_0 : i32, i32
  }
  func.func @transform_26(%arg0: i32) -> (i32, i32) {
    %c0_i32 = arith.constant 0 : i32
    %c0_i32_0 = arith.constant 0 : i32
    %c0_i32_1 = arith.constant 0 : i32
    return %c0_i32, %c0_i32_0 : i32, i32
  }
  func.func @transform_27(%arg0: i32) -> (i32, i32) {
    %c0_i32 = arith.constant 0 : i32
    %c0_i32_0 = arith.constant 0 : i32
    %c0_i32_1 = arith.constant 0 : i32
    return %c0_i32, %c0_i32_0 : i32, i32
  }
  func.func @transform_28(%arg0: i32) -> (i32, i32) {
    %c0_i32 = arith.constant 0 : i32
    %c0_i32_0 = arith.constant 0 : i32
    %c0_i32_1 = arith.constant 0 : i32
    return %c0_i32, %c0_i32_0 : i32, i32
  }
  func.func @transform_29(%arg0: i32) -> (i32, i32) {
    %c0_i32 = arith.constant 0 : i32
    %c0_i32_0 = arith.constant 0 : i32
    %c0_i32_1 = arith.constant 0 : i32
    return %c0_i32, %c0_i32_0 : i32, i32
  }
  func.func @transform_30(%arg0: i32) -> (i32, i32) {
    %c0_i32 = arith.constant 0 : i32
    %c0_i32_0 = arith.constant 0 : i32
    %c0_i32_1 = arith.constant 0 : i32
    return %c0_i32, %c0_i32_0 : i32, i32
  }
  func.func @transform_31(%arg0: i32) -> (i32, i32) {
    %c0_i32 = arith.constant 0 : i32
    %c0_i32_0 = arith.constant 0 : i32
    %c0_i32_1 = arith.constant 0 : i32
    return %c0_i32, %c0_i32_0 : i32, i32
  }
  func.func @transform_32(%arg0: i32) -> (i32, i32) {
    %c0_i32 = arith.constant 0 : i32
    %c0_i32_0 = arith.constant 0 : i32
    %c0_i32_1 = arith.constant 0 : i32
    return %c0_i32, %c0_i32_0 : i32, i32
  }
  func.func @transform_33(%arg0: i32) -> (i32, i32) {
    %c0_i32 = arith.constant 0 : i32
    %c0_i32_0 = arith.constant 0 : i32
    %c0_i32_1 = arith.constant 0 : i32
    return %c0_i32, %c0_i32_0 : i32, i32
  }
  func.func @transform_34(%arg0: i32) -> (i32, i32) {
    %c0_i32 = arith.constant 0 : i32
    %c0_i32_0 = arith.constant 0 : i32
    %c0_i32_1 = arith.constant 0 : i32
    return %c0_i32, %c0_i32_0 : i32, i32
  }
  func.func @transform_35(%arg0: i32) -> (i32, i32) {
    %c0_i32 = arith.constant 0 : i32
    %c0_i32_0 = arith.constant 0 : i32
    %c0_i32_1 = arith.constant 0 : i32
    return %c0_i32, %c0_i32_0 : i32, i32
  }
  func.func @transform_36(%arg0: i32) -> (i32, i32) {
    %c0_i32 = arith.constant 0 : i32
    %c0_i32_0 = arith.constant 0 : i32
    %c0_i32_1 = arith.constant 0 : i32
    return %c0_i32, %c0_i32_0 : i32, i32
  }
  func.func @transform_37(%arg0: i32) -> (i32, i32) {
    %c0_i32 = arith.constant 0 : i32
    %c0_i32_0 = arith.constant 0 : i32
    %c0_i32_1 = arith.constant 0 : i32
    return %c0_i32, %c0_i32_0 : i32, i32
  }
  func.func @transform_38(%arg0: i32) -> (i32, i32) {
    %c0_i32 = arith.constant 0 : i32
    %c0_i32_0 = arith.constant 0 : i32
    %c0_i32_1 = arith.constant 0 : i32
    return %c0_i32, %c0_i32_0 : i32, i32
  }
  func.func @transform_39(%arg0: i32) -> (i32, i32) {
    %c0_i32 = arith.constant 0 : i32
    %c0_i32_0 = arith.constant 0 : i32
    %c0_i32_1 = arith.constant 0 : i32
    return %c0_i32, %c0_i32_0 : i32, i32
  }
  func.func @transform_40(%arg0: i32) -> (i32, i32) {
    %c0_i32 = arith.constant 0 : i32
    %c0_i32_0 = arith.constant 0 : i32
    %c0_i32_1 = arith.constant 0 : i32
    return %c0_i32, %c0_i32_0 : i32, i32
  }
  func.func @transform_41(%arg0: i32) -> (i32, i32) {
    %c0_i32 = arith.constant 0 : i32
    %c0_i32_0 = arith.constant 0 : i32
    %c0_i32_1 = arith.constant 0 : i32
    return %c0_i32, %c0_i32_0 : i32, i32
  }
  func.func @transform_42(%arg0: i32) -> (i32, i32) {
    %c0_i32 = arith.constant 0 : i32
    %c0_i32_0 = arith.constant 0 : i32
    %c0_i32_1 = arith.constant 0 : i32
    return %c0_i32, %c0_i32_0 : i32, i32
  }
  func.func @transform_43(%arg0: i32) -> (i32, i32) {
    %c0_i32 = arith.constant 0 : i32
    %c0_i32_0 = arith.constant 0 : i32
    %c0_i32_1 = arith.constant 0 : i32
    return %c0_i32, %c0_i32_0 : i32, i32
  }
  func.func @transform_44(%arg0: i32) -> (i32, i32) {
    %c0_i32 = arith.constant 0 : i32
    %c0_i32_0 = arith.constant 0 : i32
    %c0_i32_1 = arith.constant 0 : i32
    return %c0_i32, %c0_i32_0 : i32, i32
  }
  func.func @transform_45(%arg0: i32) -> (i32, i32) {
    %c0_i32 = arith.constant 0 : i32
    %c0_i32_0 = arith.constant 0 : i32
    %c0_i32_1 = arith.constant 0 : i32
    return %c0_i32, %c0_i32_0 : i32, i32
  }
  func.func @transform_46(%arg0: i32) -> (i32, i32) {
    %c0_i32 = arith.constant 0 : i32
    %c0_i32_0 = arith.constant 0 : i32
    %c0_i32_1 = arith.constant 0 : i32
    return %c0_i32, %c0_i32_0 : i32, i32
  }
  func.func @transform_47(%arg0: i32) -> (i32, i32) {
    %c0_i32 = arith.constant 0 : i32
    %c0_i32_0 = arith.constant 0 : i32
    %c0_i32_1 = arith.constant 0 : i32
    return %c0_i32, %c0_i32_0 : i32, i32
  }
  func.func @transform_48(%arg0: i32) -> (i32, i32) {
    %c0_i32 = arith.constant 0 : i32
    %c0_i32_0 = arith.constant 0 : i32
    %c0_i32_1 = arith.constant 0 : i32
    return %c0_i32, %c0_i32_0 : i32, i32
  }
  func.func @transform_49(%arg0: i32) -> (i32, i32) {
    %c0_i32 = arith.constant 0 : i32
    %c0_i32_0 = arith.constant 0 : i32
    %c0_i32_1 = arith.constant 0 : i32
    return %c0_i32, %c0_i32_0 : i32, i32
  }
  func.func @transform_50(%arg0: i32) -> (i32, i32) {
    %c0_i32 = arith.constant 0 : i32
    %c0_i32_0 = arith.constant 0 : i32
    %c0_i32_1 = arith.constant 0 : i32
    return %c0_i32, %c0_i32_0 : i32, i32
  }
  func.func @transform_51(%arg0: i32) -> (i32, i32) {
    %c0_i32 = arith.constant 0 : i32
    %c0_i32_0 = arith.constant 0 : i32
    %c0_i32_1 = arith.constant 0 : i32
    return %c0_i32, %c0_i32_0 : i32, i32
  }
  func.func @transform_52(%arg0: i32) -> (i32, i32) {
    %c0_i32 = arith.constant 0 : i32
    %c0_i32_0 = arith.constant 0 : i32
    %c0_i32_1 = arith.constant 0 : i32
    return %c0_i32, %c0_i32_0 : i32, i32
  }
  func.func @transform_53(%arg0: i32) -> (i32, i32) {
    %c0_i32 = arith.constant 0 : i32
    %c0_i32_0 = arith.constant 0 : i32
    %c0_i32_1 = arith.constant 0 : i32
    return %c0_i32, %c0_i32_0 : i32, i32
  }
  func.func @transform_54(%arg0: i32) -> (i32, i32) {
    %c0_i32 = arith.constant 0 : i32
    %c0_i32_0 = arith.constant 0 : i32
    %c0_i32_1 = arith.constant 0 : i32
    return %c0_i32, %c0_i32_0 : i32, i32
  }
  func.func @transform_55(%arg0: i32) -> (i32, i32) {
    %c0_i32 = arith.constant 0 : i32
    %c0_i32_0 = arith.constant 0 : i32
    %c0_i32_1 = arith.constant 0 : i32
    return %c0_i32, %c0_i32_0 : i32, i32
  }
  func.func @transform_56(%arg0: i32) -> (i32, i32) {
    %c0_i32 = arith.constant 0 : i32
    %c0_i32_0 = arith.constant 0 : i32
    %c0_i32_1 = arith.constant 0 : i32
    return %c0_i32, %c0_i32_0 : i32, i32
  }
  func.func @transform_57(%arg0: i32) -> (i32, i32) {
    %c0_i32 = arith.constant 0 : i32
    %c0_i32_0 = arith.constant 0 : i32
    %c0_i32_1 = arith.constant 0 : i32
    return %c0_i32, %c0_i32_0 : i32, i32
  }
  func.func @transform_58(%arg0: i32) -> (i32, i32) {
    %c0_i32 = arith.constant 0 : i32
    %c0_i32_0 = arith.constant 0 : i32
    %c0_i32_1 = arith.constant 0 : i32
    return %c0_i32, %c0_i32_0 : i32, i32
  }
  func.func @transform_59(%arg0: i32) -> (i32, i32) {
    %c0_i32 = arith.constant 0 : i32
    %c0_i32_0 = arith.constant 0 : i32
    %c0_i32_1 = arith.constant 0 : i32
    return %c0_i32, %c0_i32_0 : i32, i32
  }
  func.func @transform_60(%arg0: i32) -> (i32, i32) {
    %c0_i32 = arith.constant 0 : i32
    %c0_i32_0 = arith.constant 0 : i32
    %c0_i32_1 = arith.constant 0 : i32
    return %c0_i32, %c0_i32_0 : i32, i32
  }
  func.func @transform_61(%arg0: i32) -> (i32, i32) {
    %c0_i32 = arith.constant 0 : i32
    %c0_i32_0 = arith.constant 0 : i32
    %c0_i32_1 = arith.constant 0 : i32
    return %c0_i32, %c0_i32_0 : i32, i32
  }
  func.func @transform_62(%arg0: i32) -> (i32, i32) {
    %c0_i32 = arith.constant 0 : i32
    %c0_i32_0 = arith.constant 0 : i32
    %c0_i32_1 = arith.constant 0 : i32
    return %c0_i32, %c0_i32_0 : i32, i32
  }
  func.func @transform_63(%arg0: i32) -> (i32, i32) {
    %c0_i32 = arith.constant 0 : i32
    %c0_i32_0 = arith.constant 0 : i32
    %c0_i32_1 = arith.constant 0 : i32
    return %c0_i32, %c0_i32_0 : i32, i32
  }
  func.func @transform_64(%arg0: i32) -> (i32, i32) {
    %c0_i32 = arith.constant 0 : i32
    %c0_i32_0 = arith.constant 0 : i32
    %c0_i32_1 = arith.constant 0 : i32
    return %c0_i32, %c0_i32_0 : i32, i32
  }
  func.func @transform_65(%arg0: i32) -> (i32, i32) {
    %c0_i32 = arith.constant 0 : i32
    %c0_i32_0 = arith.constant 0 : i32
    %c0_i32_1 = arith.constant 0 : i32
    return %c0_i32, %c0_i32_0 : i32, i32
  }
  func.func @transform_66(%arg0: i32) -> (i32, i32) {
    %c0_i32 = arith.constant 0 : i32
    %c0_i32_0 = arith.constant 0 : i32
    %c0_i32_1 = arith.constant 0 : i32
    return %c0_i32, %c0_i32_0 : i32, i32
  }
  func.func @transform_67(%arg0: i32) -> (i32, i32) {
    %c0_i32 = arith.constant 0 : i32
    %c0_i32_0 = arith.constant 0 : i32
    %c0_i32_1 = arith.constant 0 : i32
    return %c0_i32, %c0_i32_0 : i32, i32
  }
  func.func @transform_68(%arg0: i32) -> (i32, i32) {
    %c0_i32 = arith.constant 0 : i32
    %c0_i32_0 = arith.constant 0 : i32
    %c0_i32_1 = arith.constant 0 : i32
    return %c0_i32, %c0_i32_0 : i32, i32
  }
  func.func @transform_69(%arg0: i32) -> (i32, i32) {
    %c0_i32 = arith.constant 0 : i32
    %c0_i32_0 = arith.constant 0 : i32
    %c0_i32_1 = arith.constant 0 : i32
    return %c0_i32, %c0_i32_0 : i32, i32
  }
  func.func @transform_70(%arg0: i32) -> (i32, i32) {
    %c0_i32 = arith.constant 0 : i32
    %c0_i32_0 = arith.constant 0 : i32
    %c0_i32_1 = arith.constant 0 : i32
    return %c0_i32, %c0_i32_0 : i32, i32
  }
  func.func @transform_71(%arg0: i32) -> (i32, i32) {
    %c0_i32 = arith.constant 0 : i32
    %c0_i32_0 = arith.constant 0 : i32
    %c0_i32_1 = arith.constant 0 : i32
    return %c0_i32, %c0_i32_0 : i32, i32
  }
}

</mosaic_0001>

<llo_original>
// kernel: megblock_forward.1
$region0: #{megblock_forward.1}
  #allocation0 [shape = 'u32[]', space=smem, size = 0x4, offset = 0x4, fixed_abs, tag = 'smem constant byte address 0x4 - core index']
  #allocation1 [shape = 'u32[144,128]{1,0:T(1,128)}', space=vmem, size = 0x12000, scoped, tag = 'internal scratch']
  %s0 = inlined_call_operand.smem [shape: u32[72], index: -1, kind: input, shape index: {}]
  %s1 = sld [smem:[%s0]]
  %s2 = scalar_lea.smem %s0, 1
  %s3 = sld [smem:[%s2]]
  %s4 = scalar_lea.smem %s0, 2
  %s5 = sld [smem:[%s4]]
  %s6 = scalar_lea.smem %s0, 3
  %s7 = sld [smem:[%s6]]
  %s8 = scalar_lea.smem %s0, 4
  %s9 = sld [smem:[%s8]]
  %s10 = scalar_lea.smem %s0, 5
  %s11 = sld [smem:[%s10]]
  %s12 = scalar_lea.smem %s0, 6
  %s13 = sld [smem:[%s12]]
  %s14 = scalar_lea.smem %s0, 7
  %s15 = sld [smem:[%s14]]
  %s16 = scalar_lea.smem %s0, 8
  %s17 = sld [smem:[%s16]]
  %s18 = scalar_lea.smem %s0, 9
  %s19 = sld [smem:[%s18]]
  %s20 = scalar_lea.smem %s0, 10
  %s21 = sld [smem:[%s20]]
  %s22 = scalar_lea.smem %s0, 11
  %s23 = sld [smem:[%s22]]
  %s24 = scalar_lea.smem %s0, 12
  %s25 = sld [smem:[%s24]]
  %s26 = scalar_lea.smem %s0, 13
  %s27 = sld [smem:[%s26]]
  %s28 = scalar_lea.smem %s0, 14
  %s29 = sld [smem:[%s28]]
  %s30 = scalar_lea.smem %s0, 15
  %s31 = sld [smem:[%s30]]
  %s32 = scalar_lea.smem %s0, 16
  %s33 = sld [smem:[%s32]]
  %s34 = scalar_lea.smem %s0, 17
  %s35 = sld [smem:[%s34]]
  %s36 = scalar_lea.smem %s0, 18
  %s37 = sld [smem:[%s36]]
  %s38 = scalar_lea.smem %s0, 19
  %s39 = sld [smem:[%s38]]
  %s40 = scalar_lea.smem %s0, 20
  %s41 = sld [smem:[%s40]]
  %s42 = scalar_lea.smem %s0, 21
  %s43 = sld [smem:[%s42]]
  %s44 = scalar_lea.smem %s0, 22
  %s45 = sld [smem:[%s44]]
  %s46 = scalar_lea.smem %s0, 23
  %s47 = sld [smem:[%s46]]
  %s48 = scalar_lea.smem %s0, 24
  %s49 = sld [smem:[%s48]]
  %s50 = scalar_lea.smem %s0, 25
  %s51 = sld [smem:[%s50]]
  %s52 = scalar_lea.smem %s0, 26
  %s53 = sld [smem:[%s52]]
  %s54 = scalar_lea.smem %s0, 27
  %s55 = sld [smem:[%s54]]
  %s56 = scalar_lea.smem %s0, 28
  %s57 = sld [smem:[%s56]]
  %s58 = scalar_lea.smem %s0, 29
  %s59 = sld [smem:[%s58]]
  %s60 = scalar_lea.smem %s0, 30
  %s61 = sld [smem:[%s60]]
  %s62 = scalar_lea.smem %s0, 31
  %s63 = sld [smem:[%s62]]
  %s64 = scalar_lea.smem %s0, 32
  %s65 = sld [smem:[%s64]]
  %s66 = scalar_lea.smem %s0, 33
  %s67 = sld [smem:[%s66]]
  %s68 = scalar_lea.smem %s0, 34
  %s69 = sld [smem:[%s68]]
  %s70 = scalar_lea.smem %s0, 35
  %s71 = sld [smem:[%s70]]
  %s72 = scalar_lea.smem %s0, 36
  %s73 = sld [smem:[%s72]]
  %s74 = scalar_lea.smem %s0, 37
  %s75 = sld [smem:[%s74]]
  %s76 = scalar_lea.smem %s0, 38
  %s77 = sld [smem:[%s76]]
  %s78 = scalar_lea.smem %s0, 39
  %s79 = sld [smem:[%s78]]
  %s80 = scalar_lea.smem %s0, 40
  %s81 = sld [smem:[%s80]]
  %s82 = scalar_lea.smem %s0, 41
  %s83 = sld [smem:[%s82]]
  %s84 = scalar_lea.smem %s0, 42
  %s85 = sld [smem:[%s84]]
  %s86 = scalar_lea.smem %s0, 43
  %s87 = sld [smem:[%s86]]
  %s88 = scalar_lea.smem %s0, 44
  %s89 = sld [smem:[%s88]]
  %s90 = scalar_lea.smem %s0, 45
  %s91 = sld [smem:[%s90]]
  %s92 = scalar_lea.smem %s0, 46
  %s93 = sld [smem:[%s92]]
  %s94 = scalar_lea.smem %s0, 47
  %s95 = sld [smem:[%s94]]
  %s96 = scalar_lea.smem %s0, 48
  %s97 = sld [smem:[%s96]]
  %s98 = scalar_lea.smem %s0, 49
  %s99 = sld [smem:[%s98]]
  %s100 = scalar_lea.smem %s0, 50
  %s101 = sld [smem:[%s100]]
  %s102 = scalar_lea.smem %s0, 51
  %s103 = sld [smem:[%s102]]
  %s104 = scalar_lea.smem %s0, 52
  %s105 = sld [smem:[%s104]]
  %s106 = scalar_lea.smem %s0, 53
  %s107 = sld [smem:[%s106]]
  %s108 = scalar_lea.smem %s0, 54
  %s109 = sld [smem:[%s108]]
  %s110 = scalar_lea.smem %s0, 55
  %s111 = sld [smem:[%s110]]
  %s112 = scalar_lea.smem %s0, 56
  %s113 = sld [smem:[%s112]]
  %s114 = scalar_lea.smem %s0, 57
  %s115 = sld [smem:[%s114]]
  %s116 = scalar_lea.smem %s0, 58
  %s117 = sld [smem:[%s116]]
  %s118 = scalar_lea.smem %s0, 59
  %s119 = sld [smem:[%s118]]
  %s120 = scalar_lea.smem %s0, 60
  %s121 = sld [smem:[%s120]]
  %s122 = scalar_lea.smem %s0, 61
  %s123 = sld [smem:[%s122]]
  %s124 = scalar_lea.smem %s0, 62
  %s125 = sld [smem:[%s124]]
  %s126 = scalar_lea.smem %s0, 63
  %s127 = sld [smem:[%s126]]
  %s128 = scalar_lea.smem %s0, 64
  %s129 = sld [smem:[%s128]]
  %s130 = scalar_lea.smem %s0, 65
  %s131 = sld [smem:[%s130]]
  %s132 = scalar_lea.smem %s0, 66
  %s133 = sld [smem:[%s132]]
  %s134 = scalar_lea.smem %s0, 67
  %s135 = sld [smem:[%s134]]
  %s136 = scalar_lea.smem %s0, 68
  %s137 = sld [smem:[%s136]]
  %s138 = scalar_lea.smem %s0, 69
  %s139 = sld [smem:[%s138]]
  %s140 = scalar_lea.smem %s0, 70
  %s141 = sld [smem:[%s140]]
  %s142 = scalar_lea.smem %s0, 71
  %s143 = sld [smem:[%s142]]
  %144 = xla_tuple %s137, %s139, %s141, %s143
  %s145 = sld [smem:[#allocation0]]
  $region578: #{megblock_forward.1} parent=0
    _
  %s147 = ssub.s32 1, %s145
  %s148 = scalar_select 0, %s147, %s145
  $region1: #{megblock_forward.1} parent=0
    #allocation2 [shape = 'u8[4096]{0}', space=vmem, size = 0x1000, scoped, tag = 'input window, operand 0, single buffered']
    #allocation3 [shape = 's32[1]{0}', space=sflag, size = 0x4, scoped, tag = 'scoped memory for megblock_forward.1']
    #allocation4 [shape = 's32[1]{0}', space=sflag, size = 0x4, scoped, tag = 'scoped memory for megblock_forward.1']
    #allocation5 [shape = 'u8[1024]{0}', space=vmem, size = 0x400, scoped, tag = 'input window, operand 1, single buffered']
    #allocation6 [shape = 's32[1]{0}', space=sflag, size = 0x4, scoped, tag = 'scoped memory for megblock_forward.1']
    #allocation7 [shape = 'u8[8192]{0}', space=vmem, size = 0x2000, scoped, tag = 'input window, operand 2, single buffered']
    #allocation8 [shape = 'u8[8192]{0}', space=vmem, size = 0x2000, scoped, tag = 'input window, operand 3, single buffered']
    #allocation9 [shape = 's32[1]{0}', space=sflag, size = 0x4, scoped, tag = 'scoped memory for megblock_forward.1']
    #allocation10 [shape = 'u8[8192]{0}', space=vmem, size = 0x2000, scoped, tag = 'input window, operand 4, single buffered']
    #allocation11 [shape = 'u8[512]{0}', space=vmem, size = 0x400, scoped, tag = 'input window, operand 5, single buffered']
    #allocation12 [shape = 's32[1]{0}', space=sflag, size = 0x4, scoped, tag = 'scoped memory for megblock_forward.1']
    #allocation13 [shape = 'u8[8192]{0}', space=vmem, size = 0x2000, scoped, tag = 'input window, operand 6, single buffered']
    #allocation14 [shape = 'u8[8192]{0}', space=vmem, size = 0x2000, scoped, tag = 'input window, operand 7, single buffered']
    #allocation15 [shape = 's32[1]{0}', space=sflag, size = 0x4, scoped, tag = 'scoped memory for megblock_forward.1']
    #allocation16 [shape = 'u8[512]{0}', space=vmem, size = 0x400, scoped, tag = 'input window, operand 8, single buffered']
    #allocation17 [shape = 'u8[8192]{0}', space=vmem, size = 0x2000, scoped, tag = 'input window, operand 9, single buffered']
    #allocation18 [shape = 's32[1]{0}', space=sflag, size = 0x4, scoped, tag = 'scoped memory for megblock_forward.1']
    #allocation19 [shape = 'u8[512]{0}', space=vmem, size = 0x400, scoped, tag = 'input window, operand 10, single buffered']
    #allocation20 [shape = 'u8[8192]{0}', space=vmem, size = 0x2000, scoped, tag = 'input window, operand 11, single buffered']
    #allocation21 [shape = 's32[1]{0}', space=sflag, size = 0x4, scoped, tag = 'scoped memory for megblock_forward.1']
    #allocation22 [shape = 'u8[8192]{0}', space=vmem, size = 0x2000, scoped, tag = 'input window, operand 12, single buffered']
    #allocation23 [shape = 'u8[512]{0}', space=vmem, size = 0x400, scoped, tag = 'input window, operand 13, single buffered']
    #allocation24 [shape = 's32[1]{0}', space=sflag, size = 0x4, scoped, tag = 'scoped memory for megblock_forward.1']
    #allocation25 [shape = 'u8[4096]{0}', space=vmem, size = 0x1000, scoped, tag = 'input window, operand 14, single buffered']
    #allocation26 [shape = 'u8[512]{0}', space=vmem, size = 0x400, scoped, tag = 'input window, operand 15, single buffered']
    #allocation27 [shape = 's32[1]{0}', space=sflag, size = 0x4, scoped, tag = 'scoped memory for megblock_forward.1']
    #allocation28 [shape = 'u8[8192]{0}', space=vmem, size = 0x2000, scoped, tag = 'input window, operand 16, single buffered']
    #allocation29 [shape = 'u8[512]{0}', space=vmem, size = 0x400, scoped, tag = 'input window, operand 17, single buffered']
    #allocation30 [shape = 's32[1]{0}', space=sflag, size = 0x4, scoped, tag = 'scoped memory for megblock_forward.1']
    #allocation31 [shape = 'u8[16384]{0}', space=vmem, size = 0x4000, scoped, tag = 'input window, operand 18, single buffered']
    #allocation32 [shape = 'u8[512]{0}', space=vmem, size = 0x400, scoped, tag = 'input window, operand 19, single buffered']
    #allocation33 [shape = 's32[1]{0}', space=sflag, size = 0x4, scoped, tag = 'scoped memory for megblock_forward.1']
    #allocation34 [shape = 'u8[8192]{0}', space=vmem, size = 0x2000, scoped, tag = 'input window, operand 20, single buffered']
    #allocation35 [shape = 'u8[512]{0}', space=vmem, size = 0x400, scoped, tag = 'input window, operand 21, single buffered']
    #allocation36 [shape = 's32[1]{0}', space=sflag, size = 0x4, scoped, tag = 'scoped memory for megblock_forward.1']
    #allocation37 [shape = 'u8[16384]{0}', space=vmem, size = 0x4000, scoped, tag = 'input window, operand 22, single buffered']
    #allocation38 [shape = 'u8[512]{0}', space=vmem, size = 0x400, scoped, tag = 'input window, operand 23, single buffered']
    #allocation39 [shape = 's32[1]{0}', space=sflag, size = 0x4, scoped, tag = 'scoped memory for megblock_forward.1']
    #allocation40 [shape = 'u8[8192]{0}', space=vmem, size = 0x2000, scoped, tag = 'input window, operand 24, single buffered']
    #allocation41 [shape = 'u8[512]{0}', space=vmem, size = 0x400, scoped, tag = 'input window, operand 25, single buffered']
    #allocation42 [shape = 's32[1]{0}', space=sflag, size = 0x4, scoped, tag = 'scoped memory for megblock_forward.1']
    #allocation43 [shape = 'u8[16384]{0}', space=vmem, size = 0x4000, scoped, tag = 'input window, operand 26, single buffered']
    #allocation44 [shape = 'u8[512]{0}', space=vmem, size = 0x400, scoped, tag = 'input window, operand 27, single buffered']
    #allocation45 [shape = 's32[1]{0}', space=sflag, size = 0x4, scoped, tag = 'scoped memory for megblock_forward.1']
    #allocation46 [shape = 'u8[8192]{0}', space=vmem, size = 0x2000, scoped, tag = 'input window, operand 28, single buffered']
    #allocation47 [shape = 'u8[512]{0}', space=vmem, size = 0x400, scoped, tag = 'input window, operand 29, single buffered']
    #allocation48 [shape = 's32[1]{0}', space=sflag, size = 0x4, scoped, tag = 'scoped memory for megblock_forward.1']
    #allocation49 [shape = 'u8[16384]{0}', space=vmem, size = 0x4000, scoped, tag = 'input window, operand 30, single buffered']
    #allocation50 [shape = 'u8[512]{0}', space=vmem, size = 0x400, scoped, tag = 'input window, operand 31, single buffered']
    #allocation51 [shape = 's32[1]{0}', space=sflag, size = 0x4, scoped, tag = 'scoped memory for megblock_forward.1']
    #allocation52 [shape = 'u8[32768]{0}', space=vmem, size = 0x8000, scoped, tag = 'input window, operand 32, single buffered']
    #allocation53 [shape = 'u8[512]{0}', space=vmem, size = 0x400, scoped, tag = 'input window, operand 33, single buffered']
    #allocation54 [shape = 's32[1]{0}', space=sflag, size = 0x4, scoped, tag = 'scoped memory for megblock_forward.1']
    #allocation55 [shape = 'u8[16384]{0}', space=vmem, size = 0x4000, scoped, tag = 'input window, operand 34, single buffered']
    #allocation56 [shape = 'u8[512]{0}', space=vmem, size = 0x400, scoped, tag = 'input window, operand 35, single buffered']
    #allocation57 [shape = 's32[1]{0}', space=sflag, size = 0x4, scoped, tag = 'scoped memory for megblock_forward.1']
    #allocation58 [shape = 'u8[16384]{0}', space=vmem, size = 0x4000, scoped, tag = 'input window, operand 36, single buffered']
    #allocation59 [shape = 'u8[512]{0}', space=vmem, size = 0x400, scoped, tag = 'input window, operand 37, single buffered']
    #allocation60 [shape = 's32[1]{0}', space=sflag, size = 0x4, scoped, tag = 'scoped memory for megblock_forward.1']
    #allocation61 [shape = 'u8[32768]{0}', space=vmem, size = 0x8000, scoped, tag = 'input window, operand 38, single buffered']
    #allocation62 [shape = 'u8[512]{0}', space=vmem, size = 0x400, scoped, tag = 'input window, operand 39, single buffered']
    #allocation63 [shape = 's32[1]{0}', space=sflag, size = 0x4, scoped, tag = 'scoped memory for megblock_forward.1']
    #allocation64 [shape = 'u8[16384]{0}', space=vmem, size = 0x4000, scoped, tag = 'input window, operand 40, single buffered']
    #allocation65 [shape = 'u8[512]{0}', space=vmem, size = 0x400, scoped, tag = 'input window, operand 41, single buffered']
    #allocation66 [shape = 's32[1]{0}', space=sflag, size = 0x4, scoped, tag = 'scoped memory for megblock_forward.1']
    #allocation67 [shape = 'u8[16384]{0}', space=vmem, size = 0x4000, scoped, tag = 'input window, operand 42, single buffered']
    #allocation68 [shape = 'u8[512]{0}', space=vmem, size = 0x400, scoped, tag = 'input window, operand 43, single buffered']
    #allocation69 [shape = 's32[1]{0}', space=sflag, size = 0x4, scoped, tag = 'scoped memory for megblock_forward.1']
    #allocation70 [shape = 'u8[24576]{0}', space=vmem, size = 0x6000, scoped, tag = 'input window, operand 44, single buffered']
    #allocation71 [shape = 'u8[512]{0}', space=vmem, size = 0x400, scoped, tag = 'input window, operand 45, single buffered']
    #allocation72 [shape = 's32[1]{0}', space=sflag, size = 0x4, scoped, tag = 'scoped memory for megblock_forward.1']
    #allocation73 [shape = 'u8[16384]{0}', space=vmem, size = 0x4000, scoped, tag = 'input window, operand 46, single buffered']
    #allocation74 [shape = 'u8[512]{0}', space=vmem, size = 0x400, scoped, tag = 'input window, operand 47, single buffered']
    #allocation75 [shape = 's32[1]{0}', space=sflag, size = 0x4, scoped, tag = 'scoped memory for megblock_forward.1']
    #allocation76 [shape = 'u8[16384]{0}', space=vmem, size = 0x4000, scoped, tag = 'input window, operand 48, single buffered']
    #allocation77 [shape = 'u8[512]{0}', space=vmem, size = 0x400, scoped, tag = 'input window, operand 49, single buffered']
    #allocation78 [shape = 's32[1]{0}', space=sflag, size = 0x4, scoped, tag = 'scoped memory for megblock_forward.1']
    #allocation79 [shape = 'u8[24576]{0}', space=vmem, size = 0x6000, scoped, tag = 'input window, operand 50, single buffered']
    #allocation80 [shape = 'u8[512]{0}', space=vmem, size = 0x400, scoped, tag = 'input window, operand 51, single buffered']
    #allocation81 [shape = 's32[1]{0}', space=sflag, size = 0x4, scoped, tag = 'scoped memory for megblock_forward.1']
    #allocation82 [shape = 'u8[16384]{0}', space=vmem, size = 0x4000, scoped, tag = 'input window, operand 52, single buffered']
    #allocation83 [shape = 'u8[512]{0}', space=vmem, size = 0x400, scoped, tag = 'input window, operand 53, single buffered']
    #allocation84 [shape = 's32[1]{0}', space=sflag, size = 0x4, scoped, tag = 'scoped memory for megblock_forward.1']
    #allocation85 [shape = 'u8[16384]{0}', space=vmem, size = 0x4000, scoped, tag = 'input window, operand 54, single buffered']
    #allocation86 [shape = 'u8[512]{0}', space=vmem, size = 0x400, scoped, tag = 'input window, operand 55, single buffered']
    #allocation87 [shape = 's32[1]{0}', space=sflag, size = 0x4, scoped, tag = 'scoped memory for megblock_forward.1']
    #allocation88 [shape = 'u8[24576]{0}', space=vmem, size = 0x6000, scoped, tag = 'input window, operand 56, single buffered']
    #allocation89 [shape = 'u8[512]{0}', space=vmem, size = 0x400, scoped, tag = 'input window, operand 57, single buffered']
    #allocation90 [shape = 's32[1]{0}', space=sflag, size = 0x4, scoped, tag = 'scoped memory for megblock_forward.1']
    #allocation91 [shape = 'u8[16384]{0}', space=vmem, size = 0x4000, scoped, tag = 'input window, operand 58, single buffered']
    #allocation92 [shape = 'u8[512]{0}', space=vmem, size = 0x400, scoped, tag = 'input window, operand 59, single buffered']
    #allocation93 [shape = 's32[1]{0}', space=sflag, size = 0x4, scoped, tag = 'scoped memory for megblock_forward.1']
    #allocation94 [shape = 'u8[16384]{0}', space=vmem, size = 0x4000, scoped, tag = 'input window, operand 60, single buffered']
    #allocation95 [shape = 'u8[512]{0}', space=vmem, size = 0x400, scoped, tag = 'input window, operand 61, single buffered']
    #allocation96 [shape = 's32[1]{0}', space=sflag, size = 0x4, scoped, tag = 'scoped memory for megblock_forward.1']
    #allocation97 [shape = 'u8[24576]{0}', space=vmem, size = 0x6000, scoped, tag = 'input window, operand 62, single buffered']
    #allocation98 [shape = 'u8[512]{0}', space=vmem, size = 0x400, scoped, tag = 'input window, operand 63, single buffered']
    #allocation99 [shape = 's32[1]{0}', space=sflag, size = 0x4, scoped, tag = 'scoped memory for megblock_forward.1']
    #allocation100 [shape = 'u8[16384]{0}', space=vmem, size = 0x4000, scoped, tag = 'input window, operand 64, single buffered']
    #allocation101 [shape = 'u8[512]{0}', space=vmem, size = 0x400, scoped, tag = 'input window, operand 65, single buffered']
    #allocation102 [shape = 's32[1]{0}', space=sflag, size = 0x4, scoped, tag = 'scoped memory for megblock_forward.1']
    #allocation103 [shape = 'u8[16384]{0}', space=vmem, size = 0x4000, scoped, tag = 'input window, operand 66, single buffered']
    #allocation104 [shape = 'u8[512]{0}', space=vmem, size = 0x400, scoped, tag = 'input window, operand 67, single buffered']
    #allocation105 [shape = 's32[1]{0}', space=sflag, size = 0x4, scoped, tag = 'scoped memory for megblock_forward.1']
    #allocation106 [shape = 'u8[8192]{0}', space=vmem, size = 0x2000, scoped, tag = 'output window, operand 0, single buffered']
    #allocation107 [shape = 'u8[8192]{0}', space=vmem, size = 0x2000, scoped, tag = 'output window, operand 1, single buffered']
    #allocation108 [shape = 's32[1]{0}', space=sflag, size = 0x4, scoped, tag = 'scoped memory for megblock_forward.1']
    #allocation109 [shape = 'u8[4096]{0}', space=vmem, size = 0x1000, scoped, tag = 'output window, operand 2, single buffered']
    #allocation110 [shape = 'u8[1024]{0}', space=vmem, size = 0x400, scoped, tag = 'output window, operand 3, single buffered']
    #allocation111 [shape = 's32[1]{0}', space=sflag, size = 0x4, scoped, tag = 'scoped memory for megblock_forward.1']
    %149 = vsyncpa [#allocation3], 0
    %150 = vsyncpa [#allocation6], 0
    %151 = vsyncpa [#allocation9], 0
    %152 = vsyncpa [#allocation12], 0
    %153 = vsyncpa [#allocation15], 0
    %154 = vsyncpa [#allocation18], 0
    %155 = vsyncpa [#allocation21], 0
    %156 = vsyncpa [#allocation24], 0
    %157 = vsyncpa [#allocation27], 0
    %158 = vsyncpa [#allocation30], 0
    %159 = vsyncpa [#allocation33], 0
    %160 = vsyncpa [#allocation36], 0
    %161 = vsyncpa [#allocation39], 0
    %162 = vsyncpa [#allocation42], 0
    %163 = vsyncpa [#allocation45], 0
    %164 = vsyncpa [#allocation48], 0
    %165 = vsyncpa [#allocation51], 0
    %166 = vsyncpa [#allocation54], 0
    %167 = vsyncpa [#allocation57], 0
    %168 = vsyncpa [#allocation60], 0
    %169 = vsyncpa [#allocation63], 0
    %170 = vsyncpa [#allocation66], 0
    %171 = vsyncpa [#allocation69], 0
    %172 = vsyncpa [#allocation72], 0
    %173 = vsyncpa [#allocation75], 0
    %174 = vsyncpa [#allocation78], 0
    %175 = vsyncpa [#allocation81], 0
    %176 = vsyncpa [#allocation84], 0
    %177 = vsyncpa [#allocation87], 0
    %178 = vsyncpa [#allocation90], 0
    %179 = vsyncpa [#allocation93], 0
    %180 = vsyncpa [#allocation96], 0
    %181 = vsyncpa [#allocation99], 0
    %182 = vsyncpa [#allocation102], 0
    %183 = vsyncpa [#allocation105], 0
    %184 = vsyncpa [#allocation4], 0
    %185 = vsyncpa [#allocation108], 0
    %186 = vsyncpa [#allocation111], 0
    // Predicated region
    $region2: #{megblock_forward.1} parent=1 // pred_check
      _
    $region3: #{megblock_forward.1} parent=1 // pred_check_branch
      %188 = sbr.rel (0) target = $region5
    $region4: #{megblock_forward.1} parent=1 // pred_region
      %s190 = ssub.s32 128, 128
      %191 = vsyncadd [#allocation3], %s190
      %s193 = sshll.u32 [#allocation2], 4
      %s194 = int_to_ptr.vmem [resolvable:$true] %s193
      %196 = dma.hbm_to_vmem [thread:$0]  %s1, 128, %s194, [#allocation3]
    $region5: #{megblock_forward.1} parent=1 // pred_fallthru
      _
    // Predicated region
    $region6: #{megblock_forward.1} parent=1 // pred_check
      _
    $region7: #{megblock_forward.1} parent=1 // pred_check_branch
      %198 = sbr.rel (0) target = $region9
    $region8: #{megblock_forward.1} parent=1 // pred_region
      %s200 = ssub.s32 32, 32
      %201 = vsyncadd [#allocation6], %s200
      %s203 = sshll.u32 [#allocation5], 4
      %s204 = int_to_ptr.vmem [resolvable:$true] %s203
      %206 = dma.hbm_to_vmem [thread:$0]  %s3, 32, %s204, [#allocation6]
    $region9: #{megblock_forward.1} parent=1 // pred_fallthru
      _
    // Predicated region
    $region10: #{megblock_forward.1} parent=1 // pred_check
      _
    $region11: #{megblock_forward.1} parent=1 // pred_check_branch
      %208 = sbr.rel (0) target = $region13
    $region12: #{megblock_forward.1} parent=1 // pred_region
      %s210 = ssub.s32 256, 256
      %211 = vsyncadd [#allocation6], %s210
      %s212 = sshll.u32 [#allocation7], 4
      %s213 = int_to_ptr.vmem [resolvable:$true] %s212
      %218 = dma.hbm_to_vmem [thread:$0]  %s5, 256, %s213, [#allocation6], 128, 128, 8
    $region13: #{megblock_forward.1} parent=1 // pred_fallthru
      _
    // Predicated region
    $region14: #{megblock_forward.1} parent=1 // pred_check
      _
    $region15: #{megblock_forward.1} parent=1 // pred_check_branch
      %220 = sbr.rel (0) target = $region17
    $region16: #{megblock_forward.1} parent=1 // pred_region
      %s222 = ssub.s32 256, 256
      %223 = vsyncadd [#allocation9], %s222
      %s224 = sshll.u32 [#allocation8], 4
      %s225 = int_to_ptr.vmem [resolvable:$true] %s224
      %230 = dma.hbm_to_vmem [thread:$0]  %s7, 256, %s225, [#allocation9], 128, 128, 8
    $region17: #{megblock_forward.1} parent=1 // pred_fallthru
      _
    // Predicated region
    $region18: #{megblock_forward.1} parent=1 // pred_check
      _
    $region19: #{megblock_forward.1} parent=1 // pred_check_branch
      %232 = sbr.rel (0) target = $region21
    $region20: #{megblock_forward.1} parent=1 // pred_region
      %s234 = ssub.s32 256, 256
      %235 = vsyncadd [#allocation9], %s234
      %s236 = sshll.u32 [#allocation10], 4
      %s237 = int_to_ptr.vmem [resolvable:$true] %s236
      %242 = dma.hbm_to_vmem [thread:$0]  %s9, 256, %s237, [#allocation9], 128, 128, 8
    $region21: #{megblock_forward.1} parent=1 // pred_fallthru
      _
    // Predicated region
    $region22: #{megblock_forward.1} parent=1 // pred_check
      _
    $region23: #{megblock_forward.1} parent=1 // pred_check_branch
      %244 = sbr.rel (0) target = $region25
    $region24: #{megblock_forward.1} parent=1 // pred_region
      %s246 = ssub.s32 16, 16
      %247 = vsyncadd [#allocation12], %s246
      %s249 = sshll.u32 [#allocation11], 4
      %s250 = int_to_ptr.vmem [resolvable:$true] %s249
      %252 = dma.hbm_to_vmem [thread:$0]  %s11, 16, %s250, [#allocation12]
    $region25: #{megblock_forward.1} parent=1 // pred_fallthru
      _
    // Predicated region
    $region26: #{megblock_forward.1} parent=1 // pred_check
      _
    $region27: #{megblock_forward.1} parent=1 // pred_check_branch
      %254 = sbr.rel (0) target = $region29
    $region28: #{megblock_forward.1} parent=1 // pred_region
      %s256 = ssub.s32 256, 256
      %257 = vsyncadd [#allocation12], %s256
      %s258 = sshll.u32 [#allocation13], 4
      %s259 = int_to_ptr.vmem [resolvable:$true] %s258
      %264 = dma.hbm_to_vmem [thread:$0]  %s13, 256, %s259, [#allocation12], 128, 128, 8
    $region29: #{megblock_forward.1} parent=1 // pred_fallthru
      _
    // Predicated region
    $region30: #{megblock_forward.1} parent=1 // pred_check
      _
    $region31: #{megblock_forward.1} parent=1 // pred_check_branch
      %266 = sbr.rel (0) target = $region33
    $region32: #{megblock_forward.1} parent=1 // pred_region
      %s268 = ssub.s32 256, 256
      %269 = vsyncadd [#allocation15], %s268
      %s270 = sshll.u32 [#allocation14], 4
      %s271 = int_to_ptr.vmem [resolvable:$true] %s270
      %276 = dma.hbm_to_vmem [thread:$0]  %s15, 256, %s271, [#allocation15], 128, 128, 8
    $region33: #{megblock_forward.1} parent=1 // pred_fallthru
      _
    // Predicated region
    $region34: #{megblock_forward.1} parent=1 // pred_check
      _
    $region35: #{megblock_forward.1} parent=1 // pred_check_branch
      %278 = sbr.rel (0) target = $region37
    $region36: #{megblock_forward.1} parent=1 // pred_region
      %s280 = ssub.s32 16, 16
      %281 = vsyncadd [#allocation15], %s280
      %s283 = sshll.u32 [#allocation16], 4
      %s284 = int_to_ptr.vmem [resolvable:$true] %s283
      %286 = dma.hbm_to_vmem [thread:$0]  %s17, 16, %s284, [#allocation15]
    $region37: #{megblock_forward.1} parent=1 // pred_fallthru
      _
    // Predicated region
    $region38: #{megblock_forward.1} parent=1 // pred_check
      _
    $region39: #{megblock_forward.1} parent=1 // pred_check_branch
      %288 = sbr.rel (0) target = $region41
    $region40: #{megblock_forward.1} parent=1 // pred_region
      %s290 = ssub.s32 256, 256
      %291 = vsyncadd [#allocation18], %s290
      %s292 = sshll.u32 [#allocation17], 4
      %s293 = int_to_ptr.vmem [resolvable:$true] %s292
      %298 = dma.hbm_to_vmem [thread:$0]  %s19, 256, %s293, [#allocation18], 128, 128, 8
    $region41: #{megblock_forward.1} parent=1 // pred_fallthru
      _
    // Predicated region
    $region42: #{megblock_forward.1} parent=1 // pred_check
      _
    $region43: #{megblock_forward.1} parent=1 // pred_check_branch
      %300 = sbr.rel (0) target = $region45
    $region44: #{megblock_forward.1} parent=1 // pred_region
      %s302 = ssub.s32 16, 16
      %303 = vsyncadd [#allocation18], %s302
      %s305 = sshll.u32 [#allocation19], 4
      %s306 = int_to_ptr.vmem [resolvable:$true] %s305
      %308 = dma.hbm_to_vmem [thread:$0]  %s21, 16, %s306, [#allocation18]
    $region45: #{megblock_forward.1} parent=1 // pred_fallthru
      _
    // Predicated region
    $region46: #{megblock_forward.1} parent=1 // pred_check
      _
    $region47: #{megblock_forward.1} parent=1 // pred_check_branch
      %310 = sbr.rel (0) target = $region49
    $region48: #{megblock_forward.1} parent=1 // pred_region
      %s312 = ssub.s32 256, 256
      %313 = vsyncadd [#allocation21], %s312
      %s314 = sshll.u32 [#allocation20], 4
      %s315 = int_to_ptr.vmem [resolvable:$true] %s314
      %320 = dma.hbm_to_vmem [thread:$0]  %s23, 256, %s315, [#allocation21], 128, 128, 8
    $region49: #{megblock_forward.1} parent=1 // pred_fallthru
      _
    // Predicated region
    $region50: #{megblock_forward.1} parent=1 // pred_check
      _
    $region51: #{megblock_forward.1} parent=1 // pred_check_branch
      %322 = sbr.rel (0) target = $region53
    $region52: #{megblock_forward.1} parent=1 // pred_region
      %s324 = ssub.s32 256, 256
      %325 = vsyncadd [#allocation21], %s324
      %s326 = sshll.u32 [#allocation22], 4
      %s327 = int_to_ptr.vmem [resolvable:$true] %s326
      %332 = dma.hbm_to_vmem [thread:$0]  %s25, 256, %s327, [#allocation21], 128, 128, 8
    $region53: #{megblock_forward.1} parent=1 // pred_fallthru
      _
    // Predicated region
    $region54: #{megblock_forward.1} parent=1 // pred_check
      _
    $region55: #{megblock_forward.1} parent=1 // pred_check_branch
      %334 = sbr.rel (0) target = $region57
    $region56: #{megblock_forward.1} parent=1 // pred_region
      %s336 = ssub.s32 16, 16
      %337 = vsyncadd [#allocation24], %s336
      %s339 = sshll.u32 [#allocation23], 4
      %s340 = int_to_ptr.vmem [resolvable:$true] %s339
      %342 = dma.hbm_to_vmem [thread:$0]  %s27, 16, %s340, [#allocation24]
    $region57: #{megblock_forward.1} parent=1 // pred_fallthru
      _
    // Predicated region
    $region58: #{megblock_forward.1} parent=1 // pred_check
      _
    $region59: #{megblock_forward.1} parent=1 // pred_check_branch
      %344 = sbr.rel (0) target = $region61
    $region60: #{megblock_forward.1} parent=1 // pred_region
      %s346 = ssub.s32 128, 128
      %347 = vsyncadd [#allocation24], %s346
      %s349 = sshll.u32 [#allocation25], 4
      %s350 = int_to_ptr.vmem [resolvable:$true] %s349
      %352 = dma.hbm_to_vmem [thread:$0]  %s29, 128, %s350, [#allocation24]
    $region61: #{megblock_forward.1} parent=1 // pred_fallthru
      _
    // Predicated region
    $region62: #{megblock_forward.1} parent=1 // pred_check
      _
    $region63: #{megblock_forward.1} parent=1 // pred_check_branch
      %354 = sbr.rel (0) target = $region65
    $region64: #{megblock_forward.1} parent=1 // pred_region
      %s356 = ssub.s32 16, 16
      %357 = vsyncadd [#allocation27], %s356
      %s359 = sshll.u32 [#allocation26], 4
      %s360 = int_to_ptr.vmem [resolvable:$true] %s359
      %362 = dma.hbm_to_vmem [thread:$0]  %s31, 16, %s360, [#allocation27]
    $region65: #{megblock_forward.1} parent=1 // pred_fallthru
      _
    // Predicated region
    $region66: #{megblock_forward.1} parent=1 // pred_check
      _
    $region67: #{megblock_forward.1} parent=1 // pred_check_branch
      %364 = sbr.rel (0) target = $region69
    $region68: #{megblock_forward.1} parent=1 // pred_region
      %s366 = ssub.s32 256, 256
      %367 = vsyncadd [#allocation27], %s366
      %s368 = sshll.u32 [#allocation28], 4
      %s369 = int_to_ptr.vmem [resolvable:$true] %s368
      %374 = dma.hbm_to_vmem [thread:$0]  %s33, 256, %s369, [#allocation27], 64, 64, 4
    $region69: #{megblock_forward.1} parent=1 // pred_fallthru
      _
    // Predicated region
    $region70: #{megblock_forward.1} parent=1 // pred_check
      _
    $region71: #{megblock_forward.1} parent=1 // pred_check_branch
      %376 = sbr.rel (0) target = $region73
    $region72: #{megblock_forward.1} parent=1 // pred_region
      %s378 = ssub.s32 16, 16
      %379 = vsyncadd [#allocation30], %s378
      %s381 = sshll.u32 [#allocation29], 4
      %s382 = int_to_ptr.vmem [resolvable:$true] %s381
      %384 = dma.hbm_to_vmem [thread:$0]  %s35, 16, %s382, [#allocation30]
    $region73: #{megblock_forward.1} parent=1 // pred_fallthru
      _
    // Predicated region
    $region74: #{megblock_forward.1} parent=1 // pred_check
      _
    $region75: #{megblock_forward.1} parent=1 // pred_check_branch
      %386 = sbr.rel (0) target = $region77
    $region76: #{megblock_forward.1} parent=1 // pred_region
      %s388 = ssub.s32 512, 512
      %389 = vsyncadd [#allocation30], %s388
      %s390 = sshll.u32 [#allocation31], 4
      %s391 = int_to_ptr.vmem [resolvable:$true] %s390
      %396 = dma.hbm_to_vmem [thread:$0]  %s37, 512, %s391, [#allocation30], 64, 64, 4
    $region77: #{megblock_forward.1} parent=1 // pred_fallthru
      _
    // Predicated region
    $region78: #{megblock_forward.1} parent=1 // pred_check
      _
    $region79: #{megblock_forward.1} parent=1 // pred_check_branch
      %398 = sbr.rel (0) target = $region81
    $region80: #{megblock_forward.1} parent=1 // pred_region
      %s400 = ssub.s32 16, 16
      %401 = vsyncadd [#allocation33], %s400
      %s403 = sshll.u32 [#allocation32], 4
      %s404 = int_to_ptr.vmem [resolvable:$true] %s403
      %406 = dma.hbm_to_vmem [thread:$0]  %s39, 16, %s404, [#allocation33]
    $region81: #{megblock_forward.1} parent=1 // pred_fallthru
      _
    // Predicated region
    $region82: #{megblock_forward.1} parent=1 // pred_check
      _
    $region83: #{megblock_forward.1} parent=1 // pred_check_branch
      %408 = sbr.rel (0) target = $region85
    $region84: #{megblock_forward.1} parent=1 // pred_region
      %s410 = ssub.s32 256, 256
      %411 = vsyncadd [#allocation33], %s410
      %s412 = sshll.u32 [#allocation34], 4
      %s413 = int_to_ptr.vmem [resolvable:$true] %s412
      %418 = dma.hbm_to_vmem [thread:$0]  %s41, 256, %s413, [#allocation33], 64, 64, 4
    $region85: #{megblock_forward.1} parent=1 // pred_fallthru
      _
    // Predicated region
    $region86: #{megblock_forward.1} parent=1 // pred_check
      _
    $region87: #{megblock_forward.1} parent=1 // pred_check_branch
      %420 = sbr.rel (0) target = $region89
    $region88: #{megblock_forward.1} parent=1 // pred_region
      %s422 = ssub.s32 16, 16
      %423 = vsyncadd [#allocation36], %s422
      %s425 = sshll.u32 [#allocation35], 4
      %s426 = int_to_ptr.vmem [resolvable:$true] %s425
      %428 = dma.hbm_to_vmem [thread:$0]  %s43, 16, %s426, [#allocation36]
    $region89: #{megblock_forward.1} parent=1 // pred_fallthru
      _
    // Predicated region
    $region90: #{megblock_forward.1} parent=1 // pred_check
      _
    $region91: #{megblock_forward.1} parent=1 // pred_check_branch
      %430 = sbr.rel (0) target = $region93
    $region92: #{megblock_forward.1} parent=1 // pred_region
      %s432 = ssub.s32 512, 512
      %433 = vsyncadd [#allocation36], %s432
      %s434 = sshll.u32 [#allocation37], 4
      %s435 = int_to_ptr.vmem [resolvable:$true] %s434
      %440 = dma.hbm_to_vmem [thread:$0]  %s45, 512, %s435, [#allocation36], 64, 64, 4
    $region93: #{megblock_forward.1} parent=1 // pred_fallthru
      _
    // Predicated region
    $region94: #{megblock_forward.1} parent=1 // pred_check
      _
    $region95: #{megblock_forward.1} parent=1 // pred_check_branch
      %442 = sbr.rel (0) target = $region97
    $region96: #{megblock_forward.1} parent=1 // pred_region
      %s444 = ssub.s32 16, 16
      %445 = vsyncadd [#allocation39], %s444
      %s447 = sshll.u32 [#allocation38], 4
      %s448 = int_to_ptr.vmem [resolvable:$true] %s447
      %450 = dma.hbm_to_vmem [thread:$0]  %s47, 16, %s448, [#allocation39]
    $region97: #{megblock_forward.1} parent=1 // pred_fallthru
      _
    // Predicated region
    $region98: #{megblock_forward.1} parent=1 // pred_check
      _
    $region99: #{megblock_forward.1} parent=1 // pred_check_branch
      %452 = sbr.rel (0) target = $region101
    $region100: #{megblock_forward.1} parent=1 // pred_region
      %s454 = ssub.s32 256, 256
      %455 = vsyncadd [#allocation39], %s454
      %s456 = sshll.u32 [#allocation40], 4
      %s457 = int_to_ptr.vmem [resolvable:$true] %s456
      %462 = dma.hbm_to_vmem [thread:$0]  %s49, 256, %s457, [#allocation39], 64, 64, 4
    $region101: #{megblock_forward.1} parent=1 // pred_fallthru
      _
    // Predicated region
    $region102: #{megblock_forward.1} parent=1 // pred_check
      _
    $region103: #{megblock_forward.1} parent=1 // pred_check_branch
      %464 = sbr.rel (0) target = $region105
    $region104: #{megblock_forward.1} parent=1 // pred_region
      %s466 = ssub.s32 16, 16
      %467 = vsyncadd [#allocation42], %s466
      %s469 = sshll.u32 [#allocation41], 4
      %s470 = int_to_ptr.vmem [resolvable:$true] %s469
      %472 = dma.hbm_to_vmem [thread:$0]  %s51, 16, %s470, [#allocation42]
    $region105: #{megblock_forward.1} parent=1 // pred_fallthru
      _
    // Predicated region
    $region106: #{megblock_forward.1} parent=1 // pred_check
      _
    $region107: #{megblock_forward.1} parent=1 // pred_check_branch
      %474 = sbr.rel (0) target = $region109
    $region108: #{megblock_forward.1} parent=1 // pred_region
      %s476 = ssub.s32 512, 512
      %477 = vsyncadd [#allocation42], %s476
      %s478 = sshll.u32 [#allocation43], 4
      %s479 = int_to_ptr.vmem [resolvable:$true] %s478
      %484 = dma.hbm_to_vmem [thread:$0]  %s53, 512, %s479, [#allocation42], 64, 64, 4
    $region109: #{megblock_forward.1} parent=1 // pred_fallthru
      _
    // Predicated region
    $region110: #{megblock_forward.1} parent=1 // pred_check
      _
    $region111: #{megblock_forward.1} parent=1 // pred_check_branch
      %486 = sbr.rel (0) target = $region113
    $region112: #{megblock_forward.1} parent=1 // pred_region
      %s488 = ssub.s32 16, 16
      %489 = vsyncadd [#allocation45], %s488
      %s491 = sshll.u32 [#allocation44], 4
      %s492 = int_to_ptr.vmem [resolvable:$true] %s491
      %494 = dma.hbm_to_vmem [thread:$0]  %s55, 16, %s492, [#allocation45]
    $region113: #{megblock_forward.1} parent=1 // pred_fallthru
      _
    // Predicated region
    $region114: #{megblock_forward.1} parent=1 // pred_check
      _
    $region115: #{megblock_forward.1} parent=1 // pred_check_branch
      %496 = sbr.rel (0) target = $region117
    $region116: #{megblock_forward.1} parent=1 // pred_region
      %s498 = ssub.s32 256, 256
      %499 = vsyncadd [#allocation45], %s498
      %s500 = sshll.u32 [#allocation46], 4
      %s501 = int_to_ptr.vmem [resolvable:$true] %s500
      %506 = dma.hbm_to_vmem [thread:$0]  %s57, 256, %s501, [#allocation45], 64, 64, 4
    $region117: #{megblock_forward.1} parent=1 // pred_fallthru
      _
    // Predicated region
    $region118: #{megblock_forward.1} parent=1 // pred_check
      _
    $region119: #{megblock_forward.1} parent=1 // pred_check_branch
      %508 = sbr.rel (0) target = $region121
    $region120: #{megblock_forward.1} parent=1 // pred_region
      %s510 = ssub.s32 16, 16
      %511 = vsyncadd [#allocation48], %s510
      %s513 = sshll.u32 [#allocation47], 4
      %s514 = int_to_ptr.vmem [resolvable:$true] %s513
      %516 = dma.hbm_to_vmem [thread:$0]  %s59, 16, %s514, [#allocation48]
    $region121: #{megblock_forward.1} parent=1 // pred_fallthru
      _
    // Predicated region
    $region122: #{megblock_forward.1} parent=1 // pred_check
      _
    $region123: #{megblock_forward.1} parent=1 // pred_check_branch
      %518 = sbr.rel (0) target = $region125
    $region124: #{megblock_forward.1} parent=1 // pred_region
      %s520 = ssub.s32 512, 512
      %521 = vsyncadd [#allocation48], %s520
      %s522 = sshll.u32 [#allocation49], 4
      %s523 = int_to_ptr.vmem [resolvable:$true] %s522
      %528 = dma.hbm_to_vmem [thread:$0]  %s61, 512, %s523, [#allocation48], 64, 64, 4
    $region125: #{megblock_forward.1} parent=1 // pred_fallthru
      _
    // Predicated region
    $region126: #{megblock_forward.1} parent=1 // pred_check
      _
    $region127: #{megblock_forward.1} parent=1 // pred_check_branch
      %530 = sbr.rel (0) target = $region129
    $region128: #{megblock_forward.1} parent=1 // pred_region
      %s532 = ssub.s32 16, 16
      %533 = vsyncadd [#allocation51], %s532
      %s535 = sshll.u32 [#allocation50], 4
      %s536 = int_to_ptr.vmem [resolvable:$true] %s535
      %538 = dma.hbm_to_vmem [thread:$0]  %s63, 16, %s536, [#allocation51]
    $region129: #{megblock_forward.1} parent=1 // pred_fallthru
      _
    // Predicated region
    $region130: #{megblock_forward.1} parent=1 // pred_check
      _
    $region131: #{megblock_forward.1} parent=1 // pred_check_branch
      %540 = sbr.rel (0) target = $region133
    $region132: #{megblock_forward.1} parent=1 // pred_region
      %s542 = ssub.s32 1024, 1024
      %543 = vsyncadd [#allocation51], %s542
      %s544 = sshll.u32 [#allocation52], 4
      %s545 = int_to_ptr.vmem [resolvable:$true] %s544
      %550 = dma.hbm_to_vmem [thread:$0]  %s65, 1024, %s545, [#allocation51], 64, 64, 4
    $region133: #{megblock_forward.1} parent=1 // pred_fallthru
      _
    // Predicated region
    $region134: #{megblock_forward.1} parent=1 // pred_check
      _
    $region135: #{megblock_forward.1} parent=1 // pred_check_branch
      %552 = sbr.rel (0) target = $region137
    $region136: #{megblock_forward.1} parent=1 // pred_region
      %s554 = ssub.s32 16, 16
      %555 = vsyncadd [#allocation54], %s554
      %s557 = sshll.u32 [#allocation53], 4
      %s558 = int_to_ptr.vmem [resolvable:$true] %s557
      %560 = dma.hbm_to_vmem [thread:$0]  %s67, 16, %s558, [#allocation54]
    $region137: #{megblock_forward.1} parent=1 // pred_fallthru
      _
    // Predicated region
    $region138: #{megblock_forward.1} parent=1 // pred_check
      _
    $region139: #{megblock_forward.1} parent=1 // pred_check_branch
      %562 = sbr.rel (0) target = $region141
    $region140: #{megblock_forward.1} parent=1 // pred_region
      %s564 = ssub.s32 512, 512
      %565 = vsyncadd [#allocation54], %s564
      %s566 = sshll.u32 [#allocation55], 4
      %s567 = int_to_ptr.vmem [resolvable:$true] %s566
      %572 = dma.hbm_to_vmem [thread:$0]  %s69, 512, %s567, [#allocation54], 64, 64, 4
    $region141: #{megblock_forward.1} parent=1 // pred_fallthru
      _
    // Predicated region
    $region142: #{megblock_forward.1} parent=1 // pred_check
      _
    $region143: #{megblock_forward.1} parent=1 // pred_check_branch
      %574 = sbr.rel (0) target = $region145
    $region144: #{megblock_forward.1} parent=1 // pred_region
      %s576 = ssub.s32 16, 16
      %577 = vsyncadd [#allocation57], %s576
      %s579 = sshll.u32 [#allocation56], 4
      %s580 = int_to_ptr.vmem [resolvable:$true] %s579
      %582 = dma.hbm_to_vmem [thread:$0]  %s71, 16, %s580, [#allocation57]
    $region145: #{megblock_forward.1} parent=1 // pred_fallthru
      _
    // Predicated region
    $region146: #{megblock_forward.1} parent=1 // pred_check
      _
    $region147: #{megblock_forward.1} parent=1 // pred_check_branch
      %584 = sbr.rel (0) target = $region149
    $region148: #{megblock_forward.1} parent=1 // pred_region
      %s586 = ssub.s32 512, 512
      %587 = vsyncadd [#allocation57], %s586
      %s588 = sshll.u32 [#allocation58], 4
      %s589 = int_to_ptr.vmem [resolvable:$true] %s588
      %594 = dma.hbm_to_vmem [thread:$0]  %s73, 512, %s589, [#allocation57], 64, 64, 4
    $region149: #{megblock_forward.1} parent=1 // pred_fallthru
      _
    // Predicated region
    $region150: #{megblock_forward.1} parent=1 // pred_check
      _
    $region151: #{megblock_forward.1} parent=1 // pred_check_branch
      %596 = sbr.rel (0) target = $region153
    $region152: #{megblock_forward.1} parent=1 // pred_region
      %s598 = ssub.s32 16, 16
      %599 = vsyncadd [#allocation60], %s598
      %s601 = sshll.u32 [#allocation59], 4
      %s602 = int_to_ptr.vmem [resolvable:$true] %s601
      %604 = dma.hbm_to_vmem [thread:$0]  %s75, 16, %s602, [#allocation60]
    $region153: #{megblock_forward.1} parent=1 // pred_fallthru
      _
    // Predicated region
    $region154: #{megblock_forward.1} parent=1 // pred_check
      _
    $region155: #{megblock_forward.1} parent=1 // pred_check_branch
      %606 = sbr.rel (0) target = $region157
    $region156: #{megblock_forward.1} parent=1 // pred_region
      %s608 = ssub.s32 1024, 1024
      %609 = vsyncadd [#allocation60], %s608
      %s610 = sshll.u32 [#allocation61], 4
      %s611 = int_to_ptr.vmem [resolvable:$true] %s610
      %616 = dma.hbm_to_vmem [thread:$0]  %s77, 1024, %s611, [#allocation60], 64, 64, 4
    $region157: #{megblock_forward.1} parent=1 // pred_fallthru
      _
    // Predicated region
    $region158: #{megblock_forward.1} parent=1 // pred_check
      _
    $region159: #{megblock_forward.1} parent=1 // pred_check_branch
      %618 = sbr.rel (0) target = $region161
    $region160: #{megblock_forward.1} parent=1 // pred_region
      %s620 = ssub.s32 16, 16
      %621 = vsyncadd [#allocation63], %s620
      %s623 = sshll.u32 [#allocation62], 4
      %s624 = int_to_ptr.vmem [resolvable:$true] %s623
      %626 = dma.hbm_to_vmem [thread:$0]  %s79, 16, %s624, [#allocation63]
    $region161: #{megblock_forward.1} parent=1 // pred_fallthru
      _
    // Predicated region
    $region162: #{megblock_forward.1} parent=1 // pred_check
      _
    $region163: #{megblock_forward.1} parent=1 // pred_check_branch
      %628 = sbr.rel (0) target = $region165
    $region164: #{megblock_forward.1} parent=1 // pred_region
      %s630 = ssub.s32 512, 512
      %631 = vsyncadd [#allocation63], %s630
      %s632 = sshll.u32 [#allocation64], 4
      %s633 = int_to_ptr.vmem [resolvable:$true] %s632
      %638 = dma.hbm_to_vmem [thread:$0]  %s81, 512, %s633, [#allocation63], 64, 64, 4
    $region165: #{megblock_forward.1} parent=1 // pred_fallthru
      _
    // Predicated region
    $region166: #{megblock_forward.1} parent=1 // pred_check
      _
    $region167: #{megblock_forward.1} parent=1 // pred_check_branch
      %640 = sbr.rel (0) target = $region169
    $region168: #{megblock_forward.1} parent=1 // pred_region
      %s642 = ssub.s32 16, 16
      %643 = vsyncadd [#allocation66], %s642
      %s645 = sshll.u32 [#allocation65], 4
      %s646 = int_to_ptr.vmem [resolvable:$true] %s645
      %648 = dma.hbm_to_vmem [thread:$0]  %s83, 16, %s646, [#allocation66]
    $region169: #{megblock_forward.1} parent=1 // pred_fallthru
      _
    // Predicated region
    $region170: #{megblock_forward.1} parent=1 // pred_check
      _
    $region171: #{megblock_forward.1} parent=1 // pred_check_branch
      %650 = sbr.rel (0) target = $region173
    $region172: #{megblock_forward.1} parent=1 // pred_region
      %s652 = ssub.s32 512, 512
      %653 = vsyncadd [#allocation66], %s652
      %s654 = sshll.u32 [#allocation67], 4
      %s655 = int_to_ptr.vmem [resolvable:$true] %s654
      %660 = dma.hbm_to_vmem [thread:$0]  %s85, 512, %s655, [#allocation66], 64, 64, 4
    $region173: #{megblock_forward.1} parent=1 // pred_fallthru
      _
    // Predicated region
    $region174: #{megblock_forward.1} parent=1 // pred_check
      _
    $region175: #{megblock_forward.1} parent=1 // pred_check_branch
      %662 = sbr.rel (0) target = $region177
    $region176: #{megblock_forward.1} parent=1 // pred_region
      %s664 = ssub.s32 16, 16
      %665 = vsyncadd [#allocation69], %s664
      %s667 = sshll.u32 [#allocation68], 4
      %s668 = int_to_ptr.vmem [resolvable:$true] %s667
      %670 = dma.hbm_to_vmem [thread:$0]  %s87, 16, %s668, [#allocation69]
    $region177: #{megblock_forward.1} parent=1 // pred_fallthru
      _
    // Predicated region
    $region178: #{megblock_forward.1} parent=1 // pred_check
      _
    $region179: #{megblock_forward.1} parent=1 // pred_check_branch
      %672 = sbr.rel (0) target = $region181
    $region180: #{megblock_forward.1} parent=1 // pred_region
      %s674 = ssub.s32 768, 768
      %675 = vsyncadd [#allocation69], %s674
      %s676 = sshll.u32 [#allocation70], 4
      %s677 = int_to_ptr.vmem [resolvable:$true] %s676
      %682 = dma.hbm_to_vmem [thread:$0]  %s89, 768, %s677, [#allocation69], 64, 64, 4
    $region181: #{megblock_forward.1} parent=1 // pred_fallthru
      _
    // Predicated region
    $region182: #{megblock_forward.1} parent=1 // pred_check
      _
    $region183: #{megblock_forward.1} parent=1 // pred_check_branch
      %684 = sbr.rel (0) target = $region185
    $region184: #{megblock_forward.1} parent=1 // pred_region
      %s686 = ssub.s32 16, 16
      %687 = vsyncadd [#allocation72], %s686
      %s689 = sshll.u32 [#allocation71], 4
      %s690 = int_to_ptr.vmem [resolvable:$true] %s689
      %692 = dma.hbm_to_vmem [thread:$0]  %s91, 16, %s690, [#allocation72]
    $region185: #{megblock_forward.1} parent=1 // pred_fallthru
      _
    // Predicated region
    $region186: #{megblock_forward.1} parent=1 // pred_check
      _
    $region187: #{megblock_forward.1} parent=1 // pred_check_branch
      %694 = sbr.rel (0) target = $region189
    $region188: #{megblock_forward.1} parent=1 // pred_region
      %s696 = ssub.s32 512, 512
      %697 = vsyncadd [#allocation72], %s696
      %s698 = sshll.u32 [#allocation73], 4
      %s699 = int_to_ptr.vmem [resolvable:$true] %s698
      %704 = dma.hbm_to_vmem [thread:$0]  %s93, 512, %s699, [#allocation72], 64, 64, 4
    $region189: #{megblock_forward.1} parent=1 // pred_fallthru
      _
    // Predicated region
    $region190: #{megblock_forward.1} parent=1 // pred_check
      _
    $region191: #{megblock_forward.1} parent=1 // pred_check_branch
      %706 = sbr.rel (0) target = $region193
    $region192: #{megblock_forward.1} parent=1 // pred_region
      %s708 = ssub.s32 16, 16
      %709 = vsyncadd [#allocation75], %s708
      %s711 = sshll.u32 [#allocation74], 4
      %s712 = int_to_ptr.vmem [resolvable:$true] %s711
      %714 = dma.hbm_to_vmem [thread:$0]  %s95, 16, %s712, [#allocation75]
    $region193: #{megblock_forward.1} parent=1 // pred_fallthru
      _
    // Predicated region
    $region194: #{megblock_forward.1} parent=1 // pred_check
      _
    $region195: #{megblock_forward.1} parent=1 // pred_check_branch
      %716 = sbr.rel (0) target = $region197
    $region196: #{megblock_forward.1} parent=1 // pred_region
      %s718 = ssub.s32 512, 512
      %719 = vsyncadd [#allocation75], %s718
      %s720 = sshll.u32 [#allocation76], 4
      %s721 = int_to_ptr.vmem [resolvable:$true] %s720
      %726 = dma.hbm_to_vmem [thread:$0]  %s97, 512, %s721, [#allocation75], 64, 64, 4
    $region197: #{megblock_forward.1} parent=1 // pred_fallthru
      _
    // Predicated region
    $region198: #{megblock_forward.1} parent=1 // pred_check
      _
    $region199: #{megblock_forward.1} parent=1 // pred_check_branch
      %728 = sbr.rel (0) target = $region201
    $region200: #{megblock_forward.1} parent=1 // pred_region
      %s730 = ssub.s32 16, 16
      %731 = vsyncadd [#allocation78], %s730
      %s733 = sshll.u32 [#allocation77], 4
      %s734 = int_to_ptr.vmem [resolvable:$true] %s733
      %736 = dma.hbm_to_vmem [thread:$0]  %s99, 16, %s734, [#allocation78]
    $region201: #{megblock_forward.1} parent=1 // pred_fallthru
      _
    // Predicated region
    $region202: #{megblock_forward.1} parent=1 // pred_check
      _
    $region203: #{megblock_forward.1} parent=1 // pred_check_branch
      %738 = sbr.rel (0) target = $region205
    $region204: #{megblock_forward.1} parent=1 // pred_region
      %s740 = ssub.s32 768, 768
      %741 = vsyncadd [#allocation78], %s740
      %s742 = sshll.u32 [#allocation79], 4
      %s743 = int_to_ptr.vmem [resolvable:$true] %s742
      %748 = dma.hbm_to_vmem [thread:$0]  %s101, 768, %s743, [#allocation78], 64, 64, 4
    $region205: #{megblock_forward.1} parent=1 // pred_fallthru
      _
    // Predicated region
    $region206: #{megblock_forward.1} parent=1 // pred_check
      _
    $region207: #{megblock_forward.1} parent=1 // pred_check_branch
      %750 = sbr.rel (0) target = $region209
    $region208: #{megblock_forward.1} parent=1 // pred_region
      %s752 = ssub.s32 16, 16
      %753 = vsyncadd [#allocation81], %s752
      %s755 = sshll.u32 [#allocation80], 4
      %s756 = int_to_ptr.vmem [resolvable:$true] %s755
      %758 = dma.hbm_to_vmem [thread:$0]  %s103, 16, %s756, [#allocation81]
    $region209: #{megblock_forward.1} parent=1 // pred_fallthru
      _
    // Predicated region
    $region210: #{megblock_forward.1} parent=1 // pred_check
      _
    $region211: #{megblock_forward.1} parent=1 // pred_check_branch
      %760 = sbr.rel (0) target = $region213
    $region212: #{megblock_forward.1} parent=1 // pred_region
      %s762 = ssub.s32 512, 512
      %763 = vsyncadd [#allocation81], %s762
      %s764 = sshll.u32 [#allocation82], 4
      %s765 = int_to_ptr.vmem [resolvable:$true] %s764
      %770 = dma.hbm_to_vmem [thread:$0]  %s105, 512, %s765, [#allocation81], 64, 64, 4
    $region213: #{megblock_forward.1} parent=1 // pred_fallthru
      _
    // Predicated region
    $region214: #{megblock_forward.1} parent=1 // pred_check
      _
    $region215: #{megblock_forward.1} parent=1 // pred_check_branch
      %772 = sbr.rel (0) target = $region217
    $region216: #{megblock_forward.1} parent=1 // pred_region
      %s774 = ssub.s32 16, 16
      %775 = vsyncadd [#allocation84], %s774
      %s777 = sshll.u32 [#allocation83], 4
      %s778 = int_to_ptr.vmem [resolvable:$true] %s777
      %780 = dma.hbm_to_vmem [thread:$0]  %s107, 16, %s778, [#allocation84]
    $region217: #{megblock_forward.1} parent=1 // pred_fallthru
      _
    // Predicated region
    $region218: #{megblock_forward.1} parent=1 // pred_check
      _
    $region219: #{megblock_forward.1} parent=1 // pred_check_branch
      %782 = sbr.rel (0) target = $region221
    $region220: #{megblock_forward.1} parent=1 // pred_region
      %s784 = ssub.s32 512, 512
      %785 = vsyncadd [#allocation84], %s784
      %s786 = sshll.u32 [#allocation85], 4
      %s787 = int_to_ptr.vmem [resolvable:$true] %s786
      %792 = dma.hbm_to_vmem [thread:$0]  %s109, 512, %s787, [#allocation84], 64, 64, 4
    $region221: #{megblock_forward.1} parent=1 // pred_fallthru
      _
    // Predicated region
    $region222: #{megblock_forward.1} parent=1 // pred_check
      _
    $region223: #{megblock_forward.1} parent=1 // pred_check_branch
      %794 = sbr.rel (0) target = $region225
    $region224: #{megblock_forward.1} parent=1 // pred_region
      %s796 = ssub.s32 16, 16
      %797 = vsyncadd [#allocation87], %s796
      %s799 = sshll.u32 [#allocation86], 4
      %s800 = int_to_ptr.vmem [resolvable:$true] %s799
      %802 = dma.hbm_to_vmem [thread:$0]  %s111, 16, %s800, [#allocation87]
    $region225: #{megblock_forward.1} parent=1 // pred_fallthru
      _
    // Predicated region
    $region226: #{megblock_forward.1} parent=1 // pred_check
      _
    $region227: #{megblock_forward.1} parent=1 // pred_check_branch
      %804 = sbr.rel (0) target = $region229
    $region228: #{megblock_forward.1} parent=1 // pred_region
      %s806 = ssub.s32 768, 768
      %807 = vsyncadd [#allocation87], %s806
      %s808 = sshll.u32 [#allocation88], 4
      %s809 = int_to_ptr.vmem [resolvable:$true] %s808
      %814 = dma.hbm_to_vmem [thread:$0]  %s113, 768, %s809, [#allocation87], 64, 64, 4
    $region229: #{megblock_forward.1} parent=1 // pred_fallthru
      _
    // Predicated region
    $region230: #{megblock_forward.1} parent=1 // pred_check
      _
    $region231: #{megblock_forward.1} parent=1 // pred_check_branch
      %816 = sbr.rel (0) target = $region233
    $region232: #{megblock_forward.1} parent=1 // pred_region
      %s818 = ssub.s32 16, 16
      %819 = vsyncadd [#allocation90], %s818
      %s821 = sshll.u32 [#allocation89], 4
      %s822 = int_to_ptr.vmem [resolvable:$true] %s821
      %824 = dma.hbm_to_vmem [thread:$0]  %s115, 16, %s822, [#allocation90]
    $region233: #{megblock_forward.1} parent=1 // pred_fallthru
      _
    // Predicated region
    $region234: #{megblock_forward.1} parent=1 // pred_check
      _
    $region235: #{megblock_forward.1} parent=1 // pred_check_branch
      %826 = sbr.rel (0) target = $region237
    $region236: #{megblock_forward.1} parent=1 // pred_region
      %s828 = ssub.s32 512, 512
      %829 = vsyncadd [#allocation90], %s828
      %s830 = sshll.u32 [#allocation91], 4
      %s831 = int_to_ptr.vmem [resolvable:$true] %s830
      %836 = dma.hbm_to_vmem [thread:$0]  %s117, 512, %s831, [#allocation90], 64, 64, 4
    $region237: #{megblock_forward.1} parent=1 // pred_fallthru
      _
    // Predicated region
    $region238: #{megblock_forward.1} parent=1 // pred_check
      _
    $region239: #{megblock_forward.1} parent=1 // pred_check_branch
      %838 = sbr.rel (0) target = $region241
    $region240: #{megblock_forward.1} parent=1 // pred_region
      %s840 = ssub.s32 16, 16
      %841 = vsyncadd [#allocation93], %s840
      %s843 = sshll.u32 [#allocation92], 4
      %s844 = int_to_ptr.vmem [resolvable:$true] %s843
      %846 = dma.hbm_to_vmem [thread:$0]  %s119, 16, %s844, [#allocation93]
    $region241: #{megblock_forward.1} parent=1 // pred_fallthru
      _
    // Predicated region
    $region242: #{megblock_forward.1} parent=1 // pred_check
      _
    $region243: #{megblock_forward.1} parent=1 // pred_check_branch
      %848 = sbr.rel (0) target = $region245
    $region244: #{megblock_forward.1} parent=1 // pred_region
      %s850 = ssub.s32 512, 512
      %851 = vsyncadd [#allocation93], %s850
      %s852 = sshll.u32 [#allocation94], 4
      %s853 = int_to_ptr.vmem [resolvable:$true] %s852
      %858 = dma.hbm_to_vmem [thread:$0]  %s121, 512, %s853, [#allocation93], 64, 64, 4
    $region245: #{megblock_forward.1} parent=1 // pred_fallthru
      _
    // Predicated region
    $region246: #{megblock_forward.1} parent=1 // pred_check
      _
    $region247: #{megblock_forward.1} parent=1 // pred_check_branch
      %860 = sbr.rel (0) target = $region249
    $region248: #{megblock_forward.1} parent=1 // pred_region
      %s862 = ssub.s32 16, 16
      %863 = vsyncadd [#allocation96], %s862
      %s865 = sshll.u32 [#allocation95], 4
      %s866 = int_to_ptr.vmem [resolvable:$true] %s865
      %868 = dma.hbm_to_vmem [thread:$0]  %s123, 16, %s866, [#allocation96]
    $region249: #{megblock_forward.1} parent=1 // pred_fallthru
      _
    // Predicated region
    $region250: #{megblock_forward.1} parent=1 // pred_check
      _
    $region251: #{megblock_forward.1} parent=1 // pred_check_branch
      %870 = sbr.rel (0) target = $region253
    $region252: #{megblock_forward.1} parent=1 // pred_region
      %s872 = ssub.s32 768, 768
      %873 = vsyncadd [#allocation96], %s872
      %s874 = sshll.u32 [#allocation97], 4
      %s875 = int_to_ptr.vmem [resolvable:$true] %s874
      %880 = dma.hbm_to_vmem [thread:$0]  %s125, 768, %s875, [#allocation96], 64, 64, 4
    $region253: #{megblock_forward.1} parent=1 // pred_fallthru
      _
    // Predicated region
    $region254: #{megblock_forward.1} parent=1 // pred_check
      _
    $region255: #{megblock_forward.1} parent=1 // pred_check_branch
      %882 = sbr.rel (0) target = $region257
    $region256: #{megblock_forward.1} parent=1 // pred_region
      %s884 = ssub.s32 16, 16
      %885 = vsyncadd [#allocation99], %s884
      %s887 = sshll.u32 [#allocation98], 4
      %s888 = int_to_ptr.vmem [resolvable:$true] %s887
      %890 = dma.hbm_to_vmem [thread:$0]  %s127, 16, %s888, [#allocation99]
    $region257: #{megblock_forward.1} parent=1 // pred_fallthru
      _
    // Predicated region
    $region258: #{megblock_forward.1} parent=1 // pred_check
      _
    $region259: #{megblock_forward.1} parent=1 // pred_check_branch
      %892 = sbr.rel (0) target = $region261
    $region260: #{megblock_forward.1} parent=1 // pred_region
      %s894 = ssub.s32 512, 512
      %895 = vsyncadd [#allocation99], %s894
      %s896 = sshll.u32 [#allocation100], 4
      %s897 = int_to_ptr.vmem [resolvable:$true] %s896
      %902 = dma.hbm_to_vmem [thread:$0]  %s129, 512, %s897, [#allocation99], 64, 64, 4
    $region261: #{megblock_forward.1} parent=1 // pred_fallthru
      _
    // Predicated region
    $region262: #{megblock_forward.1} parent=1 // pred_check
      _
    $region263: #{megblock_forward.1} parent=1 // pred_check_branch
      %904 = sbr.rel (0) target = $region265
    $region264: #{megblock_forward.1} parent=1 // pred_region
      %s906 = ssub.s32 16, 16
      %907 = vsyncadd [#allocation102], %s906
      %s909 = sshll.u32 [#allocation101], 4
      %s910 = int_to_ptr.vmem [resolvable:$true] %s909
      %912 = dma.hbm_to_vmem [thread:$0]  %s131, 16, %s910, [#allocation102]
    $region265: #{megblock_forward.1} parent=1 // pred_fallthru
      _
    // Predicated region
    $region266: #{megblock_forward.1} parent=1 // pred_check
      _
    $region267: #{megblock_forward.1} parent=1 // pred_check_branch
      %914 = sbr.rel (0) target = $region269
    $region268: #{megblock_forward.1} parent=1 // pred_region
      %s916 = ssub.s32 512, 512
      %917 = vsyncadd [#allocation102], %s916
      %s918 = sshll.u32 [#allocation103], 4
      %s919 = int_to_ptr.vmem [resolvable:$true] %s918
      %924 = dma.hbm_to_vmem [thread:$0]  %s133, 512, %s919, [#allocation102], 64, 64, 4
    $region269: #{megblock_forward.1} parent=1 // pred_fallthru
      _
    // Predicated region
    $region270: #{megblock_forward.1} parent=1 // pred_check
      _
    $region271: #{megblock_forward.1} parent=1 // pred_check_branch
      %926 = sbr.rel (0) target = $region273
    $region272: #{megblock_forward.1} parent=1 // pred_region
      %s928 = ssub.s32 16, 16
      %929 = vsyncadd [#allocation105], %s928
      %s931 = sshll.u32 [#allocation104], 4
      %s932 = int_to_ptr.vmem [resolvable:$true] %s931
      %934 = dma.hbm_to_vmem [thread:$0]  %s135, 16, %s932, [#allocation105]
    $region273: #{megblock_forward.1} parent=1 // pred_fallthru
      _
    // Predicated region
    $region274: #{megblock_forward.1} parent=1 // pred_check
      _
    $region275: #{megblock_forward.1} parent=1 // pred_check_branch
      %936 = sbr.rel (0) target = $region277
    $region276: #{megblock_forward.1} parent=1 // pred_region
      %937 = dma.done [#allocation3], 128
    $region277: #{megblock_forward.1} parent=1 // pred_fallthru
      _
    // Predicated region
    $region278: #{megblock_forward.1} parent=1 // pred_check
      _
    $region279: #{megblock_forward.1} parent=1 // pred_check_branch
      %939 = sbr.rel (0) target = $region281
    $region280: #{megblock_forward.1} parent=1 // pred_region
      %940 = dma.done [#allocation6], 32
    $region281: #{megblock_forward.1} parent=1 // pred_fallthru
      _
    // Predicated region
    $region282: #{megblock_forward.1} parent=1 // pred_check
      _
    $region283: #{megblock_forward.1} parent=1 // pred_check_branch
      %942 = sbr.rel (0) target = $region285
    $region284: #{megblock_forward.1} parent=1 // pred_region
      %943 = dma.done [#allocation6], 256
    $region285: #{megblock_forward.1} parent=1 // pred_fallthru
      _
    // Predicated region
    $region286: #{megblock_forward.1} parent=1 // pred_check
      _
    $region287: #{megblock_forward.1} parent=1 // pred_check_branch
      %945 = sbr.rel (0) target = $region289
    $region288: #{megblock_forward.1} parent=1 // pred_region
      %946 = dma.done [#allocation9], 256
    $region289: #{megblock_forward.1} parent=1 // pred_fallthru
      _
    // Predicated region
    $region290: #{megblock_forward.1} parent=1 // pred_check
      _
    $region291: #{megblock_forward.1} parent=1 // pred_check_branch
      %948 = sbr.rel (0) target = $region293
    $region292: #{megblock_forward.1} parent=1 // pred_region
      %949 = dma.done [#allocation9], 256
    $region293: #{megblock_forward.1} parent=1 // pred_fallthru
      _
    // Predicated region
    $region294: #{megblock_forward.1} parent=1 // pred_check
      _
    $region295: #{megblock_forward.1} parent=1 // pred_check_branch
      %951 = sbr.rel (0) target = $region297
    $region296: #{megblock_forward.1} parent=1 // pred_region
      %952 = dma.done [#allocation12], 16
    $region297: #{megblock_forward.1} parent=1 // pred_fallthru
      _
    // Predicated region
    $region298: #{megblock_forward.1} parent=1 // pred_check
      _
    $region299: #{megblock_forward.1} parent=1 // pred_check_branch
      %954 = sbr.rel (0) target = $region301
    $region300: #{megblock_forward.1} parent=1 // pred_region
      %955 = dma.done [#allocation12], 256
    $region301: #{megblock_forward.1} parent=1 // pred_fallthru
      _
    // Predicated region
    $region302: #{megblock_forward.1} parent=1 // pred_check
      _
    $region303: #{megblock_forward.1} parent=1 // pred_check_branch
      %957 = sbr.rel (0) target = $region305
    $region304: #{megblock_forward.1} parent=1 // pred_region
      %958 = dma.done [#allocation15], 256
    $region305: #{megblock_forward.1} parent=1 // pred_fallthru
      _
    // Predicated region
    $region306: #{megblock_forward.1} parent=1 // pred_check
      _
    $region307: #{megblock_forward.1} parent=1 // pred_check_branch
      %960 = sbr.rel (0) target = $region309
    $region308: #{megblock_forward.1} parent=1 // pred_region
      %961 = dma.done [#allocation15], 16
    $region309: #{megblock_forward.1} parent=1 // pred_fallthru
      _
    // Predicated region
    $region310: #{megblock_forward.1} parent=1 // pred_check
      _
    $region311: #{megblock_forward.1} parent=1 // pred_check_branch
      %963 = sbr.rel (0) target = $region313
    $region312: #{megblock_forward.1} parent=1 // pred_region
      %964 = dma.done [#allocation18], 256
    $region313: #{megblock_forward.1} parent=1 // pred_fallthru
      _
    // Predicated region
    $region314: #{megblock_forward.1} parent=1 // pred_check
      _
    $region315: #{megblock_forward.1} parent=1 // pred_check_branch
      %966 = sbr.rel (0) target = $region317
    $region316: #{megblock_forward.1} parent=1 // pred_region
      %967 = dma.done [#allocation18], 16
    $region317: #{megblock_forward.1} parent=1 // pred_fallthru
      _
    // Predicated region
    $region318: #{megblock_forward.1} parent=1 // pred_check
      _
    $region319: #{megblock_forward.1} parent=1 // pred_check_branch
      %969 = sbr.rel (0) target = $region321
    $region320: #{megblock_forward.1} parent=1 // pred_region
      %970 = dma.done [#allocation21], 256
    $region321: #{megblock_forward.1} parent=1 // pred_fallthru
      _
    // Predicated region
    $region322: #{megblock_forward.1} parent=1 // pred_check
      _
    $region323: #{megblock_forward.1} parent=1 // pred_check_branch
      %972 = sbr.rel (0) target = $region325
    $region324: #{megblock_forward.1} parent=1 // pred_region
      %973 = dma.done [#allocation21], 256
    $region325: #{megblock_forward.1} parent=1 // pred_fallthru
      _
    // Predicated region
    $region326: #{megblock_forward.1} parent=1 // pred_check
      _
    $region327: #{megblock_forward.1} parent=1 // pred_check_branch
      %975 = sbr.rel (0) target = $region329
    $region328: #{megblock_forward.1} parent=1 // pred_region
      %976 = dma.done [#allocation24], 16
    $region329: #{megblock_forward.1} parent=1 // pred_fallthru
      _
    // Predicated region
    $region330: #{megblock_forward.1} parent=1 // pred_check
      _
    $region331: #{megblock_forward.1} parent=1 // pred_check_branch
      %978 = sbr.rel (0) target = $region333
    $region332: #{megblock_forward.1} parent=1 // pred_region
      %979 = dma.done [#allocation24], 128
    $region333: #{megblock_forward.1} parent=1 // pred_fallthru
      _
    // Predicated region
    $region334: #{megblock_forward.1} parent=1 // pred_check
      _
    $region335: #{megblock_forward.1} parent=1 // pred_check_branch
      %981 = sbr.rel (0) target = $region337
    $region336: #{megblock_forward.1} parent=1 // pred_region
      %982 = dma.done [#allocation27], 16
    $region337: #{megblock_forward.1} parent=1 // pred_fallthru
      _
    // Predicated region
    $region338: #{megblock_forward.1} parent=1 // pred_check
      _
    $region339: #{megblock_forward.1} parent=1 // pred_check_branch
      %984 = sbr.rel (0) target = $region341
    $region340: #{megblock_forward.1} parent=1 // pred_region
      %985 = dma.done [#allocation27], 256
    $region341: #{megblock_forward.1} parent=1 // pred_fallthru
      _
    // Predicated region
    $region342: #{megblock_forward.1} parent=1 // pred_check
      _
    $region343: #{megblock_forward.1} parent=1 // pred_check_branch
      %987 = sbr.rel (0) target = $region345
    $region344: #{megblock_forward.1} parent=1 // pred_region
      %988 = dma.done [#allocation30], 16
    $region345: #{megblock_forward.1} parent=1 // pred_fallthru
      _
    // Predicated region
    $region346: #{megblock_forward.1} parent=1 // pred_check
      _
    $region347: #{megblock_forward.1} parent=1 // pred_check_branch
      %990 = sbr.rel (0) target = $region349
    $region348: #{megblock_forward.1} parent=1 // pred_region
      %991 = dma.done [#allocation30], 512
    $region349: #{megblock_forward.1} parent=1 // pred_fallthru
      _
    // Predicated region
    $region350: #{megblock_forward.1} parent=1 // pred_check
      _
    $region351: #{megblock_forward.1} parent=1 // pred_check_branch
      %993 = sbr.rel (0) target = $region353
    $region352: #{megblock_forward.1} parent=1 // pred_region
      %994 = dma.done [#allocation33], 16
    $region353: #{megblock_forward.1} parent=1 // pred_fallthru
      _
    // Predicated region
    $region354: #{megblock_forward.1} parent=1 // pred_check
      _
    $region355: #{megblock_forward.1} parent=1 // pred_check_branch
      %996 = sbr.rel (0) target = $region357
    $region356: #{megblock_forward.1} parent=1 // pred_region
      %997 = dma.done [#allocation33], 256
    $region357: #{megblock_forward.1} parent=1 // pred_fallthru
      _
    // Predicated region
    $region358: #{megblock_forward.1} parent=1 // pred_check
      _
    $region359: #{megblock_forward.1} parent=1 // pred_check_branch
      %999 = sbr.rel (0) target = $region361
    $region360: #{megblock_forward.1} parent=1 // pred_region
      %1000 = dma.done [#allocation36], 16
    $region361: #{megblock_forward.1} parent=1 // pred_fallthru
      _
    // Predicated region
    $region362: #{megblock_forward.1} parent=1 // pred_check
      _
    $region363: #{megblock_forward.1} parent=1 // pred_check_branch
      %1002 = sbr.rel (0) target = $region365
    $region364: #{megblock_forward.1} parent=1 // pred_region
      %1003 = dma.done [#allocation36], 512
    $region365: #{megblock_forward.1} parent=1 // pred_fallthru
      _
    // Predicated region
    $region366: #{megblock_forward.1} parent=1 // pred_check
      _
    $region367: #{megblock_forward.1} parent=1 // pred_check_branch
      %1005 = sbr.rel (0) target = $region369
    $region368: #{megblock_forward.1} parent=1 // pred_region
      %1006 = dma.done [#allocation39], 16
    $region369: #{megblock_forward.1} parent=1 // pred_fallthru
      _
    // Predicated region
    $region370: #{megblock_forward.1} parent=1 // pred_check
      _
    $region371: #{megblock_forward.1} parent=1 // pred_check_branch
      %1008 = sbr.rel (0) target = $region373
    $region372: #{megblock_forward.1} parent=1 // pred_region
      %1009 = dma.done [#allocation39], 256
    $region373: #{megblock_forward.1} parent=1 // pred_fallthru
      _
    // Predicated region
    $region374: #{megblock_forward.1} parent=1 // pred_check
      _
    $region375: #{megblock_forward.1} parent=1 // pred_check_branch
      %1011 = sbr.rel (0) target = $region377
    $region376: #{megblock_forward.1} parent=1 // pred_region
      %1012 = dma.done [#allocation42], 16
    $region377: #{megblock_forward.1} parent=1 // pred_fallthru
      _
    // Predicated region
    $region378: #{megblock_forward.1} parent=1 // pred_check
      _
    $region379: #{megblock_forward.1} parent=1 // pred_check_branch
      %1014 = sbr.rel (0) target = $region381
    $region380: #{megblock_forward.1} parent=1 // pred_region
      %1015 = dma.done [#allocation42], 512
    $region381: #{megblock_forward.1} parent=1 // pred_fallthru
      _
    // Predicated region
    $region382: #{megblock_forward.1} parent=1 // pred_check
      _
    $region383: #{megblock_forward.1} parent=1 // pred_check_branch
      %1017 = sbr.rel (0) target = $region385
    $region384: #{megblock_forward.1} parent=1 // pred_region
      %1018 = dma.done [#allocation45], 16
    $region385: #{megblock_forward.1} parent=1 // pred_fallthru
      _
    // Predicated region
    $region386: #{megblock_forward.1} parent=1 // pred_check
      _
    $region387: #{megblock_forward.1} parent=1 // pred_check_branch
      %1020 = sbr.rel (0) target = $region389
    $region388: #{megblock_forward.1} parent=1 // pred_region
      %1021 = dma.done [#allocation45], 256
    $region389: #{megblock_forward.1} parent=1 // pred_fallthru
      _
    // Predicated region
    $region390: #{megblock_forward.1} parent=1 // pred_check
      _
    $region391: #{megblock_forward.1} parent=1 // pred_check_branch
      %1023 = sbr.rel (0) target = $region393
    $region392: #{megblock_forward.1} parent=1 // pred_region
      %1024 = dma.done [#allocation48], 16
    $region393: #{megblock_forward.1} parent=1 // pred_fallthru
      _
    // Predicated region
    $region394: #{megblock_forward.1} parent=1 // pred_check
      _
    $region395: #{megblock_forward.1} parent=1 // pred_check_branch
      %1026 = sbr.rel (0) target = $region397
    $region396: #{megblock_forward.1} parent=1 // pred_region
      %1027 = dma.done [#allocation48], 512
    $region397: #{megblock_forward.1} parent=1 // pred_fallthru
      _
    // Predicated region
    $region398: #{megblock_forward.1} parent=1 // pred_check
      _
    $region399: #{megblock_forward.1} parent=1 // pred_check_branch
      %1029 = sbr.rel (0) target = $region401
    $region400: #{megblock_forward.1} parent=1 // pred_region
      %1030 = dma.done [#allocation51], 16
    $region401: #{megblock_forward.1} parent=1 // pred_fallthru
      _
    // Predicated region
    $region402: #{megblock_forward.1} parent=1 // pred_check
      _
    $region403: #{megblock_forward.1} parent=1 // pred_check_branch
      %1032 = sbr.rel (0) target = $region405
    $region404: #{megblock_forward.1} parent=1 // pred_region
      %1033 = dma.done [#allocation51], 1024
    $region405: #{megblock_forward.1} parent=1 // pred_fallthru
      _
    // Predicated region
    $region406: #{megblock_forward.1} parent=1 // pred_check
      _
    $region407: #{megblock_forward.1} parent=1 // pred_check_branch
      %1035 = sbr.rel (0) target = $region409
    $region408: #{megblock_forward.1} parent=1 // pred_region
      %1036 = dma.done [#allocation54], 16
    $region409: #{megblock_forward.1} parent=1 // pred_fallthru
      _
    // Predicated region
    $region410: #{megblock_forward.1} parent=1 // pred_check
      _
    $region411: #{megblock_forward.1} parent=1 // pred_check_branch
      %1038 = sbr.rel (0) target = $region413
    $region412: #{megblock_forward.1} parent=1 // pred_region
      %1039 = dma.done [#allocation54], 512
    $region413: #{megblock_forward.1} parent=1 // pred_fallthru
      _
    // Predicated region
    $region414: #{megblock_forward.1} parent=1 // pred_check
      _
    $region415: #{megblock_forward.1} parent=1 // pred_check_branch
      %1041 = sbr.rel (0) target = $region417
    $region416: #{megblock_forward.1} parent=1 // pred_region
      %1042 = dma.done [#allocation57], 16
    $region417: #{megblock_forward.1} parent=1 // pred_fallthru
      _
    // Predicated region
    $region418: #{megblock_forward.1} parent=1 // pred_check
      _
    $region419: #{megblock_forward.1} parent=1 // pred_check_branch
      %1044 = sbr.rel (0) target = $region421
    $region420: #{megblock_forward.1} parent=1 // pred_region
      %1045 = dma.done [#allocation57], 512
    $region421: #{megblock_forward.1} parent=1 // pred_fallthru
      _
    // Predicated region
    $region422: #{megblock_forward.1} parent=1 // pred_check
      _
    $region423: #{megblock_forward.1} parent=1 // pred_check_branch
      %1047 = sbr.rel (0) target = $region425
    $region424: #{megblock_forward.1} parent=1 // pred_region
      %1048 = dma.done [#allocation60], 16
    $region425: #{megblock_forward.1} parent=1 // pred_fallthru
      _
    // Predicated region
    $region426: #{megblock_forward.1} parent=1 // pred_check
      _
    $region427: #{megblock_forward.1} parent=1 // pred_check_branch
      %1050 = sbr.rel (0) target = $region429
    $region428: #{megblock_forward.1} parent=1 // pred_region
      %1051 = dma.done [#allocation60], 1024
    $region429: #{megblock_forward.1} parent=1 // pred_fallthru
      _
    // Predicated region
    $region430: #{megblock_forward.1} parent=1 // pred_check
      _
    $region431: #{megblock_forward.1} parent=1 // pred_check_branch
      %1053 = sbr.rel (0) target = $region433
    $region432: #{megblock_forward.1} parent=1 // pred_region
      %1054 = dma.done [#allocation63], 16
    $region433: #{megblock_forward.1} parent=1 // pred_fallthru
      _
    // Predicated region
    $region434: #{megblock_forward.1} parent=1 // pred_check
      _
    $region435: #{megblock_forward.1} parent=1 // pred_check_branch
      %1056 = sbr.rel (0) target = $region437
    $region436: #{megblock_forward.1} parent=1 // pred_region
      %1057 = dma.done [#allocation63], 512
    $region437: #{megblock_forward.1} parent=1 // pred_fallthru
      _
    // Predicated region
    $region438: #{megblock_forward.1} parent=1 // pred_check
      _
    $region439: #{megblock_forward.1} parent=1 // pred_check_branch
      %1059 = sbr.rel (0) target = $region441
    $region440: #{megblock_forward.1} parent=1 // pred_region
      %1060 = dma.done [#allocation66], 16
    $region441: #{megblock_forward.1} parent=1 // pred_fallthru
      _
    // Predicated region
    $region442: #{megblock_forward.1} parent=1 // pred_check
      _
    $region443: #{megblock_forward.1} parent=1 // pred_check_branch
      %1062 = sbr.rel (0) target = $region445
    $region444: #{megblock_forward.1} parent=1 // pred_region
      %1063 = dma.done [#allocation66], 512
    $region445: #{megblock_forward.1} parent=1 // pred_fallthru
      _
    // Predicated region
    $region446: #{megblock_forward.1} parent=1 // pred_check
      _
    $region447: #{megblock_forward.1} parent=1 // pred_check_branch
      %1065 = sbr.rel (0) target = $region449
    $region448: #{megblock_forward.1} parent=1 // pred_region
      %1066 = dma.done [#allocation69], 16
    $region449: #{megblock_forward.1} parent=1 // pred_fallthru
      _
    // Predicated region
    $region450: #{megblock_forward.1} parent=1 // pred_check
      _
    $region451: #{megblock_forward.1} parent=1 // pred_check_branch
      %1068 = sbr.rel (0) target = $region453
    $region452: #{megblock_forward.1} parent=1 // pred_region
      %1069 = dma.done [#allocation69], 768
    $region453: #{megblock_forward.1} parent=1 // pred_fallthru
      _
    // Predicated region
    $region454: #{megblock_forward.1} parent=1 // pred_check
      _
    $region455: #{megblock_forward.1} parent=1 // pred_check_branch
      %1071 = sbr.rel (0) target = $region457
    $region456: #{megblock_forward.1} parent=1 // pred_region
      %1072 = dma.done [#allocation72], 16
    $region457: #{megblock_forward.1} parent=1 // pred_fallthru
      _
    // Predicated region
    $region458: #{megblock_forward.1} parent=1 // pred_check
      _
    $region459: #{megblock_forward.1} parent=1 // pred_check_branch
      %1074 = sbr.rel (0) target = $region461
    $region460: #{megblock_forward.1} parent=1 // pred_region
      %1075 = dma.done [#allocation72], 512
    $region461: #{megblock_forward.1} parent=1 // pred_fallthru
      _
    // Predicated region
    $region462: #{megblock_forward.1} parent=1 // pred_check
      _
    $region463: #{megblock_forward.1} parent=1 // pred_check_branch
      %1077 = sbr.rel (0) target = $region465
    $region464: #{megblock_forward.1} parent=1 // pred_region
      %1078 = dma.done [#allocation75], 16
    $region465: #{megblock_forward.1} parent=1 // pred_fallthru
      _
    // Predicated region
    $region466: #{megblock_forward.1} parent=1 // pred_check
      _
    $region467: #{megblock_forward.1} parent=1 // pred_check_branch
      %1080 = sbr.rel (0) target = $region469
    $region468: #{megblock_forward.1} parent=1 // pred_region
      %1081 = dma.done [#allocation75], 512
    $region469: #{megblock_forward.1} parent=1 // pred_fallthru
      _
    // Predicated region
    $region470: #{megblock_forward.1} parent=1 // pred_check
      _
    $region471: #{megblock_forward.1} parent=1 // pred_check_branch
      %1083 = sbr.rel (0) target = $region473
    $region472: #{megblock_forward.1} parent=1 // pred_region
      %1084 = dma.done [#allocation78], 16
    $region473: #{megblock_forward.1} parent=1 // pred_fallthru
      _
    // Predicated region
    $region474: #{megblock_forward.1} parent=1 // pred_check
      _
    $region475: #{megblock_forward.1} parent=1 // pred_check_branch
      %1086 = sbr.rel (0) target = $region477
    $region476: #{megblock_forward.1} parent=1 // pred_region
      %1087 = dma.done [#allocation78], 768
    $region477: #{megblock_forward.1} parent=1 // pred_fallthru
      _
    // Predicated region
    $region478: #{megblock_forward.1} parent=1 // pred_check
      _
    $region479: #{megblock_forward.1} parent=1 // pred_check_branch
      %1089 = sbr.rel (0) target = $region481
    $region480: #{megblock_forward.1} parent=1 // pred_region
      %1090 = dma.done [#allocation81], 16
    $region481: #{megblock_forward.1} parent=1 // pred_fallthru
      _
    // Predicated region
    $region482: #{megblock_forward.1} parent=1 // pred_check
      _
    $region483: #{megblock_forward.1} parent=1 // pred_check_branch
      %1092 = sbr.rel (0) target = $region485
    $region484: #{megblock_forward.1} parent=1 // pred_region
      %1093 = dma.done [#allocation81], 512
    $region485: #{megblock_forward.1} parent=1 // pred_fallthru
      _
    // Predicated region
    $region486: #{megblock_forward.1} parent=1 // pred_check
      _
    $region487: #{megblock_forward.1} parent=1 // pred_check_branch
      %1095 = sbr.rel (0) target = $region489
    $region488: #{megblock_forward.1} parent=1 // pred_region
      %1096 = dma.done [#allocation84], 16
    $region489: #{megblock_forward.1} parent=1 // pred_fallthru
      _
    // Predicated region
    $region490: #{megblock_forward.1} parent=1 // pred_check
      _
    $region491: #{megblock_forward.1} parent=1 // pred_check_branch
      %1098 = sbr.rel (0) target = $region493
    $region492: #{megblock_forward.1} parent=1 // pred_region
      %1099 = dma.done [#allocation84], 512
    $region493: #{megblock_forward.1} parent=1 // pred_fallthru
      _
    // Predicated region
    $region494: #{megblock_forward.1} parent=1 // pred_check
      _
    $region495: #{megblock_forward.1} parent=1 // pred_check_branch
      %1101 = sbr.rel (0) target = $region497
    $region496: #{megblock_forward.1} parent=1 // pred_region
      %1102 = dma.done [#allocation87], 16
    $region497: #{megblock_forward.1} parent=1 // pred_fallthru
      _
    // Predicated region
    $region498: #{megblock_forward.1} parent=1 // pred_check
      _
    $region499: #{megblock_forward.1} parent=1 // pred_check_branch
      %1104 = sbr.rel (0) target = $region501
    $region500: #{megblock_forward.1} parent=1 // pred_region
      %1105 = dma.done [#allocation87], 768
    $region501: #{megblock_forward.1} parent=1 // pred_fallthru
      _
    // Predicated region
    $region502: #{megblock_forward.1} parent=1 // pred_check
      _
    $region503: #{megblock_forward.1} parent=1 // pred_check_branch
      %1107 = sbr.rel (0) target = $region505
    $region504: #{megblock_forward.1} parent=1 // pred_region
      %1108 = dma.done [#allocation90], 16
    $region505: #{megblock_forward.1} parent=1 // pred_fallthru
      _
    // Predicated region
    $region506: #{megblock_forward.1} parent=1 // pred_check
      _
    $region507: #{megblock_forward.1} parent=1 // pred_check_branch
      %1110 = sbr.rel (0) target = $region509
    $region508: #{megblock_forward.1} parent=1 // pred_region
      %1111 = dma.done [#allocation90], 512
    $region509: #{megblock_forward.1} parent=1 // pred_fallthru
      _
    // Predicated region
    $region510: #{megblock_forward.1} parent=1 // pred_check
      _
    $region511: #{megblock_forward.1} parent=1 // pred_check_branch
      %1113 = sbr.rel (0) target = $region513
    $region512: #{megblock_forward.1} parent=1 // pred_region
      %1114 = dma.done [#allocation93], 16
    $region513: #{megblock_forward.1} parent=1 // pred_fallthru
      _
    // Predicated region
    $region514: #{megblock_forward.1} parent=1 // pred_check
      _
    $region515: #{megblock_forward.1} parent=1 // pred_check_branch
      %1116 = sbr.rel (0) target = $region517
    $region516: #{megblock_forward.1} parent=1 // pred_region
      %1117 = dma.done [#allocation93], 512
    $region517: #{megblock_forward.1} parent=1 // pred_fallthru
      _
    // Predicated region
    $region518: #{megblock_forward.1} parent=1 // pred_check
      _
    $region519: #{megblock_forward.1} parent=1 // pred_check_branch
      %1119 = sbr.rel (0) target = $region521
    $region520: #{megblock_forward.1} parent=1 // pred_region
      %1120 = dma.done [#allocation96], 16
    $region521: #{megblock_forward.1} parent=1 // pred_fallthru
      _
    // Predicated region
    $region522: #{megblock_forward.1} parent=1 // pred_check
      _
    $region523: #{megblock_forward.1} parent=1 // pred_check_branch
      %1122 = sbr.rel (0) target = $region525
    $region524: #{megblock_forward.1} parent=1 // pred_region
      %1123 = dma.done [#allocation96], 768
    $region525: #{megblock_forward.1} parent=1 // pred_fallthru
      _
    // Predicated region
    $region526: #{megblock_forward.1} parent=1 // pred_check
      _
    $region527: #{megblock_forward.1} parent=1 // pred_check_branch
      %1125 = sbr.rel (0) target = $region529
    $region528: #{megblock_forward.1} parent=1 // pred_region
      %1126 = dma.done [#allocation99], 16
    $region529: #{megblock_forward.1} parent=1 // pred_fallthru
      _
    // Predicated region
    $region530: #{megblock_forward.1} parent=1 // pred_check
      _
    $region531: #{megblock_forward.1} parent=1 // pred_check_branch
      %1128 = sbr.rel (0) target = $region533
    $region532: #{megblock_forward.1} parent=1 // pred_region
      %1129 = dma.done [#allocation99], 512
    $region533: #{megblock_forward.1} parent=1 // pred_fallthru
      _
    // Predicated region
    $region534: #{megblock_forward.1} parent=1 // pred_check
      _
    $region535: #{megblock_forward.1} parent=1 // pred_check_branch
      %1131 = sbr.rel (0) target = $region537
    $region536: #{megblock_forward.1} parent=1 // pred_region
      %1132 = dma.done [#allocation102], 16
    $region537: #{megblock_forward.1} parent=1 // pred_fallthru
      _
    // Predicated region
    $region538: #{megblock_forward.1} parent=1 // pred_check
      _
    $region539: #{megblock_forward.1} parent=1 // pred_check_branch
      %1134 = sbr.rel (0) target = $region541
    $region540: #{megblock_forward.1} parent=1 // pred_region
      %1135 = dma.done [#allocation102], 512
    $region541: #{megblock_forward.1} parent=1 // pred_fallthru
      _
    // Predicated region
    $region542: #{megblock_forward.1} parent=1 // pred_check
      _
    $region543: #{megblock_forward.1} parent=1 // pred_check_branch
      %1137 = sbr.rel (0) target = $region545
    $region544: #{megblock_forward.1} parent=1 // pred_region
      %1138 = dma.done [#allocation105], 16
    $region545: #{megblock_forward.1} parent=1 // pred_fallthru
      _
    %v1140 = vld [vmem:[#allocation2] sm:$0xff]
    %v1141 = vld [vmem:[#allocation5] sm:$0x3]
    %v1142 = vld [vmem:[#allocation7] sm:$0xff]
    %v1143 = vld [vmem:[#allocation7 + $0x8] sm:$0xf]
    %v1144 = vld [vmem:[#allocation8] sm:$0xff]
    %v1145 = vld [vmem:[#allocation8 + $0x8] sm:$0x3]
    %v1146 = vld [vmem:[#allocation40] sm:$0xf]
    %v1147 = vld [vmem:[#allocation40 + $0x4] sm:$0xf]
    %v1148 = vld [vmem:[#allocation40 + $0x8] sm:$0xf]
    %v1149 = vld [vmem:[#allocation40 + $0xc] sm:$0xf]
    %v1150 = vpack.c.bf16 %v1140, %v1140
    %v1151 = vld [vmem:[#allocation41] sm:$0x1]
    %v1153 = vlaneseq
    %v1154 = vshrl.u32 %v1153, 7
    %v1155 = vsub.s32 0, %v1154
    %v1156 = vrot.slane %v1151, %v1155
    %v1162 = vunpack.c.l.b16 %v1146
    %v1163 = vunpack.c.l.b16 %v1147
    %v1164 = vunpack.c.l.b16 %v1148
    %v1165 = vunpack.c.l.b16 %v1149
    %v1166 = vpack.c.b16 %v1163, %v1162
    %v1167 = vpack.c.b16 %v1165, %v1164
    %vm1170 = vcmask 261120
    %v1172 = vsel %vm1170, %v1150, 0
    %1174 = vmatprep.subr.bf16.mxu0 0
    %1175 = vmatpush1.bf16.msra.mxu0 %v1166
    %1176 = vmatprep.subr.bf16.mxu0 0
    %1177 = vmatpush1.bf16.msra.mxu0 %v1167
    %1178 = vmatprep.subr.bf16.mxu0 0
    %1179 = vmatpush1.bf16.msra.mxu0 0
    %1180 = vmatprep.subr.bf16.mxu0 0
    %1181 = vmatpush1.bf16.msra.mxu0 0
    %1182 = vmatprep.subr.bf16.mxu0 0
    %1183 = vmatpush1.bf16.msra.mxu0 0
    %1184 = vmatprep.subr.bf16.mxu0 0
    %1185 = vmatpush1.bf16.msra.mxu0 0
    %1186 = vmatprep.subr.bf16.mxu0 0
    %1187 = vmatpush1.bf16.msra.mxu0 0
    %1188 = vmatprep.subr.bf16.mxu0 0
    %1189 = vmatpush1.bf16.msra.mxu0 0
    %1190 = vmatprep.subr.bf16.mxu0 0
    %1191 = vmatpush1.bf16.msra.mxu0 0
    %1192 = vmatprep.subr.bf16.mxu0 0
    %1193 = vmatpush1.bf16.msra.mxu0 0
    %1194 = vmatprep.subr.bf16.mxu0 0
    %1195 = vmatpush1.bf16.msra.mxu0 0
    %1196 = vmatprep.subr.bf16.mxu0 0
    %1197 = vmatpush1.bf16.msra.mxu0 0
    %1198 = vmatprep.subr.bf16.mxu0 0
    %1199 = vmatpush1.bf16.msra.mxu0 0
    %1200 = vmatprep.subr.bf16.mxu0 0
    %1201 = vmatpush1.bf16.msra.mxu0 0
    %1202 = vmatprep.subr.bf16.mxu0 0
    %1203 = vmatpush1.bf16.msra.mxu0 0
    %1204 = vmatprep.subr.bf16.mxu0 0
    %1205 = vmatpush1.bf16.msra.mxu0 0
    %1206 = vmatprep.mubr.bf16.mxu0 0
    %1207 = vmatmul.mubr.bf16.gmra.mrb[0].mxu0 %v1172
    %v1208 = vpop.f32.mrb[0].mxu0
    %v1209 = vadd.f32 %v1156, %v1208
    %v1210 = vpop.f32.mrb[0].mxu0
    %v1211 = vpop.f32.mrb[0].mxu0
    %v1212 = vpop.f32.mrb[0].mxu0
    %1213 = vdwg.mxu0
    %v1214 = vmax.f32 %v1209, 0.0
    %v1215 = vand.u32 2147483647, %v1209
    %v1216 = vsub.f32 0.0, %v1215
    %v1217 = vmul.f32 %v1216, 1.442695
    %v1218 = vpow.pop %v1217
    %v1219 = vadd.f32 %v1218, 1.0
    %v1220 = vlog2.pop %v1219
    %v1221 = vmul.f32 %v1220, 0.6931472
    %v1222 = vmul.f32 -0.5, %v1218
    %v1223 = vadd.f32 %v1222, 1.0
    %v1224 = vmul.f32 %v1223, %v1218
    %v1225 = vand.u32 2147483647, %v1218
    %vm1226 = vcmp.lt.f32.partialorder %v1225, 0.0004427343
    %v1227 = vsel %vm1226, %v1224, %v1221
    %v1228 = vadd.f32 %v1214, %v1227
    %v1229 = vsub.f32 %v1228, 0.6931472
    %v1230 = vld [vmem:[#allocation43] sm:$0xf]
    %v1231 = vld [vmem:[#allocation43 + $0x4] sm:$0xf]
    %v1232 = vld [vmem:[#allocation43 + $0x8] sm:$0xf]
    %v1233 = vld [vmem:[#allocation43 + $0xc] sm:$0xf]
    %v1234 = vld [vmem:[#allocation43 + $0x10] sm:$0xf]
    %v1235 = vld [vmem:[#allocation43 + $0x14] sm:$0xf]
    %v1236 = vld [vmem:[#allocation43 + $0x18] sm:$0xf]
    %v1237 = vld [vmem:[#allocation43 + $0x1c] sm:$0xf]
    %v1238 = vpack.c.bf16 %v1229, %v1229
    %v1239 = vld [vmem:[#allocation44] sm:$0x1]
    %v1241 = vlaneseq
    %v1242 = vshrl.u32 %v1241, 7
    %v1243 = vsub.s32 0, %v1242
    %v1244 = vrot.slane %v1239, %v1243
    %v1254 = vunpack.c.l.b16 %v1230
    %v1255 = vunpack.c.l.b16 %v1231
    %v1256 = vunpack.c.l.b16 %v1232
    %v1257 = vunpack.c.l.b16 %v1233
    %v1258 = vunpack.c.l.b16 %v1234
    %v1259 = vunpack.c.l.b16 %v1235
    %v1260 = vunpack.c.l.b16 %v1236
    %v1261 = vunpack.c.l.b16 %v1237
    %v1262 = vpack.c.b16 %v1255, %v1254
    %v1263 = vpack.c.b16 %v1257, %v1256
    %v1264 = vpack.c.b16 %v1259, %v1258
    %v1265 = vpack.c.b16 %v1261, %v1260
    %vm1270 = vcmask 523264
    %v1272 = vsel %vm1270, %v1238, 0
    %1274 = vmatprep.subr.bf16.mxu0 0
    %1275 = vmatpush1.bf16.msra.mxu0 %v1262
    %1276 = vmatprep.subr.bf16.mxu0 0
    %1277 = vmatpush1.bf16.msra.mxu0 %v1263
    %1278 = vmatprep.subr.bf16.mxu0 0
    %1279 = vmatpush1.bf16.msra.mxu0 %v1264
    %1280 = vmatprep.subr.bf16.mxu0 0
    %1281 = vmatpush1.bf16.msra.mxu0 %v1265
    %1282 = vmatprep.subr.bf16.mxu0 0
    %1283 = vmatpush1.bf16.msra.mxu0 0
    %1284 = vmatprep.subr.bf16.mxu0 0
    %1285 = vmatpush1.bf16.msra.mxu0 0
    %1286 = vmatprep.subr.bf16.mxu0 0
    %1287 = vmatpush1.bf16.msra.mxu0 0
    %1288 = vmatprep.subr.bf16.mxu0 0
    %1289 = vmatpush1.bf16.msra.mxu0 0
    %1290 = vmatprep.subr.bf16.mxu0 0
    %1291 = vmatpush1.bf16.msra.mxu0 0
    %1292 = vmatprep.subr.bf16.mxu0 0
    %1293 = vmatpush1.bf16.msra.mxu0 0
    %1294 = vmatprep.subr.bf16.mxu0 0
    %1295 = vmatpush1.bf16.msra.mxu0 0
    %1296 = vmatprep.subr.bf16.mxu0 0
    %1297 = vmatpush1.bf16.msra.mxu0 0
    %1298 = vmatprep.subr.bf16.mxu0 0
    %1299 = vmatpush1.bf16.msra.mxu0 0
    %1300 = vmatprep.subr.bf16.mxu0 0
    %1301 = vmatpush1.bf16.msra.mxu0 0
    %1302 = vmatprep.subr.bf16.mxu0 0
    %1303 = vmatpush1.bf16.msra.mxu0 0
    %1304 = vmatprep.subr.bf16.mxu0 0
    %1305 = vmatpush1.bf16.msra.mxu0 0
    %1306 = vmatprep.mubr.bf16.mxu0 0
    %1307 = vmatmul.mubr.bf16.gmra.mrb[0].mxu0 %v1272
    %v1308 = vpop.f32.mrb[0].mxu0
    %v1309 = vadd.f32 %v1244, %v1308
    %v1310 = vpop.f32.mrb[0].mxu0
    %v1311 = vpop.f32.mrb[0].mxu0
    %v1312 = vpop.f32.mrb[0].mxu0
    %1313 = vdwg.mxu0
    %v1314 = vmax.f32 %v1309, 0.0
    %v1315 = vand.u32 2147483647, %v1309
    %v1316 = vsub.f32 0.0, %v1315
    %v1317 = vmul.f32 %v1316, 1.442695
    %v1318 = vpow.pop %v1317
    %v1319 = vadd.f32 %v1318, 1.0
    %v1320 = vlog2.pop %v1319
    %v1321 = vmul.f32 %v1320, 0.6931472
    %v1322 = vmul.f32 -0.5, %v1318
    %v1323 = vadd.f32 %v1322, 1.0
    %v1324 = vmul.f32 %v1323, %v1318
    %v1325 = vand.u32 2147483647, %v1318
    %vm1326 = vcmp.lt.f32.partialorder %v1325, 0.0004427343
    %v1327 = vsel %vm1326, %v1324, %v1321
    %v1328 = vadd.f32 %v1314, %v1327
    %v1329 = vsub.f32 %v1328, 0.6931472
    %v1330 = vld [vmem:[#allocation46] sm:$0xf]
    %v1331 = vld [vmem:[#allocation46 + $0x4] sm:$0xf]
    %v1332 = vld [vmem:[#allocation46 + $0x8] sm:$0xf]
    %v1333 = vld [vmem:[#allocation46 + $0xc] sm:$0xf]
    %v1334 = vpack.c.bf16 %v1141, %v1141
    %v1335 = vld [vmem:[#allocation47] sm:$0x1]
    %v1337 = vlaneseq
    %v1338 = vshrl.u32 %v1337, 7
    %v1339 = vsub.s32 0, %v1338
    %v1340 = vrot.slane %v1335, %v1339
    %v1346 = vunpack.c.l.b16 %v1330
    %v1347 = vunpack.c.l.b16 %v1331
    %v1348 = vunpack.c.l.b16 %v1332
    %v1349 = vunpack.c.l.b16 %v1333
    %v1350 = vpack.c.b16 %v1347, %v1346
    %v1351 = vpack.c.b16 %v1349, %v1348
    %v1355 = vsel %vm1170, %v1334, 0
    %1357 = vmatprep.subr.bf16.mxu0 0
    %1358 = vmatpush1.bf16.msra.mxu0 %v1350
    %1359 = vmatprep.subr.bf16.mxu0 0
    %1360 = vmatpush1.bf16.msra.mxu0 %v1351
    %1361 = vmatprep.subr.bf16.mxu0 0
    %1362 = vmatpush1.bf16.msra.mxu0 0
    %1363 = vmatprep.subr.bf16.mxu0 0
    %1364 = vmatpush1.bf16.msra.mxu0 0
    %1365 = vmatprep.subr.bf16.mxu0 0
    %1366 = vmatpush1.bf16.msra.mxu0 0
    %1367 = vmatprep.subr.bf16.mxu0 0
    %1368 = vmatpush1.bf16.msra.mxu0 0
    %1369 = vmatprep.subr.bf16.mxu0 0
    %1370 = vmatpush1.bf16.msra.mxu0 0
    %1371 = vmatprep.subr.bf16.mxu0 0
    %1372 = vmatpush1.bf16.msra.mxu0 0
    %1373 = vmatprep.subr.bf16.mxu0 0
    %1374 = vmatpush1.bf16.msra.mxu0 0
    %1375 = vmatprep.subr.bf16.mxu0 0
    %1376 = vmatpush1.bf16.msra.mxu0 0
    %1377 = vmatprep.subr.bf16.mxu0 0
    %1378 = vmatpush1.bf16.msra.mxu0 0
    %1379 = vmatprep.subr.bf16.mxu0 0
    %1380 = vmatpush1.bf16.msra.mxu0 0
    %1381 = vmatprep.subr.bf16.mxu0 0
    %1382 = vmatpush1.bf16.msra.mxu0 0
    %1383 = vmatprep.subr.bf16.mxu0 0
    %1384 = vmatpush1.bf16.msra.mxu0 0
    %1385 = vmatprep.subr.bf16.mxu0 0
    %1386 = vmatpush1.bf16.msra.mxu0 0
    %1387 = vmatprep.subr.bf16.mxu0 0
    %1388 = vmatpush1.bf16.msra.mxu0 0
    %1389 = vmatprep.mubr.bf16.mxu0 0
    %1390 = vmatmul.mubr.bf16.gmra.mrb[0].mxu0 %v1355
    %v1391 = vpop.f32.mrb[0].mxu0
    %v1392 = vadd.f32 %v1340, %v1391
    %v1393 = vpop.f32.mrb[0].mxu0
    %v1394 = vpop.f32.mrb[0].mxu0
    %v1395 = vpop.f32.mrb[0].mxu0
    %1396 = vdwg.mxu0
    %v1397 = vmax.f32 %v1392, 0.0
    %v1398 = vand.u32 2147483647, %v1392
    %v1399 = vsub.f32 0.0, %v1398
    %v1400 = vmul.f32 %v1399, 1.442695
    %v1401 = vpow.pop %v1400
    %v1402 = vadd.f32 %v1401, 1.0
    %v1403 = vlog2.pop %v1402
    %v1404 = vmul.f32 %v1403, 0.6931472
    %v1405 = vmul.f32 -0.5, %v1401
    %v1406 = vadd.f32 %v1405, 1.0
    %v1407 = vmul.f32 %v1406, %v1401
    %v1408 = vand.u32 2147483647, %v1401
    %vm1409 = vcmp.lt.f32.partialorder %v1408, 0.0004427343
    %v1410 = vsel %vm1409, %v1407, %v1404
    %v1411 = vadd.f32 %v1397, %v1410
    %v1412 = vsub.f32 %v1411, 0.6931472
    %v1413 = vld [vmem:[#allocation49] sm:$0xf]
    %v1414 = vld [vmem:[#allocation49 + $0x4] sm:$0xf]
    %v1415 = vld [vmem:[#allocation49 + $0x8] sm:$0xf]
    %v1416 = vld [vmem:[#allocation49 + $0xc] sm:$0xf]
    %v1417 = vld [vmem:[#allocation49 + $0x10] sm:$0xf]
    %v1418 = vld [vmem:[#allocation49 + $0x14] sm:$0xf]
    %v1419 = vld [vmem:[#allocation49 + $0x18] sm:$0xf]
    %v1420 = vld [vmem:[#allocation49 + $0x1c] sm:$0xf]
    %v1421 = vpack.c.bf16 %v1412, %v1412
    %v1422 = vld [vmem:[#allocation50] sm:$0x1]
    %v1424 = vlaneseq
    %v1425 = vshrl.u32 %v1424, 7
    %v1426 = vsub.s32 0, %v1425
    %v1427 = vrot.slane %v1422, %v1426
    %v1437 = vunpack.c.l.b16 %v1413
    %v1438 = vunpack.c.l.b16 %v1414
    %v1439 = vunpack.c.l.b16 %v1415
    %v1440 = vunpack.c.l.b16 %v1416
    %v1441 = vunpack.c.l.b16 %v1417
    %v1442 = vunpack.c.l.b16 %v1418
    %v1443 = vunpack.c.l.b16 %v1419
    %v1444 = vunpack.c.l.b16 %v1420
    %v1445 = vpack.c.b16 %v1438, %v1437
    %v1446 = vpack.c.b16 %v1440, %v1439
    %v1447 = vpack.c.b16 %v1442, %v1441
    %v1448 = vpack.c.b16 %v1444, %v1443
    %v1454 = vsel %vm1270, %v1421, 0
    %1456 = vmatprep.subr.bf16.mxu0 0
    %1457 = vmatpush1.bf16.msra.mxu0 %v1445
    %1458 = vmatprep.subr.bf16.mxu0 0
    %1459 = vmatpush1.bf16.msra.mxu0 %v1446
    %1460 = vmatprep.subr.bf16.mxu0 0
    %1461 = vmatpush1.bf16.msra.mxu0 %v1447
    %1462 = vmatprep.subr.bf16.mxu0 0
    %1463 = vmatpush1.bf16.msra.mxu0 %v1448
    %1464 = vmatprep.subr.bf16.mxu0 0
    %1465 = vmatpush1.bf16.msra.mxu0 0
    %1466 = vmatprep.subr.bf16.mxu0 0
    %1467 = vmatpush1.bf16.msra.mxu0 0
    %1468 = vmatprep.subr.bf16.mxu0 0
    %1469 = vmatpush1.bf16.msra.mxu0 0
    %1470 = vmatprep.subr.bf16.mxu0 0
    %1471 = vmatpush1.bf16.msra.mxu0 0
    %1472 = vmatprep.subr.bf16.mxu0 0
    %1473 = vmatpush1.bf16.msra.mxu0 0
    %1474 = vmatprep.subr.bf16.mxu0 0
    %1475 = vmatpush1.bf16.msra.mxu0 0
    %1476 = vmatprep.subr.bf16.mxu0 0
    %1477 = vmatpush1.bf16.msra.mxu0 0
    %1478 = vmatprep.subr.bf16.mxu0 0
    %1479 = vmatpush1.bf16.msra.mxu0 0
    %1480 = vmatprep.subr.bf16.mxu0 0
    %1481 = vmatpush1.bf16.msra.mxu0 0
    %1482 = vmatprep.subr.bf16.mxu0 0
    %1483 = vmatpush1.bf16.msra.mxu0 0
    %1484 = vmatprep.subr.bf16.mxu0 0
    %1485 = vmatpush1.bf16.msra.mxu0 0
    %1486 = vmatprep.subr.bf16.mxu0 0
    %1487 = vmatpush1.bf16.msra.mxu0 0
    %1488 = vmatprep.mubr.bf16.mxu0 0
    %1489 = vmatmul.mubr.bf16.gmra.mrb[0].mxu0 %v1454
    %v1490 = vpop.f32.mrb[0].mxu0
    %v1491 = vadd.f32 %v1427, %v1490
    %v1492 = vpop.f32.mrb[0].mxu0
    %v1493 = vpop.f32.mrb[0].mxu0
    %v1494 = vpop.f32.mrb[0].mxu0
    %1495 = vdwg.mxu0
    %v1496 = vmax.f32 %v1491, 0.0
    %v1497 = vand.u32 2147483647, %v1491
    %v1498 = vsub.f32 0.0, %v1497
    %v1499 = vmul.f32 %v1498, 1.442695
    %v1500 = vpow.pop %v1499
    %v1501 = vadd.f32 %v1500, 1.0
    %v1502 = vlog2.pop %v1501
    %v1503 = vmul.f32 %v1502, 0.6931472
    %v1504 = vmul.f32 -0.5, %v1500
    %v1505 = vadd.f32 %v1504, 1.0
    %v1506 = vmul.f32 %v1505, %v1500
    %v1507 = vand.u32 2147483647, %v1500
    %vm1508 = vcmp.lt.f32.partialorder %v1507, 0.0004427343
    %v1509 = vsel %vm1508, %v1506, %v1503
    %v1510 = vadd.f32 %v1496, %v1509
    %v1511 = vsub.f32 %v1510, 0.6931472
    %v1512 = vld [vmem:[#allocation28] sm:$0xf]
    %v1513 = vld [vmem:[#allocation28 + $0x4] sm:$0xf]
    %v1514 = vld [vmem:[#allocation28 + $0x8] sm:$0xf]
    %v1515 = vld [vmem:[#allocation28 + $0xc] sm:$0xf]
    %v1516 = vpack.c.bf16 %v1143, %v1142
    %v1517 = vld [vmem:[#allocation29] sm:$0x1]
    %v1519 = vlaneseq
    %v1520 = vshrl.u32 %v1519, 7
    %v1521 = vsub.s32 0, %v1520
    %v1522 = vrot.slane %v1517, %v1521
    %v1528 = vunpack.c.l.b16 %v1512
    %v1529 = vunpack.c.l.b16 %v1513
    %v1530 = vunpack.c.l.b16 %v1514
    %v1531 = vunpack.c.l.b16 %v1515
    %v1532 = vpack.c.b16 %v1529, %v1528
    %v1533 = vpack.c.b16 %v1531, %v1530
    %v1537 = vsel %vm1170, %v1516, 0
    %1539 = vmatprep.subr.bf16.mxu0 0
    %1540 = vmatpush1.bf16.msra.mxu0 %v1532
    %1541 = vmatprep.subr.bf16.mxu0 0
    %1542 = vmatpush1.bf16.msra.mxu0 %v1533
    %1543 = vmatprep.subr.bf16.mxu0 0
    %1544 = vmatpush1.bf16.msra.mxu0 0
    %1545 = vmatprep.subr.bf16.mxu0 0
    %1546 = vmatpush1.bf16.msra.mxu0 0
    %1547 = vmatprep.subr.bf16.mxu0 0
    %1548 = vmatpush1.bf16.msra.mxu0 0
    %1549 = vmatprep.subr.bf16.mxu0 0
    %1550 = vmatpush1.bf16.msra.mxu0 0
    %1551 = vmatprep.subr.bf16.mxu0 0
    %1552 = vmatpush1.bf16.msra.mxu0 0
    %1553 = vmatprep.subr.bf16.mxu0 0
    %1554 = vmatpush1.bf16.msra.mxu0 0
    %1555 = vmatprep.subr.bf16.mxu0 0
    %1556 = vmatpush1.bf16.msra.mxu0 0
    %1557 = vmatprep.subr.bf16.mxu0 0
    %1558 = vmatpush1.bf16.msra.mxu0 0
    %1559 = vmatprep.subr.bf16.mxu0 0
    %1560 = vmatpush1.bf16.msra.mxu0 0
    %1561 = vmatprep.subr.bf16.mxu0 0
    %1562 = vmatpush1.bf16.msra.mxu0 0
    %1563 = vmatprep.subr.bf16.mxu0 0
    %1564 = vmatpush1.bf16.msra.mxu0 0
    %1565 = vmatprep.subr.bf16.mxu0 0
    %1566 = vmatpush1.bf16.msra.mxu0 0
    %1567 = vmatprep.subr.bf16.mxu0 0
    %1568 = vmatpush1.bf16.msra.mxu0 0
    %1569 = vmatprep.subr.bf16.mxu0 0
    %1570 = vmatpush1.bf16.msra.mxu0 0
    %1571 = vmatprep.mubr.bf16.mxu0 0
    %1572 = vmatmul.mubr.bf16.gmra.mrb[0].mxu0 %v1537
    %v1573 = vpop.f32.mrb[0].mxu0
    %v1574 = vadd.f32 %v1522, %v1573
    %v1575 = vpop.f32.mrb[0].mxu0
    %v1576 = vpop.f32.mrb[0].mxu0
    %v1577 = vadd.f32 %v1522, %v1576
    %v1578 = vpop.f32.mrb[0].mxu0
    %1579 = vdwg.mxu0
    %v1580 = vmax.f32 %v1574, 0.0
    %v1581 = vmax.f32 %v1577, 0.0
    %v1582 = vand.u32 2147483647, %v1574
    %v1583 = vand.u32 2147483647, %v1577
    %v1584 = vsub.f32 0.0, %v1582
    %v1585 = vsub.f32 0.0, %v1583
    %v1586 = vmul.f32 %v1584, 1.442695
    %v1587 = vpow.pop %v1586
    %v1588 = vmul.f32 %v1585, 1.442695
    %v1589 = vpow.pop %v1588
    %v1590 = vadd.f32 %v1587, 1.0
    %v1591 = vlog2.pop %v1590
    %v1592 = vmul.f32 %v1591, 0.6931472
    %v1593 = vmul.f32 -0.5, %v1587
    %v1594 = vadd.f32 %v1593, 1.0
    %v1595 = vmul.f32 %v1594, %v1587
    %v1596 = vand.u32 2147483647, %v1587
    %vm1597 = vcmp.lt.f32.partialorder %v1596, 0.0004427343
    %v1598 = vsel %vm1597, %v1595, %v1592
    %v1599 = vadd.f32 %v1589, 1.0
    %v1600 = vlog2.pop %v1599
    %v1601 = vmul.f32 %v1600, 0.6931472
    %v1602 = vmul.f32 -0.5, %v1589
    %v1603 = vadd.f32 %v1602, 1.0
    %v1604 = vmul.f32 %v1603, %v1589
    %v1605 = vand.u32 2147483647, %v1589
    %vm1606 = vcmp.lt.f32.partialorder %v1605, 0.0004427343
    %v1607 = vsel %vm1606, %v1604, %v1601
    %v1608 = vadd.f32 %v1580, %v1598
    %v1609 = vadd.f32 %v1581, %v1607
    %v1610 = vsub.f32 %v1608, 0.6931472
    %v1611 = vsub.f32 %v1609, 0.6931472
    %v1612 = vld [vmem:[#allocation31] sm:$0xf]
    %v1613 = vld [vmem:[#allocation31 + $0x4] sm:$0xf]
    %v1614 = vld [vmem:[#allocation31 + $0x8] sm:$0xf]
    %v1615 = vld [vmem:[#allocation31 + $0xc] sm:$0xf]
    %v1616 = vld [vmem:[#allocation31 + $0x10] sm:$0xf]
    %v1617 = vld [vmem:[#allocation31 + $0x14] sm:$0xf]
    %v1618 = vld [vmem:[#allocation31 + $0x18] sm:$0xf]
    %v1619 = vld [vmem:[#allocation31 + $0x1c] sm:$0xf]
    %v1620 = vpack.c.bf16 %v1611, %v1610
    %v1621 = vld [vmem:[#allocation32] sm:$0x1]
    %v1623 = vlaneseq
    %v1624 = vshrl.u32 %v1623, 7
    %v1625 = vsub.s32 0, %v1624
    %v1626 = vrot.slane %v1621, %v1625
    %v1636 = vunpack.c.l.b16 %v1612
    %v1637 = vunpack.c.l.b16 %v1613
    %v1638 = vunpack.c.l.b16 %v1614
    %v1639 = vunpack.c.l.b16 %v1615
    %v1640 = vunpack.c.l.b16 %v1616
    %v1641 = vunpack.c.l.b16 %v1617
    %v1642 = vunpack.c.l.b16 %v1618
    %v1643 = vunpack.c.l.b16 %v1619
    %v1644 = vpack.c.b16 %v1637, %v1636
    %v1645 = vpack.c.b16 %v1639, %v1638
    %v1646 = vpack.c.b16 %v1641, %v1640
    %v1647 = vpack.c.b16 %v1643, %v1642
    %v1653 = vsel %vm1270, %v1620, 0
    %1655 = vmatprep.subr.bf16.mxu0 0
    %1656 = vmatpush1.bf16.msra.mxu0 %v1644
    %1657 = vmatprep.subr.bf16.mxu0 0
    %1658 = vmatpush1.bf16.msra.mxu0 %v1645
    %1659 = vmatprep.subr.bf16.mxu0 0
    %1660 = vmatpush1.bf16.msra.mxu0 %v1646
    %1661 = vmatprep.subr.bf16.mxu0 0
    %1662 = vmatpush1.bf16.msra.mxu0 %v1647
    %1663 = vmatprep.subr.bf16.mxu0 0
    %1664 = vmatpush1.bf16.msra.mxu0 0
    %1665 = vmatprep.subr.bf16.mxu0 0
    %1666 = vmatpush1.bf16.msra.mxu0 0
    %1667 = vmatprep.subr.bf16.mxu0 0
    %1668 = vmatpush1.bf16.msra.mxu0 0
    %1669 = vmatprep.subr.bf16.mxu0 0
    %1670 = vmatpush1.bf16.msra.mxu0 0
    %1671 = vmatprep.subr.bf16.mxu0 0
    %1672 = vmatpush1.bf16.msra.mxu0 0
    %1673 = vmatprep.subr.bf16.mxu0 0
    %1674 = vmatpush1.bf16.msra.mxu0 0
    %1675 = vmatprep.subr.bf16.mxu0 0
    %1676 = vmatpush1.bf16.msra.mxu0 0
    %1677 = vmatprep.subr.bf16.mxu0 0
    %1678 = vmatpush1.bf16.msra.mxu0 0
    %1679 = vmatprep.subr.bf16.mxu0 0
    %1680 = vmatpush1.bf16.msra.mxu0 0
    %1681 = vmatprep.subr.bf16.mxu0 0
    %1682 = vmatpush1.bf16.msra.mxu0 0
    %1683 = vmatprep.subr.bf16.mxu0 0
    %1684 = vmatpush1.bf16.msra.mxu0 0
    %1685 = vmatprep.subr.bf16.mxu0 0
    %1686 = vmatpush1.bf16.msra.mxu0 0
    %1687 = vmatprep.mubr.bf16.mxu0 0
    %1688 = vmatmul.mubr.bf16.gmra.mrb[0].mxu0 %v1653
    %v1689 = vpop.f32.mrb[0].mxu0
    %v1690 = vadd.f32 %v1626, %v1689
    %v1691 = vpop.f32.mrb[0].mxu0
    %v1692 = vpop.f32.mrb[0].mxu0
    %v1693 = vadd.f32 %v1626, %v1692
    %v1694 = vpop.f32.mrb[0].mxu0
    %1695 = vdwg.mxu0
    %v1696 = vmax.f32 %v1690, 0.0
    %v1697 = vmax.f32 %v1693, 0.0
    %v1698 = vand.u32 2147483647, %v1690
    %v1699 = vand.u32 2147483647, %v1693
    %v1700 = vsub.f32 0.0, %v1698
    %v1701 = vsub.f32 0.0, %v1699
    %v1702 = vmul.f32 %v1700, 1.442695
    %v1703 = vpow.pop %v1702
    %v1704 = vmul.f32 %v1701, 1.442695
    %v1705 = vpow.pop %v1704
    %v1706 = vadd.f32 %v1703, 1.0
    %v1707 = vlog2.pop %v1706
    %v1708 = vmul.f32 %v1707, 0.6931472
    %v1709 = vmul.f32 -0.5, %v1703
    %v1710 = vadd.f32 %v1709, 1.0
    %v1711 = vmul.f32 %v1710, %v1703
    %v1712 = vand.u32 2147483647, %v1703
    %vm1713 = vcmp.lt.f32.partialorder %v1712, 0.0004427343
    %v1714 = vsel %vm1713, %v1711, %v1708
    %v1715 = vadd.f32 %v1705, 1.0
    %v1716 = vlog2.pop %v1715
    %v1717 = vmul.f32 %v1716, 0.6931472
    %v1718 = vmul.f32 -0.5, %v1705
    %v1719 = vadd.f32 %v1718, 1.0
    %v1720 = vmul.f32 %v1719, %v1705
    %v1721 = vand.u32 2147483647, %v1705
    %vm1722 = vcmp.lt.f32.partialorder %v1721, 0.0004427343
    %v1723 = vsel %vm1722, %v1720, %v1717
    %v1724 = vadd.f32 %v1696, %v1714
    %v1725 = vadd.f32 %v1697, %v1723
    %v1726 = vsub.f32 %v1724, 0.6931472
    %v1727 = vsub.f32 %v1725, 0.6931472
    %v1728 = vld [vmem:[#allocation34] sm:$0xf]
    %v1729 = vld [vmem:[#allocation34 + $0x4] sm:$0xf]
    %v1730 = vld [vmem:[#allocation34 + $0x8] sm:$0xf]
    %v1731 = vld [vmem:[#allocation34 + $0xc] sm:$0xf]
    %v1732 = vpack.c.bf16 %v1145, %v1144
    %v1733 = vld [vmem:[#allocation35] sm:$0x1]
    %v1735 = vlaneseq
    %v1736 = vshrl.u32 %v1735, 7
    %v1737 = vsub.s32 0, %v1736
    %v1738 = vrot.slane %v1733, %v1737
    %v1744 = vunpack.c.l.b16 %v1728
    %v1745 = vunpack.c.l.b16 %v1729
    %v1746 = vunpack.c.l.b16 %v1730
    %v1747 = vunpack.c.l.b16 %v1731
    %v1748 = vpack.c.b16 %v1745, %v1744
    %v1749 = vpack.c.b16 %v1747, %v1746
    %v1753 = vsel %vm1170, %v1732, 0
    %1755 = vmatprep.subr.bf16.mxu0 0
    %1756 = vmatpush1.bf16.msra.mxu0 %v1748
    %1757 = vmatprep.subr.bf16.mxu0 0
    %1758 = vmatpush1.bf16.msra.mxu0 %v1749
    %1759 = vmatprep.subr.bf16.mxu0 0
    %1760 = vmatpush1.bf16.msra.mxu0 0
    %1761 = vmatprep.subr.bf16.mxu0 0
    %1762 = vmatpush1.bf16.msra.mxu0 0
    %1763 = vmatprep.subr.bf16.mxu0 0
    %1764 = vmatpush1.bf16.msra.mxu0 0
    %1765 = vmatprep.subr.bf16.mxu0 0
    %1766 = vmatpush1.bf16.msra.mxu0 0
    %1767 = vmatprep.subr.bf16.mxu0 0
    %1768 = vmatpush1.bf16.msra.mxu0 0
    %1769 = vmatprep.subr.bf16.mxu0 0
    %1770 = vmatpush1.bf16.msra.mxu0 0
    %1771 = vmatprep.subr.bf16.mxu0 0
    %1772 = vmatpush1.bf16.msra.mxu0 0
    %1773 = vmatprep.subr.bf16.mxu0 0
    %1774 = vmatpush1.bf16.msra.mxu0 0
    %1775 = vmatprep.subr.bf16.mxu0 0
    %1776 = vmatpush1.bf16.msra.mxu0 0
    %1777 = vmatprep.subr.bf16.mxu0 0
    %1778 = vmatpush1.bf16.msra.mxu0 0
    %1779 = vmatprep.subr.bf16.mxu0 0
    %1780 = vmatpush1.bf16.msra.mxu0 0
    %1781 = vmatprep.subr.bf16.mxu0 0
    %1782 = vmatpush1.bf16.msra.mxu0 0
    %1783 = vmatprep.subr.bf16.mxu0 0
    %1784 = vmatpush1.bf16.msra.mxu0 0
    %1785 = vmatprep.subr.bf16.mxu0 0
    %1786 = vmatpush1.bf16.msra.mxu0 0
    %1787 = vmatprep.mubr.bf16.mxu0 0
    %1788 = vmatmul.mubr.bf16.gmra.mrb[0].mxu0 %v1753
    %v1789 = vpop.f32.mrb[0].mxu0
    %v1790 = vadd.f32 %v1738, %v1789
    %v1791 = vpop.f32.mrb[0].mxu0
    %v1792 = vpop.f32.mrb[0].mxu0
    %v1793 = vadd.f32 %v1738, %v1792
    %v1794 = vpop.f32.mrb[0].mxu0
    %1795 = vdwg.mxu0
    %v1796 = vmax.f32 %v1790, 0.0
    %v1797 = vmax.f32 %v1793, 0.0
    %v1798 = vand.u32 2147483647, %v1790
    %v1799 = vand.u32 2147483647, %v1793
    %v1800 = vsub.f32 0.0, %v1798
    %v1801 = vsub.f32 0.0, %v1799
    %v1802 = vmul.f32 %v1800, 1.442695
    %v1803 = vpow.pop %v1802
    %v1804 = vmul.f32 %v1801, 1.442695
    %v1805 = vpow.pop %v1804
    %v1806 = vadd.f32 %v1803, 1.0
    %v1807 = vlog2.pop %v1806
    %v1808 = vmul.f32 %v1807, 0.6931472
    %v1809 = vmul.f32 -0.5, %v1803
    %v1810 = vadd.f32 %v1809, 1.0
    %v1811 = vmul.f32 %v1810, %v1803
    %v1812 = vand.u32 2147483647, %v1803
    %vm1813 = vcmp.lt.f32.partialorder %v1812, 0.0004427343
    %v1814 = vsel %vm1813, %v1811, %v1808
    %v1815 = vadd.f32 %v1805, 1.0
    %v1816 = vlog2.pop %v1815
    %v1817 = vmul.f32 %v1816, 0.6931472
    %v1818 = vmul.f32 -0.5, %v1805
    %v1819 = vadd.f32 %v1818, 1.0
    %v1820 = vmul.f32 %v1819, %v1805
    %v1821 = vand.u32 2147483647, %v1805
    %vm1822 = vcmp.lt.f32.partialorder %v1821, 0.0004427343
    %v1823 = vsel %vm1822, %v1820, %v1817
    %v1824 = vadd.f32 %v1796, %v1814
    %v1825 = vadd.f32 %v1797, %v1823
    %v1826 = vsub.f32 %v1824, 0.6931472
    %v1827 = vsub.f32 %v1825, 0.6931472
    %v1828 = vld [vmem:[#allocation37] sm:$0xf]
    %v1829 = vld [vmem:[#allocation37 + $0x4] sm:$0xf]
    %v1830 = vld [vmem:[#allocation37 + $0x8] sm:$0xf]
    %v1831 = vld [vmem:[#allocation37 + $0xc] sm:$0xf]
    %v1832 = vld [vmem:[#allocation37 + $0x10] sm:$0xf]
    %v1833 = vld [vmem:[#allocation37 + $0x14] sm:$0xf]
    %v1834 = vld [vmem:[#allocation37 + $0x18] sm:$0xf]
    %v1835 = vld [vmem:[#allocation37 + $0x1c] sm:$0xf]
    %v1836 = vpack.c.bf16 %v1827, %v1826
    %v1837 = vld [vmem:[#allocation38] sm:$0x1]
    %v1839 = vlaneseq
    %v1840 = vshrl.u32 %v1839, 7
    %v1841 = vsub.s32 0, %v1840
    %v1842 = vrot.slane %v1837, %v1841
    %v1852 = vunpack.c.l.b16 %v1828
    %v1853 = vunpack.c.l.b16 %v1829
    %v1854 = vunpack.c.l.b16 %v1830
    %v1855 = vunpack.c.l.b16 %v1831
    %v1856 = vunpack.c.l.b16 %v1832
    %v1857 = vunpack.c.l.b16 %v1833
    %v1858 = vunpack.c.l.b16 %v1834
    %v1859 = vunpack.c.l.b16 %v1835
    %v1860 = vpack.c.b16 %v1853, %v1852
    %v1861 = vpack.c.b16 %v1855, %v1854
    %v1862 = vpack.c.b16 %v1857, %v1856
    %v1863 = vpack.c.b16 %v1859, %v1858
    %v1869 = vsel %vm1270, %v1836, 0
    %1871 = vmatprep.subr.bf16.mxu0 0
    %1872 = vmatpush1.bf16.msra.mxu0 %v1860
    %1873 = vmatprep.subr.bf16.mxu0 0
    %1874 = vmatpush1.bf16.msra.mxu0 %v1861
    %1875 = vmatprep.subr.bf16.mxu0 0
    %1876 = vmatpush1.bf16.msra.mxu0 %v1862
    %1877 = vmatprep.subr.bf16.mxu0 0
    %1878 = vmatpush1.bf16.msra.mxu0 %v1863
    %1879 = vmatprep.subr.bf16.mxu0 0
    %1880 = vmatpush1.bf16.msra.mxu0 0
    %1881 = vmatprep.subr.bf16.mxu0 0
    %1882 = vmatpush1.bf16.msra.mxu0 0
    %1883 = vmatprep.subr.bf16.mxu0 0
    %1884 = vmatpush1.bf16.msra.mxu0 0
    %1885 = vmatprep.subr.bf16.mxu0 0
    %1886 = vmatpush1.bf16.msra.mxu0 0
    %1887 = vmatprep.subr.bf16.mxu0 0
    %1888 = vmatpush1.bf16.msra.mxu0 0
    %1889 = vmatprep.subr.bf16.mxu0 0
    %1890 = vmatpush1.bf16.msra.mxu0 0
    %1891 = vmatprep.subr.bf16.mxu0 0
    %1892 = vmatpush1.bf16.msra.mxu0 0
    %1893 = vmatprep.subr.bf16.mxu0 0
    %1894 = vmatpush1.bf16.msra.mxu0 0
    %1895 = vmatprep.subr.bf16.mxu0 0
    %1896 = vmatpush1.bf16.msra.mxu0 0
    %1897 = vmatprep.subr.bf16.mxu0 0
    %1898 = vmatpush1.bf16.msra.mxu0 0
    %1899 = vmatprep.subr.bf16.mxu0 0
    %1900 = vmatpush1.bf16.msra.mxu0 0
    %1901 = vmatprep.subr.bf16.mxu0 0
    %1902 = vmatpush1.bf16.msra.mxu0 0
    %1903 = vmatprep.mubr.bf16.mxu0 0
    %1904 = vmatmul.mubr.bf16.gmra.mrb[0].mxu0 %v1869
    %v1905 = vpop.f32.mrb[0].mxu0
    %v1906 = vadd.f32 %v1842, %v1905
    %v1907 = vpop.f32.mrb[0].mxu0
    %v1908 = vpop.f32.mrb[0].mxu0
    %v1909 = vadd.f32 %v1842, %v1908
    %v1910 = vpop.f32.mrb[0].mxu0
    %1911 = vdwg.mxu0
    %v1912 = vmax.f32 %v1906, 0.0
    %v1913 = vmax.f32 %v1909, 0.0
    %v1914 = vand.u32 2147483647, %v1906
    %v1915 = vand.u32 2147483647, %v1909
    %v1916 = vsub.f32 0.0, %v1914
    %v1917 = vsub.f32 0.0, %v1915
    %v1918 = vmul.f32 %v1916, 1.442695
    %v1919 = vpow.pop %v1918
    %v1920 = vmul.f32 %v1917, 1.442695
    %v1921 = vpow.pop %v1920
    %v1922 = vadd.f32 %v1919, 1.0
    %v1923 = vlog2.pop %v1922
    %v1924 = vmul.f32 %v1923, 0.6931472
    %v1925 = vmul.f32 -0.5, %v1919
    %v1926 = vadd.f32 %v1925, 1.0
    %v1927 = vmul.f32 %v1926, %v1919
    %v1928 = vand.u32 2147483647, %v1919
    %vm1929 = vcmp.lt.f32.partialorder %v1928, 0.0004427343
    %v1930 = vsel %vm1929, %v1927, %v1924
    %v1931 = vadd.f32 %v1921, 1.0
    %v1932 = vlog2.pop %v1931
    %v1933 = vmul.f32 %v1932, 0.6931472
    %v1934 = vmul.f32 -0.5, %v1921
    %v1935 = vadd.f32 %v1934, 1.0
    %v1936 = vmul.f32 %v1935, %v1921
    %v1937 = vand.u32 2147483647, %v1921
    %vm1938 = vcmp.lt.f32.partialorder %v1937, 0.0004427343
    %v1939 = vsel %vm1938, %v1936, %v1933
    %v1940 = vadd.f32 %v1912, %v1930
    %v1941 = vadd.f32 %v1913, %v1939
    %v1942 = vsub.f32 %v1940, 0.6931472
    %v1943 = vsub.f32 %v1941, 0.6931472
    %v1944 = vld [vmem:[#allocation25] sm:$0xff]
    %v1945 = vlaneseq
    %v1946 = vand.u32 %v1945, 127
    %1947 = vset.pattern.permute.xlu0 0
    %1948 = vperm.xlu0 %1947, %v1944
    %v1949 = vpop.permute.xlu0 %1948
    %vm1950 = vcmp.eq.s32.totalorder %v1946, %v1949
    %v1951 = vsel %vm1950, 1, 0
    %v1952 = vcvt.s32.f32 %v1951
    %v1953 = vpack.c.bf16 %v1952, %v1952
    %v1954 = vld [vmem:[#allocation26] sm:$0x1]
    %v1955 = vlaneseq
    %v1956 = vshrl.u32 %v1955, 7
    %v1957 = vlaneseq
    %v1958 = vshrl.u32 %v1957, 7
    %v1959 = vsub.s32 0, %v1958
    %v1960 = vrot.slane %v1954, %v1959
    %vm1961 = vcmp.eq.s32.totalorder %v1956, %v1960
    %v1962 = vsel %vm1961, 1, 0
    %v1963 = vcvt.s32.f32 %v1962
    %v1964 = vpack.c.bf16 %v1963, %v1963
    %v1965 = vpack.c.bf16 %v1511, %v1511
    %vm1966 = vcmask 15360
    %v1968 = vsel %vm1966, %v1953, 0
    %vm1970 = vcmask 1040384
    %v1972 = vsel %vm1970, %v1965, 0
    %1974 = vmatprep.subr.bf16.mxu0 0
    %1975 = vmatpush1.bf16.msra.mxu0 %v1972
    %1976 = vmatprep.subr.bf16.mxu0 0
    %1977 = vmatpush1.bf16.msra.mxu0 0
    %1978 = vmatprep.subr.bf16.mxu0 0
    %1979 = vmatpush1.bf16.msra.mxu0 0
    %1980 = vmatprep.subr.bf16.mxu0 0
    %1981 = vmatpush1.bf16.msra.mxu0 0
    %1982 = vmatprep.subr.bf16.mxu0 0
    %1983 = vmatpush1.bf16.msra.mxu0 0
    %1984 = vmatprep.subr.bf16.mxu0 0
    %1985 = vmatpush1.bf16.msra.mxu0 0
    %1986 = vmatprep.subr.bf16.mxu0 0
    %1987 = vmatpush1.bf16.msra.mxu0 0
    %1988 = vmatprep.subr.bf16.mxu0 0
    %1989 = vmatpush1.bf16.msra.mxu0 0
    %1990 = vmatprep.subr.bf16.mxu0 0
    %1991 = vmatpush1.bf16.msra.mxu0 0
    %1992 = vmatprep.subr.bf16.mxu0 0
    %1993 = vmatpush1.bf16.msra.mxu0 0
    %1994 = vmatprep.subr.bf16.mxu0 0
    %1995 = vmatpush1.bf16.msra.mxu0 0
    %1996 = vmatprep.subr.bf16.mxu0 0
    %1997 = vmatpush1.bf16.msra.mxu0 0
    %1998 = vmatprep.subr.bf16.mxu0 0
    %1999 = vmatpush1.bf16.msra.mxu0 0
    %2000 = vmatprep.subr.bf16.mxu0 0
    %2001 = vmatpush1.bf16.msra.mxu0 0
    %2002 = vmatprep.subr.bf16.mxu0 0
    %2003 = vmatpush1.bf16.msra.mxu0 0
    %2004 = vmatprep.subr.bf16.mxu0 0
    %2005 = vmatpush1.bf16.msra.mxu0 0
    %2006 = vmatprep.mubr.bf16.mxu0 0
    %2007 = vmatmul.mubr.bf16.gmra.mrb[0].mxu0 %v1968
    %v2008 = vpop.f32.mrb[0].mxu0
    %v2009 = vadd.f32 0.0, %v2008
    %v2010 = vpop.f32.mrb[0].mxu0
    %v2011 = vpop.f32.mrb[0].mxu0
    %v2012 = vpop.f32.mrb[0].mxu0
    %2013 = vdwg.mxu0
    %v2014 = vld [vmem:[#allocation10] sm:$0xff]
    %v2015 = vld [vmem:[#allocation10 + $0x8] sm:$0xf]
    %2016 = vset.pattern.permute.xlu0 0
    %2017 = vperm.xlu0 %2016, %v2014
    %v2018 = vpop.permute.xlu0 %2017
    %2019 = vset.pattern.permute.xlu0 0
    %2020 = vperm.xlu0 %2019, %v2015
    %v2021 = vpop.permute.xlu0 %2020
    %vm2022 = vcmp.eq.s32.totalorder %v1946, %v2018
    %vm2023 = vcmp.eq.s32.totalorder %v1946, %v2021
    %v2024 = vsel %vm2022, 1, 0
    %v2025 = vsel %vm2023, 1, 0
    %v2026 = vcvt.s32.f32 %v2024
    %v2027 = vcvt.s32.f32 %v2025
    %v2028 = vpack.c.bf16 %v2027, %v2026
    %v2029 = vld [vmem:[#allocation11] sm:$0x1]
    %v2030 = vlaneseq
    %v2031 = vshrl.u32 %v2030, 7
    %v2032 = vsub.s32 0, %v2031
    %v2033 = vrot.slane %v2029, %v2032
    %vm2034 = vcmp.eq.s32.totalorder %v1956, %v2033
    %v2035 = vsel %vm2034, 1, 0
    %v2036 = vcvt.s32.f32 %v2035
    %v2037 = vpack.c.bf16 %v2036, %v2036
    %v2038 = vld [vmem:[#allocation13] sm:$0xff]
    %v2039 = vld [vmem:[#allocation13 + $0x8] sm:$0xf]
    %2040 = vset.pattern.permute.xlu0 0
    %2041 = vperm.xlu0 %2040, %v2038
    %v2042 = vpop.permute.xlu0 %2041
    %2043 = vset.pattern.permute.xlu0 0
    %2044 = vperm.xlu0 %2043, %v2039
    %v2045 = vpop.permute.xlu0 %2044
    %vm2046 = vcmp.eq.s32.totalorder %v1946, %v2042
    %vm2047 = vcmp.eq.s32.totalorder %v1946, %v2045
    %v2048 = vsel %vm2046, 1, 0
    %v2049 = vsel %vm2047, 1, 0
    %v2050 = vcvt.s32.f32 %v2048
    %v2051 = vcvt.s32.f32 %v2049
    %v2052 = vpack.c.bf16 %v2051, %v2050
    %v2053 = vld [vmem:[#allocation14] sm:$0xff]
    %v2054 = vld [vmem:[#allocation14 + $0x8] sm:$0xf]
    %2055 = vset.pattern.permute.xlu0 0
    %2056 = vperm.xlu0 %2055, %v2053
    %v2057 = vpop.permute.xlu0 %2056
    %2058 = vset.pattern.permute.xlu0 0
    %2059 = vperm.xlu0 %2058, %v2054
    %v2060 = vpop.permute.xlu0 %2059
    %vm2061 = vcmp.eq.s32.totalorder %v1946, %v2057
    %vm2062 = vcmp.eq.s32.totalorder %v1946, %v2060
    %v2063 = vsel %vm2061, 1, 0
    %v2064 = vsel %vm2062, 1, 0
    %v2065 = vcvt.s32.f32 %v2063
    %v2066 = vcvt.s32.f32 %v2064
    %v2067 = vpack.c.bf16 %v2066, %v2065
    %v2068 = vld [vmem:[#allocation16] sm:$0x1]
    %v2069 = vlaneseq
    %v2070 = vshrl.u32 %v2069, 7
    %v2071 = vsub.s32 0, %v2070
    %v2072 = vrot.slane %v2068, %v2071
    %vm2073 = vcmp.eq.s32.totalorder %v1956, %v2072
    %v2074 = vsel %vm2073, 1, 0
    %v2075 = vcvt.s32.f32 %v2074
    %v2076 = vpack.c.bf16 %v2075, %v2075
    %v2077 = vpack.c.bf16 %v1329, %v1329
    %vm2078 = vcmask 64512
    %v2080 = vsel %vm2078, %v2028, 0
    %vm2082 = vcmask 1043456
    %v2084 = vsel %vm2082, %v2077, 0
    %2086 = vmatprep.subr.bf16.mxu0 0
    %2087 = vmatpush1.bf16.msra.mxu0 %v2084
    %2088 = vmatprep.subr.bf16.mxu0 0
    %2089 = vmatpush1.bf16.msra.mxu0 0
    %2090 = vmatprep.subr.bf16.mxu0 0
    %2091 = vmatpush1.bf16.msra.mxu0 0
    %2092 = vmatprep.subr.bf16.mxu0 0
    %2093 = vmatpush1.bf16.msra.mxu0 0
    %2094 = vmatprep.subr.bf16.mxu0 0
    %2095 = vmatpush1.bf16.msra.mxu0 0
    %2096 = vmatprep.subr.bf16.mxu0 0
    %2097 = vmatpush1.bf16.msra.mxu0 0
    %2098 = vmatprep.subr.bf16.mxu0 0
    %2099 = vmatpush1.bf16.msra.mxu0 0
    %2100 = vmatprep.subr.bf16.mxu0 0
    %2101 = vmatpush1.bf16.msra.mxu0 0
    %2102 = vmatprep.subr.bf16.mxu0 0
    %2103 = vmatpush1.bf16.msra.mxu0 0
    %2104 = vmatprep.subr.bf16.mxu0 0
    %2105 = vmatpush1.bf16.msra.mxu0 0
    %2106 = vmatprep.subr.bf16.mxu0 0
    %2107 = vmatpush1.bf16.msra.mxu0 0
    %2108 = vmatprep.subr.bf16.mxu0 0
    %2109 = vmatpush1.bf16.msra.mxu0 0
    %2110 = vmatprep.subr.bf16.mxu0 0
    %2111 = vmatpush1.bf16.msra.mxu0 0
    %2112 = vmatprep.subr.bf16.mxu0 0
    %2113 = vmatpush1.bf16.msra.mxu0 0
    %2114 = vmatprep.subr.bf16.mxu0 0
    %2115 = vmatpush1.bf16.msra.mxu0 0
    %2116 = vmatprep.subr.bf16.mxu0 0
    %2117 = vmatpush1.bf16.msra.mxu0 0
    %2118 = vmatprep.mubr.bf16.mxu0 0
    %2119 = vmatmul.mubr.bf16.gmra.mrb[0].mxu0 %v2080
    %v2120 = vpop.f32.mrb[0].mxu0
    %v2121 = vadd.f32 0.0, %v2120
    %v2122 = vpop.f32.mrb[0].mxu0
    %v2123 = vpop.f32.mrb[0].mxu0
    %v2124 = vadd.f32 0.0, %v2123
    %v2125 = vpop.f32.mrb[0].mxu0
    %2126 = vdwg.mxu0
    %v2128 = vsel %vm2078, %v2052, 0
    %2130 = vmatprep.subr.bf16.mxu0 0
    %2131 = vmatpush1.bf16.msra.mxu0 %v2084
    %2132 = vmatprep.subr.bf16.mxu0 0
    %2133 = vmatpush1.bf16.msra.mxu0 0
    %2134 = vmatprep.subr.bf16.mxu0 0
    %2135 = vmatpush1.bf16.msra.mxu0 0
    %2136 = vmatprep.subr.bf16.mxu0 0
    %2137 = vmatpush1.bf16.msra.mxu0 0
    %2138 = vmatprep.subr.bf16.mxu0 0
    %2139 = vmatpush1.bf16.msra.mxu0 0
    %2140 = vmatprep.subr.bf16.mxu0 0
    %2141 = vmatpush1.bf16.msra.mxu0 0
    %2142 = vmatprep.subr.bf16.mxu0 0
    %2143 = vmatpush1.bf16.msra.mxu0 0
    %2144 = vmatprep.subr.bf16.mxu0 0
    %2145 = vmatpush1.bf16.msra.mxu0 0
    %2146 = vmatprep.subr.bf16.mxu0 0
    %2147 = vmatpush1.bf16.msra.mxu0 0
    %2148 = vmatprep.subr.bf16.mxu0 0
    %2149 = vmatpush1.bf16.msra.mxu0 0
    %2150 = vmatprep.subr.bf16.mxu0 0
    %2151 = vmatpush1.bf16.msra.mxu0 0
    %2152 = vmatprep.subr.bf16.mxu0 0
    %2153 = vmatpush1.bf16.msra.mxu0 0
    %2154 = vmatprep.subr.bf16.mxu0 0
    %2155 = vmatpush1.bf16.msra.mxu0 0
    %2156 = vmatprep.subr.bf16.mxu0 0
    %2157 = vmatpush1.bf16.msra.mxu0 0
    %2158 = vmatprep.subr.bf16.mxu0 0
    %2159 = vmatpush1.bf16.msra.mxu0 0
    %2160 = vmatprep.subr.bf16.mxu0 0
    %2161 = vmatpush1.bf16.msra.mxu0 0
    %2162 = vmatprep.mubr.bf16.mxu0 0
    %2163 = vmatmul.mubr.bf16.gmra.mrb[0].mxu0 %v2128
    %v2164 = vpop.f32.mrb[0].mxu0
    %v2165 = vadd.f32 0.0, %v2164
    %v2166 = vpop.f32.mrb[0].mxu0
    %v2167 = vpop.f32.mrb[0].mxu0
    %v2168 = vadd.f32 0.0, %v2167
    %v2169 = vpop.f32.mrb[0].mxu0
    %2170 = vdwg.mxu0
    %v2172 = vsel %vm1966, %v2067, 0
    %2174 = vmatprep.subr.bf16.mxu0 0
    %2175 = vmatpush1.bf16.msra.mxu0 %v1972
    %2176 = vmatprep.subr.bf16.mxu0 0
    %2177 = vmatpush1.bf16.msra.mxu0 0
    %2178 = vmatprep.subr.bf16.mxu0 0
    %2179 = vmatpush1.bf16.msra.mxu0 0
    %2180 = vmatprep.subr.bf16.mxu0 0
    %2181 = vmatpush1.bf16.msra.mxu0 0
    %2182 = vmatprep.subr.bf16.mxu0 0
    %2183 = vmatpush1.bf16.msra.mxu0 0
    %2184 = vmatprep.subr.bf16.mxu0 0
    %2185 = vmatpush1.bf16.msra.mxu0 0
    %2186 = vmatprep.subr.bf16.mxu0 0
    %2187 = vmatpush1.bf16.msra.mxu0 0
    %2188 = vmatprep.subr.bf16.mxu0 0
    %2189 = vmatpush1.bf16.msra.mxu0 0
    %2190 = vmatprep.subr.bf16.mxu0 0
    %2191 = vmatpush1.bf16.msra.mxu0 0
    %2192 = vmatprep.subr.bf16.mxu0 0
    %2193 = vmatpush1.bf16.msra.mxu0 0
    %2194 = vmatprep.subr.bf16.mxu0 0
    %2195 = vmatpush1.bf16.msra.mxu0 0
    %2196 = vmatprep.subr.bf16.mxu0 0
    %2197 = vmatpush1.bf16.msra.mxu0 0
    %2198 = vmatprep.subr.bf16.mxu0 0
    %2199 = vmatpush1.bf16.msra.mxu0 0
    %2200 = vmatprep.subr.bf16.mxu0 0
    %2201 = vmatpush1.bf16.msra.mxu0 0
    %2202 = vmatprep.subr.bf16.mxu0 0
    %2203 = vmatpush1.bf16.msra.mxu0 0
    %2204 = vmatprep.subr.bf16.mxu0 0
    %2205 = vmatpush1.bf16.msra.mxu0 0
    %2206 = vmatprep.mubr.bf16.mxu0 0
    %2207 = vmatmul.mubr.bf16.gmra.mrb[0].mxu0 %v2172
    %v2208 = vpop.f32.mrb[0].mxu0
    %v2209 = vadd.f32 0.0, %v2208
    %v2210 = vpop.f32.mrb[0].mxu0
    %v2211 = vpop.f32.mrb[0].mxu0
    %v2212 = vadd.f32 0.0, %v2211
    %v2213 = vpop.f32.mrb[0].mxu0
    %2214 = vdwg.mxu0
    %v2215 = vld [vmem:[#allocation52] sm:$0xf]
    %v2216 = vld [vmem:[#allocation52 + $0x4] sm:$0xf]
    %v2217 = vld [vmem:[#allocation52 + $0x8] sm:$0xf]
    %v2218 = vld [vmem:[#allocation52 + $0xc] sm:$0xf]
    %v2219 = vpack.c.bf16 %v2124, %v2121
    %v2220 = vld [vmem:[#allocation52 + $0x10] sm:$0xf]
    %v2221 = vld [vmem:[#allocation52 + $0x14] sm:$0xf]
    %v2222 = vld [vmem:[#allocation52 + $0x18] sm:$0xf]
    %v2223 = vld [vmem:[#allocation52 + $0x1c] sm:$0xf]
    %v2224 = vpack.c.bf16 %v1727, %v1726
    %v2229 = vunpack.c.l.b16 %v2220
    %v2230 = vunpack.c.l.b16 %v2221
    %v2231 = vunpack.c.l.b16 %v2222
    %v2232 = vunpack.c.l.b16 %v2223
    %v2233 = vpack.c.b16 %v2230, %v2229
    %v2234 = vpack.c.b16 %v2232, %v2231
    %v2238 = vsel %vm1170, %v2224, 0
    %2240 = vmatprep.subr.bf16.mxu0 0
    %2241 = vmatpush1.bf16.msra.mxu0 %v2233
    %2242 = vmatprep.subr.bf16.mxu0 0
    %2243 = vmatpush1.bf16.msra.mxu0 %v2234
    %2244 = vmatprep.subr.bf16.mxu0 0
    %2245 = vmatpush1.bf16.msra.mxu0 0
    %2246 = vmatprep.subr.bf16.mxu0 0
    %2247 = vmatpush1.bf16.msra.mxu0 0
    %2248 = vmatprep.subr.bf16.mxu0 0
    %2249 = vmatpush1.bf16.msra.mxu0 0
    %2250 = vmatprep.subr.bf16.mxu0 0
    %2251 = vmatpush1.bf16.msra.mxu0 0
    %2252 = vmatprep.subr.bf16.mxu0 0
    %2253 = vmatpush1.bf16.msra.mxu0 0
    %2254 = vmatprep.subr.bf16.mxu0 0
    %2255 = vmatpush1.bf16.msra.mxu0 0
    %2256 = vmatprep.subr.bf16.mxu0 0
    %2257 = vmatpush1.bf16.msra.mxu0 0
    %2258 = vmatprep.subr.bf16.mxu0 0
    %2259 = vmatpush1.bf16.msra.mxu0 0
    %2260 = vmatprep.subr.bf16.mxu0 0
    %2261 = vmatpush1.bf16.msra.mxu0 0
    %2262 = vmatprep.subr.bf16.mxu0 0
    %2263 = vmatpush1.bf16.msra.mxu0 0
    %2264 = vmatprep.subr.bf16.mxu0 0
    %2265 = vmatpush1.bf16.msra.mxu0 0
    %2266 = vmatprep.subr.bf16.mxu0 0
    %2267 = vmatpush1.bf16.msra.mxu0 0
    %2268 = vmatprep.subr.bf16.mxu0 0
    %2269 = vmatpush1.bf16.msra.mxu0 0
    %2270 = vmatprep.subr.bf16.mxu0 0
    %2271 = vmatpush1.bf16.msra.mxu0 0
    %2272 = vmatprep.mubr.bf16.mxu0 0
    %2273 = vmatmul.mubr.bf16.gmra.mrb[0].mxu0 %v2238
    %v2274 = vpop.f32.mrb[0].mxu0
    %v2275 = vadd.f32 0.0, %v2274
    %v2276 = vpop.f32.mrb[0].mxu0
    %v2277 = vpop.f32.mrb[0].mxu0
    %v2278 = vadd.f32 0.0, %v2277
    %v2279 = vpop.f32.mrb[0].mxu0
    %2280 = vdwg.mxu0
    %v2285 = vunpack.c.l.b16 %v2215
    %v2286 = vunpack.c.l.b16 %v2216
    %v2287 = vunpack.c.l.b16 %v2217
    %v2288 = vunpack.c.l.b16 %v2218
    %v2289 = vpack.c.b16 %v2286, %v2285
    %v2290 = vpack.c.b16 %v2288, %v2287
    %v2294 = vsel %vm1170, %v2219, 0
    %2296 = vmatprep.subr.bf16.mxu0 0
    %2297 = vmatpush1.bf16.msra.mxu0 %v2289
    %2298 = vmatprep.subr.bf16.mxu0 0
    %2299 = vmatpush1.bf16.msra.mxu0 %v2290
    %2300 = vmatprep.subr.bf16.mxu0 0
    %2301 = vmatpush1.bf16.msra.mxu0 0
    %2302 = vmatprep.subr.bf16.mxu0 0
    %2303 = vmatpush1.bf16.msra.mxu0 0
    %2304 = vmatprep.subr.bf16.mxu0 0
    %2305 = vmatpush1.bf16.msra.mxu0 0
    %2306 = vmatprep.subr.bf16.mxu0 0
    %2307 = vmatpush1.bf16.msra.mxu0 0
    %2308 = vmatprep.subr.bf16.mxu0 0
    %2309 = vmatpush1.bf16.msra.mxu0 0
    %2310 = vmatprep.subr.bf16.mxu0 0
    %2311 = vmatpush1.bf16.msra.mxu0 0
    %2312 = vmatprep.subr.bf16.mxu0 0
    %2313 = vmatpush1.bf16.msra.mxu0 0
    %2314 = vmatprep.subr.bf16.mxu0 0
    %2315 = vmatpush1.bf16.msra.mxu0 0
    %2316 = vmatprep.subr.bf16.mxu0 0
    %2317 = vmatpush1.bf16.msra.mxu0 0
    %2318 = vmatprep.subr.bf16.mxu0 0
    %2319 = vmatpush1.bf16.msra.mxu0 0
    %2320 = vmatprep.subr.bf16.mxu0 0
    %2321 = vmatpush1.bf16.msra.mxu0 0
    %2322 = vmatprep.subr.bf16.mxu0 0
    %2323 = vmatpush1.bf16.msra.mxu0 0
    %2324 = vmatprep.subr.bf16.mxu0 0
    %2325 = vmatpush1.bf16.msra.mxu0 0
    %2326 = vmatprep.subr.bf16.mxu0 0
    %2327 = vmatpush1.bf16.msra.mxu0 0
    %2328 = vmatprep.mubr.bf16.mxu0 0
    %2329 = vmatmul.mubr.bf16.gmra.mrb[0].mxu0 %v2294
    %v2330 = vpop.f32.mrb[0].mxu0
    %v2331 = vadd.f32 %v2275, %v2330
    %v2332 = vpop.f32.mrb[0].mxu0
    %v2333 = vpop.f32.mrb[0].mxu0
    %v2334 = vadd.f32 %v2278, %v2333
    %v2335 = vpop.f32.mrb[0].mxu0
    %2336 = vdwg.mxu0
    %v2337 = vld [vmem:[#allocation52 + $0x20] sm:$0xf]
    %v2338 = vld [vmem:[#allocation52 + $0x24] sm:$0xf]
    %v2339 = vld [vmem:[#allocation52 + $0x28] sm:$0xf]
    %v2340 = vld [vmem:[#allocation52 + $0x2c] sm:$0xf]
    %v2341 = vpack.c.bf16 %v2168, %v2165
    %v2346 = vunpack.c.l.b16 %v2337
    %v2347 = vunpack.c.l.b16 %v2338
    %v2348 = vunpack.c.l.b16 %v2339
    %v2349 = vunpack.c.l.b16 %v2340
    %v2350 = vpack.c.b16 %v2347, %v2346
    %v2351 = vpack.c.b16 %v2349, %v2348
    %v2355 = vsel %vm1170, %v2341, 0
    %2357 = vmatprep.subr.bf16.mxu0 0
    %2358 = vmatpush1.bf16.msra.mxu0 %v2350
    %2359 = vmatprep.subr.bf16.mxu0 0
    %2360 = vmatpush1.bf16.msra.mxu0 %v2351
    %2361 = vmatprep.subr.bf16.mxu0 0
    %2362 = vmatpush1.bf16.msra.mxu0 0
    %2363 = vmatprep.subr.bf16.mxu0 0
    %2364 = vmatpush1.bf16.msra.mxu0 0
    %2365 = vmatprep.subr.bf16.mxu0 0
    %2366 = vmatpush1.bf16.msra.mxu0 0
    %2367 = vmatprep.subr.bf16.mxu0 0
    %2368 = vmatpush1.bf16.msra.mxu0 0
    %2369 = vmatprep.subr.bf16.mxu0 0
    %2370 = vmatpush1.bf16.msra.mxu0 0
    %2371 = vmatprep.subr.bf16.mxu0 0
    %2372 = vmatpush1.bf16.msra.mxu0 0
    %2373 = vmatprep.subr.bf16.mxu0 0
    %2374 = vmatpush1.bf16.msra.mxu0 0
    %2375 = vmatprep.subr.bf16.mxu0 0
    %2376 = vmatpush1.bf16.msra.mxu0 0
    %2377 = vmatprep.subr.bf16.mxu0 0
    %2378 = vmatpush1.bf16.msra.mxu0 0
    %2379 = vmatprep.subr.bf16.mxu0 0
    %2380 = vmatpush1.bf16.msra.mxu0 0
    %2381 = vmatprep.subr.bf16.mxu0 0
    %2382 = vmatpush1.bf16.msra.mxu0 0
    %2383 = vmatprep.subr.bf16.mxu0 0
    %2384 = vmatpush1.bf16.msra.mxu0 0
    %2385 = vmatprep.subr.bf16.mxu0 0
    %2386 = vmatpush1.bf16.msra.mxu0 0
    %2387 = vmatprep.subr.bf16.mxu0 0
    %2388 = vmatpush1.bf16.msra.mxu0 0
    %2389 = vmatprep.mubr.bf16.mxu0 0
    %2390 = vmatmul.mubr.bf16.gmra.mrb[0].mxu0 %v2355
    %v2391 = vpop.f32.mrb[0].mxu0
    %v2392 = vadd.f32 0.0, %v2391
    %v2393 = vpop.f32.mrb[0].mxu0
    %v2394 = vpop.f32.mrb[0].mxu0
    %v2395 = vadd.f32 0.0, %v2394
    %v2396 = vpop.f32.mrb[0].mxu0
    %2397 = vdwg.mxu0
    %v2398 = vadd.f32 %v2331, %v2392
    %v2399 = vadd.f32 %v2334, %v2395
    %v2400 = vld [vmem:[#allocation52 + $0x30] sm:$0xf]
    %v2401 = vld [vmem:[#allocation52 + $0x34] sm:$0xf]
    %v2402 = vld [vmem:[#allocation52 + $0x38] sm:$0xf]
    %v2403 = vld [vmem:[#allocation52 + $0x3c] sm:$0xf]
    %v2404 = vpack.c.bf16 %v2212, %v2209
    %v2409 = vunpack.c.l.b16 %v2400
    %v2410 = vunpack.c.l.b16 %v2401
    %v2411 = vunpack.c.l.b16 %v2402
    %v2412 = vunpack.c.l.b16 %v2403
    %v2413 = vpack.c.b16 %v2410, %v2409
    %v2414 = vpack.c.b16 %v2412, %v2411
    %v2418 = vsel %vm1170, %v2404, 0
    %2420 = vmatprep.subr.bf16.mxu0 0
    %2421 = vmatpush1.bf16.msra.mxu0 %v2413
    %2422 = vmatprep.subr.bf16.mxu0 0
    %2423 = vmatpush1.bf16.msra.mxu0 %v2414
    %2424 = vmatprep.subr.bf16.mxu0 0
    %2425 = vmatpush1.bf16.msra.mxu0 0
    %2426 = vmatprep.subr.bf16.mxu0 0
    %2427 = vmatpush1.bf16.msra.mxu0 0
    %2428 = vmatprep.subr.bf16.mxu0 0
    %2429 = vmatpush1.bf16.msra.mxu0 0
    %2430 = vmatprep.subr.bf16.mxu0 0
    %2431 = vmatpush1.bf16.msra.mxu0 0
    %2432 = vmatprep.subr.bf16.mxu0 0
    %2433 = vmatpush1.bf16.msra.mxu0 0
    %2434 = vmatprep.subr.bf16.mxu0 0
    %2435 = vmatpush1.bf16.msra.mxu0 0
    %2436 = vmatprep.subr.bf16.mxu0 0
    %2437 = vmatpush1.bf16.msra.mxu0 0
    %2438 = vmatprep.subr.bf16.mxu0 0
    %2439 = vmatpush1.bf16.msra.mxu0 0
    %2440 = vmatprep.subr.bf16.mxu0 0
    %2441 = vmatpush1.bf16.msra.mxu0 0
    %2442 = vmatprep.subr.bf16.mxu0 0
    %2443 = vmatpush1.bf16.msra.mxu0 0
    %2444 = vmatprep.subr.bf16.mxu0 0
    %2445 = vmatpush1.bf16.msra.mxu0 0
    %2446 = vmatprep.subr.bf16.mxu0 0
    %2447 = vmatpush1.bf16.msra.mxu0 0
    %2448 = vmatprep.subr.bf16.mxu0 0
    %2449 = vmatpush1.bf16.msra.mxu0 0
    %2450 = vmatprep.subr.bf16.mxu0 0
    %2451 = vmatpush1.bf16.msra.mxu0 0
    %2452 = vmatprep.mubr.bf16.mxu0 0
    %2453 = vmatmul.mubr.bf16.gmra.mrb[0].mxu0 %v2418
    %v2454 = vpop.f32.mrb[0].mxu0
    %v2455 = vadd.f32 0.0, %v2454
    %v2456 = vpop.f32.mrb[0].mxu0
    %v2457 = vpop.f32.mrb[0].mxu0
    %v2458 = vadd.f32 0.0, %v2457
    %v2459 = vpop.f32.mrb[0].mxu0
    %2460 = vdwg.mxu0
    %v2461 = vadd.f32 %v2398, %v2455
    %v2462 = vadd.f32 %v2399, %v2458
    %v2463 = vld [vmem:[#allocation53] sm:$0x1]
    %v2465 = vlaneseq
    %v2466 = vshrl.u32 %v2465, 7
    %v2467 = vsub.s32 0, %v2466
    %v2468 = vrot.slane %v2463, %v2467
    %v2470 = vadd.f32 %v2461, %v2468
    %v2471 = vadd.f32 %v2462, %v2468
    %v2472 = vmax.f32 %v2470, 0.0
    %v2473 = vmax.f32 %v2471, 0.0
    %v2474 = vand.u32 2147483647, %v2470
    %v2475 = vand.u32 2147483647, %v2471
    %v2476 = vsub.f32 0.0, %v2474
    %v2477 = vsub.f32 0.0, %v2475
    %v2478 = vmul.f32 %v2476, 1.442695
    %v2479 = vpow.pop %v2478
    %v2480 = vmul.f32 %v2477, 1.442695
    %v2481 = vpow.pop %v2480
    %v2482 = vadd.f32 %v2479, 1.0
    %v2483 = vlog2.pop %v2482
    %v2484 = vmul.f32 %v2483, 0.6931472
    %v2485 = vmul.f32 -0.5, %v2479
    %v2486 = vadd.f32 %v2485, 1.0
    %v2487 = vmul.f32 %v2486, %v2479
    %v2488 = vand.u32 2147483647, %v2479
    %vm2489 = vcmp.lt.f32.partialorder %v2488, 0.0004427343
    %v2490 = vsel %vm2489, %v2487, %v2484
    %v2491 = vadd.f32 %v2481, 1.0
    %v2492 = vlog2.pop %v2491
    %v2493 = vmul.f32 %v2492, 0.6931472
    %v2494 = vmul.f32 -0.5, %v2481
    %v2495 = vadd.f32 %v2494, 1.0
    %v2496 = vmul.f32 %v2495, %v2481
    %v2497 = vand.u32 2147483647, %v2481
    %vm2498 = vcmp.lt.f32.partialorder %v2497, 0.0004427343
    %v2499 = vsel %vm2498, %v2496, %v2493
    %v2500 = vadd.f32 %v2472, %v2490
    %v2501 = vadd.f32 %v2473, %v2499
    %v2502 = vsub.f32 %v2500, 0.6931472
    %v2503 = vsub.f32 %v2501, 0.6931472
    %v2504 = vld [vmem:[#allocation55] sm:$0xf]
    %v2505 = vld [vmem:[#allocation55 + $0x4] sm:$0xf]
    %v2506 = vld [vmem:[#allocation55 + $0x8] sm:$0xf]
    %v2507 = vld [vmem:[#allocation55 + $0xc] sm:$0xf]
    %v2508 = vld [vmem:[#allocation55 + $0x10] sm:$0xf]
    %v2509 = vld [vmem:[#allocation55 + $0x14] sm:$0xf]
    %v2510 = vld [vmem:[#allocation55 + $0x18] sm:$0xf]
    %v2511 = vld [vmem:[#allocation55 + $0x1c] sm:$0xf]
    %v2512 = vpack.c.bf16 %v2503, %v2502
    %v2513 = vld [vmem:[#allocation56] sm:$0x1]
    %v2515 = vlaneseq
    %v2516 = vshrl.u32 %v2515, 7
    %v2517 = vsub.s32 0, %v2516
    %v2518 = vrot.slane %v2513, %v2517
    %v2528 = vunpack.c.l.b16 %v2504
    %v2529 = vunpack.c.l.b16 %v2505
    %v2530 = vunpack.c.l.b16 %v2506
    %v2531 = vunpack.c.l.b16 %v2507
    %v2532 = vunpack.c.l.b16 %v2508
    %v2533 = vunpack.c.l.b16 %v2509
    %v2534 = vunpack.c.l.b16 %v2510
    %v2535 = vunpack.c.l.b16 %v2511
    %v2536 = vpack.c.b16 %v2529, %v2528
    %v2537 = vpack.c.b16 %v2531, %v2530
    %v2538 = vpack.c.b16 %v2533, %v2532
    %v2539 = vpack.c.b16 %v2535, %v2534
    %v2545 = vsel %vm1270, %v2512, 0
    %2547 = vmatprep.subr.bf16.mxu0 0
    %2548 = vmatpush1.bf16.msra.mxu0 %v2536
    %2549 = vmatprep.subr.bf16.mxu0 0
    %2550 = vmatpush1.bf16.msra.mxu0 %v2537
    %2551 = vmatprep.subr.bf16.mxu0 0
    %2552 = vmatpush1.bf16.msra.mxu0 %v2538
    %2553 = vmatprep.subr.bf16.mxu0 0
    %2554 = vmatpush1.bf16.msra.mxu0 %v2539
    %2555 = vmatprep.subr.bf16.mxu0 0
    %2556 = vmatpush1.bf16.msra.mxu0 0
    %2557 = vmatprep.subr.bf16.mxu0 0
    %2558 = vmatpush1.bf16.msra.mxu0 0
    %2559 = vmatprep.subr.bf16.mxu0 0
    %2560 = vmatpush1.bf16.msra.mxu0 0
    %2561 = vmatprep.subr.bf16.mxu0 0
    %2562 = vmatpush1.bf16.msra.mxu0 0
    %2563 = vmatprep.subr.bf16.mxu0 0
    %2564 = vmatpush1.bf16.msra.mxu0 0
    %2565 = vmatprep.subr.bf16.mxu0 0
    %2566 = vmatpush1.bf16.msra.mxu0 0
    %2567 = vmatprep.subr.bf16.mxu0 0
    %2568 = vmatpush1.bf16.msra.mxu0 0
    %2569 = vmatprep.subr.bf16.mxu0 0
    %2570 = vmatpush1.bf16.msra.mxu0 0
    %2571 = vmatprep.subr.bf16.mxu0 0
    %2572 = vmatpush1.bf16.msra.mxu0 0
    %2573 = vmatprep.subr.bf16.mxu0 0
    %2574 = vmatpush1.bf16.msra.mxu0 0
    %2575 = vmatprep.subr.bf16.mxu0 0
    %2576 = vmatpush1.bf16.msra.mxu0 0
    %2577 = vmatprep.subr.bf16.mxu0 0
    %2578 = vmatpush1.bf16.msra.mxu0 0
    %2579 = vmatprep.mubr.bf16.mxu0 0
    %2580 = vmatmul.mubr.bf16.gmra.mrb[0].mxu0 %v2545
    %v2581 = vpop.f32.mrb[0].mxu0
    %v2582 = vadd.f32 %v2518, %v2581
    %v2583 = vpop.f32.mrb[0].mxu0
    %v2584 = vpop.f32.mrb[0].mxu0
    %v2585 = vadd.f32 %v2518, %v2584
    %v2586 = vpop.f32.mrb[0].mxu0
    %2587 = vdwg.mxu0
    %v2588 = vmax.f32 %v2582, 0.0
    %v2589 = vmax.f32 %v2585, 0.0
    %v2590 = vand.u32 2147483647, %v2582
    %v2591 = vand.u32 2147483647, %v2585
    %v2592 = vsub.f32 0.0, %v2590
    %v2593 = vsub.f32 0.0, %v2591
    %v2594 = vmul.f32 %v2592, 1.442695
    %v2595 = vpow.pop %v2594
    %v2596 = vmul.f32 %v2593, 1.442695
    %v2597 = vpow.pop %v2596
    %v2598 = vadd.f32 %v2595, 1.0
    %v2599 = vlog2.pop %v2598
    %v2600 = vmul.f32 %v2599, 0.6931472
    %v2601 = vmul.f32 -0.5, %v2595
    %v2602 = vadd.f32 %v2601, 1.0
    %v2603 = vmul.f32 %v2602, %v2595
    %v2604 = vand.u32 2147483647, %v2595
    %vm2605 = vcmp.lt.f32.partialorder %v2604, 0.0004427343
    %v2606 = vsel %vm2605, %v2603, %v2600
    %v2607 = vadd.f32 %v2597, 1.0
    %v2608 = vlog2.pop %v2607
    %v2609 = vmul.f32 %v2608, 0.6931472
    %v2610 = vmul.f32 -0.5, %v2597
    %v2611 = vadd.f32 %v2610, 1.0
    %v2612 = vmul.f32 %v2611, %v2597
    %v2613 = vand.u32 2147483647, %v2597
    %vm2614 = vcmp.lt.f32.partialorder %v2613, 0.0004427343
    %v2615 = vsel %vm2614, %v2612, %v2609
    %v2616 = vadd.f32 %v2588, %v2606
    %v2617 = vadd.f32 %v2589, %v2615
    %v2618 = vsub.f32 %v2616, 0.6931472
    %v2619 = vsub.f32 %v2617, 0.6931472
    %v2620 = vld [vmem:[#allocation58] sm:$0xf]
    %v2621 = vld [vmem:[#allocation58 + $0x4] sm:$0xf]
    %v2622 = vld [vmem:[#allocation58 + $0x8] sm:$0xf]
    %v2623 = vld [vmem:[#allocation58 + $0xc] sm:$0xf]
    %v2624 = vld [vmem:[#allocation58 + $0x10] sm:$0xf]
    %v2625 = vld [vmem:[#allocation58 + $0x14] sm:$0xf]
    %v2626 = vld [vmem:[#allocation58 + $0x18] sm:$0xf]
    %v2627 = vld [vmem:[#allocation58 + $0x1c] sm:$0xf]
    %v2628 = vpack.c.bf16 %v2619, %v2618
    %v2629 = vld [vmem:[#allocation59] sm:$0x1]
    %v2631 = vlaneseq
    %v2632 = vshrl.u32 %v2631, 7
    %v2633 = vsub.s32 0, %v2632
    %v2634 = vrot.slane %v2629, %v2633
    %v2644 = vunpack.c.l.b16 %v2620
    %v2645 = vunpack.c.l.b16 %v2621
    %v2646 = vunpack.c.l.b16 %v2622
    %v2647 = vunpack.c.l.b16 %v2623
    %v2648 = vunpack.c.l.b16 %v2624
    %v2649 = vunpack.c.l.b16 %v2625
    %v2650 = vunpack.c.l.b16 %v2626
    %v2651 = vunpack.c.l.b16 %v2627
    %v2652 = vpack.c.b16 %v2645, %v2644
    %v2653 = vpack.c.b16 %v2647, %v2646
    %v2654 = vpack.c.b16 %v2649, %v2648
    %v2655 = vpack.c.b16 %v2651, %v2650
    %v2661 = vsel %vm1270, %v2628, 0
    %2663 = vmatprep.subr.bf16.mxu0 0
    %2664 = vmatpush1.bf16.msra.mxu0 %v2652
    %2665 = vmatprep.subr.bf16.mxu0 0
    %2666 = vmatpush1.bf16.msra.mxu0 %v2653
    %2667 = vmatprep.subr.bf16.mxu0 0
    %2668 = vmatpush1.bf16.msra.mxu0 %v2654
    %2669 = vmatprep.subr.bf16.mxu0 0
    %2670 = vmatpush1.bf16.msra.mxu0 %v2655
    %2671 = vmatprep.subr.bf16.mxu0 0
    %2672 = vmatpush1.bf16.msra.mxu0 0
    %2673 = vmatprep.subr.bf16.mxu0 0
    %2674 = vmatpush1.bf16.msra.mxu0 0
    %2675 = vmatprep.subr.bf16.mxu0 0
    %2676 = vmatpush1.bf16.msra.mxu0 0
    %2677 = vmatprep.subr.bf16.mxu0 0
    %2678 = vmatpush1.bf16.msra.mxu0 0
    %2679 = vmatprep.subr.bf16.mxu0 0
    %2680 = vmatpush1.bf16.msra.mxu0 0
    %2681 = vmatprep.subr.bf16.mxu0 0
    %2682 = vmatpush1.bf16.msra.mxu0 0
    %2683 = vmatprep.subr.bf16.mxu0 0
    %2684 = vmatpush1.bf16.msra.mxu0 0
    %2685 = vmatprep.subr.bf16.mxu0 0
    %2686 = vmatpush1.bf16.msra.mxu0 0
    %2687 = vmatprep.subr.bf16.mxu0 0
    %2688 = vmatpush1.bf16.msra.mxu0 0
    %2689 = vmatprep.subr.bf16.mxu0 0
    %2690 = vmatpush1.bf16.msra.mxu0 0
    %2691 = vmatprep.subr.bf16.mxu0 0
    %2692 = vmatpush1.bf16.msra.mxu0 0
    %2693 = vmatprep.subr.bf16.mxu0 0
    %2694 = vmatpush1.bf16.msra.mxu0 0
    %2695 = vmatprep.mubr.bf16.mxu0 0
    %2696 = vmatmul.mubr.bf16.gmra.mrb[0].mxu0 %v2661
    %v2697 = vpop.f32.mrb[0].mxu0
    %v2698 = vadd.f32 %v2634, %v2697
    %v2699 = vpop.f32.mrb[0].mxu0
    %v2700 = vpop.f32.mrb[0].mxu0
    %v2701 = vadd.f32 %v2634, %v2700
    %v2702 = vpop.f32.mrb[0].mxu0
    %2703 = vdwg.mxu0
    %v2704 = vmax.f32 %v2698, 0.0
    %v2705 = vmax.f32 %v2701, 0.0
    %v2706 = vand.u32 2147483647, %v2698
    %v2707 = vand.u32 2147483647, %v2701
    %v2708 = vsub.f32 0.0, %v2706
    %v2709 = vsub.f32 0.0, %v2707
    %v2710 = vmul.f32 %v2708, 1.442695
    %v2711 = vpow.pop %v2710
    %v2712 = vmul.f32 %v2709, 1.442695
    %v2713 = vpow.pop %v2712
    %v2714 = vadd.f32 %v2711, 1.0
    %v2715 = vlog2.pop %v2714
    %v2716 = vmul.f32 %v2715, 0.6931472
    %v2717 = vmul.f32 -0.5, %v2711
    %v2718 = vadd.f32 %v2717, 1.0
    %v2719 = vmul.f32 %v2718, %v2711
    %v2720 = vand.u32 2147483647, %v2711
    %vm2721 = vcmp.lt.f32.partialorder %v2720, 0.0004427343
    %v2722 = vsel %vm2721, %v2719, %v2716
    %v2723 = vadd.f32 %v2713, 1.0
    %v2724 = vlog2.pop %v2723
    %v2725 = vmul.f32 %v2724, 0.6931472
    %v2726 = vmul.f32 -0.5, %v2713
    %v2727 = vadd.f32 %v2726, 1.0
    %v2728 = vmul.f32 %v2727, %v2713
    %v2729 = vand.u32 2147483647, %v2713
    %vm2730 = vcmp.lt.f32.partialorder %v2729, 0.0004427343
    %v2731 = vsel %vm2730, %v2728, %v2725
    %v2732 = vadd.f32 %v2704, %v2722
    %v2733 = vadd.f32 %v2705, %v2731
    %v2734 = vsub.f32 %v2732, 0.6931472
    %v2735 = vsub.f32 %v2733, 0.6931472
    %v2736 = vpack.c.bf16 %v2735, %v2734
    %vm2737 = vcmask 97280
    %v2739 = vsel %vm2737, %v2037, 0
    %vm2741 = vcmask 1045504
    %v2743 = vsel %vm2741, %v2736, 0
    %2745 = vmatprep.subr.bf16.mxu0 0
    %2746 = vmatpush1.bf16.msra.mxu0 %v2743
    %2747 = vmatprep.subr.bf16.mxu0 0
    %2748 = vmatpush1.bf16.msra.mxu0 0
    %2749 = vmatprep.subr.bf16.mxu0 0
    %2750 = vmatpush1.bf16.msra.mxu0 0
    %2751 = vmatprep.subr.bf16.mxu0 0
    %2752 = vmatpush1.bf16.msra.mxu0 0
    %2753 = vmatprep.subr.bf16.mxu0 0
    %2754 = vmatpush1.bf16.msra.mxu0 0
    %2755 = vmatprep.subr.bf16.mxu0 0
    %2756 = vmatpush1.bf16.msra.mxu0 0
    %2757 = vmatprep.subr.bf16.mxu0 0
    %2758 = vmatpush1.bf16.msra.mxu0 0
    %2759 = vmatprep.subr.bf16.mxu0 0
    %2760 = vmatpush1.bf16.msra.mxu0 0
    %2761 = vmatprep.subr.bf16.mxu0 0
    %2762 = vmatpush1.bf16.msra.mxu0 0
    %2763 = vmatprep.subr.bf16.mxu0 0
    %2764 = vmatpush1.bf16.msra.mxu0 0
    %2765 = vmatprep.subr.bf16.mxu0 0
    %2766 = vmatpush1.bf16.msra.mxu0 0
    %2767 = vmatprep.subr.bf16.mxu0 0
    %2768 = vmatpush1.bf16.msra.mxu0 0
    %2769 = vmatprep.subr.bf16.mxu0 0
    %2770 = vmatpush1.bf16.msra.mxu0 0
    %2771 = vmatprep.subr.bf16.mxu0 0
    %2772 = vmatpush1.bf16.msra.mxu0 0
    %2773 = vmatprep.subr.bf16.mxu0 0
    %2774 = vmatpush1.bf16.msra.mxu0 0
    %2775 = vmatprep.subr.bf16.mxu0 0
    %2776 = vmatpush1.bf16.msra.mxu0 0
    %2777 = vmatprep.mubr.bf16.mxu0 0
    %2778 = vmatmul.mubr.bf16.gmra.mrb[0].mxu0 %v2739
    %v2779 = vpop.f32.mrb[0].mxu0
    %v2780 = vadd.f32 0.0, %v2779
    %v2781 = vpop.f32.mrb[0].mxu0
    %v2782 = vpop.f32.mrb[0].mxu0
    %v2783 = vpop.f32.mrb[0].mxu0
    %2784 = vdwg.mxu0
    %v2785 = vld [vmem:[#allocation70] sm:$0xf]
    %v2786 = vld [vmem:[#allocation70 + $0x4] sm:$0xf]
    %v2787 = vld [vmem:[#allocation70 + $0x8] sm:$0xf]
    %v2788 = vld [vmem:[#allocation70 + $0xc] sm:$0xf]
    %v2789 = vpack.c.bf16 %v2780, %v2780
    %v2790 = vld [vmem:[#allocation70 + $0x10] sm:$0xf]
    %v2791 = vld [vmem:[#allocation70 + $0x14] sm:$0xf]
    %v2792 = vld [vmem:[#allocation70 + $0x18] sm:$0xf]
    %v2793 = vld [vmem:[#allocation70 + $0x1c] sm:$0xf]
    %v2798 = vunpack.c.l.b16 %v2790
    %v2799 = vunpack.c.l.b16 %v2791
    %v2800 = vunpack.c.l.b16 %v2792
    %v2801 = vunpack.c.l.b16 %v2793
    %v2802 = vpack.c.b16 %v2799, %v2798
    %v2803 = vpack.c.b16 %v2801, %v2800
    %v2806 = vsel %vm1170, %v2077, 0
    %2808 = vmatprep.subr.bf16.mxu0 0
    %2809 = vmatpush1.bf16.msra.mxu0 %v2802
    %2810 = vmatprep.subr.bf16.mxu0 0
    %2811 = vmatpush1.bf16.msra.mxu0 %v2803
    %2812 = vmatprep.subr.bf16.mxu0 0
    %2813 = vmatpush1.bf16.msra.mxu0 0
    %2814 = vmatprep.subr.bf16.mxu0 0
    %2815 = vmatpush1.bf16.msra.mxu0 0
    %2816 = vmatprep.subr.bf16.mxu0 0
    %2817 = vmatpush1.bf16.msra.mxu0 0
    %2818 = vmatprep.subr.bf16.mxu0 0
    %2819 = vmatpush1.bf16.msra.mxu0 0
    %2820 = vmatprep.subr.bf16.mxu0 0
    %2821 = vmatpush1.bf16.msra.mxu0 0
    %2822 = vmatprep.subr.bf16.mxu0 0
    %2823 = vmatpush1.bf16.msra.mxu0 0
    %2824 = vmatprep.subr.bf16.mxu0 0
    %2825 = vmatpush1.bf16.msra.mxu0 0
    %2826 = vmatprep.subr.bf16.mxu0 0
    %2827 = vmatpush1.bf16.msra.mxu0 0
    %2828 = vmatprep.subr.bf16.mxu0 0
    %2829 = vmatpush1.bf16.msra.mxu0 0
    %2830 = vmatprep.subr.bf16.mxu0 0
    %2831 = vmatpush1.bf16.msra.mxu0 0
    %2832 = vmatprep.subr.bf16.mxu0 0
    %2833 = vmatpush1.bf16.msra.mxu0 0
    %2834 = vmatprep.subr.bf16.mxu0 0
    %2835 = vmatpush1.bf16.msra.mxu0 0
    %2836 = vmatprep.subr.bf16.mxu0 0
    %2837 = vmatpush1.bf16.msra.mxu0 0
    %2838 = vmatprep.subr.bf16.mxu0 0
    %2839 = vmatpush1.bf16.msra.mxu0 0
    %2840 = vmatprep.mubr.bf16.mxu0 0
    %2841 = vmatmul.mubr.bf16.gmra.mrb[0].mxu0 %v2806
    %v2842 = vpop.f32.mrb[0].mxu0
    %v2843 = vadd.f32 0.0, %v2842
    %v2844 = vpop.f32.mrb[0].mxu0
    %v2845 = vpop.f32.mrb[0].mxu0
    %v2846 = vpop.f32.mrb[0].mxu0
    %2847 = vdwg.mxu0
    %v2852 = vunpack.c.l.b16 %v2785
    %v2853 = vunpack.c.l.b16 %v2786
    %v2854 = vunpack.c.l.b16 %v2787
    %v2855 = vunpack.c.l.b16 %v2788
    %v2856 = vpack.c.b16 %v2853, %v2852
    %v2857 = vpack.c.b16 %v2855, %v2854
    %v2861 = vsel %vm1170, %v2789, 0
    %2863 = vmatprep.subr.bf16.mxu0 0
    %2864 = vmatpush1.bf16.msra.mxu0 %v2856
    %2865 = vmatprep.subr.bf16.mxu0 0
    %2866 = vmatpush1.bf16.msra.mxu0 %v2857
    %2867 = vmatprep.subr.bf16.mxu0 0
    %2868 = vmatpush1.bf16.msra.mxu0 0
    %2869 = vmatprep.subr.bf16.mxu0 0
    %2870 = vmatpush1.bf16.msra.mxu0 0
    %2871 = vmatprep.subr.bf16.mxu0 0
    %2872 = vmatpush1.bf16.msra.mxu0 0
    %2873 = vmatprep.subr.bf16.mxu0 0
    %2874 = vmatpush1.bf16.msra.mxu0 0
    %2875 = vmatprep.subr.bf16.mxu0 0
    %2876 = vmatpush1.bf16.msra.mxu0 0
    %2877 = vmatprep.subr.bf16.mxu0 0
    %2878 = vmatpush1.bf16.msra.mxu0 0
    %2879 = vmatprep.subr.bf16.mxu0 0
    %2880 = vmatpush1.bf16.msra.mxu0 0
    %2881 = vmatprep.subr.bf16.mxu0 0
    %2882 = vmatpush1.bf16.msra.mxu0 0
    %2883 = vmatprep.subr.bf16.mxu0 0
    %2884 = vmatpush1.bf16.msra.mxu0 0
    %2885 = vmatprep.subr.bf16.mxu0 0
    %2886 = vmatpush1.bf16.msra.mxu0 0
    %2887 = vmatprep.subr.bf16.mxu0 0
    %2888 = vmatpush1.bf16.msra.mxu0 0
    %2889 = vmatprep.subr.bf16.mxu0 0
    %2890 = vmatpush1.bf16.msra.mxu0 0
    %2891 = vmatprep.subr.bf16.mxu0 0
    %2892 = vmatpush1.bf16.msra.mxu0 0
    %2893 = vmatprep.subr.bf16.mxu0 0
    %2894 = vmatpush1.bf16.msra.mxu0 0
    %2895 = vmatprep.mubr.bf16.mxu0 0
    %2896 = vmatmul.mubr.bf16.gmra.mrb[0].mxu0 %v2861
    %v2897 = vpop.f32.mrb[0].mxu0
    %v2898 = vadd.f32 %v2843, %v2897
    %v2899 = vpop.f32.mrb[0].mxu0
    %v2900 = vpop.f32.mrb[0].mxu0
    %v2901 = vpop.f32.mrb[0].mxu0
    %2902 = vdwg.mxu0
    %v2903 = vld [vmem:[#allocation70 + $0x20] sm:$0xf]
    %v2904 = vld [vmem:[#allocation70 + $0x24] sm:$0xf]
    %v2905 = vld [vmem:[#allocation70 + $0x28] sm:$0xf]
    %v2906 = vld [vmem:[#allocation70 + $0x2c] sm:$0xf]
    %v2907 = vpack.c.bf16 %v2009, %v2009
    %v2912 = vunpack.c.l.b16 %v2903
    %v2913 = vunpack.c.l.b16 %v2904
    %v2914 = vunpack.c.l.b16 %v2905
    %v2915 = vunpack.c.l.b16 %v2906
    %v2916 = vpack.c.b16 %v2913, %v2912
    %v2917 = vpack.c.b16 %v2915, %v2914
    %v2921 = vsel %vm1170, %v2907, 0
    %2923 = vmatprep.subr.bf16.mxu0 0
    %2924 = vmatpush1.bf16.msra.mxu0 %v2916
    %2925 = vmatprep.subr.bf16.mxu0 0
    %2926 = vmatpush1.bf16.msra.mxu0 %v2917
    %2927 = vmatprep.subr.bf16.mxu0 0
    %2928 = vmatpush1.bf16.msra.mxu0 0
    %2929 = vmatprep.subr.bf16.mxu0 0
    %2930 = vmatpush1.bf16.msra.mxu0 0
    %2931 = vmatprep.subr.bf16.mxu0 0
    %2932 = vmatpush1.bf16.msra.mxu0 0
    %2933 = vmatprep.subr.bf16.mxu0 0
    %2934 = vmatpush1.bf16.msra.mxu0 0
    %2935 = vmatprep.subr.bf16.mxu0 0
    %2936 = vmatpush1.bf16.msra.mxu0 0
    %2937 = vmatprep.subr.bf16.mxu0 0
    %2938 = vmatpush1.bf16.msra.mxu0 0
    %2939 = vmatprep.subr.bf16.mxu0 0
    %2940 = vmatpush1.bf16.msra.mxu0 0
    %2941 = vmatprep.subr.bf16.mxu0 0
    %2942 = vmatpush1.bf16.msra.mxu0 0
    %2943 = vmatprep.subr.bf16.mxu0 0
    %2944 = vmatpush1.bf16.msra.mxu0 0
    %2945 = vmatprep.subr.bf16.mxu0 0
    %2946 = vmatpush1.bf16.msra.mxu0 0
    %2947 = vmatprep.subr.bf16.mxu0 0
    %2948 = vmatpush1.bf16.msra.mxu0 0
    %2949 = vmatprep.subr.bf16.mxu0 0
    %2950 = vmatpush1.bf16.msra.mxu0 0
    %2951 = vmatprep.subr.bf16.mxu0 0
    %2952 = vmatpush1.bf16.msra.mxu0 0
    %2953 = vmatprep.subr.bf16.mxu0 0
    %2954 = vmatpush1.bf16.msra.mxu0 0
    %2955 = vmatprep.mubr.bf16.mxu0 0
    %2956 = vmatmul.mubr.bf16.gmra.mrb[0].mxu0 %v2921
    %v2957 = vpop.f32.mrb[0].mxu0
    %v2958 = vadd.f32 0.0, %v2957
    %v2959 = vpop.f32.mrb[0].mxu0
    %v2960 = vpop.f32.mrb[0].mxu0
    %v2961 = vpop.f32.mrb[0].mxu0
    %2962 = vdwg.mxu0
    %v2963 = vadd.f32 %v2898, %v2958
    %v2964 = vld [vmem:[#allocation71] sm:$0x1]
    %v2966 = vlaneseq
    %v2967 = vshrl.u32 %v2966, 7
    %v2968 = vsub.s32 0, %v2967
    %v2969 = vrot.slane %v2964, %v2968
    %v2971 = vadd.f32 %v2963, %v2969
    %v2972 = vmax.f32 %v2971, 0.0
    %v2973 = vand.u32 2147483647, %v2971
    %v2974 = vsub.f32 0.0, %v2973
    %v2975 = vmul.f32 %v2974, 1.442695
    %v2976 = vpow.pop %v2975
    %v2977 = vadd.f32 %v2976, 1.0
    %v2978 = vlog2.pop %v2977
    %v2979 = vmul.f32 %v2978, 0.6931472
    %v2980 = vmul.f32 -0.5, %v2976
    %v2981 = vadd.f32 %v2980, 1.0
    %v2982 = vmul.f32 %v2981, %v2976
    %v2983 = vand.u32 2147483647, %v2976
    %vm2984 = vcmp.lt.f32.partialorder %v2983, 0.0004427343
    %v2985 = vsel %vm2984, %v2982, %v2979
    %v2986 = vadd.f32 %v2972, %v2985
    %v2987 = vsub.f32 %v2986, 0.6931472
    %v2988 = vld [vmem:[#allocation73] sm:$0xf]
    %v2989 = vld [vmem:[#allocation73 + $0x4] sm:$0xf]
    %v2990 = vld [vmem:[#allocation73 + $0x8] sm:$0xf]
    %v2991 = vld [vmem:[#allocation73 + $0xc] sm:$0xf]
    %v2992 = vld [vmem:[#allocation73 + $0x10] sm:$0xf]
    %v2993 = vld [vmem:[#allocation73 + $0x14] sm:$0xf]
    %v2994 = vld [vmem:[#allocation73 + $0x18] sm:$0xf]
    %v2995 = vld [vmem:[#allocation73 + $0x1c] sm:$0xf]
    %v2996 = vpack.c.bf16 %v2987, %v2987
    %v2997 = vld [vmem:[#allocation74] sm:$0x1]
    %v2999 = vlaneseq
    %v3000 = vshrl.u32 %v2999, 7
    %v3001 = vsub.s32 0, %v3000
    %v3002 = vrot.slane %v2997, %v3001
    %v3012 = vunpack.c.l.b16 %v2988
    %v3013 = vunpack.c.l.b16 %v2989
    %v3014 = vunpack.c.l.b16 %v2990
    %v3015 = vunpack.c.l.b16 %v2991
    %v3016 = vunpack.c.l.b16 %v2992
    %v3017 = vunpack.c.l.b16 %v2993
    %v3018 = vunpack.c.l.b16 %v2994
    %v3019 = vunpack.c.l.b16 %v2995
    %v3020 = vpack.c.b16 %v3013, %v3012
    %v3021 = vpack.c.b16 %v3015, %v3014
    %v3022 = vpack.c.b16 %v3017, %v3016
    %v3023 = vpack.c.b16 %v3019, %v3018
    %v3029 = vsel %vm1270, %v2996, 0
    %3031 = vmatprep.subr.bf16.mxu0 0
    %3032 = vmatpush1.bf16.msra.mxu0 %v3020
    %3033 = vmatprep.subr.bf16.mxu0 0
    %3034 = vmatpush1.bf16.msra.mxu0 %v3021
    %3035 = vmatprep.subr.bf16.mxu0 0
    %3036 = vmatpush1.bf16.msra.mxu0 %v3022
    %3037 = vmatprep.subr.bf16.mxu0 0
    %3038 = vmatpush1.bf16.msra.mxu0 %v3023
    %3039 = vmatprep.subr.bf16.mxu0 0
    %3040 = vmatpush1.bf16.msra.mxu0 0
    %3041 = vmatprep.subr.bf16.mxu0 0
    %3042 = vmatpush1.bf16.msra.mxu0 0
    %3043 = vmatprep.subr.bf16.mxu0 0
    %3044 = vmatpush1.bf16.msra.mxu0 0
    %3045 = vmatprep.subr.bf16.mxu0 0
    %3046 = vmatpush1.bf16.msra.mxu0 0
    %3047 = vmatprep.subr.bf16.mxu0 0
    %3048 = vmatpush1.bf16.msra.mxu0 0
    %3049 = vmatprep.subr.bf16.mxu0 0
    %3050 = vmatpush1.bf16.msra.mxu0 0
    %3051 = vmatprep.subr.bf16.mxu0 0
    %3052 = vmatpush1.bf16.msra.mxu0 0
    %3053 = vmatprep.subr.bf16.mxu0 0
    %3054 = vmatpush1.bf16.msra.mxu0 0
    %3055 = vmatprep.subr.bf16.mxu0 0
    %3056 = vmatpush1.bf16.msra.mxu0 0
    %3057 = vmatprep.subr.bf16.mxu0 0
    %3058 = vmatpush1.bf16.msra.mxu0 0
    %3059 = vmatprep.subr.bf16.mxu0 0
    %3060 = vmatpush1.bf16.msra.mxu0 0
    %3061 = vmatprep.subr.bf16.mxu0 0
    %3062 = vmatpush1.bf16.msra.mxu0 0
    %3063 = vmatprep.mubr.bf16.mxu0 0
    %3064 = vmatmul.mubr.bf16.gmra.mrb[0].mxu0 %v3029
    %v3065 = vpop.f32.mrb[0].mxu0
    %v3066 = vadd.f32 %v3002, %v3065
    %v3067 = vpop.f32.mrb[0].mxu0
    %v3068 = vpop.f32.mrb[0].mxu0
    %v3069 = vpop.f32.mrb[0].mxu0
    %3070 = vdwg.mxu0
    %v3071 = vmax.f32 %v3066, 0.0
    %v3072 = vand.u32 2147483647, %v3066
    %v3073 = vsub.f32 0.0, %v3072
    %v3074 = vmul.f32 %v3073, 1.442695
    %v3075 = vpow.pop %v3074
    %v3076 = vadd.f32 %v3075, 1.0
    %v3077 = vlog2.pop %v3076
    %v3078 = vmul.f32 %v3077, 0.6931472
    %v3079 = vmul.f32 -0.5, %v3075
    %v3080 = vadd.f32 %v3079, 1.0
    %v3081 = vmul.f32 %v3080, %v3075
    %v3082 = vand.u32 2147483647, %v3075
    %vm3083 = vcmp.lt.f32.partialorder %v3082, 0.0004427343
    %v3084 = vsel %vm3083, %v3081, %v3078
    %v3085 = vadd.f32 %v3071, %v3084
    %v3086 = vsub.f32 %v3085, 0.6931472
    %v3087 = vld [vmem:[#allocation76] sm:$0xf]
    %v3088 = vld [vmem:[#allocation76 + $0x4] sm:$0xf]
    %v3089 = vld [vmem:[#allocation76 + $0x8] sm:$0xf]
    %v3090 = vld [vmem:[#allocation76 + $0xc] sm:$0xf]
    %v3091 = vld [vmem:[#allocation76 + $0x10] sm:$0xf]
    %v3092 = vld [vmem:[#allocation76 + $0x14] sm:$0xf]
    %v3093 = vld [vmem:[#allocation76 + $0x18] sm:$0xf]
    %v3094 = vld [vmem:[#allocation76 + $0x1c] sm:$0xf]
    %v3095 = vpack.c.bf16 %v3086, %v3086
    %v3096 = vld [vmem:[#allocation77] sm:$0x1]
    %v3098 = vlaneseq
    %v3099 = vshrl.u32 %v3098, 7
    %v3100 = vsub.s32 0, %v3099
    %v3101 = vrot.slane %v3096, %v3100
    %v3111 = vunpack.c.l.b16 %v3087
    %v3112 = vunpack.c.l.b16 %v3088
    %v3113 = vunpack.c.l.b16 %v3089
    %v3114 = vunpack.c.l.b16 %v3090
    %v3115 = vunpack.c.l.b16 %v3091
    %v3116 = vunpack.c.l.b16 %v3092
    %v3117 = vunpack.c.l.b16 %v3093
    %v3118 = vunpack.c.l.b16 %v3094
    %v3119 = vpack.c.b16 %v3112, %v3111
    %v3120 = vpack.c.b16 %v3114, %v3113
    %v3121 = vpack.c.b16 %v3116, %v3115
    %v3122 = vpack.c.b16 %v3118, %v3117
    %v3128 = vsel %vm1270, %v3095, 0
    %3130 = vmatprep.subr.bf16.mxu0 0
    %3131 = vmatpush1.bf16.msra.mxu0 %v3119
    %3132 = vmatprep.subr.bf16.mxu0 0
    %3133 = vmatpush1.bf16.msra.mxu0 %v3120
    %3134 = vmatprep.subr.bf16.mxu0 0
    %3135 = vmatpush1.bf16.msra.mxu0 %v3121
    %3136 = vmatprep.subr.bf16.mxu0 0
    %3137 = vmatpush1.bf16.msra.mxu0 %v3122
    %3138 = vmatprep.subr.bf16.mxu0 0
    %3139 = vmatpush1.bf16.msra.mxu0 0
    %3140 = vmatprep.subr.bf16.mxu0 0
    %3141 = vmatpush1.bf16.msra.mxu0 0
    %3142 = vmatprep.subr.bf16.mxu0 0
    %3143 = vmatpush1.bf16.msra.mxu0 0
    %3144 = vmatprep.subr.bf16.mxu0 0
    %3145 = vmatpush1.bf16.msra.mxu0 0
    %3146 = vmatprep.subr.bf16.mxu0 0
    %3147 = vmatpush1.bf16.msra.mxu0 0
    %3148 = vmatprep.subr.bf16.mxu0 0
    %3149 = vmatpush1.bf16.msra.mxu0 0
    %3150 = vmatprep.subr.bf16.mxu0 0
    %3151 = vmatpush1.bf16.msra.mxu0 0
    %3152 = vmatprep.subr.bf16.mxu0 0
    %3153 = vmatpush1.bf16.msra.mxu0 0
    %3154 = vmatprep.subr.bf16.mxu0 0
    %3155 = vmatpush1.bf16.msra.mxu0 0
    %3156 = vmatprep.subr.bf16.mxu0 0
    %3157 = vmatpush1.bf16.msra.mxu0 0
    %3158 = vmatprep.subr.bf16.mxu0 0
    %3159 = vmatpush1.bf16.msra.mxu0 0
    %3160 = vmatprep.subr.bf16.mxu0 0
    %3161 = vmatpush1.bf16.msra.mxu0 0
    %3162 = vmatprep.mubr.bf16.mxu0 0
    %3163 = vmatmul.mubr.bf16.gmra.mrb[0].mxu0 %v3128
    %v3164 = vpop.f32.mrb[0].mxu0
    %v3165 = vadd.f32 %v3101, %v3164
    %v3166 = vpop.f32.mrb[0].mxu0
    %v3167 = vpop.f32.mrb[0].mxu0
    %v3168 = vpop.f32.mrb[0].mxu0
    %3169 = vdwg.mxu0
    %v3170 = vmax.f32 %v3165, 0.0
    %v3171 = vand.u32 2147483647, %v3165
    %v3172 = vsub.f32 0.0, %v3171
    %v3173 = vmul.f32 %v3172, 1.442695
    %v3174 = vpow.pop %v3173
    %v3175 = vadd.f32 %v3174, 1.0
    %v3176 = vlog2.pop %v3175
    %v3177 = vmul.f32 %v3176, 0.6931472
    %v3178 = vmul.f32 -0.5, %v3174
    %v3179 = vadd.f32 %v3178, 1.0
    %v3180 = vmul.f32 %v3179, %v3174
    %v3181 = vand.u32 2147483647, %v3174
    %vm3182 = vcmp.lt.f32.partialorder %v3181, 0.0004427343
    %v3183 = vsel %vm3182, %v3180, %v3177
    %v3184 = vadd.f32 %v3170, %v3183
    %v3185 = vsub.f32 %v3184, 0.6931472
    %v3187 = vsel %vm2737, %v2076, 0
    %3189 = vmatprep.subr.bf16.mxu0 0
    %3190 = vmatpush1.bf16.msra.mxu0 %v2743
    %3191 = vmatprep.subr.bf16.mxu0 0
    %3192 = vmatpush1.bf16.msra.mxu0 0
    %3193 = vmatprep.subr.bf16.mxu0 0
    %3194 = vmatpush1.bf16.msra.mxu0 0
    %3195 = vmatprep.subr.bf16.mxu0 0
    %3196 = vmatpush1.bf16.msra.mxu0 0
    %3197 = vmatprep.subr.bf16.mxu0 0
    %3198 = vmatpush1.bf16.msra.mxu0 0
    %3199 = vmatprep.subr.bf16.mxu0 0
    %3200 = vmatpush1.bf16.msra.mxu0 0
    %3201 = vmatprep.subr.bf16.mxu0 0
    %3202 = vmatpush1.bf16.msra.mxu0 0
    %3203 = vmatprep.subr.bf16.mxu0 0
    %3204 = vmatpush1.bf16.msra.mxu0 0
    %3205 = vmatprep.subr.bf16.mxu0 0
    %3206 = vmatpush1.bf16.msra.mxu0 0
    %3207 = vmatprep.subr.bf16.mxu0 0
    %3208 = vmatpush1.bf16.msra.mxu0 0
    %3209 = vmatprep.subr.bf16.mxu0 0
    %3210 = vmatpush1.bf16.msra.mxu0 0
    %3211 = vmatprep.subr.bf16.mxu0 0
    %3212 = vmatpush1.bf16.msra.mxu0 0
    %3213 = vmatprep.subr.bf16.mxu0 0
    %3214 = vmatpush1.bf16.msra.mxu0 0
    %3215 = vmatprep.subr.bf16.mxu0 0
    %3216 = vmatpush1.bf16.msra.mxu0 0
    %3217 = vmatprep.subr.bf16.mxu0 0
    %3218 = vmatpush1.bf16.msra.mxu0 0
    %3219 = vmatprep.subr.bf16.mxu0 0
    %3220 = vmatpush1.bf16.msra.mxu0 0
    %3221 = vmatprep.mubr.bf16.mxu0 0
    %3222 = vmatmul.mubr.bf16.gmra.mrb[0].mxu0 %v3187
    %v3223 = vpop.f32.mrb[0].mxu0
    %v3224 = vadd.f32 0.0, %v3223
    %v3225 = vpop.f32.mrb[0].mxu0
    %v3226 = vpop.f32.mrb[0].mxu0
    %v3227 = vpop.f32.mrb[0].mxu0
    %3228 = vdwg.mxu0
    %v3229 = vpack.c.bf16 %v3185, %v3185
    %v3231 = vsel %vm2078, %v1964, 0
    %v3234 = vsel %vm2082, %v3229, 0
    %3236 = vmatprep.subr.bf16.mxu0 0
    %3237 = vmatpush1.bf16.msra.mxu0 %v3234
    %3238 = vmatprep.subr.bf16.mxu0 0
    %3239 = vmatpush1.bf16.msra.mxu0 0
    %3240 = vmatprep.subr.bf16.mxu0 0
    %3241 = vmatpush1.bf16.msra.mxu0 0
    %3242 = vmatprep.subr.bf16.mxu0 0
    %3243 = vmatpush1.bf16.msra.mxu0 0
    %3244 = vmatprep.subr.bf16.mxu0 0
    %3245 = vmatpush1.bf16.msra.mxu0 0
    %3246 = vmatprep.subr.bf16.mxu0 0
    %3247 = vmatpush1.bf16.msra.mxu0 0
    %3248 = vmatprep.subr.bf16.mxu0 0
    %3249 = vmatpush1.bf16.msra.mxu0 0
    %3250 = vmatprep.subr.bf16.mxu0 0
    %3251 = vmatpush1.bf16.msra.mxu0 0
    %3252 = vmatprep.subr.bf16.mxu0 0
    %3253 = vmatpush1.bf16.msra.mxu0 0
    %3254 = vmatprep.subr.bf16.mxu0 0
    %3255 = vmatpush1.bf16.msra.mxu0 0
    %3256 = vmatprep.subr.bf16.mxu0 0
    %3257 = vmatpush1.bf16.msra.mxu0 0
    %3258 = vmatprep.subr.bf16.mxu0 0
    %3259 = vmatpush1.bf16.msra.mxu0 0
    %3260 = vmatprep.subr.bf16.mxu0 0
    %3261 = vmatpush1.bf16.msra.mxu0 0
    %3262 = vmatprep.subr.bf16.mxu0 0
    %3263 = vmatpush1.bf16.msra.mxu0 0
    %3264 = vmatprep.subr.bf16.mxu0 0
    %3265 = vmatpush1.bf16.msra.mxu0 0
    %3266 = vmatprep.subr.bf16.mxu0 0
    %3267 = vmatpush1.bf16.msra.mxu0 0
    %3268 = vmatprep.mubr.bf16.mxu0 0
    %3269 = vmatmul.mubr.bf16.gmra.mrb[0].mxu0 %v3231
    %v3270 = vpop.f32.mrb[0].mxu0
    %v3271 = vadd.f32 0.0, %v3270
    %v3272 = vpop.f32.mrb[0].mxu0
    %v3273 = vpop.f32.mrb[0].mxu0
    %v3274 = vpop.f32.mrb[0].mxu0
    %3275 = vdwg.mxu0
    %v3276 = vld [vmem:[#allocation88] sm:$0xf]
    %v3277 = vld [vmem:[#allocation88 + $0x4] sm:$0xf]
    %v3278 = vld [vmem:[#allocation88 + $0x8] sm:$0xf]
    %v3279 = vld [vmem:[#allocation88 + $0xc] sm:$0xf]
    %v3280 = vpack.c.bf16 %v3224, %v3224
    %v3281 = vld [vmem:[#allocation88 + $0x10] sm:$0xf]
    %v3282 = vld [vmem:[#allocation88 + $0x14] sm:$0xf]
    %v3283 = vld [vmem:[#allocation88 + $0x18] sm:$0xf]
    %v3284 = vld [vmem:[#allocation88 + $0x1c] sm:$0xf]
    %v3285 = vpack.c.bf16 %v3271, %v3271
    %v3290 = vunpack.c.l.b16 %v3281
    %v3291 = vunpack.c.l.b16 %v3282
    %v3292 = vunpack.c.l.b16 %v3283
    %v3293 = vunpack.c.l.b16 %v3284
    %v3294 = vpack.c.b16 %v3291, %v3290
    %v3295 = vpack.c.b16 %v3293, %v3292
    %v3299 = vsel %vm1170, %v3285, 0
    %3301 = vmatprep.subr.bf16.mxu0 0
    %3302 = vmatpush1.bf16.msra.mxu0 %v3294
    %3303 = vmatprep.subr.bf16.mxu0 0
    %3304 = vmatpush1.bf16.msra.mxu0 %v3295
    %3305 = vmatprep.subr.bf16.mxu0 0
    %3306 = vmatpush1.bf16.msra.mxu0 0
    %3307 = vmatprep.subr.bf16.mxu0 0
    %3308 = vmatpush1.bf16.msra.mxu0 0
    %3309 = vmatprep.subr.bf16.mxu0 0
    %3310 = vmatpush1.bf16.msra.mxu0 0
    %3311 = vmatprep.subr.bf16.mxu0 0
    %3312 = vmatpush1.bf16.msra.mxu0 0
    %3313 = vmatprep.subr.bf16.mxu0 0
    %3314 = vmatpush1.bf16.msra.mxu0 0
    %3315 = vmatprep.subr.bf16.mxu0 0
    %3316 = vmatpush1.bf16.msra.mxu0 0
    %3317 = vmatprep.subr.bf16.mxu0 0
    %3318 = vmatpush1.bf16.msra.mxu0 0
    %3319 = vmatprep.subr.bf16.mxu0 0
    %3320 = vmatpush1.bf16.msra.mxu0 0
    %3321 = vmatprep.subr.bf16.mxu0 0
    %3322 = vmatpush1.bf16.msra.mxu0 0
    %3323 = vmatprep.subr.bf16.mxu0 0
    %3324 = vmatpush1.bf16.msra.mxu0 0
    %3325 = vmatprep.subr.bf16.mxu0 0
    %3326 = vmatpush1.bf16.msra.mxu0 0
    %3327 = vmatprep.subr.bf16.mxu0 0
    %3328 = vmatpush1.bf16.msra.mxu0 0
    %3329 = vmatprep.subr.bf16.mxu0 0
    %3330 = vmatpush1.bf16.msra.mxu0 0
    %3331 = vmatprep.subr.bf16.mxu0 0
    %3332 = vmatpush1.bf16.msra.mxu0 0
    %3333 = vmatprep.mubr.bf16.mxu0 0
    %3334 = vmatmul.mubr.bf16.gmra.mrb[0].mxu0 %v3299
    %v3335 = vpop.f32.mrb[0].mxu0
    %v3336 = vadd.f32 0.0, %v3335
    %v3337 = vpop.f32.mrb[0].mxu0
    %v3338 = vpop.f32.mrb[0].mxu0
    %v3339 = vpop.f32.mrb[0].mxu0
    %3340 = vdwg.mxu0
    %v3345 = vunpack.c.l.b16 %v3276
    %v3346 = vunpack.c.l.b16 %v3277
    %v3347 = vunpack.c.l.b16 %v3278
    %v3348 = vunpack.c.l.b16 %v3279
    %v3349 = vpack.c.b16 %v3346, %v3345
    %v3350 = vpack.c.b16 %v3348, %v3347
    %v3354 = vsel %vm1170, %v3280, 0
    %3356 = vmatprep.subr.bf16.mxu0 0
    %3357 = vmatpush1.bf16.msra.mxu0 %v3349
    %3358 = vmatprep.subr.bf16.mxu0 0
    %3359 = vmatpush1.bf16.msra.mxu0 %v3350
    %3360 = vmatprep.subr.bf16.mxu0 0
    %3361 = vmatpush1.bf16.msra.mxu0 0
    %3362 = vmatprep.subr.bf16.mxu0 0
    %3363 = vmatpush1.bf16.msra.mxu0 0
    %3364 = vmatprep.subr.bf16.mxu0 0
    %3365 = vmatpush1.bf16.msra.mxu0 0
    %3366 = vmatprep.subr.bf16.mxu0 0
    %3367 = vmatpush1.bf16.msra.mxu0 0
    %3368 = vmatprep.subr.bf16.mxu0 0
    %3369 = vmatpush1.bf16.msra.mxu0 0
    %3370 = vmatprep.subr.bf16.mxu0 0
    %3371 = vmatpush1.bf16.msra.mxu0 0
    %3372 = vmatprep.subr.bf16.mxu0 0
    %3373 = vmatpush1.bf16.msra.mxu0 0
    %3374 = vmatprep.subr.bf16.mxu0 0
    %3375 = vmatpush1.bf16.msra.mxu0 0
    %3376 = vmatprep.subr.bf16.mxu0 0
    %3377 = vmatpush1.bf16.msra.mxu0 0
    %3378 = vmatprep.subr.bf16.mxu0 0
    %3379 = vmatpush1.bf16.msra.mxu0 0
    %3380 = vmatprep.subr.bf16.mxu0 0
    %3381 = vmatpush1.bf16.msra.mxu0 0
    %3382 = vmatprep.subr.bf16.mxu0 0
    %3383 = vmatpush1.bf16.msra.mxu0 0
    %3384 = vmatprep.subr.bf16.mxu0 0
    %3385 = vmatpush1.bf16.msra.mxu0 0
    %3386 = vmatprep.subr.bf16.mxu0 0
    %3387 = vmatpush1.bf16.msra.mxu0 0
    %3388 = vmatprep.mubr.bf16.mxu0 0
    %3389 = vmatmul.mubr.bf16.gmra.mrb[0].mxu0 %v3354
    %v3390 = vpop.f32.mrb[0].mxu0
    %v3391 = vadd.f32 %v3336, %v3390
    %v3392 = vpop.f32.mrb[0].mxu0
    %v3393 = vpop.f32.mrb[0].mxu0
    %v3394 = vpop.f32.mrb[0].mxu0
    %3395 = vdwg.mxu0
    %v3396 = vld [vmem:[#allocation88 + $0x20] sm:$0xf]
    %v3397 = vld [vmem:[#allocation88 + $0x24] sm:$0xf]
    %v3398 = vld [vmem:[#allocation88 + $0x28] sm:$0xf]
    %v3399 = vld [vmem:[#allocation88 + $0x2c] sm:$0xf]
    %v3404 = vunpack.c.l.b16 %v3396
    %v3405 = vunpack.c.l.b16 %v3397
    %v3406 = vunpack.c.l.b16 %v3398
    %v3407 = vunpack.c.l.b16 %v3399
    %v3408 = vpack.c.b16 %v3405, %v3404
    %v3409 = vpack.c.b16 %v3407, %v3406
    %v3412 = vsel %vm1170, %v1965, 0
    %3414 = vmatprep.subr.bf16.mxu0 0
    %3415 = vmatpush1.bf16.msra.mxu0 %v3408
    %3416 = vmatprep.subr.bf16.mxu0 0
    %3417 = vmatpush1.bf16.msra.mxu0 %v3409
    %3418 = vmatprep.subr.bf16.mxu0 0
    %3419 = vmatpush1.bf16.msra.mxu0 0
    %3420 = vmatprep.subr.bf16.mxu0 0
    %3421 = vmatpush1.bf16.msra.mxu0 0
    %3422 = vmatprep.subr.bf16.mxu0 0
    %3423 = vmatpush1.bf16.msra.mxu0 0
    %3424 = vmatprep.subr.bf16.mxu0 0
    %3425 = vmatpush1.bf16.msra.mxu0 0
    %3426 = vmatprep.subr.bf16.mxu0 0
    %3427 = vmatpush1.bf16.msra.mxu0 0
    %3428 = vmatprep.subr.bf16.mxu0 0
    %3429 = vmatpush1.bf16.msra.mxu0 0
    %3430 = vmatprep.subr.bf16.mxu0 0
    %3431 = vmatpush1.bf16.msra.mxu0 0
    %3432 = vmatprep.subr.bf16.mxu0 0
    %3433 = vmatpush1.bf16.msra.mxu0 0
    %3434 = vmatprep.subr.bf16.mxu0 0
    %3435 = vmatpush1.bf16.msra.mxu0 0
    %3436 = vmatprep.subr.bf16.mxu0 0
    %3437 = vmatpush1.bf16.msra.mxu0 0
    %3438 = vmatprep.subr.bf16.mxu0 0
    %3439 = vmatpush1.bf16.msra.mxu0 0
    %3440 = vmatprep.subr.bf16.mxu0 0
    %3441 = vmatpush1.bf16.msra.mxu0 0
    %3442 = vmatprep.subr.bf16.mxu0 0
    %3443 = vmatpush1.bf16.msra.mxu0 0
    %3444 = vmatprep.subr.bf16.mxu0 0
    %3445 = vmatpush1.bf16.msra.mxu0 0
    %3446 = vmatprep.mubr.bf16.mxu0 0
    %3447 = vmatmul.mubr.bf16.gmra.mrb[0].mxu0 %v3412
    %v3448 = vpop.f32.mrb[0].mxu0
    %v3449 = vadd.f32 0.0, %v3448
    %v3450 = vpop.f32.mrb[0].mxu0
    %v3451 = vpop.f32.mrb[0].mxu0
    %v3452 = vpop.f32.mrb[0].mxu0
    %3453 = vdwg.mxu0
    %v3454 = vadd.f32 %v3391, %v3449
    %v3455 = vld [vmem:[#allocation89] sm:$0x1]
    %v3457 = vlaneseq
    %v3458 = vshrl.u32 %v3457, 7
    %v3459 = vsub.s32 0, %v3458
    %v3460 = vrot.slane %v3455, %v3459
    %v3462 = vadd.f32 %v3454, %v3460
    %v3463 = vmax.f32 %v3462, 0.0
    %v3464 = vand.u32 2147483647, %v3462
    %v3465 = vsub.f32 0.0, %v3464
    %v3466 = vmul.f32 %v3465, 1.442695
    %v3467 = vpow.pop %v3466
    %v3468 = vadd.f32 %v3467, 1.0
    %v3469 = vlog2.pop %v3468
    %v3470 = vmul.f32 %v3469, 0.6931472
    %v3471 = vmul.f32 -0.5, %v3467
    %v3472 = vadd.f32 %v3471, 1.0
    %v3473 = vmul.f32 %v3472, %v3467
    %v3474 = vand.u32 2147483647, %v3467
    %vm3475 = vcmp.lt.f32.partialorder %v3474, 0.0004427343
    %v3476 = vsel %vm3475, %v3473, %v3470
    %v3477 = vadd.f32 %v3463, %v3476
    %v3478 = vsub.f32 %v3477, 0.6931472
    %v3479 = vld [vmem:[#allocation91] sm:$0xf]
    %v3480 = vld [vmem:[#allocation91 + $0x4] sm:$0xf]
    %v3481 = vld [vmem:[#allocation91 + $0x8] sm:$0xf]
    %v3482 = vld [vmem:[#allocation91 + $0xc] sm:$0xf]
    %v3483 = vld [vmem:[#allocation91 + $0x10] sm:$0xf]
    %v3484 = vld [vmem:[#allocation91 + $0x14] sm:$0xf]
    %v3485 = vld [vmem:[#allocation91 + $0x18] sm:$0xf]
    %v3486 = vld [vmem:[#allocation91 + $0x1c] sm:$0xf]
    %v3487 = vpack.c.bf16 %v3478, %v3478
    %v3488 = vld [vmem:[#allocation92] sm:$0x1]
    %v3490 = vlaneseq
    %v3491 = vshrl.u32 %v3490, 7
    %v3492 = vsub.s32 0, %v3491
    %v3493 = vrot.slane %v3488, %v3492
    %v3503 = vunpack.c.l.b16 %v3479
    %v3504 = vunpack.c.l.b16 %v3480
    %v3505 = vunpack.c.l.b16 %v3481
    %v3506 = vunpack.c.l.b16 %v3482
    %v3507 = vunpack.c.l.b16 %v3483
    %v3508 = vunpack.c.l.b16 %v3484
    %v3509 = vunpack.c.l.b16 %v3485
    %v3510 = vunpack.c.l.b16 %v3486
    %v3511 = vpack.c.b16 %v3504, %v3503
    %v3512 = vpack.c.b16 %v3506, %v3505
    %v3513 = vpack.c.b16 %v3508, %v3507
    %v3514 = vpack.c.b16 %v3510, %v3509
    %v3520 = vsel %vm1270, %v3487, 0
    %3522 = vmatprep.subr.bf16.mxu0 0
    %3523 = vmatpush1.bf16.msra.mxu0 %v3511
    %3524 = vmatprep.subr.bf16.mxu0 0
    %3525 = vmatpush1.bf16.msra.mxu0 %v3512
    %3526 = vmatprep.subr.bf16.mxu0 0
    %3527 = vmatpush1.bf16.msra.mxu0 %v3513
    %3528 = vmatprep.subr.bf16.mxu0 0
    %3529 = vmatpush1.bf16.msra.mxu0 %v3514
    %3530 = vmatprep.subr.bf16.mxu0 0
    %3531 = vmatpush1.bf16.msra.mxu0 0
    %3532 = vmatprep.subr.bf16.mxu0 0
    %3533 = vmatpush1.bf16.msra.mxu0 0
    %3534 = vmatprep.subr.bf16.mxu0 0
    %3535 = vmatpush1.bf16.msra.mxu0 0
    %3536 = vmatprep.subr.bf16.mxu0 0
    %3537 = vmatpush1.bf16.msra.mxu0 0
    %3538 = vmatprep.subr.bf16.mxu0 0
    %3539 = vmatpush1.bf16.msra.mxu0 0
    %3540 = vmatprep.subr.bf16.mxu0 0
    %3541 = vmatpush1.bf16.msra.mxu0 0
    %3542 = vmatprep.subr.bf16.mxu0 0
    %3543 = vmatpush1.bf16.msra.mxu0 0
    %3544 = vmatprep.subr.bf16.mxu0 0
    %3545 = vmatpush1.bf16.msra.mxu0 0
    %3546 = vmatprep.subr.bf16.mxu0 0
    %3547 = vmatpush1.bf16.msra.mxu0 0
    %3548 = vmatprep.subr.bf16.mxu0 0
    %3549 = vmatpush1.bf16.msra.mxu0 0
    %3550 = vmatprep.subr.bf16.mxu0 0
    %3551 = vmatpush1.bf16.msra.mxu0 0
    %3552 = vmatprep.subr.bf16.mxu0 0
    %3553 = vmatpush1.bf16.msra.mxu0 0
    %3554 = vmatprep.mubr.bf16.mxu0 0
    %3555 = vmatmul.mubr.bf16.gmra.mrb[0].mxu0 %v3520
    %v3556 = vpop.f32.mrb[0].mxu0
    %v3557 = vadd.f32 %v3493, %v3556
    %v3558 = vpop.f32.mrb[0].mxu0
    %v3559 = vpop.f32.mrb[0].mxu0
    %v3560 = vpop.f32.mrb[0].mxu0
    %3561 = vdwg.mxu0
    %v3562 = vmax.f32 %v3557, 0.0
    %v3563 = vand.u32 2147483647, %v3557
    %v3564 = vsub.f32 0.0, %v3563
    %v3565 = vmul.f32 %v3564, 1.442695
    %v3566 = vpow.pop %v3565
    %v3567 = vadd.f32 %v3566, 1.0
    %v3568 = vlog2.pop %v3567
    %v3569 = vmul.f32 %v3568, 0.6931472
    %v3570 = vmul.f32 -0.5, %v3566
    %v3571 = vadd.f32 %v3570, 1.0
    %v3572 = vmul.f32 %v3571, %v3566
    %v3573 = vand.u32 2147483647, %v3566
    %vm3574 = vcmp.lt.f32.partialorder %v3573, 0.0004427343
    %v3575 = vsel %vm3574, %v3572, %v3569
    %v3576 = vadd.f32 %v3562, %v3575
    %v3577 = vsub.f32 %v3576, 0.6931472
    %v3578 = vld [vmem:[#allocation94] sm:$0xf]
    %v3579 = vld [vmem:[#allocation94 + $0x4] sm:$0xf]
    %v3580 = vld [vmem:[#allocation94 + $0x8] sm:$0xf]
    %v3581 = vld [vmem:[#allocation94 + $0xc] sm:$0xf]
    %v3582 = vld [vmem:[#allocation94 + $0x10] sm:$0xf]
    %v3583 = vld [vmem:[#allocation94 + $0x14] sm:$0xf]
    %v3584 = vld [vmem:[#allocation94 + $0x18] sm:$0xf]
    %v3585 = vld [vmem:[#allocation94 + $0x1c] sm:$0xf]
    %v3586 = vpack.c.bf16 %v3577, %v3577
    %v3587 = vld [vmem:[#allocation95] sm:$0x1]
    %v3589 = vlaneseq
    %v3590 = vshrl.u32 %v3589, 7
    %v3591 = vsub.s32 0, %v3590
    %v3592 = vrot.slane %v3587, %v3591
    %v3602 = vunpack.c.l.b16 %v3578
    %v3603 = vunpack.c.l.b16 %v3579
    %v3604 = vunpack.c.l.b16 %v3580
    %v3605 = vunpack.c.l.b16 %v3581
    %v3606 = vunpack.c.l.b16 %v3582
    %v3607 = vunpack.c.l.b16 %v3583
    %v3608 = vunpack.c.l.b16 %v3584
    %v3609 = vunpack.c.l.b16 %v3585
    %v3610 = vpack.c.b16 %v3603, %v3602
    %v3611 = vpack.c.b16 %v3605, %v3604
    %v3612 = vpack.c.b16 %v3607, %v3606
    %v3613 = vpack.c.b16 %v3609, %v3608
    %v3619 = vsel %vm1270, %v3586, 0
    %3621 = vmatprep.subr.bf16.mxu0 0
    %3622 = vmatpush1.bf16.msra.mxu0 %v3610
    %3623 = vmatprep.subr.bf16.mxu0 0
    %3624 = vmatpush1.bf16.msra.mxu0 %v3611
    %3625 = vmatprep.subr.bf16.mxu0 0
    %3626 = vmatpush1.bf16.msra.mxu0 %v3612
    %3627 = vmatprep.subr.bf16.mxu0 0
    %3628 = vmatpush1.bf16.msra.mxu0 %v3613
    %3629 = vmatprep.subr.bf16.mxu0 0
    %3630 = vmatpush1.bf16.msra.mxu0 0
    %3631 = vmatprep.subr.bf16.mxu0 0
    %3632 = vmatpush1.bf16.msra.mxu0 0
    %3633 = vmatprep.subr.bf16.mxu0 0
    %3634 = vmatpush1.bf16.msra.mxu0 0
    %3635 = vmatprep.subr.bf16.mxu0 0
    %3636 = vmatpush1.bf16.msra.mxu0 0
    %3637 = vmatprep.subr.bf16.mxu0 0
    %3638 = vmatpush1.bf16.msra.mxu0 0
    %3639 = vmatprep.subr.bf16.mxu0 0
    %3640 = vmatpush1.bf16.msra.mxu0 0
    %3641 = vmatprep.subr.bf16.mxu0 0
    %3642 = vmatpush1.bf16.msra.mxu0 0
    %3643 = vmatprep.subr.bf16.mxu0 0
    %3644 = vmatpush1.bf16.msra.mxu0 0
    %3645 = vmatprep.subr.bf16.mxu0 0
    %3646 = vmatpush1.bf16.msra.mxu0 0
    %3647 = vmatprep.subr.bf16.mxu0 0
    %3648 = vmatpush1.bf16.msra.mxu0 0
    %3649 = vmatprep.subr.bf16.mxu0 0
    %3650 = vmatpush1.bf16.msra.mxu0 0
    %3651 = vmatprep.subr.bf16.mxu0 0
    %3652 = vmatpush1.bf16.msra.mxu0 0
    %3653 = vmatprep.mubr.bf16.mxu0 0
    %3654 = vmatmul.mubr.bf16.gmra.mrb[0].mxu0 %v3619
    %v3655 = vpop.f32.mrb[0].mxu0
    %v3656 = vadd.f32 %v3592, %v3655
    %v3657 = vpop.f32.mrb[0].mxu0
    %v3658 = vpop.f32.mrb[0].mxu0
    %v3659 = vpop.f32.mrb[0].mxu0
    %3660 = vdwg.mxu0
    %v3661 = vmax.f32 %v3656, 0.0
    %v3662 = vand.u32 2147483647, %v3656
    %v3663 = vsub.f32 0.0, %v3662
    %v3664 = vmul.f32 %v3663, 1.442695
    %v3665 = vpow.pop %v3664
    %v3666 = vadd.f32 %v3665, 1.0
    %v3667 = vlog2.pop %v3666
    %v3668 = vmul.f32 %v3667, 0.6931472
    %v3669 = vmul.f32 -0.5, %v3665
    %v3670 = vadd.f32 %v3669, 1.0
    %v3671 = vmul.f32 %v3670, %v3665
    %v3672 = vand.u32 2147483647, %v3665
    %vm3673 = vcmp.lt.f32.partialorder %v3672, 0.0004427343
    %v3674 = vsel %vm3673, %v3671, %v3668
    %v3675 = vadd.f32 %v3661, %v3674
    %v3676 = vsub.f32 %v3675, 0.6931472
    %v3677 = vld [vmem:[#allocation17] sm:$0xff]
    %v3678 = vld [vmem:[#allocation17 + $0x8] sm:$0x3]
    %3679 = vset.pattern.permute.xlu0 0
    %3680 = vperm.xlu0 %3679, %v3677
    %v3681 = vpop.permute.xlu0 %3680
    %3682 = vset.pattern.permute.xlu0 0
    %3683 = vperm.xlu0 %3682, %v3678
    %v3684 = vpop.permute.xlu0 %3683
    %vm3685 = vcmp.eq.s32.totalorder %v1946, %v3681
    %vm3686 = vcmp.eq.s32.totalorder %v1946, %v3684
    %v3687 = vsel %vm3685, 1, 0
    %v3688 = vsel %vm3686, 1, 0
    %v3689 = vcvt.s32.f32 %v3687
    %v3690 = vcvt.s32.f32 %v3688
    %v3691 = vpack.c.bf16 %v3690, %v3689
    %v3692 = vld [vmem:[#allocation19] sm:$0x1]
    %v3693 = vlaneseq
    %v3694 = vshrl.u32 %v3693, 7
    %v3695 = vsub.s32 0, %v3694
    %v3696 = vrot.slane %v3692, %v3695
    %vm3697 = vcmp.eq.s32.totalorder %v1956, %v3696
    %v3698 = vsel %vm3697, 1, 0
    %v3699 = vcvt.s32.f32 %v3698
    %v3700 = vpack.c.bf16 %v3699, %v3699
    %v3701 = vld [vmem:[#allocation20] sm:$0xff]
    %v3702 = vld [vmem:[#allocation20 + $0x8] sm:$0x3]
    %3703 = vset.pattern.permute.xlu0 0
    %3704 = vperm.xlu0 %3703, %v3701
    %v3705 = vpop.permute.xlu0 %3704
    %3706 = vset.pattern.permute.xlu0 0
    %3707 = vperm.xlu0 %3706, %v3702
    %v3708 = vpop.permute.xlu0 %3707
    %vm3709 = vcmp.eq.s32.totalorder %v1946, %v3705
    %vm3710 = vcmp.eq.s32.totalorder %v1946, %v3708
    %v3711 = vsel %vm3709, 1, 0
    %v3712 = vsel %vm3710, 1, 0
    %v3713 = vcvt.s32.f32 %v3711
    %v3714 = vcvt.s32.f32 %v3712
    %v3715 = vpack.c.bf16 %v3714, %v3713
    %v3716 = vld [vmem:[#allocation22] sm:$0xff]
    %v3717 = vld [vmem:[#allocation22 + $0x8] sm:$0x3]
    %3718 = vset.pattern.permute.xlu0 0
    %3719 = vperm.xlu0 %3718, %v3716
    %v3720 = vpop.permute.xlu0 %3719
    %3721 = vset.pattern.permute.xlu0 0
    %3722 = vperm.xlu0 %3721, %v3717
    %v3723 = vpop.permute.xlu0 %3722
    %vm3724 = vcmp.eq.s32.totalorder %v1946, %v3720
    %vm3725 = vcmp.eq.s32.totalorder %v1946, %v3723
    %v3726 = vsel %vm3724, 1, 0
    %v3727 = vsel %vm3725, 1, 0
    %v3728 = vcvt.s32.f32 %v3726
    %v3729 = vcvt.s32.f32 %v3727
    %v3730 = vpack.c.bf16 %v3729, %v3728
    %v3731 = vld [vmem:[#allocation23] sm:$0x1]
    %v3732 = vlaneseq
    %v3733 = vshrl.u32 %v3732, 7
    %v3734 = vsub.s32 0, %v3733
    %v3735 = vrot.slane %v3731, %v3734
    %vm3736 = vcmp.eq.s32.totalorder %v1956, %v3735
    %v3737 = vsel %vm3736, 1, 0
    %v3738 = vcvt.s32.f32 %v3737
    %v3739 = vpack.c.bf16 %v3738, %v3738
    %v3741 = vsel %vm2078, %v3691, 0
    %3743 = vmatprep.subr.bf16.mxu0 0
    %3744 = vmatpush1.bf16.msra.mxu0 %v2084
    %3745 = vmatprep.subr.bf16.mxu0 0
    %3746 = vmatpush1.bf16.msra.mxu0 0
    %3747 = vmatprep.subr.bf16.mxu0 0
    %3748 = vmatpush1.bf16.msra.mxu0 0
    %3749 = vmatprep.subr.bf16.mxu0 0
    %3750 = vmatpush1.bf16.msra.mxu0 0
    %3751 = vmatprep.subr.bf16.mxu0 0
    %3752 = vmatpush1.bf16.msra.mxu0 0
    %3753 = vmatprep.subr.bf16.mxu0 0
    %3754 = vmatpush1.bf16.msra.mxu0 0
    %3755 = vmatprep.subr.bf16.mxu0 0
    %3756 = vmatpush1.bf16.msra.mxu0 0
    %3757 = vmatprep.subr.bf16.mxu0 0
    %3758 = vmatpush1.bf16.msra.mxu0 0
    %3759 = vmatprep.subr.bf16.mxu0 0
    %3760 = vmatpush1.bf16.msra.mxu0 0
    %3761 = vmatprep.subr.bf16.mxu0 0
    %3762 = vmatpush1.bf16.msra.mxu0 0
    %3763 = vmatprep.subr.bf16.mxu0 0
    %3764 = vmatpush1.bf16.msra.mxu0 0
    %3765 = vmatprep.subr.bf16.mxu0 0
    %3766 = vmatpush1.bf16.msra.mxu0 0
    %3767 = vmatprep.subr.bf16.mxu0 0
    %3768 = vmatpush1.bf16.msra.mxu0 0
    %3769 = vmatprep.subr.bf16.mxu0 0
    %3770 = vmatpush1.bf16.msra.mxu0 0
    %3771 = vmatprep.subr.bf16.mxu0 0
    %3772 = vmatpush1.bf16.msra.mxu0 0
    %3773 = vmatprep.subr.bf16.mxu0 0
    %3774 = vmatpush1.bf16.msra.mxu0 0
    %3775 = vmatprep.mubr.bf16.mxu0 0
    %3776 = vmatmul.mubr.bf16.gmra.mrb[0].mxu0 %v3741
    %v3777 = vpop.f32.mrb[0].mxu0
    %v3778 = vadd.f32 0.0, %v3777
    %v3779 = vpop.f32.mrb[0].mxu0
    %v3780 = vpop.f32.mrb[0].mxu0
    %v3781 = vadd.f32 0.0, %v3780
    %v3782 = vpop.f32.mrb[0].mxu0
    %3783 = vdwg.mxu0
    %v3785 = vsel %vm2078, %v3715, 0
    %3787 = vmatprep.subr.bf16.mxu0 0
    %3788 = vmatpush1.bf16.msra.mxu0 %v2084
    %3789 = vmatprep.subr.bf16.mxu0 0
    %3790 = vmatpush1.bf16.msra.mxu0 0
    %3791 = vmatprep.subr.bf16.mxu0 0
    %3792 = vmatpush1.bf16.msra.mxu0 0
    %3793 = vmatprep.subr.bf16.mxu0 0
    %3794 = vmatpush1.bf16.msra.mxu0 0
    %3795 = vmatprep.subr.bf16.mxu0 0
    %3796 = vmatpush1.bf16.msra.mxu0 0
    %3797 = vmatprep.subr.bf16.mxu0 0
    %3798 = vmatpush1.bf16.msra.mxu0 0
    %3799 = vmatprep.subr.bf16.mxu0 0
    %3800 = vmatpush1.bf16.msra.mxu0 0
    %3801 = vmatprep.subr.bf16.mxu0 0
    %3802 = vmatpush1.bf16.msra.mxu0 0
    %3803 = vmatprep.subr.bf16.mxu0 0
    %3804 = vmatpush1.bf16.msra.mxu0 0
    %3805 = vmatprep.subr.bf16.mxu0 0
    %3806 = vmatpush1.bf16.msra.mxu0 0
    %3807 = vmatprep.subr.bf16.mxu0 0
    %3808 = vmatpush1.bf16.msra.mxu0 0
    %3809 = vmatprep.subr.bf16.mxu0 0
    %3810 = vmatpush1.bf16.msra.mxu0 0
    %3811 = vmatprep.subr.bf16.mxu0 0
    %3812 = vmatpush1.bf16.msra.mxu0 0
    %3813 = vmatprep.subr.bf16.mxu0 0
    %3814 = vmatpush1.bf16.msra.mxu0 0
    %3815 = vmatprep.subr.bf16.mxu0 0
    %3816 = vmatpush1.bf16.msra.mxu0 0
    %3817 = vmatprep.subr.bf16.mxu0 0
    %3818 = vmatpush1.bf16.msra.mxu0 0
    %3819 = vmatprep.mubr.bf16.mxu0 0
    %3820 = vmatmul.mubr.bf16.gmra.mrb[0].mxu0 %v3785
    %v3821 = vpop.f32.mrb[0].mxu0
    %v3822 = vadd.f32 0.0, %v3821
    %v3823 = vpop.f32.mrb[0].mxu0
    %v3824 = vpop.f32.mrb[0].mxu0
    %v3825 = vadd.f32 0.0, %v3824
    %v3826 = vpop.f32.mrb[0].mxu0
    %3827 = vdwg.mxu0
    %v3829 = vsel %vm1966, %v3730, 0
    %3831 = vmatprep.subr.bf16.mxu0 0
    %3832 = vmatpush1.bf16.msra.mxu0 %v1972
    %3833 = vmatprep.subr.bf16.mxu0 0
    %3834 = vmatpush1.bf16.msra.mxu0 0
    %3835 = vmatprep.subr.bf16.mxu0 0
    %3836 = vmatpush1.bf16.msra.mxu0 0
    %3837 = vmatprep.subr.bf16.mxu0 0
    %3838 = vmatpush1.bf16.msra.mxu0 0
    %3839 = vmatprep.subr.bf16.mxu0 0
    %3840 = vmatpush1.bf16.msra.mxu0 0
    %3841 = vmatprep.subr.bf16.mxu0 0
    %3842 = vmatpush1.bf16.msra.mxu0 0
    %3843 = vmatprep.subr.bf16.mxu0 0
    %3844 = vmatpush1.bf16.msra.mxu0 0
    %3845 = vmatprep.subr.bf16.mxu0 0
    %3846 = vmatpush1.bf16.msra.mxu0 0
    %3847 = vmatprep.subr.bf16.mxu0 0
    %3848 = vmatpush1.bf16.msra.mxu0 0
    %3849 = vmatprep.subr.bf16.mxu0 0
    %3850 = vmatpush1.bf16.msra.mxu0 0
    %3851 = vmatprep.subr.bf16.mxu0 0
    %3852 = vmatpush1.bf16.msra.mxu0 0
    %3853 = vmatprep.subr.bf16.mxu0 0
    %3854 = vmatpush1.bf16.msra.mxu0 0
    %3855 = vmatprep.subr.bf16.mxu0 0
    %3856 = vmatpush1.bf16.msra.mxu0 0
    %3857 = vmatprep.subr.bf16.mxu0 0
    %3858 = vmatpush1.bf16.msra.mxu0 0
    %3859 = vmatprep.subr.bf16.mxu0 0
    %3860 = vmatpush1.bf16.msra.mxu0 0
    %3861 = vmatprep.subr.bf16.mxu0 0
    %3862 = vmatpush1.bf16.msra.mxu0 0
    %3863 = vmatprep.mubr.bf16.mxu0 0
    %3864 = vmatmul.mubr.bf16.gmra.mrb[0].mxu0 %v3829
    %v3865 = vpop.f32.mrb[0].mxu0
    %v3866 = vadd.f32 0.0, %v3865
    %v3867 = vpop.f32.mrb[0].mxu0
    %v3868 = vpop.f32.mrb[0].mxu0
    %v3869 = vadd.f32 0.0, %v3868
    %v3870 = vpop.f32.mrb[0].mxu0
    %3871 = vdwg.mxu0
    %v3872 = vld [vmem:[#allocation61] sm:$0xf]
    %v3873 = vld [vmem:[#allocation61 + $0x4] sm:$0xf]
    %v3874 = vld [vmem:[#allocation61 + $0x8] sm:$0xf]
    %v3875 = vld [vmem:[#allocation61 + $0xc] sm:$0xf]
    %v3876 = vpack.c.bf16 %v3781, %v3778
    %v3877 = vld [vmem:[#allocation61 + $0x10] sm:$0xf]
    %v3878 = vld [vmem:[#allocation61 + $0x14] sm:$0xf]
    %v3879 = vld [vmem:[#allocation61 + $0x18] sm:$0xf]
    %v3880 = vld [vmem:[#allocation61 + $0x1c] sm:$0xf]
    %v3881 = vpack.c.bf16 %v1943, %v1942
    %v3886 = vunpack.c.l.b16 %v3877
    %v3887 = vunpack.c.l.b16 %v3878
    %v3888 = vunpack.c.l.b16 %v3879
    %v3889 = vunpack.c.l.b16 %v3880
    %v3890 = vpack.c.b16 %v3887, %v3886
    %v3891 = vpack.c.b16 %v3889, %v3888
    %v3895 = vsel %vm1170, %v3881, 0
    %3897 = vmatprep.subr.bf16.mxu0 0
    %3898 = vmatpush1.bf16.msra.mxu0 %v3890
    %3899 = vmatprep.subr.bf16.mxu0 0
    %3900 = vmatpush1.bf16.msra.mxu0 %v3891
    %3901 = vmatprep.subr.bf16.mxu0 0
    %3902 = vmatpush1.bf16.msra.mxu0 0
    %3903 = vmatprep.subr.bf16.mxu0 0
    %3904 = vmatpush1.bf16.msra.mxu0 0
    %3905 = vmatprep.subr.bf16.mxu0 0
    %3906 = vmatpush1.bf16.msra.mxu0 0
    %3907 = vmatprep.subr.bf16.mxu0 0
    %3908 = vmatpush1.bf16.msra.mxu0 0
    %3909 = vmatprep.subr.bf16.mxu0 0
    %3910 = vmatpush1.bf16.msra.mxu0 0
    %3911 = vmatprep.subr.bf16.mxu0 0
    %3912 = vmatpush1.bf16.msra.mxu0 0
    %3913 = vmatprep.subr.bf16.mxu0 0
    %3914 = vmatpush1.bf16.msra.mxu0 0
    %3915 = vmatprep.subr.bf16.mxu0 0
    %3916 = vmatpush1.bf16.msra.mxu0 0
    %3917 = vmatprep.subr.bf16.mxu0 0
    %3918 = vmatpush1.bf16.msra.mxu0 0
    %3919 = vmatprep.subr.bf16.mxu0 0
    %3920 = vmatpush1.bf16.msra.mxu0 0
    %3921 = vmatprep.subr.bf16.mxu0 0
    %3922 = vmatpush1.bf16.msra.mxu0 0
    %3923 = vmatprep.subr.bf16.mxu0 0
    %3924 = vmatpush1.bf16.msra.mxu0 0
    %3925 = vmatprep.subr.bf16.mxu0 0
    %3926 = vmatpush1.bf16.msra.mxu0 0
    %3927 = vmatprep.subr.bf16.mxu0 0
    %3928 = vmatpush1.bf16.msra.mxu0 0
    %3929 = vmatprep.mubr.bf16.mxu0 0
    %3930 = vmatmul.mubr.bf16.gmra.mrb[0].mxu0 %v3895
    %v3931 = vpop.f32.mrb[0].mxu0
    %v3932 = vadd.f32 0.0, %v3931
    %v3933 = vpop.f32.mrb[0].mxu0
    %v3934 = vpop.f32.mrb[0].mxu0
    %v3935 = vadd.f32 0.0, %v3934
    %v3936 = vpop.f32.mrb[0].mxu0
    %3937 = vdwg.mxu0
    %v3942 = vunpack.c.l.b16 %v3872
    %v3943 = vunpack.c.l.b16 %v3873
    %v3944 = vunpack.c.l.b16 %v3874
    %v3945 = vunpack.c.l.b16 %v3875
    %v3946 = vpack.c.b16 %v3943, %v3942
    %v3947 = vpack.c.b16 %v3945, %v3944
    %v3951 = vsel %vm1170, %v3876, 0
    %3953 = vmatprep.subr.bf16.mxu0 0
    %3954 = vmatpush1.bf16.msra.mxu0 %v3946
    %3955 = vmatprep.subr.bf16.mxu0 0
    %3956 = vmatpush1.bf16.msra.mxu0 %v3947
    %3957 = vmatprep.subr.bf16.mxu0 0
    %3958 = vmatpush1.bf16.msra.mxu0 0
    %3959 = vmatprep.subr.bf16.mxu0 0
    %3960 = vmatpush1.bf16.msra.mxu0 0
    %3961 = vmatprep.subr.bf16.mxu0 0
    %3962 = vmatpush1.bf16.msra.mxu0 0
    %3963 = vmatprep.subr.bf16.mxu0 0
    %3964 = vmatpush1.bf16.msra.mxu0 0
    %3965 = vmatprep.subr.bf16.mxu0 0
    %3966 = vmatpush1.bf16.msra.mxu0 0
    %3967 = vmatprep.subr.bf16.mxu0 0
    %3968 = vmatpush1.bf16.msra.mxu0 0
    %3969 = vmatprep.subr.bf16.mxu0 0
    %3970 = vmatpush1.bf16.msra.mxu0 0
    %3971 = vmatprep.subr.bf16.mxu0 0
    %3972 = vmatpush1.bf16.msra.mxu0 0
    %3973 = vmatprep.subr.bf16.mxu0 0
    %3974 = vmatpush1.bf16.msra.mxu0 0
    %3975 = vmatprep.subr.bf16.mxu0 0
    %3976 = vmatpush1.bf16.msra.mxu0 0
    %3977 = vmatprep.subr.bf16.mxu0 0
    %3978 = vmatpush1.bf16.msra.mxu0 0
    %3979 = vmatprep.subr.bf16.mxu0 0
    %3980 = vmatpush1.bf16.msra.mxu0 0
    %3981 = vmatprep.subr.bf16.mxu0 0
    %3982 = vmatpush1.bf16.msra.mxu0 0
    %3983 = vmatprep.subr.bf16.mxu0 0
    %3984 = vmatpush1.bf16.msra.mxu0 0
    %3985 = vmatprep.mubr.bf16.mxu0 0
    %3986 = vmatmul.mubr.bf16.gmra.mrb[0].mxu0 %v3951
    %v3987 = vpop.f32.mrb[0].mxu0
    %v3988 = vadd.f32 %v3932, %v3987
    %v3989 = vpop.f32.mrb[0].mxu0
    %v3990 = vpop.f32.mrb[0].mxu0
    %v3991 = vadd.f32 %v3935, %v3990
    %v3992 = vpop.f32.mrb[0].mxu0
    %3993 = vdwg.mxu0
    %v3994 = vld [vmem:[#allocation61 + $0x20] sm:$0xf]
    %v3995 = vld [vmem:[#allocation61 + $0x24] sm:$0xf]
    %v3996 = vld [vmem:[#allocation61 + $0x28] sm:$0xf]
    %v3997 = vld [vmem:[#allocation61 + $0x2c] sm:$0xf]
    %v3998 = vpack.c.bf16 %v3825, %v3822
    %v4003 = vunpack.c.l.b16 %v3994
    %v4004 = vunpack.c.l.b16 %v3995
    %v4005 = vunpack.c.l.b16 %v3996
    %v4006 = vunpack.c.l.b16 %v3997
    %v4007 = vpack.c.b16 %v4004, %v4003
    %v4008 = vpack.c.b16 %v4006, %v4005
    %v4012 = vsel %vm1170, %v3998, 0
    %4014 = vmatprep.subr.bf16.mxu0 0
    %4015 = vmatpush1.bf16.msra.mxu0 %v4007
    %4016 = vmatprep.subr.bf16.mxu0 0
    %4017 = vmatpush1.bf16.msra.mxu0 %v4008
    %4018 = vmatprep.subr.bf16.mxu0 0
    %4019 = vmatpush1.bf16.msra.mxu0 0
    %4020 = vmatprep.subr.bf16.mxu0 0
    %4021 = vmatpush1.bf16.msra.mxu0 0
    %4022 = vmatprep.subr.bf16.mxu0 0
    %4023 = vmatpush1.bf16.msra.mxu0 0
    %4024 = vmatprep.subr.bf16.mxu0 0
    %4025 = vmatpush1.bf16.msra.mxu0 0
    %4026 = vmatprep.subr.bf16.mxu0 0
    %4027 = vmatpush1.bf16.msra.mxu0 0
    %4028 = vmatprep.subr.bf16.mxu0 0
    %4029 = vmatpush1.bf16.msra.mxu0 0
    %4030 = vmatprep.subr.bf16.mxu0 0
    %4031 = vmatpush1.bf16.msra.mxu0 0
    %4032 = vmatprep.subr.bf16.mxu0 0
    %4033 = vmatpush1.bf16.msra.mxu0 0
    %4034 = vmatprep.subr.bf16.mxu0 0
    %4035 = vmatpush1.bf16.msra.mxu0 0
    %4036 = vmatprep.subr.bf16.mxu0 0
    %4037 = vmatpush1.bf16.msra.mxu0 0
    %4038 = vmatprep.subr.bf16.mxu0 0
    %4039 = vmatpush1.bf16.msra.mxu0 0
    %4040 = vmatprep.subr.bf16.mxu0 0
    %4041 = vmatpush1.bf16.msra.mxu0 0
    %4042 = vmatprep.subr.bf16.mxu0 0
    %4043 = vmatpush1.bf16.msra.mxu0 0
    %4044 = vmatprep.subr.bf16.mxu0 0
    %4045 = vmatpush1.bf16.msra.mxu0 0
    %4046 = vmatprep.mubr.bf16.mxu0 0
    %4047 = vmatmul.mubr.bf16.gmra.mrb[0].mxu0 %v4012
    %v4048 = vpop.f32.mrb[0].mxu0
    %v4049 = vadd.f32 0.0, %v4048
    %v4050 = vpop.f32.mrb[0].mxu0
    %v4051 = vpop.f32.mrb[0].mxu0
    %v4052 = vadd.f32 0.0, %v4051
    %v4053 = vpop.f32.mrb[0].mxu0
    %4054 = vdwg.mxu0
    %v4055 = vadd.f32 %v3988, %v4049
    %v4056 = vadd.f32 %v3991, %v4052
    %v4057 = vld [vmem:[#allocation61 + $0x30] sm:$0xf]
    %v4058 = vld [vmem:[#allocation61 + $0x34] sm:$0xf]
    %v4059 = vld [vmem:[#allocation61 + $0x38] sm:$0xf]
    %v4060 = vld [vmem:[#allocation61 + $0x3c] sm:$0xf]
    %v4061 = vpack.c.bf16 %v3869, %v3866
    %v4066 = vunpack.c.l.b16 %v4057
    %v4067 = vunpack.c.l.b16 %v4058
    %v4068 = vunpack.c.l.b16 %v4059
    %v4069 = vunpack.c.l.b16 %v4060
    %v4070 = vpack.c.b16 %v4067, %v4066
    %v4071 = vpack.c.b16 %v4069, %v4068
    %v4075 = vsel %vm1170, %v4061, 0
    %4077 = vmatprep.subr.bf16.mxu0 0
    %4078 = vmatpush1.bf16.msra.mxu0 %v4070
    %4079 = vmatprep.subr.bf16.mxu0 0
    %4080 = vmatpush1.bf16.msra.mxu0 %v4071
    %4081 = vmatprep.subr.bf16.mxu0 0
    %4082 = vmatpush1.bf16.msra.mxu0 0
    %4083 = vmatprep.subr.bf16.mxu0 0
    %4084 = vmatpush1.bf16.msra.mxu0 0
    %4085 = vmatprep.subr.bf16.mxu0 0
    %4086 = vmatpush1.bf16.msra.mxu0 0
    %4087 = vmatprep.subr.bf16.mxu0 0
    %4088 = vmatpush1.bf16.msra.mxu0 0
    %4089 = vmatprep.subr.bf16.mxu0 0
    %4090 = vmatpush1.bf16.msra.mxu0 0
    %4091 = vmatprep.subr.bf16.mxu0 0
    %4092 = vmatpush1.bf16.msra.mxu0 0
    %4093 = vmatprep.subr.bf16.mxu0 0
    %4094 = vmatpush1.bf16.msra.mxu0 0
    %4095 = vmatprep.subr.bf16.mxu0 0
    %4096 = vmatpush1.bf16.msra.mxu0 0
    %4097 = vmatprep.subr.bf16.mxu0 0
    %4098 = vmatpush1.bf16.msra.mxu0 0
    %4099 = vmatprep.subr.bf16.mxu0 0
    %4100 = vmatpush1.bf16.msra.mxu0 0
    %4101 = vmatprep.subr.bf16.mxu0 0
    %4102 = vmatpush1.bf16.msra.mxu0 0
    %4103 = vmatprep.subr.bf16.mxu0 0
    %4104 = vmatpush1.bf16.msra.mxu0 0
    %4105 = vmatprep.subr.bf16.mxu0 0
    %4106 = vmatpush1.bf16.msra.mxu0 0
    %4107 = vmatprep.subr.bf16.mxu0 0
    %4108 = vmatpush1.bf16.msra.mxu0 0
    %4109 = vmatprep.mubr.bf16.mxu0 0
    %4110 = vmatmul.mubr.bf16.gmra.mrb[0].mxu0 %v4075
    %v4111 = vpop.f32.mrb[0].mxu0
    %v4112 = vadd.f32 0.0, %v4111
    %v4113 = vpop.f32.mrb[0].mxu0
    %v4114 = vpop.f32.mrb[0].mxu0
    %v4115 = vadd.f32 0.0, %v4114
    %v4116 = vpop.f32.mrb[0].mxu0
    %4117 = vdwg.mxu0
    %v4118 = vadd.f32 %v4055, %v4112
    %v4119 = vadd.f32 %v4056, %v4115
    %v4120 = vld [vmem:[#allocation62] sm:$0x1]
    %v4122 = vlaneseq
    %v4123 = vshrl.u32 %v4122, 7
    %v4124 = vsub.s32 0, %v4123
    %v4125 = vrot.slane %v4120, %v4124
    %v4127 = vadd.f32 %v4118, %v4125
    %v4128 = vadd.f32 %v4119, %v4125
    %v4129 = vmax.f32 %v4127, 0.0
    %v4130 = vmax.f32 %v4128, 0.0
    %v4131 = vand.u32 2147483647, %v4127
    %v4132 = vand.u32 2147483647, %v4128
    %v4133 = vsub.f32 0.0, %v4131
    %v4134 = vsub.f32 0.0, %v4132
    %v4135 = vmul.f32 %v4133, 1.442695
    %v4136 = vpow.pop %v4135
    %v4137 = vmul.f32 %v4134, 1.442695
    %v4138 = vpow.pop %v4137
    %v4139 = vadd.f32 %v4136, 1.0
    %v4140 = vlog2.pop %v4139
    %v4141 = vmul.f32 %v4140, 0.6931472
    %v4142 = vmul.f32 -0.5, %v4136
    %v4143 = vadd.f32 %v4142, 1.0
    %v4144 = vmul.f32 %v4143, %v4136
    %v4145 = vand.u32 2147483647, %v4136
    %vm4146 = vcmp.lt.f32.partialorder %v4145, 0.0004427343
    %v4147 = vsel %vm4146, %v4144, %v4141
    %v4148 = vadd.f32 %v4138, 1.0
    %v4149 = vlog2.pop %v4148
    %v4150 = vmul.f32 %v4149, 0.6931472
    %v4151 = vmul.f32 -0.5, %v4138
    %v4152 = vadd.f32 %v4151, 1.0
    %v4153 = vmul.f32 %v4152, %v4138
    %v4154 = vand.u32 2147483647, %v4138
    %vm4155 = vcmp.lt.f32.partialorder %v4154, 0.0004427343
    %v4156 = vsel %vm4155, %v4153, %v4150
    %v4157 = vadd.f32 %v4129, %v4147
    %v4158 = vadd.f32 %v4130, %v4156
    %v4159 = vsub.f32 %v4157, 0.6931472
    %v4160 = vsub.f32 %v4158, 0.6931472
    %v4161 = vld [vmem:[#allocation64] sm:$0xf]
    %v4162 = vld [vmem:[#allocation64 + $0x4] sm:$0xf]
    %v4163 = vld [vmem:[#allocation64 + $0x8] sm:$0xf]
    %v4164 = vld [vmem:[#allocation64 + $0xc] sm:$0xf]
    %v4165 = vld [vmem:[#allocation64 + $0x10] sm:$0xf]
    %v4166 = vld [vmem:[#allocation64 + $0x14] sm:$0xf]
    %v4167 = vld [vmem:[#allocation64 + $0x18] sm:$0xf]
    %v4168 = vld [vmem:[#allocation64 + $0x1c] sm:$0xf]
    %v4169 = vpack.c.bf16 %v4160, %v4159
    %v4170 = vld [vmem:[#allocation65] sm:$0x1]
    %v4172 = vlaneseq
    %v4173 = vshrl.u32 %v4172, 7
    %v4174 = vsub.s32 0, %v4173
    %v4175 = vrot.slane %v4170, %v4174
    %v4185 = vunpack.c.l.b16 %v4161
    %v4186 = vunpack.c.l.b16 %v4162
    %v4187 = vunpack.c.l.b16 %v4163
    %v4188 = vunpack.c.l.b16 %v4164
    %v4189 = vunpack.c.l.b16 %v4165
    %v4190 = vunpack.c.l.b16 %v4166
    %v4191 = vunpack.c.l.b16 %v4167
    %v4192 = vunpack.c.l.b16 %v4168
    %v4193 = vpack.c.b16 %v4186, %v4185
    %v4194 = vpack.c.b16 %v4188, %v4187
    %v4195 = vpack.c.b16 %v4190, %v4189
    %v4196 = vpack.c.b16 %v4192, %v4191
    %v4202 = vsel %vm1270, %v4169, 0
    %4204 = vmatprep.subr.bf16.mxu0 0
    %4205 = vmatpush1.bf16.msra.mxu0 %v4193
    %4206 = vmatprep.subr.bf16.mxu0 0
    %4207 = vmatpush1.bf16.msra.mxu0 %v4194
    %4208 = vmatprep.subr.bf16.mxu0 0
    %4209 = vmatpush1.bf16.msra.mxu0 %v4195
    %4210 = vmatprep.subr.bf16.mxu0 0
    %4211 = vmatpush1.bf16.msra.mxu0 %v4196
    %4212 = vmatprep.subr.bf16.mxu0 0
    %4213 = vmatpush1.bf16.msra.mxu0 0
    %4214 = vmatprep.subr.bf16.mxu0 0
    %4215 = vmatpush1.bf16.msra.mxu0 0
    %4216 = vmatprep.subr.bf16.mxu0 0
    %4217 = vmatpush1.bf16.msra.mxu0 0
    %4218 = vmatprep.subr.bf16.mxu0 0
    %4219 = vmatpush1.bf16.msra.mxu0 0
    %4220 = vmatprep.subr.bf16.mxu0 0
    %4221 = vmatpush1.bf16.msra.mxu0 0
    %4222 = vmatprep.subr.bf16.mxu0 0
    %4223 = vmatpush1.bf16.msra.mxu0 0
    %4224 = vmatprep.subr.bf16.mxu0 0
    %4225 = vmatpush1.bf16.msra.mxu0 0
    %4226 = vmatprep.subr.bf16.mxu0 0
    %4227 = vmatpush1.bf16.msra.mxu0 0
    %4228 = vmatprep.subr.bf16.mxu0 0
    %4229 = vmatpush1.bf16.msra.mxu0 0
    %4230 = vmatprep.subr.bf16.mxu0 0
    %4231 = vmatpush1.bf16.msra.mxu0 0
    %4232 = vmatprep.subr.bf16.mxu0 0
    %4233 = vmatpush1.bf16.msra.mxu0 0
    %4234 = vmatprep.subr.bf16.mxu0 0
    %4235 = vmatpush1.bf16.msra.mxu0 0
    %4236 = vmatprep.mubr.bf16.mxu0 0
    %4237 = vmatmul.mubr.bf16.gmra.mrb[0].mxu0 %v4202
    %v4238 = vpop.f32.mrb[0].mxu0
    %v4239 = vadd.f32 %v4175, %v4238
    %v4240 = vpop.f32.mrb[0].mxu0
    %v4241 = vpop.f32.mrb[0].mxu0
    %v4242 = vadd.f32 %v4175, %v4241
    %v4243 = vpop.f32.mrb[0].mxu0
    %4244 = vdwg.mxu0
    %v4245 = vmax.f32 %v4239, 0.0
    %v4246 = vmax.f32 %v4242, 0.0
    %v4247 = vand.u32 2147483647, %v4239
    %v4248 = vand.u32 2147483647, %v4242
    %v4249 = vsub.f32 0.0, %v4247
    %v4250 = vsub.f32 0.0, %v4248
    %v4251 = vmul.f32 %v4249, 1.442695
    %v4252 = vpow.pop %v4251
    %v4253 = vmul.f32 %v4250, 1.442695
    %v4254 = vpow.pop %v4253
    %v4255 = vadd.f32 %v4252, 1.0
    %v4256 = vlog2.pop %v4255
    %v4257 = vmul.f32 %v4256, 0.6931472
    %v4258 = vmul.f32 -0.5, %v4252
    %v4259 = vadd.f32 %v4258, 1.0
    %v4260 = vmul.f32 %v4259, %v4252
    %v4261 = vand.u32 2147483647, %v4252
    %vm4262 = vcmp.lt.f32.partialorder %v4261, 0.0004427343
    %v4263 = vsel %vm4262, %v4260, %v4257
    %v4264 = vadd.f32 %v4254, 1.0
    %v4265 = vlog2.pop %v4264
    %v4266 = vmul.f32 %v4265, 0.6931472
    %v4267 = vmul.f32 -0.5, %v4254
    %v4268 = vadd.f32 %v4267, 1.0
    %v4269 = vmul.f32 %v4268, %v4254
    %v4270 = vand.u32 2147483647, %v4254
    %vm4271 = vcmp.lt.f32.partialorder %v4270, 0.0004427343
    %v4272 = vsel %vm4271, %v4269, %v4266
    %v4273 = vadd.f32 %v4245, %v4263
    %v4274 = vadd.f32 %v4246, %v4272
    %v4275 = vsub.f32 %v4273, 0.6931472
    %v4276 = vsub.f32 %v4274, 0.6931472
    %v4277 = vld [vmem:[#allocation67] sm:$0xf]
    %v4278 = vld [vmem:[#allocation67 + $0x4] sm:$0xf]
    %v4279 = vld [vmem:[#allocation67 + $0x8] sm:$0xf]
    %v4280 = vld [vmem:[#allocation67 + $0xc] sm:$0xf]
    %v4281 = vld [vmem:[#allocation67 + $0x10] sm:$0xf]
    %v4282 = vld [vmem:[#allocation67 + $0x14] sm:$0xf]
    %v4283 = vld [vmem:[#allocation67 + $0x18] sm:$0xf]
    %v4284 = vld [vmem:[#allocation67 + $0x1c] sm:$0xf]
    %v4285 = vpack.c.bf16 %v4276, %v4275
    %v4286 = vld [vmem:[#allocation68] sm:$0x1]
    %v4288 = vlaneseq
    %v4289 = vshrl.u32 %v4288, 7
    %v4290 = vsub.s32 0, %v4289
    %v4291 = vrot.slane %v4286, %v4290
    %v4301 = vunpack.c.l.b16 %v4277
    %v4302 = vunpack.c.l.b16 %v4278
    %v4303 = vunpack.c.l.b16 %v4279
    %v4304 = vunpack.c.l.b16 %v4280
    %v4305 = vunpack.c.l.b16 %v4281
    %v4306 = vunpack.c.l.b16 %v4282
    %v4307 = vunpack.c.l.b16 %v4283
    %v4308 = vunpack.c.l.b16 %v4284
    %v4309 = vpack.c.b16 %v4302, %v4301
    %v4310 = vpack.c.b16 %v4304, %v4303
    %v4311 = vpack.c.b16 %v4306, %v4305
    %v4312 = vpack.c.b16 %v4308, %v4307
    %v4318 = vsel %vm1270, %v4285, 0
    %4320 = vmatprep.subr.bf16.mxu0 0
    %4321 = vmatpush1.bf16.msra.mxu0 %v4309
    %4322 = vmatprep.subr.bf16.mxu0 0
    %4323 = vmatpush1.bf16.msra.mxu0 %v4310
    %4324 = vmatprep.subr.bf16.mxu0 0
    %4325 = vmatpush1.bf16.msra.mxu0 %v4311
    %4326 = vmatprep.subr.bf16.mxu0 0
    %4327 = vmatpush1.bf16.msra.mxu0 %v4312
    %4328 = vmatprep.subr.bf16.mxu0 0
    %4329 = vmatpush1.bf16.msra.mxu0 0
    %4330 = vmatprep.subr.bf16.mxu0 0
    %4331 = vmatpush1.bf16.msra.mxu0 0
    %4332 = vmatprep.subr.bf16.mxu0 0
    %4333 = vmatpush1.bf16.msra.mxu0 0
    %4334 = vmatprep.subr.bf16.mxu0 0
    %4335 = vmatpush1.bf16.msra.mxu0 0
    %4336 = vmatprep.subr.bf16.mxu0 0
    %4337 = vmatpush1.bf16.msra.mxu0 0
    %4338 = vmatprep.subr.bf16.mxu0 0
    %4339 = vmatpush1.bf16.msra.mxu0 0
    %4340 = vmatprep.subr.bf16.mxu0 0
    %4341 = vmatpush1.bf16.msra.mxu0 0
    %4342 = vmatprep.subr.bf16.mxu0 0
    %4343 = vmatpush1.bf16.msra.mxu0 0
    %4344 = vmatprep.subr.bf16.mxu0 0
    %4345 = vmatpush1.bf16.msra.mxu0 0
    %4346 = vmatprep.subr.bf16.mxu0 0
    %4347 = vmatpush1.bf16.msra.mxu0 0
    %4348 = vmatprep.subr.bf16.mxu0 0
    %4349 = vmatpush1.bf16.msra.mxu0 0
    %4350 = vmatprep.subr.bf16.mxu0 0
    %4351 = vmatpush1.bf16.msra.mxu0 0
    %4352 = vmatprep.mubr.bf16.mxu0 0
    %4353 = vmatmul.mubr.bf16.gmra.mrb[0].mxu0 %v4318
    %v4354 = vpop.f32.mrb[0].mxu0
    %v4355 = vadd.f32 %v4291, %v4354
    %v4356 = vpop.f32.mrb[0].mxu0
    %v4357 = vpop.f32.mrb[0].mxu0
    %v4358 = vadd.f32 %v4291, %v4357
    %v4359 = vpop.f32.mrb[0].mxu0
    %4360 = vdwg.mxu0
    %v4361 = vmax.f32 %v4355, 0.0
    %v4362 = vmax.f32 %v4358, 0.0
    %v4363 = vand.u32 2147483647, %v4355
    %v4364 = vand.u32 2147483647, %v4358
    %v4365 = vsub.f32 0.0, %v4363
    %v4366 = vsub.f32 0.0, %v4364
    %v4367 = vmul.f32 %v4365, 1.442695
    %v4368 = vpow.pop %v4367
    %v4369 = vmul.f32 %v4366, 1.442695
    %v4370 = vpow.pop %v4369
    %v4371 = vadd.f32 %v4368, 1.0
    %v4372 = vlog2.pop %v4371
    %v4373 = vmul.f32 %v4372, 0.6931472
    %v4374 = vmul.f32 -0.5, %v4368
    %v4375 = vadd.f32 %v4374, 1.0
    %v4376 = vmul.f32 %v4375, %v4368
    %v4377 = vand.u32 2147483647, %v4368
    %vm4378 = vcmp.lt.f32.partialorder %v4377, 0.0004427343
    %v4379 = vsel %vm4378, %v4376, %v4373
    %v4380 = vadd.f32 %v4370, 1.0
    %v4381 = vlog2.pop %v4380
    %v4382 = vmul.f32 %v4381, 0.6931472
    %v4383 = vmul.f32 -0.5, %v4370
    %v4384 = vadd.f32 %v4383, 1.0
    %v4385 = vmul.f32 %v4384, %v4370
    %v4386 = vand.u32 2147483647, %v4370
    %vm4387 = vcmp.lt.f32.partialorder %v4386, 0.0004427343
    %v4388 = vsel %vm4387, %v4385, %v4382
    %v4389 = vadd.f32 %v4361, %v4379
    %v4390 = vadd.f32 %v4362, %v4388
    %v4391 = vsub.f32 %v4389, 0.6931472
    %v4392 = vsub.f32 %v4390, 0.6931472
    %v4393 = vpack.c.bf16 %v4392, %v4391
    %vm4394 = vcmask 80896
    %v4396 = vsel %vm4394, %v3700, 0
    %vm4398 = vcmask 1044480
    %v4400 = vsel %vm4398, %v4393, 0
    %4402 = vmatprep.subr.bf16.mxu0 0
    %4403 = vmatpush1.bf16.msra.mxu0 %v4400
    %4404 = vmatprep.subr.bf16.mxu0 0
    %4405 = vmatpush1.bf16.msra.mxu0 0
    %4406 = vmatprep.subr.bf16.mxu0 0
    %4407 = vmatpush1.bf16.msra.mxu0 0
    %4408 = vmatprep.subr.bf16.mxu0 0
    %4409 = vmatpush1.bf16.msra.mxu0 0
    %4410 = vmatprep.subr.bf16.mxu0 0
    %4411 = vmatpush1.bf16.msra.mxu0 0
    %4412 = vmatprep.subr.bf16.mxu0 0
    %4413 = vmatpush1.bf16.msra.mxu0 0
    %4414 = vmatprep.subr.bf16.mxu0 0
    %4415 = vmatpush1.bf16.msra.mxu0 0
    %4416 = vmatprep.subr.bf16.mxu0 0
    %4417 = vmatpush1.bf16.msra.mxu0 0
    %4418 = vmatprep.subr.bf16.mxu0 0
    %4419 = vmatpush1.bf16.msra.mxu0 0
    %4420 = vmatprep.subr.bf16.mxu0 0
    %4421 = vmatpush1.bf16.msra.mxu0 0
    %4422 = vmatprep.subr.bf16.mxu0 0
    %4423 = vmatpush1.bf16.msra.mxu0 0
    %4424 = vmatprep.subr.bf16.mxu0 0
    %4425 = vmatpush1.bf16.msra.mxu0 0
    %4426 = vmatprep.subr.bf16.mxu0 0
    %4427 = vmatpush1.bf16.msra.mxu0 0
    %4428 = vmatprep.subr.bf16.mxu0 0
    %4429 = vmatpush1.bf16.msra.mxu0 0
    %4430 = vmatprep.subr.bf16.mxu0 0
    %4431 = vmatpush1.bf16.msra.mxu0 0
    %4432 = vmatprep.subr.bf16.mxu0 0
    %4433 = vmatpush1.bf16.msra.mxu0 0
    %4434 = vmatprep.mubr.bf16.mxu0 0
    %4435 = vmatmul.mubr.bf16.gmra.mrb[0].mxu0 %v4396
    %v4436 = vpop.f32.mrb[0].mxu0
    %v4437 = vadd.f32 0.0, %v4436
    %v4438 = vpop.f32.mrb[0].mxu0
    %v4439 = vpop.f32.mrb[0].mxu0
    %v4440 = vpop.f32.mrb[0].mxu0
    %4441 = vdwg.mxu0
    %v4442 = vld [vmem:[#allocation79] sm:$0xf]
    %v4443 = vld [vmem:[#allocation79 + $0x4] sm:$0xf]
    %v4444 = vld [vmem:[#allocation79 + $0x8] sm:$0xf]
    %v4445 = vld [vmem:[#allocation79 + $0xc] sm:$0xf]
    %v4446 = vpack.c.bf16 %v4437, %v4437
    %v4447 = vld [vmem:[#allocation79 + $0x10] sm:$0xf]
    %v4448 = vld [vmem:[#allocation79 + $0x14] sm:$0xf]
    %v4449 = vld [vmem:[#allocation79 + $0x18] sm:$0xf]
    %v4450 = vld [vmem:[#allocation79 + $0x1c] sm:$0xf]
    %v4455 = vunpack.c.l.b16 %v4447
    %v4456 = vunpack.c.l.b16 %v4448
    %v4457 = vunpack.c.l.b16 %v4449
    %v4458 = vunpack.c.l.b16 %v4450
    %v4459 = vpack.c.b16 %v4456, %v4455
    %v4460 = vpack.c.b16 %v4458, %v4457
    %4463 = vmatprep.subr.bf16.mxu0 0
    %4464 = vmatpush1.bf16.msra.mxu0 %v4459
    %4465 = vmatprep.subr.bf16.mxu0 0
    %4466 = vmatpush1.bf16.msra.mxu0 %v4460
    %4467 = vmatprep.subr.bf16.mxu0 0
    %4468 = vmatpush1.bf16.msra.mxu0 0
    %4469 = vmatprep.subr.bf16.mxu0 0
    %4470 = vmatpush1.bf16.msra.mxu0 0
    %4471 = vmatprep.subr.bf16.mxu0 0
    %4472 = vmatpush1.bf16.msra.mxu0 0
    %4473 = vmatprep.subr.bf16.mxu0 0
    %4474 = vmatpush1.bf16.msra.mxu0 0
    %4475 = vmatprep.subr.bf16.mxu0 0
    %4476 = vmatpush1.bf16.msra.mxu0 0
    %4477 = vmatprep.subr.bf16.mxu0 0
    %4478 = vmatpush1.bf16.msra.mxu0 0
    %4479 = vmatprep.subr.bf16.mxu0 0
    %4480 = vmatpush1.bf16.msra.mxu0 0
    %4481 = vmatprep.subr.bf16.mxu0 0
    %4482 = vmatpush1.bf16.msra.mxu0 0
    %4483 = vmatprep.subr.bf16.mxu0 0
    %4484 = vmatpush1.bf16.msra.mxu0 0
    %4485 = vmatprep.subr.bf16.mxu0 0
    %4486 = vmatpush1.bf16.msra.mxu0 0
    %4487 = vmatprep.subr.bf16.mxu0 0
    %4488 = vmatpush1.bf16.msra.mxu0 0
    %4489 = vmatprep.subr.bf16.mxu0 0
    %4490 = vmatpush1.bf16.msra.mxu0 0
    %4491 = vmatprep.subr.bf16.mxu0 0
    %4492 = vmatpush1.bf16.msra.mxu0 0
    %4493 = vmatprep.subr.bf16.mxu0 0
    %4494 = vmatpush1.bf16.msra.mxu0 0
    %4495 = vmatprep.mubr.bf16.mxu0 0
    %4496 = vmatmul.mubr.bf16.gmra.mrb[0].mxu0 %v2806
    %v4497 = vpop.f32.mrb[0].mxu0
    %v4498 = vadd.f32 0.0, %v4497
    %v4499 = vpop.f32.mrb[0].mxu0
    %v4500 = vpop.f32.mrb[0].mxu0
    %v4501 = vpop.f32.mrb[0].mxu0
    %4502 = vdwg.mxu0
    %v4507 = vunpack.c.l.b16 %v4442
    %v4508 = vunpack.c.l.b16 %v4443
    %v4509 = vunpack.c.l.b16 %v4444
    %v4510 = vunpack.c.l.b16 %v4445
    %v4511 = vpack.c.b16 %v4508, %v4507
    %v4512 = vpack.c.b16 %v4510, %v4509
    %v4516 = vsel %vm1170, %v4446, 0
    %4518 = vmatprep.subr.bf16.mxu0 0
    %4519 = vmatpush1.bf16.msra.mxu0 %v4511
    %4520 = vmatprep.subr.bf16.mxu0 0
    %4521 = vmatpush1.bf16.msra.mxu0 %v4512
    %4522 = vmatprep.subr.bf16.mxu0 0
    %4523 = vmatpush1.bf16.msra.mxu0 0
    %4524 = vmatprep.subr.bf16.mxu0 0
    %4525 = vmatpush1.bf16.msra.mxu0 0
    %4526 = vmatprep.subr.bf16.mxu0 0
    %4527 = vmatpush1.bf16.msra.mxu0 0
    %4528 = vmatprep.subr.bf16.mxu0 0
    %4529 = vmatpush1.bf16.msra.mxu0 0
    %4530 = vmatprep.subr.bf16.mxu0 0
    %4531 = vmatpush1.bf16.msra.mxu0 0
    %4532 = vmatprep.subr.bf16.mxu0 0
    %4533 = vmatpush1.bf16.msra.mxu0 0
    %4534 = vmatprep.subr.bf16.mxu0 0
    %4535 = vmatpush1.bf16.msra.mxu0 0
    %4536 = vmatprep.subr.bf16.mxu0 0
    %4537 = vmatpush1.bf16.msra.mxu0 0
    %4538 = vmatprep.subr.bf16.mxu0 0
    %4539 = vmatpush1.bf16.msra.mxu0 0
    %4540 = vmatprep.subr.bf16.mxu0 0
    %4541 = vmatpush1.bf16.msra.mxu0 0
    %4542 = vmatprep.subr.bf16.mxu0 0
    %4543 = vmatpush1.bf16.msra.mxu0 0
    %4544 = vmatprep.subr.bf16.mxu0 0
    %4545 = vmatpush1.bf16.msra.mxu0 0
    %4546 = vmatprep.subr.bf16.mxu0 0
    %4547 = vmatpush1.bf16.msra.mxu0 0
    %4548 = vmatprep.subr.bf16.mxu0 0
    %4549 = vmatpush1.bf16.msra.mxu0 0
    %4550 = vmatprep.mubr.bf16.mxu0 0
    %4551 = vmatmul.mubr.bf16.gmra.mrb[0].mxu0 %v4516
    %v4552 = vpop.f32.mrb[0].mxu0
    %v4553 = vadd.f32 %v4498, %v4552
    %v4554 = vpop.f32.mrb[0].mxu0
    %v4555 = vpop.f32.mrb[0].mxu0
    %v4556 = vpop.f32.mrb[0].mxu0
    %4557 = vdwg.mxu0
    %v4558 = vld [vmem:[#allocation79 + $0x20] sm:$0xf]
    %v4559 = vld [vmem:[#allocation79 + $0x24] sm:$0xf]
    %v4560 = vld [vmem:[#allocation79 + $0x28] sm:$0xf]
    %v4561 = vld [vmem:[#allocation79 + $0x2c] sm:$0xf]
    %v4566 = vunpack.c.l.b16 %v4558
    %v4567 = vunpack.c.l.b16 %v4559
    %v4568 = vunpack.c.l.b16 %v4560
    %v4569 = vunpack.c.l.b16 %v4561
    %v4570 = vpack.c.b16 %v4567, %v4566
    %v4571 = vpack.c.b16 %v4569, %v4568
    %4574 = vmatprep.subr.bf16.mxu0 0
    %4575 = vmatpush1.bf16.msra.mxu0 %v4570
    %4576 = vmatprep.subr.bf16.mxu0 0
    %4577 = vmatpush1.bf16.msra.mxu0 %v4571
    %4578 = vmatprep.subr.bf16.mxu0 0
    %4579 = vmatpush1.bf16.msra.mxu0 0
    %4580 = vmatprep.subr.bf16.mxu0 0
    %4581 = vmatpush1.bf16.msra.mxu0 0
    %4582 = vmatprep.subr.bf16.mxu0 0
    %4583 = vmatpush1.bf16.msra.mxu0 0
    %4584 = vmatprep.subr.bf16.mxu0 0
    %4585 = vmatpush1.bf16.msra.mxu0 0
    %4586 = vmatprep.subr.bf16.mxu0 0
    %4587 = vmatpush1.bf16.msra.mxu0 0
    %4588 = vmatprep.subr.bf16.mxu0 0
    %4589 = vmatpush1.bf16.msra.mxu0 0
    %4590 = vmatprep.subr.bf16.mxu0 0
    %4591 = vmatpush1.bf16.msra.mxu0 0
    %4592 = vmatprep.subr.bf16.mxu0 0
    %4593 = vmatpush1.bf16.msra.mxu0 0
    %4594 = vmatprep.subr.bf16.mxu0 0
    %4595 = vmatpush1.bf16.msra.mxu0 0
    %4596 = vmatprep.subr.bf16.mxu0 0
    %4597 = vmatpush1.bf16.msra.mxu0 0
    %4598 = vmatprep.subr.bf16.mxu0 0
    %4599 = vmatpush1.bf16.msra.mxu0 0
    %4600 = vmatprep.subr.bf16.mxu0 0
    %4601 = vmatpush1.bf16.msra.mxu0 0
    %4602 = vmatprep.subr.bf16.mxu0 0
    %4603 = vmatpush1.bf16.msra.mxu0 0
    %4604 = vmatprep.subr.bf16.mxu0 0
    %4605 = vmatpush1.bf16.msra.mxu0 0
    %4606 = vmatprep.mubr.bf16.mxu0 0
    %4607 = vmatmul.mubr.bf16.gmra.mrb[0].mxu0 %v2921
    %v4608 = vpop.f32.mrb[0].mxu0
    %v4609 = vadd.f32 0.0, %v4608
    %v4610 = vpop.f32.mrb[0].mxu0
    %v4611 = vpop.f32.mrb[0].mxu0
    %v4612 = vpop.f32.mrb[0].mxu0
    %4613 = vdwg.mxu0
    %v4614 = vadd.f32 %v4553, %v4609
    %v4615 = vld [vmem:[#allocation80] sm:$0x1]
    %v4617 = vlaneseq
    %v4618 = vshrl.u32 %v4617, 7
    %v4619 = vsub.s32 0, %v4618
    %v4620 = vrot.slane %v4615, %v4619
    %v4622 = vadd.f32 %v4614, %v4620
    %v4623 = vmax.f32 %v4622, 0.0
    %v4624 = vand.u32 2147483647, %v4622
    %v4625 = vsub.f32 0.0, %v4624
    %v4626 = vmul.f32 %v4625, 1.442695
    %v4627 = vpow.pop %v4626
    %v4628 = vadd.f32 %v4627, 1.0
    %v4629 = vlog2.pop %v4628
    %v4630 = vmul.f32 %v4629, 0.6931472
    %v4631 = vmul.f32 -0.5, %v4627
    %v4632 = vadd.f32 %v4631, 1.0
    %v4633 = vmul.f32 %v4632, %v4627
    %v4634 = vand.u32 2147483647, %v4627
    %vm4635 = vcmp.lt.f32.partialorder %v4634, 0.0004427343
    %v4636 = vsel %vm4635, %v4633, %v4630
    %v4637 = vadd.f32 %v4623, %v4636
    %v4638 = vsub.f32 %v4637, 0.6931472
    %v4639 = vld [vmem:[#allocation82] sm:$0xf]
    %v4640 = vld [vmem:[#allocation82 + $0x4] sm:$0xf]
    %v4641 = vld [vmem:[#allocation82 + $0x8] sm:$0xf]
    %v4642 = vld [vmem:[#allocation82 + $0xc] sm:$0xf]
    %v4643 = vld [vmem:[#allocation82 + $0x10] sm:$0xf]
    %v4644 = vld [vmem:[#allocation82 + $0x14] sm:$0xf]
    %v4645 = vld [vmem:[#allocation82 + $0x18] sm:$0xf]
    %v4646 = vld [vmem:[#allocation82 + $0x1c] sm:$0xf]
    %v4647 = vpack.c.bf16 %v4638, %v4638
    %v4648 = vld [vmem:[#allocation83] sm:$0x1]
    %v4650 = vlaneseq
    %v4651 = vshrl.u32 %v4650, 7
    %v4652 = vsub.s32 0, %v4651
    %v4653 = vrot.slane %v4648, %v4652
    %v4663 = vunpack.c.l.b16 %v4639
    %v4664 = vunpack.c.l.b16 %v4640
    %v4665 = vunpack.c.l.b16 %v4641
    %v4666 = vunpack.c.l.b16 %v4642
    %v4667 = vunpack.c.l.b16 %v4643
    %v4668 = vunpack.c.l.b16 %v4644
    %v4669 = vunpack.c.l.b16 %v4645
    %v4670 = vunpack.c.l.b16 %v4646
    %v4671 = vpack.c.b16 %v4664, %v4663
    %v4672 = vpack.c.b16 %v4666, %v4665
    %v4673 = vpack.c.b16 %v4668, %v4667
    %v4674 = vpack.c.b16 %v4670, %v4669
    %v4680 = vsel %vm1270, %v4647, 0
    %4682 = vmatprep.subr.bf16.mxu0 0
    %4683 = vmatpush1.bf16.msra.mxu0 %v4671
    %4684 = vmatprep.subr.bf16.mxu0 0
    %4685 = vmatpush1.bf16.msra.mxu0 %v4672
    %4686 = vmatprep.subr.bf16.mxu0 0
    %4687 = vmatpush1.bf16.msra.mxu0 %v4673
    %4688 = vmatprep.subr.bf16.mxu0 0
    %4689 = vmatpush1.bf16.msra.mxu0 %v4674
    %4690 = vmatprep.subr.bf16.mxu0 0
    %4691 = vmatpush1.bf16.msra.mxu0 0
    %4692 = vmatprep.subr.bf16.mxu0 0
    %4693 = vmatpush1.bf16.msra.mxu0 0
    %4694 = vmatprep.subr.bf16.mxu0 0
    %4695 = vmatpush1.bf16.msra.mxu0 0
    %4696 = vmatprep.subr.bf16.mxu0 0
    %4697 = vmatpush1.bf16.msra.mxu0 0
    %4698 = vmatprep.subr.bf16.mxu0 0
    %4699 = vmatpush1.bf16.msra.mxu0 0
    %4700 = vmatprep.subr.bf16.mxu0 0
    %4701 = vmatpush1.bf16.msra.mxu0 0
    %4702 = vmatprep.subr.bf16.mxu0 0
    %4703 = vmatpush1.bf16.msra.mxu0 0
    %4704 = vmatprep.subr.bf16.mxu0 0
    %4705 = vmatpush1.bf16.msra.mxu0 0
    %4706 = vmatprep.subr.bf16.mxu0 0
    %4707 = vmatpush1.bf16.msra.mxu0 0
    %4708 = vmatprep.subr.bf16.mxu0 0
    %4709 = vmatpush1.bf16.msra.mxu0 0
    %4710 = vmatprep.subr.bf16.mxu0 0
    %4711 = vmatpush1.bf16.msra.mxu0 0
    %4712 = vmatprep.subr.bf16.mxu0 0
    %4713 = vmatpush1.bf16.msra.mxu0 0
    %4714 = vmatprep.mubr.bf16.mxu0 0
    %4715 = vmatmul.mubr.bf16.gmra.mrb[0].mxu0 %v4680
    %v4716 = vpop.f32.mrb[0].mxu0
    %v4717 = vadd.f32 %v4653, %v4716
    %v4718 = vpop.f32.mrb[0].mxu0
    %v4719 = vpop.f32.mrb[0].mxu0
    %v4720 = vpop.f32.mrb[0].mxu0
    %4721 = vdwg.mxu0
    %v4722 = vmax.f32 %v4717, 0.0
    %v4723 = vand.u32 2147483647, %v4717
    %v4724 = vsub.f32 0.0, %v4723
    %v4725 = vmul.f32 %v4724, 1.442695
    %v4726 = vpow.pop %v4725
    %v4727 = vadd.f32 %v4726, 1.0
    %v4728 = vlog2.pop %v4727
    %v4729 = vmul.f32 %v4728, 0.6931472
    %v4730 = vmul.f32 -0.5, %v4726
    %v4731 = vadd.f32 %v4730, 1.0
    %v4732 = vmul.f32 %v4731, %v4726
    %v4733 = vand.u32 2147483647, %v4726
    %vm4734 = vcmp.lt.f32.partialorder %v4733, 0.0004427343
    %v4735 = vsel %vm4734, %v4732, %v4729
    %v4736 = vadd.f32 %v4722, %v4735
    %v4737 = vsub.f32 %v4736, 0.6931472
    %v4738 = vld [vmem:[#allocation85] sm:$0xf]
    %v4739 = vld [vmem:[#allocation85 + $0x4] sm:$0xf]
    %v4740 = vld [vmem:[#allocation85 + $0x8] sm:$0xf]
    %v4741 = vld [vmem:[#allocation85 + $0xc] sm:$0xf]
    %v4742 = vld [vmem:[#allocation85 + $0x10] sm:$0xf]
    %v4743 = vld [vmem:[#allocation85 + $0x14] sm:$0xf]
    %v4744 = vld [vmem:[#allocation85 + $0x18] sm:$0xf]
    %v4745 = vld [vmem:[#allocation85 + $0x1c] sm:$0xf]
    %v4746 = vpack.c.bf16 %v4737, %v4737
    %v4747 = vld [vmem:[#allocation86] sm:$0x1]
    %v4749 = vlaneseq
    %v4750 = vshrl.u32 %v4749, 7
    %v4751 = vsub.s32 0, %v4750
    %v4752 = vrot.slane %v4747, %v4751
    %v4762 = vunpack.c.l.b16 %v4738
    %v4763 = vunpack.c.l.b16 %v4739
    %v4764 = vunpack.c.l.b16 %v4740
    %v4765 = vunpack.c.l.b16 %v4741
    %v4766 = vunpack.c.l.b16 %v4742
    %v4767 = vunpack.c.l.b16 %v4743
    %v4768 = vunpack.c.l.b16 %v4744
    %v4769 = vunpack.c.l.b16 %v4745
    %v4770 = vpack.c.b16 %v4763, %v4762
    %v4771 = vpack.c.b16 %v4765, %v4764
    %v4772 = vpack.c.b16 %v4767, %v4766
    %v4773 = vpack.c.b16 %v4769, %v4768
    %v4779 = vsel %vm1270, %v4746, 0
    %4781 = vmatprep.subr.bf16.mxu0 0
    %4782 = vmatpush1.bf16.msra.mxu0 %v4770
    %4783 = vmatprep.subr.bf16.mxu0 0
    %4784 = vmatpush1.bf16.msra.mxu0 %v4771
    %4785 = vmatprep.subr.bf16.mxu0 0
    %4786 = vmatpush1.bf16.msra.mxu0 %v4772
    %4787 = vmatprep.subr.bf16.mxu0 0
    %4788 = vmatpush1.bf16.msra.mxu0 %v4773
    %4789 = vmatprep.subr.bf16.mxu0 0
    %4790 = vmatpush1.bf16.msra.mxu0 0
    %4791 = vmatprep.subr.bf16.mxu0 0
    %4792 = vmatpush1.bf16.msra.mxu0 0
    %4793 = vmatprep.subr.bf16.mxu0 0
    %4794 = vmatpush1.bf16.msra.mxu0 0
    %4795 = vmatprep.subr.bf16.mxu0 0
    %4796 = vmatpush1.bf16.msra.mxu0 0
    %4797 = vmatprep.subr.bf16.mxu0 0
    %4798 = vmatpush1.bf16.msra.mxu0 0
    %4799 = vmatprep.subr.bf16.mxu0 0
    %4800 = vmatpush1.bf16.msra.mxu0 0
    %4801 = vmatprep.subr.bf16.mxu0 0
    %4802 = vmatpush1.bf16.msra.mxu0 0
    %4803 = vmatprep.subr.bf16.mxu0 0
    %4804 = vmatpush1.bf16.msra.mxu0 0
    %4805 = vmatprep.subr.bf16.mxu0 0
    %4806 = vmatpush1.bf16.msra.mxu0 0
    %4807 = vmatprep.subr.bf16.mxu0 0
    %4808 = vmatpush1.bf16.msra.mxu0 0
    %4809 = vmatprep.subr.bf16.mxu0 0
    %4810 = vmatpush1.bf16.msra.mxu0 0
    %4811 = vmatprep.subr.bf16.mxu0 0
    %4812 = vmatpush1.bf16.msra.mxu0 0
    %4813 = vmatprep.mubr.bf16.mxu0 0
    %4814 = vmatmul.mubr.bf16.gmra.mrb[0].mxu0 %v4779
    %v4815 = vpop.f32.mrb[0].mxu0
    %v4816 = vadd.f32 %v4752, %v4815
    %v4817 = vpop.f32.mrb[0].mxu0
    %v4818 = vpop.f32.mrb[0].mxu0
    %v4819 = vpop.f32.mrb[0].mxu0
    %4820 = vdwg.mxu0
    %v4821 = vmax.f32 %v4816, 0.0
    %v4822 = vand.u32 2147483647, %v4816
    %v4823 = vsub.f32 0.0, %v4822
    %v4824 = vmul.f32 %v4823, 1.442695
    %v4825 = vpow.pop %v4824
    %v4826 = vadd.f32 %v4825, 1.0
    %v4827 = vlog2.pop %v4826
    %v4828 = vmul.f32 %v4827, 0.6931472
    %v4829 = vmul.f32 -0.5, %v4825
    %v4830 = vadd.f32 %v4829, 1.0
    %v4831 = vmul.f32 %v4830, %v4825
    %v4832 = vand.u32 2147483647, %v4825
    %vm4833 = vcmp.lt.f32.partialorder %v4832, 0.0004427343
    %v4834 = vsel %vm4833, %v4831, %v4828
    %v4835 = vadd.f32 %v4821, %v4834
    %v4836 = vsub.f32 %v4835, 0.6931472
    %v4838 = vsel %vm4394, %v3739, 0
    %4840 = vmatprep.subr.bf16.mxu0 0
    %4841 = vmatpush1.bf16.msra.mxu0 %v4400
    %4842 = vmatprep.subr.bf16.mxu0 0
    %4843 = vmatpush1.bf16.msra.mxu0 0
    %4844 = vmatprep.subr.bf16.mxu0 0
    %4845 = vmatpush1.bf16.msra.mxu0 0
    %4846 = vmatprep.subr.bf16.mxu0 0
    %4847 = vmatpush1.bf16.msra.mxu0 0
    %4848 = vmatprep.subr.bf16.mxu0 0
    %4849 = vmatpush1.bf16.msra.mxu0 0
    %4850 = vmatprep.subr.bf16.mxu0 0
    %4851 = vmatpush1.bf16.msra.mxu0 0
    %4852 = vmatprep.subr.bf16.mxu0 0
    %4853 = vmatpush1.bf16.msra.mxu0 0
    %4854 = vmatprep.subr.bf16.mxu0 0
    %4855 = vmatpush1.bf16.msra.mxu0 0
    %4856 = vmatprep.subr.bf16.mxu0 0
    %4857 = vmatpush1.bf16.msra.mxu0 0
    %4858 = vmatprep.subr.bf16.mxu0 0
    %4859 = vmatpush1.bf16.msra.mxu0 0
    %4860 = vmatprep.subr.bf16.mxu0 0
    %4861 = vmatpush1.bf16.msra.mxu0 0
    %4862 = vmatprep.subr.bf16.mxu0 0
    %4863 = vmatpush1.bf16.msra.mxu0 0
    %4864 = vmatprep.subr.bf16.mxu0 0
    %4865 = vmatpush1.bf16.msra.mxu0 0
    %4866 = vmatprep.subr.bf16.mxu0 0
    %4867 = vmatpush1.bf16.msra.mxu0 0
    %4868 = vmatprep.subr.bf16.mxu0 0
    %4869 = vmatpush1.bf16.msra.mxu0 0
    %4870 = vmatprep.subr.bf16.mxu0 0
    %4871 = vmatpush1.bf16.msra.mxu0 0
    %4872 = vmatprep.mubr.bf16.mxu0 0
    %4873 = vmatmul.mubr.bf16.gmra.mrb[0].mxu0 %v4838
    %v4874 = vpop.f32.mrb[0].mxu0
    %v4875 = vadd.f32 0.0, %v4874
    %v4876 = vpop.f32.mrb[0].mxu0
    %v4877 = vpop.f32.mrb[0].mxu0
    %v4878 = vpop.f32.mrb[0].mxu0
    %4879 = vdwg.mxu0
    %v4880 = vpack.c.bf16 %v4836, %v4836
    %v4882 = vsel %vm2082, %v4880, 0
    %4884 = vmatprep.subr.bf16.mxu0 0
    %4885 = vmatpush1.bf16.msra.mxu0 %v4882
    %4886 = vmatprep.subr.bf16.mxu0 0
    %4887 = vmatpush1.bf16.msra.mxu0 0
    %4888 = vmatprep.subr.bf16.mxu0 0
    %4889 = vmatpush1.bf16.msra.mxu0 0
    %4890 = vmatprep.subr.bf16.mxu0 0
    %4891 = vmatpush1.bf16.msra.mxu0 0
    %4892 = vmatprep.subr.bf16.mxu0 0
    %4893 = vmatpush1.bf16.msra.mxu0 0
    %4894 = vmatprep.subr.bf16.mxu0 0
    %4895 = vmatpush1.bf16.msra.mxu0 0
    %4896 = vmatprep.subr.bf16.mxu0 0
    %4897 = vmatpush1.bf16.msra.mxu0 0
    %4898 = vmatprep.subr.bf16.mxu0 0
    %4899 = vmatpush1.bf16.msra.mxu0 0
    %4900 = vmatprep.subr.bf16.mxu0 0
    %4901 = vmatpush1.bf16.msra.mxu0 0
    %4902 = vmatprep.subr.bf16.mxu0 0
    %4903 = vmatpush1.bf16.msra.mxu0 0
    %4904 = vmatprep.subr.bf16.mxu0 0
    %4905 = vmatpush1.bf16.msra.mxu0 0
    %4906 = vmatprep.subr.bf16.mxu0 0
    %4907 = vmatpush1.bf16.msra.mxu0 0
    %4908 = vmatprep.subr.bf16.mxu0 0
    %4909 = vmatpush1.bf16.msra.mxu0 0
    %4910 = vmatprep.subr.bf16.mxu0 0
    %4911 = vmatpush1.bf16.msra.mxu0 0
    %4912 = vmatprep.subr.bf16.mxu0 0
    %4913 = vmatpush1.bf16.msra.mxu0 0
    %4914 = vmatprep.subr.bf16.mxu0 0
    %4915 = vmatpush1.bf16.msra.mxu0 0
    %4916 = vmatprep.mubr.bf16.mxu0 0
    %4917 = vmatmul.mubr.bf16.gmra.mrb[0].mxu0 %v3231
    %v4918 = vpop.f32.mrb[0].mxu0
    %v4919 = vadd.f32 0.0, %v4918
    %v4920 = vpop.f32.mrb[0].mxu0
    %v4921 = vpop.f32.mrb[0].mxu0
    %v4922 = vpop.f32.mrb[0].mxu0
    %4923 = vdwg.mxu0
    %v4924 = vld [vmem:[#allocation97] sm:$0xf]
    %v4925 = vld [vmem:[#allocation97 + $0x4] sm:$0xf]
    %v4926 = vld [vmem:[#allocation97 + $0x8] sm:$0xf]
    %v4927 = vld [vmem:[#allocation97 + $0xc] sm:$0xf]
    %v4928 = vpack.c.bf16 %v4875, %v4875
    %v4929 = vld [vmem:[#allocation97 + $0x10] sm:$0xf]
    %v4930 = vld [vmem:[#allocation97 + $0x14] sm:$0xf]
    %v4931 = vld [vmem:[#allocation97 + $0x18] sm:$0xf]
    %v4932 = vld [vmem:[#allocation97 + $0x1c] sm:$0xf]
    %v4933 = vpack.c.bf16 %v4919, %v4919
    %v4938 = vunpack.c.l.b16 %v4929
    %v4939 = vunpack.c.l.b16 %v4930
    %v4940 = vunpack.c.l.b16 %v4931
    %v4941 = vunpack.c.l.b16 %v4932
    %v4942 = vpack.c.b16 %v4939, %v4938
    %v4943 = vpack.c.b16 %v4941, %v4940
    %v4947 = vsel %vm1170, %v4933, 0
    %4949 = vmatprep.subr.bf16.mxu0 0
    %4950 = vmatpush1.bf16.msra.mxu0 %v4942
    %4951 = vmatprep.subr.bf16.mxu0 0
    %4952 = vmatpush1.bf16.msra.mxu0 %v4943
    %4953 = vmatprep.subr.bf16.mxu0 0
    %4954 = vmatpush1.bf16.msra.mxu0 0
    %4955 = vmatprep.subr.bf16.mxu0 0
    %4956 = vmatpush1.bf16.msra.mxu0 0
    %4957 = vmatprep.subr.bf16.mxu0 0
    %4958 = vmatpush1.bf16.msra.mxu0 0
    %4959 = vmatprep.subr.bf16.mxu0 0
    %4960 = vmatpush1.bf16.msra.mxu0 0
    %4961 = vmatprep.subr.bf16.mxu0 0
    %4962 = vmatpush1.bf16.msra.mxu0 0
    %4963 = vmatprep.subr.bf16.mxu0 0
    %4964 = vmatpush1.bf16.msra.mxu0 0
    %4965 = vmatprep.subr.bf16.mxu0 0
    %4966 = vmatpush1.bf16.msra.mxu0 0
    %4967 = vmatprep.subr.bf16.mxu0 0
    %4968 = vmatpush1.bf16.msra.mxu0 0
    %4969 = vmatprep.subr.bf16.mxu0 0
    %4970 = vmatpush1.bf16.msra.mxu0 0
    %4971 = vmatprep.subr.bf16.mxu0 0
    %4972 = vmatpush1.bf16.msra.mxu0 0
    %4973 = vmatprep.subr.bf16.mxu0 0
    %4974 = vmatpush1.bf16.msra.mxu0 0
    %4975 = vmatprep.subr.bf16.mxu0 0
    %4976 = vmatpush1.bf16.msra.mxu0 0
    %4977 = vmatprep.subr.bf16.mxu0 0
    %4978 = vmatpush1.bf16.msra.mxu0 0
    %4979 = vmatprep.subr.bf16.mxu0 0
    %4980 = vmatpush1.bf16.msra.mxu0 0
    %4981 = vmatprep.mubr.bf16.mxu0 0
    %4982 = vmatmul.mubr.bf16.gmra.mrb[0].mxu0 %v4947
    %v4983 = vpop.f32.mrb[0].mxu0
    %v4984 = vadd.f32 0.0, %v4983
    %v4985 = vpop.f32.mrb[0].mxu0
    %v4986 = vpop.f32.mrb[0].mxu0
    %v4987 = vpop.f32.mrb[0].mxu0
    %4988 = vdwg.mxu0
    %v4993 = vunpack.c.l.b16 %v4924
    %v4994 = vunpack.c.l.b16 %v4925
    %v4995 = vunpack.c.l.b16 %v4926
    %v4996 = vunpack.c.l.b16 %v4927
    %v4997 = vpack.c.b16 %v4994, %v4993
    %v4998 = vpack.c.b16 %v4996, %v4995
    %v5002 = vsel %vm1170, %v4928, 0
    %5004 = vmatprep.subr.bf16.mxu0 0
    %5005 = vmatpush1.bf16.msra.mxu0 %v4997
    %5006 = vmatprep.subr.bf16.mxu0 0
    %5007 = vmatpush1.bf16.msra.mxu0 %v4998
    %5008 = vmatprep.subr.bf16.mxu0 0
    %5009 = vmatpush1.bf16.msra.mxu0 0
    %5010 = vmatprep.subr.bf16.mxu0 0
    %5011 = vmatpush1.bf16.msra.mxu0 0
    %5012 = vmatprep.subr.bf16.mxu0 0
    %5013 = vmatpush1.bf16.msra.mxu0 0
    %5014 = vmatprep.subr.bf16.mxu0 0
    %5015 = vmatpush1.bf16.msra.mxu0 0
    %5016 = vmatprep.subr.bf16.mxu0 0
    %5017 = vmatpush1.bf16.msra.mxu0 0
    %5018 = vmatprep.subr.bf16.mxu0 0
    %5019 = vmatpush1.bf16.msra.mxu0 0
    %5020 = vmatprep.subr.bf16.mxu0 0
    %5021 = vmatpush1.bf16.msra.mxu0 0
    %5022 = vmatprep.subr.bf16.mxu0 0
    %5023 = vmatpush1.bf16.msra.mxu0 0
    %5024 = vmatprep.subr.bf16.mxu0 0
    %5025 = vmatpush1.bf16.msra.mxu0 0
    %5026 = vmatprep.subr.bf16.mxu0 0
    %5027 = vmatpush1.bf16.msra.mxu0 0
    %5028 = vmatprep.subr.bf16.mxu0 0
    %5029 = vmatpush1.bf16.msra.mxu0 0
    %5030 = vmatprep.subr.bf16.mxu0 0
    %5031 = vmatpush1.bf16.msra.mxu0 0
    %5032 = vmatprep.subr.bf16.mxu0 0
    %5033 = vmatpush1.bf16.msra.mxu0 0
    %5034 = vmatprep.subr.bf16.mxu0 0
    %5035 = vmatpush1.bf16.msra.mxu0 0
    %5036 = vmatprep.mubr.bf16.mxu0 0
    %5037 = vmatmul.mubr.bf16.gmra.mrb[0].mxu0 %v5002
    %v5038 = vpop.f32.mrb[0].mxu0
    %v5039 = vadd.f32 %v4984, %v5038
    %v5040 = vpop.f32.mrb[0].mxu0
    %v5041 = vpop.f32.mrb[0].mxu0
    %v5042 = vpop.f32.mrb[0].mxu0
    %5043 = vdwg.mxu0
    %v5044 = vld [vmem:[#allocation97 + $0x20] sm:$0xf]
    %v5045 = vld [vmem:[#allocation97 + $0x24] sm:$0xf]
    %v5046 = vld [vmem:[#allocation97 + $0x28] sm:$0xf]
    %v5047 = vld [vmem:[#allocation97 + $0x2c] sm:$0xf]
    %v5052 = vunpack.c.l.b16 %v5044
    %v5053 = vunpack.c.l.b16 %v5045
    %v5054 = vunpack.c.l.b16 %v5046
    %v5055 = vunpack.c.l.b16 %v5047
    %v5056 = vpack.c.b16 %v5053, %v5052
    %v5057 = vpack.c.b16 %v5055, %v5054
    %5060 = vmatprep.subr.bf16.mxu0 0
    %5061 = vmatpush1.bf16.msra.mxu0 %v5056
    %5062 = vmatprep.subr.bf16.mxu0 0
    %5063 = vmatpush1.bf16.msra.mxu0 %v5057
    %5064 = vmatprep.subr.bf16.mxu0 0
    %5065 = vmatpush1.bf16.msra.mxu0 0
    %5066 = vmatprep.subr.bf16.mxu0 0
    %5067 = vmatpush1.bf16.msra.mxu0 0
    %5068 = vmatprep.subr.bf16.mxu0 0
    %5069 = vmatpush1.bf16.msra.mxu0 0
    %5070 = vmatprep.subr.bf16.mxu0 0
    %5071 = vmatpush1.bf16.msra.mxu0 0
    %5072 = vmatprep.subr.bf16.mxu0 0
    %5073 = vmatpush1.bf16.msra.mxu0 0
    %5074 = vmatprep.subr.bf16.mxu0 0
    %5075 = vmatpush1.bf16.msra.mxu0 0
    %5076 = vmatprep.subr.bf16.mxu0 0
    %5077 = vmatpush1.bf16.msra.mxu0 0
    %5078 = vmatprep.subr.bf16.mxu0 0
    %5079 = vmatpush1.bf16.msra.mxu0 0
    %5080 = vmatprep.subr.bf16.mxu0 0
    %5081 = vmatpush1.bf16.msra.mxu0 0
    %5082 = vmatprep.subr.bf16.mxu0 0
    %5083 = vmatpush1.bf16.msra.mxu0 0
    %5084 = vmatprep.subr.bf16.mxu0 0
    %5085 = vmatpush1.bf16.msra.mxu0 0
    %5086 = vmatprep.subr.bf16.mxu0 0
    %5087 = vmatpush1.bf16.msra.mxu0 0
    %5088 = vmatprep.subr.bf16.mxu0 0
    %5089 = vmatpush1.bf16.msra.mxu0 0
    %5090 = vmatprep.subr.bf16.mxu0 0
    %5091 = vmatpush1.bf16.msra.mxu0 0
    %5092 = vmatprep.mubr.bf16.mxu0 0
    %5093 = vmatmul.mubr.bf16.gmra.mrb[0].mxu0 %v3412
    %v5094 = vpop.f32.mrb[0].mxu0
    %v5095 = vadd.f32 0.0, %v5094
    %v5096 = vpop.f32.mrb[0].mxu0
    %v5097 = vpop.f32.mrb[0].mxu0
    %v5098 = vpop.f32.mrb[0].mxu0
    %5099 = vdwg.mxu0
    %v5100 = vadd.f32 %v5039, %v5095
    %v5101 = vld [vmem:[#allocation98] sm:$0x1]
    %v5103 = vlaneseq
    %v5104 = vshrl.u32 %v5103, 7
    %v5105 = vsub.s32 0, %v5104
    %v5106 = vrot.slane %v5101, %v5105
    %v5108 = vadd.f32 %v5100, %v5106
    %v5109 = vmax.f32 %v5108, 0.0
    %v5110 = vand.u32 2147483647, %v5108
    %v5111 = vsub.f32 0.0, %v5110
    %v5112 = vmul.f32 %v5111, 1.442695
    %v5113 = vpow.pop %v5112
    %v5114 = vadd.f32 %v5113, 1.0
    %v5115 = vlog2.pop %v5114
    %v5116 = vmul.f32 %v5115, 0.6931472
    %v5117 = vmul.f32 -0.5, %v5113
    %v5118 = vadd.f32 %v5117, 1.0
    %v5119 = vmul.f32 %v5118, %v5113
    %v5120 = vand.u32 2147483647, %v5113
    %vm5121 = vcmp.lt.f32.partialorder %v5120, 0.0004427343
    %v5122 = vsel %vm5121, %v5119, %v5116
    %v5123 = vadd.f32 %v5109, %v5122
    %v5124 = vsub.f32 %v5123, 0.6931472
    %v5125 = vld [vmem:[#allocation100] sm:$0xf]
    %v5126 = vld [vmem:[#allocation100 + $0x4] sm:$0xf]
    %v5127 = vld [vmem:[#allocation100 + $0x8] sm:$0xf]
    %v5128 = vld [vmem:[#allocation100 + $0xc] sm:$0xf]
    %v5129 = vld [vmem:[#allocation100 + $0x10] sm:$0xf]
    %v5130 = vld [vmem:[#allocation100 + $0x14] sm:$0xf]
    %v5131 = vld [vmem:[#allocation100 + $0x18] sm:$0xf]
    %v5132 = vld [vmem:[#allocation100 + $0x1c] sm:$0xf]
    %v5133 = vpack.c.bf16 %v5124, %v5124
    %v5134 = vld [vmem:[#allocation101] sm:$0x1]
    %v5136 = vlaneseq
    %v5137 = vshrl.u32 %v5136, 7
    %v5138 = vsub.s32 0, %v5137
    %v5139 = vrot.slane %v5134, %v5138
    %v5149 = vunpack.c.l.b16 %v5125
    %v5150 = vunpack.c.l.b16 %v5126
    %v5151 = vunpack.c.l.b16 %v5127
    %v5152 = vunpack.c.l.b16 %v5128
    %v5153 = vunpack.c.l.b16 %v5129
    %v5154 = vunpack.c.l.b16 %v5130
    %v5155 = vunpack.c.l.b16 %v5131
    %v5156 = vunpack.c.l.b16 %v5132
    %v5157 = vpack.c.b16 %v5150, %v5149
    %v5158 = vpack.c.b16 %v5152, %v5151
    %v5159 = vpack.c.b16 %v5154, %v5153
    %v5160 = vpack.c.b16 %v5156, %v5155
    %v5166 = vsel %vm1270, %v5133, 0
    %5168 = vmatprep.subr.bf16.mxu0 0
    %5169 = vmatpush1.bf16.msra.mxu0 %v5157
    %5170 = vmatprep.subr.bf16.mxu0 0
    %5171 = vmatpush1.bf16.msra.mxu0 %v5158
    %5172 = vmatprep.subr.bf16.mxu0 0
    %5173 = vmatpush1.bf16.msra.mxu0 %v5159
    %5174 = vmatprep.subr.bf16.mxu0 0
    %5175 = vmatpush1.bf16.msra.mxu0 %v5160
    %5176 = vmatprep.subr.bf16.mxu0 0
    %5177 = vmatpush1.bf16.msra.mxu0 0
    %5178 = vmatprep.subr.bf16.mxu0 0
    %5179 = vmatpush1.bf16.msra.mxu0 0
    %5180 = vmatprep.subr.bf16.mxu0 0
    %5181 = vmatpush1.bf16.msra.mxu0 0
    %5182 = vmatprep.subr.bf16.mxu0 0
    %5183 = vmatpush1.bf16.msra.mxu0 0
    %5184 = vmatprep.subr.bf16.mxu0 0
    %5185 = vmatpush1.bf16.msra.mxu0 0
    %5186 = vmatprep.subr.bf16.mxu0 0
    %5187 = vmatpush1.bf16.msra.mxu0 0
    %5188 = vmatprep.subr.bf16.mxu0 0
    %5189 = vmatpush1.bf16.msra.mxu0 0
    %5190 = vmatprep.subr.bf16.mxu0 0
    %5191 = vmatpush1.bf16.msra.mxu0 0
    %5192 = vmatprep.subr.bf16.mxu0 0
    %5193 = vmatpush1.bf16.msra.mxu0 0
    %5194 = vmatprep.subr.bf16.mxu0 0
    %5195 = vmatpush1.bf16.msra.mxu0 0
    %5196 = vmatprep.subr.bf16.mxu0 0
    %5197 = vmatpush1.bf16.msra.mxu0 0
    %5198 = vmatprep.subr.bf16.mxu0 0
    %5199 = vmatpush1.bf16.msra.mxu0 0
    %5200 = vmatprep.mubr.bf16.mxu0 0
    %5201 = vmatmul.mubr.bf16.gmra.mrb[0].mxu0 %v5166
    %v5202 = vpop.f32.mrb[0].mxu0
    %v5203 = vadd.f32 %v5139, %v5202
    %v5204 = vpop.f32.mrb[0].mxu0
    %v5205 = vpop.f32.mrb[0].mxu0
    %v5206 = vpop.f32.mrb[0].mxu0
    %5207 = vdwg.mxu0
    %v5208 = vmax.f32 %v5203, 0.0
    %v5209 = vand.u32 2147483647, %v5203
    %v5210 = vsub.f32 0.0, %v5209
    %v5211 = vmul.f32 %v5210, 1.442695
    %v5212 = vpow.pop %v5211
    %v5213 = vadd.f32 %v5212, 1.0
    %v5214 = vlog2.pop %v5213
    %v5215 = vmul.f32 %v5214, 0.6931472
    %v5216 = vmul.f32 -0.5, %v5212
    %v5217 = vadd.f32 %v5216, 1.0
    %v5218 = vmul.f32 %v5217, %v5212
    %v5219 = vand.u32 2147483647, %v5212
    %vm5220 = vcmp.lt.f32.partialorder %v5219, 0.0004427343
    %v5221 = vsel %vm5220, %v5218, %v5215
    %v5222 = vadd.f32 %v5208, %v5221
    %v5223 = vsub.f32 %v5222, 0.6931472
    %v5224 = vld [vmem:[#allocation103] sm:$0xf]
    %v5225 = vld [vmem:[#allocation103 + $0x4] sm:$0xf]
    %v5226 = vld [vmem:[#allocation103 + $0x8] sm:$0xf]
    %v5227 = vld [vmem:[#allocation103 + $0xc] sm:$0xf]
    %v5228 = vld [vmem:[#allocation103 + $0x10] sm:$0xf]
    %v5229 = vld [vmem:[#allocation103 + $0x14] sm:$0xf]
    %v5230 = vld [vmem:[#allocation103 + $0x18] sm:$0xf]
    %v5231 = vld [vmem:[#allocation103 + $0x1c] sm:$0xf]
    %v5232 = vpack.c.bf16 %v5223, %v5223
    %v5233 = vld [vmem:[#allocation104] sm:$0x1]
    %v5235 = vlaneseq
    %v5236 = vshrl.u32 %v5235, 7
    %v5237 = vsub.s32 0, %v5236
    %v5238 = vrot.slane %v5233, %v5237
    %v5248 = vunpack.c.l.b16 %v5224
    %v5249 = vunpack.c.l.b16 %v5225
    %v5250 = vunpack.c.l.b16 %v5226
    %v5251 = vunpack.c.l.b16 %v5227
    %v5252 = vunpack.c.l.b16 %v5228
    %v5253 = vunpack.c.l.b16 %v5229
    %v5254 = vunpack.c.l.b16 %v5230
    %v5255 = vunpack.c.l.b16 %v5231
    %v5256 = vpack.c.b16 %v5249, %v5248
    %v5257 = vpack.c.b16 %v5251, %v5250
    %v5258 = vpack.c.b16 %v5253, %v5252
    %v5259 = vpack.c.b16 %v5255, %v5254
    %v5265 = vsel %vm1270, %v5232, 0
    %5267 = vmatprep.subr.bf16.mxu0 0
    %5268 = vmatpush1.bf16.msra.mxu0 %v5256
    %5269 = vmatprep.subr.bf16.mxu0 0
    %5270 = vmatpush1.bf16.msra.mxu0 %v5257
    %5271 = vmatprep.subr.bf16.mxu0 0
    %5272 = vmatpush1.bf16.msra.mxu0 %v5258
    %5273 = vmatprep.subr.bf16.mxu0 0
    %5274 = vmatpush1.bf16.msra.mxu0 %v5259
    %5275 = vmatprep.subr.bf16.mxu0 0
    %5276 = vmatpush1.bf16.msra.mxu0 0
    %5277 = vmatprep.subr.bf16.mxu0 0
    %5278 = vmatpush1.bf16.msra.mxu0 0
    %5279 = vmatprep.subr.bf16.mxu0 0
    %5280 = vmatpush1.bf16.msra.mxu0 0
    %5281 = vmatprep.subr.bf16.mxu0 0
    %5282 = vmatpush1.bf16.msra.mxu0 0
    %5283 = vmatprep.subr.bf16.mxu0 0
    %5284 = vmatpush1.bf16.msra.mxu0 0
    %5285 = vmatprep.subr.bf16.mxu0 0
    %5286 = vmatpush1.bf16.msra.mxu0 0
    %5287 = vmatprep.subr.bf16.mxu0 0
    %5288 = vmatpush1.bf16.msra.mxu0 0
    %5289 = vmatprep.subr.bf16.mxu0 0
    %5290 = vmatpush1.bf16.msra.mxu0 0
    %5291 = vmatprep.subr.bf16.mxu0 0
    %5292 = vmatpush1.bf16.msra.mxu0 0
    %5293 = vmatprep.subr.bf16.mxu0 0
    %5294 = vmatpush1.bf16.msra.mxu0 0
    %5295 = vmatprep.subr.bf16.mxu0 0
    %5296 = vmatpush1.bf16.msra.mxu0 0
    %5297 = vmatprep.subr.bf16.mxu0 0
    %5298 = vmatpush1.bf16.msra.mxu0 0
    %5299 = vmatprep.mubr.bf16.mxu0 0
    %5300 = vmatmul.mubr.bf16.gmra.mrb[0].mxu0 %v5265
    %v5301 = vpop.f32.mrb[0].mxu0
    %v5302 = vadd.f32 %v5238, %v5301
    %v5303 = vpop.f32.mrb[0].mxu0
    %v5304 = vpop.f32.mrb[0].mxu0
    %v5305 = vpop.f32.mrb[0].mxu0
    %5306 = vdwg.mxu0
    %v5307 = vmax.f32 %v5302, 0.0
    %v5308 = vand.u32 2147483647, %v5302
    %v5309 = vsub.f32 0.0, %v5308
    %v5310 = vmul.f32 %v5309, 1.442695
    %v5311 = vpow.pop %v5310
    %v5312 = vadd.f32 %v5311, 1.0
    %v5313 = vlog2.pop %v5312
    %v5314 = vmul.f32 %v5313, 0.6931472
    %v5315 = vmul.f32 -0.5, %v5311
    %v5316 = vadd.f32 %v5315, 1.0
    %v5317 = vmul.f32 %v5316, %v5311
    %v5318 = vand.u32 2147483647, %v5311
    %vm5319 = vcmp.lt.f32.partialorder %v5318, 0.0004427343
    %v5320 = vsel %vm5319, %v5317, %v5314
    %v5321 = vadd.f32 %v5307, %v5320
    %v5322 = vsub.f32 %v5321, 0.6931472
    %v5323 = vadd.f32 %v1142, %v2734
    %v5324 = vadd.f32 %v1143, %v2735
    %5325 = vst.msk [vmem:[#allocation106] sm:$0xff] %vm1170, %v5323
    %vm5326 = vcmask 257024
    %5327 = vst.msk [vmem:[#allocation106 + $0x8] sm:$0xf] %vm5326, %v5324
    %v5328 = vadd.f32 %v1144, %v4391
    %v5329 = vadd.f32 %v1145, %v4392
    %5330 = vst.msk [vmem:[#allocation107] sm:$0xff] %vm1170, %v5328
    %vm5331 = vcmask 254976
    %5332 = vst.msk [vmem:[#allocation107 + $0x8] sm:$0x3] %vm5331, %v5329
    %v5333 = vadd.f32 %v1140, %v3185
    %v5334 = vadd.f32 %v5333, %v4836
    %5335 = vst.msk [vmem:[#allocation109] sm:$0xff] %vm1170, %v5334
    %v5336 = vadd.f32 %v1141, %v3676
    %v5337 = vadd.f32 %v5336, %v5322
    %5338 = vst.msk [vmem:[#allocation110] sm:$0x3] %vm5331, %v5337
    // Predicated region
    $region546: #{megblock_forward.1} parent=1 // pred_check
      _
    $region547: #{megblock_forward.1} parent=1 // pred_check_branch
      %5340 = sbr.rel (0) target = $region549
    $region548: #{megblock_forward.1} parent=1 // pred_region
      %s5342 = ssub.s32 256, 256
      %5343 = vsyncadd [#allocation4], %s5342
      %s5344 = sshll.u32 [#allocation106], 4
      %s5345 = int_to_ptr.vmem [resolvable:$true] %s5344
      %5350 = dma.vmem_to_hbm [thread:$0]  %s5345, 256, %s137, [#allocation4], 128, 128, 8
    $region549: #{megblock_forward.1} parent=1 // pred_fallthru
      _
    // Predicated region
    $region550: #{megblock_forward.1} parent=1 // pred_check
      _
    $region551: #{megblock_forward.1} parent=1 // pred_check_branch
      %5352 = sbr.rel (0) target = $region553
    $region552: #{megblock_forward.1} parent=1 // pred_region
      %s5354 = ssub.s32 256, 256
      %5355 = vsyncadd [#allocation108], %s5354
      %s5356 = sshll.u32 [#allocation107], 4
      %s5357 = int_to_ptr.vmem [resolvable:$true] %s5356
      %5362 = dma.vmem_to_hbm [thread:$0]  %s5357, 256, %s139, [#allocation108], 128, 128, 8
    $region553: #{megblock_forward.1} parent=1 // pred_fallthru
      _
    // Predicated region
    $region554: #{megblock_forward.1} parent=1 // pred_check
      _
    $region555: #{megblock_forward.1} parent=1 // pred_check_branch
      %5364 = sbr.rel (0) target = $region557
    $region556: #{megblock_forward.1} parent=1 // pred_region
      %s5366 = ssub.s32 128, 128
      %5367 = vsyncadd [#allocation108], %s5366
      %s5369 = sshll.u32 [#allocation109], 4
      %s5370 = int_to_ptr.vmem [resolvable:$true] %s5369
      %5372 = dma.vmem_to_hbm [thread:$0]  %s5370, 128, %s141, [#allocation108]
    $region557: #{megblock_forward.1} parent=1 // pred_fallthru
      _
    // Predicated region
    $region558: #{megblock_forward.1} parent=1 // pred_check
      _
    $region559: #{megblock_forward.1} parent=1 // pred_check_branch
      %5374 = sbr.rel (0) target = $region561
    $region560: #{megblock_forward.1} parent=1 // pred_region
      %s5376 = ssub.s32 32, 32
      %5377 = vsyncadd [#allocation111], %s5376
      %s5379 = sshll.u32 [#allocation110], 4
      %s5380 = int_to_ptr.vmem [resolvable:$true] %s5379
      %5382 = dma.vmem_to_hbm [thread:$0]  %s5380, 32, %s143, [#allocation111]
    $region561: #{megblock_forward.1} parent=1 // pred_fallthru
      _
    // Predicated region
    $region562: #{megblock_forward.1} parent=1 // pred_check
      _
    $region563: #{megblock_forward.1} parent=1 // pred_check_branch
      %5384 = sbr.rel (0) target = $region565
    $region564: #{megblock_forward.1} parent=1 // pred_region
      %5385 = dma.done [#allocation4], 256
    $region565: #{megblock_forward.1} parent=1 // pred_fallthru
      _
    // Predicated region
    $region566: #{megblock_forward.1} parent=1 // pred_check
      _
    $region567: #{megblock_forward.1} parent=1 // pred_check_branch
      %5387 = sbr.rel (0) target = $region569
    $region568: #{megblock_forward.1} parent=1 // pred_region
      %5388 = dma.done [#allocation108], 256
    $region569: #{megblock_forward.1} parent=1 // pred_fallthru
      _
    // Predicated region
    $region570: #{megblock_forward.1} parent=1 // pred_check
      _
    $region571: #{megblock_forward.1} parent=1 // pred_check_branch
      %5390 = sbr.rel (0) target = $region573
    $region572: #{megblock_forward.1} parent=1 // pred_region
      %5391 = dma.done [#allocation108], 128
    $region573: #{megblock_forward.1} parent=1 // pred_fallthru
      _
    // Predicated region
    $region574: #{megblock_forward.1} parent=1 // pred_check
      _
    $region575: #{megblock_forward.1} parent=1 // pred_check_branch
      %5393 = sbr.rel (0) target = $region577
    $region576: #{megblock_forward.1} parent=1 // pred_region
      %5394 = dma.done [#allocation111], 32
    $region577: #{megblock_forward.1} parent=1 // pred_fallthru
      _
    %5395 = vsyncpa [#allocation3], 1
    %5396 = vsyncpa [#allocation6], 1
    %5397 = vsyncpa [#allocation9], 1
    %5398 = vsyncpa [#allocation12], 1
    %5399 = vsyncpa [#allocation15], 1
    %5400 = vsyncpa [#allocation18], 1
    %5401 = vsyncpa [#allocation21], 1
    %5402 = vsyncpa [#allocation24], 1
    %5403 = vsyncpa [#allocation27], 1
    %5404 = vsyncpa [#allocation30], 1
    %5405 = vsyncpa [#allocation33], 1
    %5406 = vsyncpa [#allocation36], 1
    %5407 = vsyncpa [#allocation39], 1
    %5408 = vsyncpa [#allocation42], 1
    %5409 = vsyncpa [#allocation45], 1
    %5410 = vsyncpa [#allocation48], 1
    %5411 = vsyncpa [#allocation51], 1
    %5412 = vsyncpa [#allocation54], 1
    %5413 = vsyncpa [#allocation57], 1
    %5414 = vsyncpa [#allocation60], 1
    %5415 = vsyncpa [#allocation63], 1
    %5416 = vsyncpa [#allocation66], 1
    %5417 = vsyncpa [#allocation69], 1
    %5418 = vsyncpa [#allocation72], 1
    %5419 = vsyncpa [#allocation75], 1
    %5420 = vsyncpa [#allocation78], 1
    %5421 = vsyncpa [#allocation81], 1
    %5422 = vsyncpa [#allocation84], 1
    %5423 = vsyncpa [#allocation87], 1
    %5424 = vsyncpa [#allocation90], 1
    %5425 = vsyncpa [#allocation93], 1
    %5426 = vsyncpa [#allocation96], 1
    %5427 = vsyncpa [#allocation99], 1
    %5428 = vsyncpa [#allocation102], 1
    %5429 = vsyncpa [#allocation105], 1
    %5430 = vsyncpa [#allocation4], 1
    %5431 = vsyncpa [#allocation108], 1
    %5432 = vsyncpa [#allocation111], 1

</llo_original>
